<compile_context>
chip_gen: v7x
topology: tpu7x:2x2x1
jax: 0.10.0
libtpu: 0.0.40
codegen_flags: <defaults>
</compile_context>

<pallas_src>
import functools
import math

import jax
import jax.numpy as jnp
from jax.experimental import pallas as pl
from jax.experimental.pallas import tpu as pltpu

NHEAD = 8
FF_DIM = 2048            # nn.TransformerEncoderLayer default dim_feedforward
LN_EPS = 1e-5
ITEM_TILE_N = 1024       # vocab tile; sweep 1024-2048 on v7x (3.2 TB/s HBM)
MASK_PAD = 128           # masked-token count bucket (sublane/lane aligned)
_VMEM_LIMIT = 32 * 1024 * 1024   # safe on v5e/v6e/v7x; raise on v5e/v6e if
                                 # larger groups_per_block tiles are used


def _round_up(x, m):
    return (x + m - 1) // m * m


def _pick_groups_per_block(s, b, target_rows=256):
    g = max(1, min(s, target_rows // max(b, 1)))
    while s % g:
        g -= 1
    return g


# -----------------------------------------------------------------------------
# Fused transformer encoder layer.
#   x: (S, B, E); one grid step processes `groups_per_block` groups.  Each
#   group (fixed s) attends only within itself -> exact block-diagonal
#   attention with no masks and no redundant FLOPs.
# -----------------------------------------------------------------------------
def _encoder_layer_kernel(x_ref, in_w_ref, in_b_ref, out_w_ref, out_b_ref,
                          ln1_g_ref, ln1_b_ref, ff1_w_ref, ff1_b_ref,
                          ff2_w_ref, ff2_b_ref, ln2_g_ref, ln2_b_ref,
                          o_ref, *, nhead, eps):
    g_blk, _, e = x_ref.shape
    dh = e // nhead
    scale = 1.0 / math.sqrt(dh)

    in_w = in_w_ref[...]
    in_b = in_b_ref[...]
    out_w = out_w_ref[...]
    out_b = out_b_ref[...]
    ff1_w = ff1_w_ref[...]
    ff1_b = ff1_b_ref[...]
    ff2_w = ff2_w_ref[...]
    ff2_b = ff2_b_ref[...]
    ln1_g = ln1_g_ref[...]
    ln1_b = ln1_b_ref[...]
    ln2_g = ln2_g_ref[...]
    ln2_b = ln2_b_ref[...]

    def layer_norm(y, gamma, beta):
        mu = jnp.mean(y, axis=-1, keepdims=True)
        yc = y - mu
        var = jnp.mean(yc * yc, axis=-1, keepdims=True)
        return yc * jax.lax.rsqrt(var + eps) * gamma + beta

    for g in range(g_blk):
        x = x_ref[g]                                       # (B, E)  f32
        xb = x.astype(jnp.bfloat16)

        # ---- fused QKV projection (bf16 MXU, f32 accumulate) ----------------
        qkv = jnp.dot(xb, in_w, preferred_element_type=jnp.float32) + in_b
        q = qkv[:, :e]
        k = qkv[:, e:2 * e]
        v = qkv[:, 2 * e:]
        qb = (q * scale).astype(jnp.bfloat16)
        kb = k.astype(jnp.bfloat16)
        vb = v.astype(jnp.bfloat16)

        # ---- per-head block-diagonal attention (exact, no masks) ------------
        head_outs = []
        for h in range(nhead):
            lo = h * dh
            s_h = jnp.einsum("md,nd->mn", qb[:, lo:lo + dh], kb[:, lo:lo + dh],
                             preferred_element_type=jnp.float32)    # (B, B)
            s_h = s_h - jnp.max(s_h, axis=-1, keepdims=True)
            p_h = jnp.exp(s_h)
            p_h = p_h * pl.reciprocal(jnp.sum(p_h, axis=-1, keepdims=True),
                                      approx=True)
            head_outs.append(jnp.dot(p_h.astype(jnp.bfloat16),
                                     vb[:, lo:lo + dh],
                                     preferred_element_type=jnp.float32))
        attn = jnp.concatenate(head_outs, axis=-1)                  # (B, E)
        attn = jnp.dot(attn.astype(jnp.bfloat16), out_w,
                       preferred_element_type=jnp.float32) + out_b

        x1 = layer_norm(x + attn, ln1_g, ln1_b)                     # norm1

        # ---- feed-forward ----------------------------------------------------
        h1 = jnp.dot(x1.astype(jnp.bfloat16), ff1_w,
                     preferred_element_type=jnp.float32) + ff1_b
        h1 = jnp.maximum(h1, 0.0)
        h2 = jnp.dot(h1.astype(jnp.bfloat16), ff2_w,
                     preferred_element_type=jnp.float32) + ff2_b

        o_ref[g] = layer_norm(x1 + h2, ln2_g, ln2_b)                # norm2


def transformer_encoder_layer(x_sbe, p, groups_per_block):
    s, b, e = x_sbe.shape
    g = groups_per_block
    assert s % g == 0, "groups_per_block must divide the group count"

    kernel = functools.partial(_encoder_layer_kernel, nhead=NHEAD, eps=LN_EPS)

    def wspec(arr):
        nd = arr.ndim
        return pl.BlockSpec(arr.shape, lambda i, _nd=nd: (0,) * _nd)

    weights = (p["in_w"], p["in_b"], p["out_w"], p["out_b"],
               p["ln1_g"], p["ln1_b"], p["ff1_w"], p["ff1_b"],
               p["ff2_w"], p["ff2_b"], p["ln2_g"], p["ln2_b"])

    return pl.pallas_call(
        kernel,
        out_shape=jax.ShapeDtypeStruct((s, b, e), jnp.float32),
        grid_spec=pltpu.PrefetchScalarGridSpec(
            num_scalar_prefetch=0,
            grid=(s // g,),
            in_specs=[pl.BlockSpec((g, b, e), lambda i: (i, 0, 0))]
                     + [wspec(w) for w in weights],
            out_specs=pl.BlockSpec((g, b, e), lambda i: (i, 0, 0))),
        compiler_params=pltpu.CompilerParams(
            dimension_semantics=("parallel",),
            vmem_limit_bytes=_VMEM_LIMIT),
    )(x_sbe, *weights)


# -----------------------------------------------------------------------------
# Item prediction head: lane-dense, vocab-tiled weight streaming (bf16 weight
# pre-padded at init; the gathered token rows stay resident across the grid).
# -----------------------------------------------------------------------------
def _item_head_kernel(x_ref, w_ref, b_ref, o_ref):
    o_ref[...] = (jnp.dot(x_ref[...], w_ref[...],
                          preferred_element_type=jnp.float32) + b_ref[...])


def item_head(x_bf16, w_pad, b_pad, num_items, tile_n=ITEM_TILE_N):
    m, e = x_bf16.shape
    vocab_pad = w_pad.shape[1]
    tile_n = min(tile_n, vocab_pad)
    grid = (vocab_pad // tile_n,)
    return pl.pallas_call(
        _item_head_kernel,
        out_shape=jax.ShapeDtypeStruct((m, num_items), jnp.float32),
        grid_spec=pltpu.PrefetchScalarGridSpec(
            num_scalar_prefetch=0,
            grid=grid,
            in_specs=[pl.BlockSpec((m, e), lambda j: (0, 0)),
                      pl.BlockSpec((e, tile_n), lambda j: (0, j)),
                      pl.BlockSpec((1, tile_n), lambda j: (0, j))],
            out_specs=pl.BlockSpec((m, tile_n), lambda j: (0, j))),
        compiler_params=pltpu.CompilerParams(
            dimension_semantics=("parallel",),
            vmem_limit_bytes=_VMEM_LIMIT),
    )(x_bf16, w_pad, b_pad)


# -------------------------------------------------------------- params ------
def init_params(key, num_users, num_items, embed_dim, max_seq_len,
                user_attr_num, user_attr_ft_num, num_layers=2):
    keys = iter(jax.random.split(key, 64))
    E = embed_dim

    def nrm(shape, scale=0.02):
        return (scale * jax.random.normal(next(keys), shape)).astype(jnp.float32)

    vocab_pad = _round_up(num_items, ITEM_TILE_N)
    item_w = nrm((E, num_items))
    item_b = nrm((1, num_items), scale=0.02)
    item_head_w = jnp.pad(
        item_w, ((0, 0), (0, vocab_pad - num_items))).astype(jnp.bfloat16)
    item_head_b = jnp.pad(item_b, ((0, 0), (0, vocab_pad - num_items)))

    params = dict(
        user_emb=nrm((num_users, E)),   # only used for the range check (as in torch)
        item_emb=nrm((num_items, E)),
        pos_emb=nrm((max_seq_len, E)),
        item_head_w=item_head_w,        # (E, vocab_pad) bf16, pre-padded
        item_head_b=item_head_b,        # (1, vocab_pad) f32
        # user_attr_ft_num independent heads packed column-wise: (E, F*A)
        attr_w=nrm((E, user_attr_ft_num * user_attr_num)),
        attr_b=nrm((user_attr_ft_num * user_attr_num,), scale=0.02),
        layers=[],
    )
    for _ in range(num_layers):
        params["layers"].append(dict(
            in_w=nrm((E, 3 * E)).astype(jnp.bfloat16),
            in_b=nrm((1, 3 * E), scale=0.01),
            out_w=nrm((E, E)).astype(jnp.bfloat16),
            out_b=nrm((1, E), scale=0.01),
            ln1_g=jnp.ones((1, E), jnp.float32),
            ln1_b=jnp.zeros((1, E), jnp.float32),
            ff1_w=nrm((E, FF_DIM)).astype(jnp.bfloat16),
            ff1_b=nrm((1, FF_DIM), scale=0.01),
            ff2_w=nrm((FF_DIM, E)).astype(jnp.bfloat16),
            ff2_b=nrm((1, E), scale=0.01),
            ln2_g=jnp.ones((1, E), jnp.float32),
            ln2_b=jnp.zeros((1, E), jnp.float32),
        ))
    return params


# ------------------------------------------------------------- forward ------
@functools.partial(jax.jit, static_argnames=("user_attr_num",
                                              "user_attr_ft_num",
                                              "groups_per_block"))
def _forward_core(params, item_seq, gather_idx, *, user_attr_num,
                  user_attr_ft_num, groups_per_block):
    b, s = item_seq.shape
    e = params["item_emb"].shape[1]
    num_items = params["item_emb"].shape[0]

    # Embedding lookups (XLA gather glue), built directly in (S, B, E) layout.
    x = jnp.take(params["item_emb"], item_seq.T, axis=0)            # (S, B, E)
    x = x + params["pos_emb"][:s][:, None, :]

    for lp in params["layers"]:
        x = transformer_encoder_layer(x, lp, groups_per_block)

    # masked-token item logits (gather padded to a static 128-bucket)
    x_flat = x.reshape(s * b, e)
    masked_tokens = jnp.take(x_flat, gather_idx, axis=0).astype(jnp.bfloat16)
    masked_item_logits = item_head(masked_tokens, params["item_head_w"],
                                   params["item_head_b"], num_items)

    # user embedding = mean over the sequence dim; tiny attr heads -> XLA
    user_emb = jnp.mean(x, axis=0)                                   # (B, E)
    attr = user_emb @ params["attr_w"] + params["attr_b"]
    user_attr_logits = attr.reshape(b, user_attr_ft_num, user_attr_num)
    return masked_item_logits, user_attr_logits


def pretrain_rec_forward(params, user_ids, item_seq, mask_positions,
                         user_attr_num, user_attr_ft_num,
                         groups_per_block=None):
    num_items = params["item_emb"].shape[0]
    num_users = params["user_emb"].shape[0]
    b, s = item_seq.shape

    if groups_per_block is None:
        groups_per_block = _pick_groups_per_block(s, b)

    # Single host round trip (needed anyway for the PyTorch-style raise); it
    # also supplies the masked-token count.  The gather size is bucketed to a
    # multiple of 128 so _forward_core only recompiles per bucket, not per
    # batch, and every pallas_call dispatches asynchronously.
    max_item, max_user, n_masked = jax.device_get(
        (jnp.max(item_seq), jnp.max(user_ids),
         jnp.sum(mask_positions.astype(jnp.int32))))
    n_masked = int(n_masked)
    if int(max_item) >= num_items:
        raise ValueError(
            f"item_seq contains index {int(max_item)} which is out of range "
            f"for item_embedding with size {num_items}")
    if int(max_user) >= num_users:
        raise ValueError(
            f"user_ids contains index {int(max_user)} which is out of range "
            f"for user_embedding with size {num_users}")

    pad_n = _round_up(max(n_masked, 1), MASK_PAD)
    rows, cols = jnp.nonzero(mask_positions, size=pad_n, fill_value=0)
    gather_idx = cols.astype(jnp.int32) * b + rows.astype(jnp.int32)  # (s,b)-major

    logits_pad, user_attr_logits = _forward_core(
        params, item_seq, gather_idx,
        user_attr_num=user_attr_num, user_attr_ft_num=user_attr_ft_num,
        groups_per_block=groups_per_block)
    return logits_pad[:n_masked], user_attr_logits


# ------------------------------------------------ plain-JAX reference -------
def _reference_forward(params, item_seq, mask_positions,
                       user_attr_num, user_attr_ft_num):
    bsz, s = item_seq.shape
    e = params["item_emb"].shape[1]
    num_items = params["item_emb"].shape[0]
    h, dh = NHEAD, e // NHEAD
    x = jnp.take(params["item_emb"], item_seq, axis=0) + params["pos_emb"][:s][None]
    for p in params["layers"]:
        xf = x.reshape(bsz * s, e)                 # (L*N, E): L=bsz (seq), N=s
        qkv = xf @ p["in_w"].astype(jnp.float32) + p["in_b"]
        q, k, v = qkv[:, :e], qkv[:, e:2 * e], qkv[:, 2 * e:]

        def heads(t):
            return t.reshape(bsz, s, h, dh).transpose(1, 2, 0, 3)   # (N,H,L,Dh)

        qh = heads(q) / math.sqrt(dh)
        sc = jnp.einsum("nhld,nhmd->nhlm", qh, heads(k))
        pr = jax.nn.softmax(sc, axis=-1)
        o = jnp.einsum("nhlm,nhmd->nhld", pr, heads(v))
        o = o.transpose(2, 0, 1, 3).reshape(bsz * s, e)
        o = o @ p["out_w"].astype(jnp.float32) + p["out_b"]

        def ln(y, gm, bt):
            mu = y.mean(-1, keepdims=True)
            var = ((y - mu) ** 2).mean(-1, keepdims=True)
            return (y - mu) * jax.lax.rsqrt(var + LN_EPS) * gm + bt

        x1 = ln(xf + o, p["ln1_g"], p["ln1_b"])
        ff = (jnp.maximum(x1 @ p["ff1_w"].astype(jnp.float32) + p["ff1_b"], 0.0)
              @ p["ff2_w"].astype(jnp.float32) + p["ff2_b"])
        x = ln(x1 + ff, p["ln2_g"], p["ln2_b"]).reshape(bsz, s, e)
    rows, cols = jnp.nonzero(mask_positions, size=int(mask_positions.sum()))
    mt = x[rows, cols]
    iw = params["item_head_w"].astype(jnp.float32)[:, :num_items]
    ib = params["item_head_b"][0, :num_items]
    mil = mt @ iw + ib
    ue = x.mean(axis=1)
    ual = (ue @ params["attr_w"] + params["attr_b"]).reshape(
        bsz, user_attr_ft_num, user_attr_num)
    return mil, ual


if __name__ == "__main__":
    num_users, num_items = 50, 2000
    embed_dim, max_seq_len = 64, 16
    user_attr_num, user_attr_ft_num = 6, 3
    B, S = 4, 8

    root = jax.random.PRNGKey(0)
    pkey, k_user, k_item = jax.random.split(root, 3)
    params = init_params(pkey, num_users, num_items, embed_dim, max_seq_len,
                         user_attr_num, user_attr_ft_num)

    user_ids = jax.random.randint(k_user, (B,), 0, num_users, dtype=jnp.int32)
    item_seq = jax.random.randint(k_item, (B, S), 0, num_items, dtype=jnp.int32)
    mask_positions = (jnp.zeros((B, S), dtype=bool)
                      .at[:, 2].set(True)
                      .at[0, 5].set(True))

    masked_item_logits, user_attr_logits = pretrain_rec_forward(
        params, user_ids, item_seq, mask_positions,
        user_attr_num, user_attr_ft_num, groups_per_block=2)
    jax.block_until_ready((masked_item_logits, user_attr_logits))

    n_masked = int(mask_positions.sum())
    assert masked_item_logits.shape == (n_masked, num_items)
    assert user_attr_logits.shape == (B, user_attr_ft_num, user_attr_num)
    assert bool(jnp.all(jnp.isfinite(masked_item_logits)))
    assert bool(jnp.all(jnp.isfinite(user_attr_logits)))

    # cross-check the fused kernels against a plain-JAX reference
    with jax.default_matmul_precision("float32"):
        ref_item, ref_attr = _reference_forward(
            params, item_seq, mask_positions, user_attr_num, user_attr_ft_num)
    assert bool(jnp.allclose(masked_item_logits, ref_item, rtol=2e-2, atol=2e-2))
    assert bool(jnp.allclose(user_attr_logits, ref_attr, rtol=2e-2, atol=2e-2))

    print("KERNEL_OK")
</pallas_src>

<mosaic_0001>
module attributes {stable_mosaic.version = 11 : i64} {
  func.func @_encoder_layer_kernel(%arg0: i32, %arg1: memref<2x4x64xf32, #tpu.memory_space<vmem>>, %arg2: memref<64x192xbf16, #tpu.memory_space<vmem>>, %arg3: memref<1x192xf32, #tpu.memory_space<vmem>>, %arg4: memref<64x64xbf16, #tpu.memory_space<vmem>>, %arg5: memref<1x64xf32, #tpu.memory_space<vmem>>, %arg6: memref<1x64xf32, #tpu.memory_space<vmem>>, %arg7: memref<1x64xf32, #tpu.memory_space<vmem>>, %arg8: memref<64x2048xbf16, #tpu.memory_space<vmem>>, %arg9: memref<1x2048xf32, #tpu.memory_space<vmem>>, %arg10: memref<2048x64xbf16, #tpu.memory_space<vmem>>, %arg11: memref<1x64xf32, #tpu.memory_space<vmem>>, %arg12: memref<1x64xf32, #tpu.memory_space<vmem>>, %arg13: memref<1x64xf32, #tpu.memory_space<vmem>>, %arg14: memref<2x4x64xf32, #tpu.memory_space<vmem>>) attributes {dimension_semantics = [#tpu.dimension_semantics<parallel>], iteration_bounds = array<i64: 4>, scalar_prefetch = 0 : i64, scratch_operands = 0 : i64, tpu.core_type = #tpu.core_type<tc>, window_params = [{transform_indices = @transform_0, window_bounds = array<i64: 2, 4, 64>}, {pipeline_mode = #tpu.pipeline_mode<synchronous>, transform_indices = @transform_1, window_bounds = array<i64: 64, 192>}, {pipeline_mode = #tpu.pipeline_mode<synchronous>, transform_indices = @transform_2, window_bounds = array<i64: 1, 192>}, {pipeline_mode = #tpu.pipeline_mode<synchronous>, transform_indices = @transform_3, window_bounds = array<i64: 64, 64>}, {pipeline_mode = #tpu.pipeline_mode<synchronous>, transform_indices = @transform_4, window_bounds = array<i64: 1, 64>}, {pipeline_mode = #tpu.pipeline_mode<synchronous>, transform_indices = @transform_5, window_bounds = array<i64: 1, 64>}, {pipeline_mode = #tpu.pipeline_mode<synchronous>, transform_indices = @transform_6, window_bounds = array<i64: 1, 64>}, {pipeline_mode = #tpu.pipeline_mode<synchronous>, transform_indices = @transform_7, window_bounds = array<i64: 64, 2048>}, {pipeline_mode = #tpu.pipeline_mode<synchronous>, transform_indices = @transform_8, window_bounds = array<i64: 1, 2048>}, {pipeline_mode = #tpu.pipeline_mode<synchronous>, transform_indices = @transform_9, window_bounds = array<i64: 2048, 64>}, {pipeline_mode = #tpu.pipeline_mode<synchronous>, transform_indices = @transform_10, window_bounds = array<i64: 1, 64>}, {pipeline_mode = #tpu.pipeline_mode<synchronous>, transform_indices = @transform_11, window_bounds = array<i64: 1, 64>}, {pipeline_mode = #tpu.pipeline_mode<synchronous>, transform_indices = @transform_12, window_bounds = array<i64: 1, 64>}, {transform_indices = @transform_13, window_bounds = array<i64: 2, 4, 64>}]} {
    %c0 = arith.constant 0 : index
    %c0_0 = arith.constant 0 : index
    %0 = vector.load %arg2[%c0, %c0_0] : memref<64x192xbf16, #tpu.memory_space<vmem>>, vector<64x192xbf16>
    %c0_1 = arith.constant 0 : index
    %c0_2 = arith.constant 0 : index
    %1 = vector.load %arg3[%c0_1, %c0_2] : memref<1x192xf32, #tpu.memory_space<vmem>>, vector<1x192xf32>
    %c0_3 = arith.constant 0 : index
    %c0_4 = arith.constant 0 : index
    %2 = vector.load %arg4[%c0_3, %c0_4] : memref<64x64xbf16, #tpu.memory_space<vmem>>, vector<64x64xbf16>
    %c0_5 = arith.constant 0 : index
    %c0_6 = arith.constant 0 : index
    %3 = vector.load %arg5[%c0_5, %c0_6] : memref<1x64xf32, #tpu.memory_space<vmem>>, vector<1x64xf32>
    %c0_7 = arith.constant 0 : index
    %c0_8 = arith.constant 0 : index
    %4 = vector.load %arg8[%c0_7, %c0_8] : memref<64x2048xbf16, #tpu.memory_space<vmem>>, vector<64x2048xbf16>
    %c0_9 = arith.constant 0 : index
    %c0_10 = arith.constant 0 : index
    %5 = vector.load %arg9[%c0_9, %c0_10] : memref<1x2048xf32, #tpu.memory_space<vmem>>, vector<1x2048xf32>
    %c0_11 = arith.constant 0 : index
    %c0_12 = arith.constant 0 : index
    %6 = vector.load %arg10[%c0_11, %c0_12] : memref<2048x64xbf16, #tpu.memory_space<vmem>>, vector<2048x64xbf16>
    %c0_13 = arith.constant 0 : index
    %c0_14 = arith.constant 0 : index
    %7 = vector.load %arg11[%c0_13, %c0_14] : memref<1x64xf32, #tpu.memory_space<vmem>>, vector<1x64xf32>
    %c0_15 = arith.constant 0 : index
    %c0_16 = arith.constant 0 : index
    %8 = vector.load %arg6[%c0_15, %c0_16] : memref<1x64xf32, #tpu.memory_space<vmem>>, vector<1x64xf32>
    %c0_17 = arith.constant 0 : index
    %c0_18 = arith.constant 0 : index
    %9 = vector.load %arg7[%c0_17, %c0_18] : memref<1x64xf32, #tpu.memory_space<vmem>>, vector<1x64xf32>
    %c0_19 = arith.constant 0 : index
    %c0_20 = arith.constant 0 : index
    %10 = vector.load %arg12[%c0_19, %c0_20] : memref<1x64xf32, #tpu.memory_space<vmem>>, vector<1x64xf32>
    %c0_21 = arith.constant 0 : index
    %c0_22 = arith.constant 0 : index
    %11 = vector.load %arg13[%c0_21, %c0_22] : memref<1x64xf32, #tpu.memory_space<vmem>>, vector<1x64xf32>
    %c0_23 = arith.constant 0 : index
    %c0_24 = arith.constant 0 : index
    %c0_25 = arith.constant 0 : index
    %12 = vector.load %arg1[%c0_23, %c0_24, %c0_25] : memref<2x4x64xf32, #tpu.memory_space<vmem>>, vector<1x4x64xf32>
    %13 = vector.shape_cast %12 : vector<1x4x64xf32> to vector<4x64xf32>
    %14 = arith.truncf %13 : vector<4x64xf32> to vector<4x64xbf16>
    %cst = arith.constant dense<0.000000e+00> : vector<4x192xf32>
    %15 = tpu.matmul %14, %0, %cst {dimension_numbers = #tpu.dot_dimension_numbers<[1], [0], [0], [1], [0, 0, 1, 1], [], []>} : vector<4x64xbf16>, vector<64x192xbf16>, vector<4x192xf32> -> vector<4x192xf32>
    %16 = vector.broadcast %1 : vector<1x192xf32> to vector<4x192xf32>
    %17 = arith.addf %15, %16 : vector<4x192xf32>
    %18 = vector.extract_strided_slice %17 {offsets = [0, 0], sizes = [4, 64], strides = [1, 1]} : vector<4x192xf32> to vector<4x64xf32>
    %19 = vector.extract_strided_slice %17 {offsets = [0, 64], sizes = [4, 64], strides = [1, 1]} : vector<4x192xf32> to vector<4x64xf32>
    %20 = vector.extract_strided_slice %17 {offsets = [0, 128], sizes = [4, 64], strides = [1, 1]} : vector<4x192xf32> to vector<4x64xf32>
    %cst_26 = arith.constant 0.353553385 : f32
    %21 = vector.broadcast %cst_26 : f32 to vector<4x64xf32>
    %22 = arith.mulf %18, %21 : vector<4x64xf32>
    %23 = arith.truncf %22 : vector<4x64xf32> to vector<4x64xbf16>
    %24 = arith.truncf %19 : vector<4x64xf32> to vector<4x64xbf16>
    %25 = arith.truncf %20 : vector<4x64xf32> to vector<4x64xbf16>
    %26 = vector.extract_strided_slice %23 {offsets = [0, 0], sizes = [4, 8], strides = [1, 1]} : vector<4x64xbf16> to vector<4x8xbf16>
    %27 = vector.extract_strided_slice %24 {offsets = [0, 0], sizes = [4, 8], strides = [1, 1]} : vector<4x64xbf16> to vector<4x8xbf16>
    "tpu.trace_start"() <{level = 10 : i32, message = "md,nd->mn"}> : () -> ()
    %cst_27 = arith.constant dense<0.000000e+00> : vector<4x4xf32>
    %28 = tpu.matmul %26, %27, %cst_27 {dimension_numbers = #tpu.dot_dimension_numbers<[1], [1], [0], [0], [0, 0, 1, 0], [], []>} : vector<4x8xbf16>, vector<4x8xbf16>, vector<4x4xf32> -> vector<4x4xf32>
    "tpu.trace_stop"() : () -> ()
    %cst_28 = arith.constant dense<0xFF800000> : vector<4xf32>
    %29 = vector.multi_reduction <maximumf>, %28, %cst_28 [1] : vector<4x4xf32> to vector<4xf32>
    %30 = vector.shape_cast %29 : vector<4xf32> to vector<4x1xf32>
    %31 = vector.broadcast %30 : vector<4x1xf32> to vector<4x4xf32>
    %32 = arith.subf %28, %31 : vector<4x4xf32>
    %33 = math.exp %32 : vector<4x4xf32>
    %cst_29 = arith.constant dense<0.000000e+00> : vector<4xf32>
    %34 = vector.multi_reduction <add>, %33, %cst_29 [1] : vector<4x4xf32> to vector<4xf32>
    %35 = vector.shape_cast %34 : vector<4xf32> to vector<4x1xf32>
    %36 = tpu.reciprocal %35 {approx = true} : vector<4x1xf32> -> vector<4x1xf32>
    %37 = vector.broadcast %36 : vector<4x1xf32> to vector<4x4xf32>
    %38 = arith.mulf %33, %37 : vector<4x4xf32>
    %39 = arith.truncf %38 : vector<4x4xf32> to vector<4x4xbf16>
    %40 = vector.extract_strided_slice %25 {offsets = [0, 0], sizes = [4, 8], strides = [1, 1]} : vector<4x64xbf16> to vector<4x8xbf16>
    %cst_30 = arith.constant dense<0.000000e+00> : vector<4x8xf32>
    %41 = tpu.matmul %39, %40, %cst_30 {dimension_numbers = #tpu.dot_dimension_numbers<[1], [0], [0], [1], [0, 0, 1, 1], [], []>} : vector<4x4xbf16>, vector<4x8xbf16>, vector<4x8xf32> -> vector<4x8xf32>
    %42 = vector.extract_strided_slice %23 {offsets = [0, 8], sizes = [4, 8], strides = [1, 1]} : vector<4x64xbf16> to vector<4x8xbf16>
    %43 = vector.extract_strided_slice %24 {offsets = [0, 8], sizes = [4, 8], strides = [1, 1]} : vector<4x64xbf16> to vector<4x8xbf16>
    "tpu.trace_start"() <{level = 10 : i32, message = "md,nd->mn"}> : () -> ()
    %cst_31 = arith.constant dense<0.000000e+00> : vector<4x4xf32>
    %44 = tpu.matmul %42, %43, %cst_31 {dimension_numbers = #tpu.dot_dimension_numbers<[1], [1], [0], [0], [0, 0, 1, 0], [], []>} : vector<4x8xbf16>, vector<4x8xbf16>, vector<4x4xf32> -> vector<4x4xf32>
    "tpu.trace_stop"() : () -> ()
    %cst_32 = arith.constant dense<0xFF800000> : vector<4xf32>
    %45 = vector.multi_reduction <maximumf>, %44, %cst_32 [1] : vector<4x4xf32> to vector<4xf32>
    %46 = vector.shape_cast %45 : vector<4xf32> to vector<4x1xf32>
    %47 = vector.broadcast %46 : vector<4x1xf32> to vector<4x4xf32>
    %48 = arith.subf %44, %47 : vector<4x4xf32>
    %49 = math.exp %48 : vector<4x4xf32>
    %cst_33 = arith.constant dense<0.000000e+00> : vector<4xf32>
    %50 = vector.multi_reduction <add>, %49, %cst_33 [1] : vector<4x4xf32> to vector<4xf32>
    %51 = vector.shape_cast %50 : vector<4xf32> to vector<4x1xf32>
    %52 = tpu.reciprocal %51 {approx = true} : vector<4x1xf32> -> vector<4x1xf32>
    %53 = vector.broadcast %52 : vector<4x1xf32> to vector<4x4xf32>
    %54 = arith.mulf %49, %53 : vector<4x4xf32>
    %55 = arith.truncf %54 : vector<4x4xf32> to vector<4x4xbf16>
    %56 = vector.extract_strided_slice %25 {offsets = [0, 8], sizes = [4, 8], strides = [1, 1]} : vector<4x64xbf16> to vector<4x8xbf16>
    %cst_34 = arith.constant dense<0.000000e+00> : vector<4x8xf32>
    %57 = tpu.matmul %55, %56, %cst_34 {dimension_numbers = #tpu.dot_dimension_numbers<[1], [0], [0], [1], [0, 0, 1, 1], [], []>} : vector<4x4xbf16>, vector<4x8xbf16>, vector<4x8xf32> -> vector<4x8xf32>
    %58 = vector.extract_strided_slice %23 {offsets = [0, 16], sizes = [4, 8], strides = [1, 1]} : vector<4x64xbf16> to vector<4x8xbf16>
    %59 = vector.extract_strided_slice %24 {offsets = [0, 16], sizes = [4, 8], strides = [1, 1]} : vector<4x64xbf16> to vector<4x8xbf16>
    "tpu.trace_start"() <{level = 10 : i32, message = "md,nd->mn"}> : () -> ()
    %cst_35 = arith.constant dense<0.000000e+00> : vector<4x4xf32>
    %60 = tpu.matmul %58, %59, %cst_35 {dimension_numbers = #tpu.dot_dimension_numbers<[1], [1], [0], [0], [0, 0, 1, 0], [], []>} : vector<4x8xbf16>, vector<4x8xbf16>, vector<4x4xf32> -> vector<4x4xf32>
    "tpu.trace_stop"() : () -> ()
    %cst_36 = arith.constant dense<0xFF800000> : vector<4xf32>
    %61 = vector.multi_reduction <maximumf>, %60, %cst_36 [1] : vector<4x4xf32> to vector<4xf32>
    %62 = vector.shape_cast %61 : vector<4xf32> to vector<4x1xf32>
    %63 = vector.broadcast %62 : vector<4x1xf32> to vector<4x4xf32>
    %64 = arith.subf %60, %63 : vector<4x4xf32>
    %65 = math.exp %64 : vector<4x4xf32>
    %cst_37 = arith.constant dense<0.000000e+00> : vector<4xf32>
    %66 = vector.multi_reduction <add>, %65, %cst_37 [1] : vector<4x4xf32> to vector<4xf32>
    %67 = vector.shape_cast %66 : vector<4xf32> to vector<4x1xf32>
    %68 = tpu.reciprocal %67 {approx = true} : vector<4x1xf32> -> vector<4x1xf32>
    %69 = vector.broadcast %68 : vector<4x1xf32> to vector<4x4xf32>
    %70 = arith.mulf %65, %69 : vector<4x4xf32>
    %71 = arith.truncf %70 : vector<4x4xf32> to vector<4x4xbf16>
    %72 = vector.extract_strided_slice %25 {offsets = [0, 16], sizes = [4, 8], strides = [1, 1]} : vector<4x64xbf16> to vector<4x8xbf16>
    %cst_38 = arith.constant dense<0.000000e+00> : vector<4x8xf32>
    %73 = tpu.matmul %71, %72, %cst_38 {dimension_numbers = #tpu.dot_dimension_numbers<[1], [0], [0], [1], [0, 0, 1, 1], [], []>} : vector<4x4xbf16>, vector<4x8xbf16>, vector<4x8xf32> -> vector<4x8xf32>
    %74 = vector.extract_strided_slice %23 {offsets = [0, 24], sizes = [4, 8], strides = [1, 1]} : vector<4x64xbf16> to vector<4x8xbf16>
    %75 = vector.extract_strided_slice %24 {offsets = [0, 24], sizes = [4, 8], strides = [1, 1]} : vector<4x64xbf16> to vector<4x8xbf16>
    "tpu.trace_start"() <{level = 10 : i32, message = "md,nd->mn"}> : () -> ()
    %cst_39 = arith.constant dense<0.000000e+00> : vector<4x4xf32>
    %76 = tpu.matmul %74, %75, %cst_39 {dimension_numbers = #tpu.dot_dimension_numbers<[1], [1], [0], [0], [0, 0, 1, 0], [], []>} : vector<4x8xbf16>, vector<4x8xbf16>, vector<4x4xf32> -> vector<4x4xf32>
    "tpu.trace_stop"() : () -> ()
    %cst_40 = arith.constant dense<0xFF800000> : vector<4xf32>
    %77 = vector.multi_reduction <maximumf>, %76, %cst_40 [1] : vector<4x4xf32> to vector<4xf32>
    %78 = vector.shape_cast %77 : vector<4xf32> to vector<4x1xf32>
    %79 = vector.broadcast %78 : vector<4x1xf32> to vector<4x4xf32>
    %80 = arith.subf %76, %79 : vector<4x4xf32>
    %81 = math.exp %80 : vector<4x4xf32>
    %cst_41 = arith.constant dense<0.000000e+00> : vector<4xf32>
    %82 = vector.multi_reduction <add>, %81, %cst_41 [1] : vector<4x4xf32> to vector<4xf32>
    %83 = vector.shape_cast %82 : vector<4xf32> to vector<4x1xf32>
    %84 = tpu.reciprocal %83 {approx = true} : vector<4x1xf32> -> vector<4x1xf32>
    %85 = vector.broadcast %84 : vector<4x1xf32> to vector<4x4xf32>
    %86 = arith.mulf %81, %85 : vector<4x4xf32>
    %87 = arith.truncf %86 : vector<4x4xf32> to vector<4x4xbf16>
    %88 = vector.extract_strided_slice %25 {offsets = [0, 24], sizes = [4, 8], strides = [1, 1]} : vector<4x64xbf16> to vector<4x8xbf16>
    %cst_42 = arith.constant dense<0.000000e+00> : vector<4x8xf32>
    %89 = tpu.matmul %87, %88, %cst_42 {dimension_numbers = #tpu.dot_dimension_numbers<[1], [0], [0], [1], [0, 0, 1, 1], [], []>} : vector<4x4xbf16>, vector<4x8xbf16>, vector<4x8xf32> -> vector<4x8xf32>
    %90 = vector.extract_strided_slice %23 {offsets = [0, 32], sizes = [4, 8], strides = [1, 1]} : vector<4x64xbf16> to vector<4x8xbf16>
    %91 = vector.extract_strided_slice %24 {offsets = [0, 32], sizes = [4, 8], strides = [1, 1]} : vector<4x64xbf16> to vector<4x8xbf16>
    "tpu.trace_start"() <{level = 10 : i32, message = "md,nd->mn"}> : () -> ()
    %cst_43 = arith.constant dense<0.000000e+00> : vector<4x4xf32>
    %92 = tpu.matmul %90, %91, %cst_43 {dimension_numbers = #tpu.dot_dimension_numbers<[1], [1], [0], [0], [0, 0, 1, 0], [], []>} : vector<4x8xbf16>, vector<4x8xbf16>, vector<4x4xf32> -> vector<4x4xf32>
    "tpu.trace_stop"() : () -> ()
    %cst_44 = arith.constant dense<0xFF800000> : vector<4xf32>
    %93 = vector.multi_reduction <maximumf>, %92, %cst_44 [1] : vector<4x4xf32> to vector<4xf32>
    %94 = vector.shape_cast %93 : vector<4xf32> to vector<4x1xf32>
    %95 = vector.broadcast %94 : vector<4x1xf32> to vector<4x4xf32>
    %96 = arith.subf %92, %95 : vector<4x4xf32>
    %97 = math.exp %96 : vector<4x4xf32>
    %cst_45 = arith.constant dense<0.000000e+00> : vector<4xf32>
    %98 = vector.multi_reduction <add>, %97, %cst_45 [1] : vector<4x4xf32> to vector<4xf32>
    %99 = vector.shape_cast %98 : vector<4xf32> to vector<4x1xf32>
    %100 = tpu.reciprocal %99 {approx = true} : vector<4x1xf32> -> vector<4x1xf32>
    %101 = vector.broadcast %100 : vector<4x1xf32> to vector<4x4xf32>
    %102 = arith.mulf %97, %101 : vector<4x4xf32>
    %103 = arith.truncf %102 : vector<4x4xf32> to vector<4x4xbf16>
    %104 = vector.extract_strided_slice %25 {offsets = [0, 32], sizes = [4, 8], strides = [1, 1]} : vector<4x64xbf16> to vector<4x8xbf16>
    %cst_46 = arith.constant dense<0.000000e+00> : vector<4x8xf32>
    %105 = tpu.matmul %103, %104, %cst_46 {dimension_numbers = #tpu.dot_dimension_numbers<[1], [0], [0], [1], [0, 0, 1, 1], [], []>} : vector<4x4xbf16>, vector<4x8xbf16>, vector<4x8xf32> -> vector<4x8xf32>
    %106 = vector.extract_strided_slice %23 {offsets = [0, 40], sizes = [4, 8], strides = [1, 1]} : vector<4x64xbf16> to vector<4x8xbf16>
    %107 = vector.extract_strided_slice %24 {offsets = [0, 40], sizes = [4, 8], strides = [1, 1]} : vector<4x64xbf16> to vector<4x8xbf16>
    "tpu.trace_start"() <{level = 10 : i32, message = "md,nd->mn"}> : () -> ()
    %cst_47 = arith.constant dense<0.000000e+00> : vector<4x4xf32>
    %108 = tpu.matmul %106, %107, %cst_47 {dimension_numbers = #tpu.dot_dimension_numbers<[1], [1], [0], [0], [0, 0, 1, 0], [], []>} : vector<4x8xbf16>, vector<4x8xbf16>, vector<4x4xf32> -> vector<4x4xf32>
    "tpu.trace_stop"() : () -> ()
    %cst_48 = arith.constant dense<0xFF800000> : vector<4xf32>
    %109 = vector.multi_reduction <maximumf>, %108, %cst_48 [1] : vector<4x4xf32> to vector<4xf32>
    %110 = vector.shape_cast %109 : vector<4xf32> to vector<4x1xf32>
    %111 = vector.broadcast %110 : vector<4x1xf32> to vector<4x4xf32>
    %112 = arith.subf %108, %111 : vector<4x4xf32>
    %113 = math.exp %112 : vector<4x4xf32>
    %cst_49 = arith.constant dense<0.000000e+00> : vector<4xf32>
    %114 = vector.multi_reduction <add>, %113, %cst_49 [1] : vector<4x4xf32> to vector<4xf32>
    %115 = vector.shape_cast %114 : vector<4xf32> to vector<4x1xf32>
    %116 = tpu.reciprocal %115 {approx = true} : vector<4x1xf32> -> vector<4x1xf32>
    %117 = vector.broadcast %116 : vector<4x1xf32> to vector<4x4xf32>
    %118 = arith.mulf %113, %117 : vector<4x4xf32>
    %119 = arith.truncf %118 : vector<4x4xf32> to vector<4x4xbf16>
    %120 = vector.extract_strided_slice %25 {offsets = [0, 40], sizes = [4, 8], strides = [1, 1]} : vector<4x64xbf16> to vector<4x8xbf16>
    %cst_50 = arith.constant dense<0.000000e+00> : vector<4x8xf32>
    %121 = tpu.matmul %119, %120, %cst_50 {dimension_numbers = #tpu.dot_dimension_numbers<[1], [0], [0], [1], [0, 0, 1, 1], [], []>} : vector<4x4xbf16>, vector<4x8xbf16>, vector<4x8xf32> -> vector<4x8xf32>
    %122 = vector.extract_strided_slice %23 {offsets = [0, 48], sizes = [4, 8], strides = [1, 1]} : vector<4x64xbf16> to vector<4x8xbf16>
    %123 = vector.extract_strided_slice %24 {offsets = [0, 48], sizes = [4, 8], strides = [1, 1]} : vector<4x64xbf16> to vector<4x8xbf16>
    "tpu.trace_start"() <{level = 10 : i32, message = "md,nd->mn"}> : () -> ()
    %cst_51 = arith.constant dense<0.000000e+00> : vector<4x4xf32>
    %124 = tpu.matmul %122, %123, %cst_51 {dimension_numbers = #tpu.dot_dimension_numbers<[1], [1], [0], [0], [0, 0, 1, 0], [], []>} : vector<4x8xbf16>, vector<4x8xbf16>, vector<4x4xf32> -> vector<4x4xf32>
    "tpu.trace_stop"() : () -> ()
    %cst_52 = arith.constant dense<0xFF800000> : vector<4xf32>
    %125 = vector.multi_reduction <maximumf>, %124, %cst_52 [1] : vector<4x4xf32> to vector<4xf32>
    %126 = vector.shape_cast %125 : vector<4xf32> to vector<4x1xf32>
    %127 = vector.broadcast %126 : vector<4x1xf32> to vector<4x4xf32>
    %128 = arith.subf %124, %127 : vector<4x4xf32>
    %129 = math.exp %128 : vector<4x4xf32>
    %cst_53 = arith.constant dense<0.000000e+00> : vector<4xf32>
    %130 = vector.multi_reduction <add>, %129, %cst_53 [1] : vector<4x4xf32> to vector<4xf32>
    %131 = vector.shape_cast %130 : vector<4xf32> to vector<4x1xf32>
    %132 = tpu.reciprocal %131 {approx = true} : vector<4x1xf32> -> vector<4x1xf32>
    %133 = vector.broadcast %132 : vector<4x1xf32> to vector<4x4xf32>
    %134 = arith.mulf %129, %133 : vector<4x4xf32>
    %135 = arith.truncf %134 : vector<4x4xf32> to vector<4x4xbf16>
    %136 = vector.extract_strided_slice %25 {offsets = [0, 48], sizes = [4, 8], strides = [1, 1]} : vector<4x64xbf16> to vector<4x8xbf16>
    %cst_54 = arith.constant dense<0.000000e+00> : vector<4x8xf32>
    %137 = tpu.matmul %135, %136, %cst_54 {dimension_numbers = #tpu.dot_dimension_numbers<[1], [0], [0], [1], [0, 0, 1, 1], [], []>} : vector<4x4xbf16>, vector<4x8xbf16>, vector<4x8xf32> -> vector<4x8xf32>
    %138 = vector.extract_strided_slice %23 {offsets = [0, 56], sizes = [4, 8], strides = [1, 1]} : vector<4x64xbf16> to vector<4x8xbf16>
    %139 = vector.extract_strided_slice %24 {offsets = [0, 56], sizes = [4, 8], strides = [1, 1]} : vector<4x64xbf16> to vector<4x8xbf16>
    "tpu.trace_start"() <{level = 10 : i32, message = "md,nd->mn"}> : () -> ()
    %cst_55 = arith.constant dense<0.000000e+00> : vector<4x4xf32>
    %140 = tpu.matmul %138, %139, %cst_55 {dimension_numbers = #tpu.dot_dimension_numbers<[1], [1], [0], [0], [0, 0, 1, 0], [], []>} : vector<4x8xbf16>, vector<4x8xbf16>, vector<4x4xf32> -> vector<4x4xf32>
    "tpu.trace_stop"() : () -> ()
    %cst_56 = arith.constant dense<0xFF800000> : vector<4xf32>
    %141 = vector.multi_reduction <maximumf>, %140, %cst_56 [1] : vector<4x4xf32> to vector<4xf32>
    %142 = vector.shape_cast %141 : vector<4xf32> to vector<4x1xf32>
    %143 = vector.broadcast %142 : vector<4x1xf32> to vector<4x4xf32>
    %144 = arith.subf %140, %143 : vector<4x4xf32>
    %145 = math.exp %144 : vector<4x4xf32>
    %cst_57 = arith.constant dense<0.000000e+00> : vector<4xf32>
    %146 = vector.multi_reduction <add>, %145, %cst_57 [1] : vector<4x4xf32> to vector<4xf32>
    %147 = vector.shape_cast %146 : vector<4xf32> to vector<4x1xf32>
    %148 = tpu.reciprocal %147 {approx = true} : vector<4x1xf32> -> vector<4x1xf32>
    %149 = vector.broadcast %148 : vector<4x1xf32> to vector<4x4xf32>
    %150 = arith.mulf %145, %149 : vector<4x4xf32>
    %151 = arith.truncf %150 : vector<4x4xf32> to vector<4x4xbf16>
    %152 = vector.extract_strided_slice %25 {offsets = [0, 56], sizes = [4, 8], strides = [1, 1]} : vector<4x64xbf16> to vector<4x8xbf16>
    %cst_58 = arith.constant dense<0.000000e+00> : vector<4x8xf32>
    %153 = tpu.matmul %151, %152, %cst_58 {dimension_numbers = #tpu.dot_dimension_numbers<[1], [0], [0], [1], [0, 0, 1, 1], [], []>} : vector<4x4xbf16>, vector<4x8xbf16>, vector<4x8xf32> -> vector<4x8xf32>
    %154 = tpu.concatenate %41, %57, %73, %89, %105, %121, %137, %153 in 1 : vector<4x8xf32>, vector<4x8xf32>, vector<4x8xf32>, vector<4x8xf32>, vector<4x8xf32>, vector<4x8xf32>, vector<4x8xf32>, vector<4x8xf32> -> vector<4x64xf32>
    %155 = arith.truncf %154 : vector<4x64xf32> to vector<4x64xbf16>
    %cst_59 = arith.constant dense<0.000000e+00> : vector<4x64xf32>
    %156 = tpu.matmul %155, %2, %cst_59 {dimension_numbers = #tpu.dot_dimension_numbers<[1], [0], [0], [1], [0, 0, 1, 1], [], []>} : vector<4x64xbf16>, vector<64x64xbf16>, vector<4x64xf32> -> vector<4x64xf32>
    %157 = vector.broadcast %3 : vector<1x64xf32> to vector<4x64xf32>
    %158 = arith.addf %156, %157 : vector<4x64xf32>
    %159 = arith.addf %13, %158 : vector<4x64xf32>
    %cst_60 = arith.constant dense<0.000000e+00> : vector<4xf32>
    %160 = vector.multi_reduction <add>, %159, %cst_60 [1] : vector<4x64xf32> to vector<4xf32>
    %161 = vector.shape_cast %160 : vector<4xf32> to vector<4x1xf32>
    %cst_61 = arith.constant 6.400000e+01 : f32
    %162 = vector.broadcast %cst_61 : f32 to vector<4x1xf32>
    %163 = arith.divf %161, %162 : vector<4x1xf32>
    %164 = vector.broadcast %163 : vector<4x1xf32> to vector<4x64xf32>
    %165 = arith.subf %159, %164 : vector<4x64xf32>
    %166 = arith.mulf %165, %165 : vector<4x64xf32>
    %cst_62 = arith.constant dense<0.000000e+00> : vector<4xf32>
    %167 = vector.multi_reduction <add>, %166, %cst_62 [1] : vector<4x64xf32> to vector<4xf32>
    %168 = vector.shape_cast %167 : vector<4xf32> to vector<4x1xf32>
    %cst_63 = arith.constant 6.400000e+01 : f32
    %169 = vector.broadcast %cst_63 : f32 to vector<4x1xf32>
    %170 = arith.divf %168, %169 : vector<4x1xf32>
    %cst_64 = arith.constant 9.99999974E-6 : f32
    %171 = vector.broadcast %cst_64 : f32 to vector<4x1xf32>
    %172 = arith.addf %170, %171 : vector<4x1xf32>
    %173 = math.rsqrt %172 : vector<4x1xf32>
    %174 = vector.broadcast %173 : vector<4x1xf32> to vector<4x64xf32>
    %175 = arith.mulf %165, %174 : vector<4x64xf32>
    %176 = vector.broadcast %8 : vector<1x64xf32> to vector<4x64xf32>
    %177 = arith.mulf %175, %176 : vector<4x64xf32>
    %178 = vector.broadcast %9 : vector<1x64xf32> to vector<4x64xf32>
    %179 = arith.addf %177, %178 : vector<4x64xf32>
    %180 = arith.truncf %179 : vector<4x64xf32> to vector<4x64xbf16>
    %cst_65 = arith.constant dense<0.000000e+00> : vector<4x2048xf32>
    %181 = tpu.matmul %180, %4, %cst_65 {dimension_numbers = #tpu.dot_dimension_numbers<[1], [0], [0], [1], [0, 0, 1, 1], [], []>} : vector<4x64xbf16>, vector<64x2048xbf16>, vector<4x2048xf32> -> vector<4x2048xf32>
    %182 = vector.broadcast %5 : vector<1x2048xf32> to vector<4x2048xf32>
    %183 = arith.addf %181, %182 : vector<4x2048xf32>
    %cst_66 = arith.constant 0.000000e+00 : f32
    %184 = vector.broadcast %cst_66 : f32 to vector<4x2048xf32>
    %185 = arith.maximumf %183, %184 : vector<4x2048xf32>
    %186 = arith.truncf %185 : vector<4x2048xf32> to vector<4x2048xbf16>
    %cst_67 = arith.constant dense<0.000000e+00> : vector<4x64xf32>
    %187 = tpu.matmul %186, %6, %cst_67 {dimension_numbers = #tpu.dot_dimension_numbers<[1], [0], [0], [1], [0, 0, 1, 1], [], []>} : vector<4x2048xbf16>, vector<2048x64xbf16>, vector<4x64xf32> -> vector<4x64xf32>
    %188 = vector.broadcast %7 : vector<1x64xf32> to vector<4x64xf32>
    %189 = arith.addf %187, %188 : vector<4x64xf32>
    %190 = arith.addf %179, %189 : vector<4x64xf32>
    %cst_68 = arith.constant dense<0.000000e+00> : vector<4xf32>
    %191 = vector.multi_reduction <add>, %190, %cst_68 [1] : vector<4x64xf32> to vector<4xf32>
    %192 = vector.shape_cast %191 : vector<4xf32> to vector<4x1xf32>
    %cst_69 = arith.constant 6.400000e+01 : f32
    %193 = vector.broadcast %cst_69 : f32 to vector<4x1xf32>
    %194 = arith.divf %192, %193 : vector<4x1xf32>
    %195 = vector.broadcast %194 : vector<4x1xf32> to vector<4x64xf32>
    %196 = arith.subf %190, %195 : vector<4x64xf32>
    %197 = arith.mulf %196, %196 : vector<4x64xf32>
    %cst_70 = arith.constant dense<0.000000e+00> : vector<4xf32>
    %198 = vector.multi_reduction <add>, %197, %cst_70 [1] : vector<4x64xf32> to vector<4xf32>
    %199 = vector.shape_cast %198 : vector<4xf32> to vector<4x1xf32>
    %cst_71 = arith.constant 6.400000e+01 : f32
    %200 = vector.broadcast %cst_71 : f32 to vector<4x1xf32>
    %201 = arith.divf %199, %200 : vector<4x1xf32>
    %cst_72 = arith.constant 9.99999974E-6 : f32
    %202 = vector.broadcast %cst_72 : f32 to vector<4x1xf32>
    %203 = arith.addf %201, %202 : vector<4x1xf32>
    %204 = math.rsqrt %203 : vector<4x1xf32>
    %205 = vector.broadcast %204 : vector<4x1xf32> to vector<4x64xf32>
    %206 = arith.mulf %196, %205 : vector<4x64xf32>
    %207 = vector.broadcast %10 : vector<1x64xf32> to vector<4x64xf32>
    %208 = arith.mulf %206, %207 : vector<4x64xf32>
    %209 = vector.broadcast %11 : vector<1x64xf32> to vector<4x64xf32>
    %210 = arith.addf %208, %209 : vector<4x64xf32>
    %c0_73 = arith.constant 0 : index
    %c0_74 = arith.constant 0 : index
    %c0_75 = arith.constant 0 : index
    %211 = vector.load %arg14[%c0_73, %c0_74, %c0_75] : memref<2x4x64xf32, #tpu.memory_space<vmem>>, vector<1x4x64xf32>
    %212 = vector.shape_cast %211 : vector<1x4x64xf32> to vector<4x64xf32>
    %213 = vector.shape_cast %210 : vector<4x64xf32> to vector<1x4x64xf32>
    tpu.vector_store %arg14[%c0_73, %c0_74, %c0_75], %213 {strides = array<i32>} : memref<2x4x64xf32, #tpu.memory_space<vmem>>, vector<1x4x64xf32>,
    %c1 = arith.constant 1 : index
    %c0_76 = arith.constant 0 : index
    %c0_77 = arith.constant 0 : index
    %214 = vector.load %arg1[%c1, %c0_76, %c0_77] : memref<2x4x64xf32, #tpu.memory_space<vmem>>, vector<1x4x64xf32>
    %215 = vector.shape_cast %214 : vector<1x4x64xf32> to vector<4x64xf32>
    %216 = arith.truncf %215 : vector<4x64xf32> to vector<4x64xbf16>
    %cst_78 = arith.constant dense<0.000000e+00> : vector<4x192xf32>
    %217 = tpu.matmul %216, %0, %cst_78 {dimension_numbers = #tpu.dot_dimension_numbers<[1], [0], [0], [1], [0, 0, 1, 1], [], []>} : vector<4x64xbf16>, vector<64x192xbf16>, vector<4x192xf32> -> vector<4x192xf32>
    %218 = vector.broadcast %1 : vector<1x192xf32> to vector<4x192xf32>
    %219 = arith.addf %217, %218 : vector<4x192xf32>
    %220 = vector.extract_strided_slice %219 {offsets = [0, 0], sizes = [4, 64], strides = [1, 1]} : vector<4x192xf32> to vector<4x64xf32>
    %221 = vector.extract_strided_slice %219 {offsets = [0, 64], sizes = [4, 64], strides = [1, 1]} : vector<4x192xf32> to vector<4x64xf32>
    %222 = vector.extract_strided_slice %219 {offsets = [0, 128], sizes = [4, 64], strides = [1, 1]} : vector<4x192xf32> to vector<4x64xf32>
    %cst_79 = arith.constant 0.353553385 : f32
    %223 = vector.broadcast %cst_79 : f32 to vector<4x64xf32>
    %224 = arith.mulf %220, %223 : vector<4x64xf32>
    %225 = arith.truncf %224 : vector<4x64xf32> to vector<4x64xbf16>
    %226 = arith.truncf %221 : vector<4x64xf32> to vector<4x64xbf16>
    %227 = arith.truncf %222 : vector<4x64xf32> to vector<4x64xbf16>
    %228 = vector.extract_strided_slice %225 {offsets = [0, 0], sizes = [4, 8], strides = [1, 1]} : vector<4x64xbf16> to vector<4x8xbf16>
    %229 = vector.extract_strided_slice %226 {offsets = [0, 0], sizes = [4, 8], strides = [1, 1]} : vector<4x64xbf16> to vector<4x8xbf16>
    "tpu.trace_start"() <{level = 10 : i32, message = "md,nd->mn"}> : () -> ()
    %cst_80 = arith.constant dense<0.000000e+00> : vector<4x4xf32>
    %230 = tpu.matmul %228, %229, %cst_80 {dimension_numbers = #tpu.dot_dimension_numbers<[1], [1], [0], [0], [0, 0, 1, 0], [], []>} : vector<4x8xbf16>, vector<4x8xbf16>, vector<4x4xf32> -> vector<4x4xf32>
    "tpu.trace_stop"() : () -> ()
    %cst_81 = arith.constant dense<0xFF800000> : vector<4xf32>
    %231 = vector.multi_reduction <maximumf>, %230, %cst_81 [1] : vector<4x4xf32> to vector<4xf32>
    %232 = vector.shape_cast %231 : vector<4xf32> to vector<4x1xf32>
    %233 = vector.broadcast %232 : vector<4x1xf32> to vector<4x4xf32>
    %234 = arith.subf %230, %233 : vector<4x4xf32>
    %235 = math.exp %234 : vector<4x4xf32>
    %cst_82 = arith.constant dense<0.000000e+00> : vector<4xf32>
    %236 = vector.multi_reduction <add>, %235, %cst_82 [1] : vector<4x4xf32> to vector<4xf32>
    %237 = vector.shape_cast %236 : vector<4xf32> to vector<4x1xf32>
    %238 = tpu.reciprocal %237 {approx = true} : vector<4x1xf32> -> vector<4x1xf32>
    %239 = vector.broadcast %238 : vector<4x1xf32> to vector<4x4xf32>
    %240 = arith.mulf %235, %239 : vector<4x4xf32>
    %241 = arith.truncf %240 : vector<4x4xf32> to vector<4x4xbf16>
    %242 = vector.extract_strided_slice %227 {offsets = [0, 0], sizes = [4, 8], strides = [1, 1]} : vector<4x64xbf16> to vector<4x8xbf16>
    %cst_83 = arith.constant dense<0.000000e+00> : vector<4x8xf32>
    %243 = tpu.matmul %241, %242, %cst_83 {dimension_numbers = #tpu.dot_dimension_numbers<[1], [0], [0], [1], [0, 0, 1, 1], [], []>} : vector<4x4xbf16>, vector<4x8xbf16>, vector<4x8xf32> -> vector<4x8xf32>
    %244 = vector.extract_strided_slice %225 {offsets = [0, 8], sizes = [4, 8], strides = [1, 1]} : vector<4x64xbf16> to vector<4x8xbf16>
    %245 = vector.extract_strided_slice %226 {offsets = [0, 8], sizes = [4, 8], strides = [1, 1]} : vector<4x64xbf16> to vector<4x8xbf16>
    "tpu.trace_start"() <{level = 10 : i32, message = "md,nd->mn"}> : () -> ()
    %cst_84 = arith.constant dense<0.000000e+00> : vector<4x4xf32>
    %246 = tpu.matmul %244, %245, %cst_84 {dimension_numbers = #tpu.dot_dimension_numbers<[1], [1], [0], [0], [0, 0, 1, 0], [], []>} : vector<4x8xbf16>, vector<4x8xbf16>, vector<4x4xf32> -> vector<4x4xf32>
    "tpu.trace_stop"() : () -> ()
    %cst_85 = arith.constant dense<0xFF800000> : vector<4xf32>
    %247 = vector.multi_reduction <maximumf>, %246, %cst_85 [1] : vector<4x4xf32> to vector<4xf32>
    %248 = vector.shape_cast %247 : vector<4xf32> to vector<4x1xf32>
    %249 = vector.broadcast %248 : vector<4x1xf32> to vector<4x4xf32>
    %250 = arith.subf %246, %249 : vector<4x4xf32>
    %251 = math.exp %250 : vector<4x4xf32>
    %cst_86 = arith.constant dense<0.000000e+00> : vector<4xf32>
    %252 = vector.multi_reduction <add>, %251, %cst_86 [1] : vector<4x4xf32> to vector<4xf32>
    %253 = vector.shape_cast %252 : vector<4xf32> to vector<4x1xf32>
    %254 = tpu.reciprocal %253 {approx = true} : vector<4x1xf32> -> vector<4x1xf32>
    %255 = vector.broadcast %254 : vector<4x1xf32> to vector<4x4xf32>
    %256 = arith.mulf %251, %255 : vector<4x4xf32>
    %257 = arith.truncf %256 : vector<4x4xf32> to vector<4x4xbf16>
    %258 = vector.extract_strided_slice %227 {offsets = [0, 8], sizes = [4, 8], strides = [1, 1]} : vector<4x64xbf16> to vector<4x8xbf16>
    %cst_87 = arith.constant dense<0.000000e+00> : vector<4x8xf32>
    %259 = tpu.matmul %257, %258, %cst_87 {dimension_numbers = #tpu.dot_dimension_numbers<[1], [0], [0], [1], [0, 0, 1, 1], [], []>} : vector<4x4xbf16>, vector<4x8xbf16>, vector<4x8xf32> -> vector<4x8xf32>
    %260 = vector.extract_strided_slice %225 {offsets = [0, 16], sizes = [4, 8], strides = [1, 1]} : vector<4x64xbf16> to vector<4x8xbf16>
    %261 = vector.extract_strided_slice %226 {offsets = [0, 16], sizes = [4, 8], strides = [1, 1]} : vector<4x64xbf16> to vector<4x8xbf16>
    "tpu.trace_start"() <{level = 10 : i32, message = "md,nd->mn"}> : () -> ()
    %cst_88 = arith.constant dense<0.000000e+00> : vector<4x4xf32>
    %262 = tpu.matmul %260, %261, %cst_88 {dimension_numbers = #tpu.dot_dimension_numbers<[1], [1], [0], [0], [0, 0, 1, 0], [], []>} : vector<4x8xbf16>, vector<4x8xbf16>, vector<4x4xf32> -> vector<4x4xf32>
    "tpu.trace_stop"() : () -> ()
    %cst_89 = arith.constant dense<0xFF800000> : vector<4xf32>
    %263 = vector.multi_reduction <maximumf>, %262, %cst_89 [1] : vector<4x4xf32> to vector<4xf32>
    %264 = vector.shape_cast %263 : vector<4xf32> to vector<4x1xf32>
    %265 = vector.broadcast %264 : vector<4x1xf32> to vector<4x4xf32>
    %266 = arith.subf %262, %265 : vector<4x4xf32>
    %267 = math.exp %266 : vector<4x4xf32>
    %cst_90 = arith.constant dense<0.000000e+00> : vector<4xf32>
    %268 = vector.multi_reduction <add>, %267, %cst_90 [1] : vector<4x4xf32> to vector<4xf32>
    %269 = vector.shape_cast %268 : vector<4xf32> to vector<4x1xf32>
    %270 = tpu.reciprocal %269 {approx = true} : vector<4x1xf32> -> vector<4x1xf32>
    %271 = vector.broadcast %270 : vector<4x1xf32> to vector<4x4xf32>
    %272 = arith.mulf %267, %271 : vector<4x4xf32>
    %273 = arith.truncf %272 : vector<4x4xf32> to vector<4x4xbf16>
    %274 = vector.extract_strided_slice %227 {offsets = [0, 16], sizes = [4, 8], strides = [1, 1]} : vector<4x64xbf16> to vector<4x8xbf16>
    %cst_91 = arith.constant dense<0.000000e+00> : vector<4x8xf32>
    %275 = tpu.matmul %273, %274, %cst_91 {dimension_numbers = #tpu.dot_dimension_numbers<[1], [0], [0], [1], [0, 0, 1, 1], [], []>} : vector<4x4xbf16>, vector<4x8xbf16>, vector<4x8xf32> -> vector<4x8xf32>
    %276 = vector.extract_strided_slice %225 {offsets = [0, 24], sizes = [4, 8], strides = [1, 1]} : vector<4x64xbf16> to vector<4x8xbf16>
    %277 = vector.extract_strided_slice %226 {offsets = [0, 24], sizes = [4, 8], strides = [1, 1]} : vector<4x64xbf16> to vector<4x8xbf16>
    "tpu.trace_start"() <{level = 10 : i32, message = "md,nd->mn"}> : () -> ()
    %cst_92 = arith.constant dense<0.000000e+00> : vector<4x4xf32>
    %278 = tpu.matmul %276, %277, %cst_92 {dimension_numbers = #tpu.dot_dimension_numbers<[1], [1], [0], [0], [0, 0, 1, 0], [], []>} : vector<4x8xbf16>, vector<4x8xbf16>, vector<4x4xf32> -> vector<4x4xf32>
    "tpu.trace_stop"() : () -> ()
    %cst_93 = arith.constant dense<0xFF800000> : vector<4xf32>
    %279 = vector.multi_reduction <maximumf>, %278, %cst_93 [1] : vector<4x4xf32> to vector<4xf32>
    %280 = vector.shape_cast %279 : vector<4xf32> to vector<4x1xf32>
    %281 = vector.broadcast %280 : vector<4x1xf32> to vector<4x4xf32>
    %282 = arith.subf %278, %281 : vector<4x4xf32>
    %283 = math.exp %282 : vector<4x4xf32>
    %cst_94 = arith.constant dense<0.000000e+00> : vector<4xf32>
    %284 = vector.multi_reduction <add>, %283, %cst_94 [1] : vector<4x4xf32> to vector<4xf32>
    %285 = vector.shape_cast %284 : vector<4xf32> to vector<4x1xf32>
    %286 = tpu.reciprocal %285 {approx = true} : vector<4x1xf32> -> vector<4x1xf32>
    %287 = vector.broadcast %286 : vector<4x1xf32> to vector<4x4xf32>
    %288 = arith.mulf %283, %287 : vector<4x4xf32>
    %289 = arith.truncf %288 : vector<4x4xf32> to vector<4x4xbf16>
    %290 = vector.extract_strided_slice %227 {offsets = [0, 24], sizes = [4, 8], strides = [1, 1]} : vector<4x64xbf16> to vector<4x8xbf16>
    %cst_95 = arith.constant dense<0.000000e+00> : vector<4x8xf32>
    %291 = tpu.matmul %289, %290, %cst_95 {dimension_numbers = #tpu.dot_dimension_numbers<[1], [0], [0], [1], [0, 0, 1, 1], [], []>} : vector<4x4xbf16>, vector<4x8xbf16>, vector<4x8xf32> -> vector<4x8xf32>
    %292 = vector.extract_strided_slice %225 {offsets = [0, 32], sizes = [4, 8], strides = [1, 1]} : vector<4x64xbf16> to vector<4x8xbf16>
    %293 = vector.extract_strided_slice %226 {offsets = [0, 32], sizes = [4, 8], strides = [1, 1]} : vector<4x64xbf16> to vector<4x8xbf16>
    "tpu.trace_start"() <{level = 10 : i32, message = "md,nd->mn"}> : () -> ()
    %cst_96 = arith.constant dense<0.000000e+00> : vector<4x4xf32>
    %294 = tpu.matmul %292, %293, %cst_96 {dimension_numbers = #tpu.dot_dimension_numbers<[1], [1], [0], [0], [0, 0, 1, 0], [], []>} : vector<4x8xbf16>, vector<4x8xbf16>, vector<4x4xf32> -> vector<4x4xf32>
    "tpu.trace_stop"() : () -> ()
    %cst_97 = arith.constant dense<0xFF800000> : vector<4xf32>
    %295 = vector.multi_reduction <maximumf>, %294, %cst_97 [1] : vector<4x4xf32> to vector<4xf32>
    %296 = vector.shape_cast %295 : vector<4xf32> to vector<4x1xf32>
    %297 = vector.broadcast %296 : vector<4x1xf32> to vector<4x4xf32>
    %298 = arith.subf %294, %297 : vector<4x4xf32>
    %299 = math.exp %298 : vector<4x4xf32>
    %cst_98 = arith.constant dense<0.000000e+00> : vector<4xf32>
    %300 = vector.multi_reduction <add>, %299, %cst_98 [1] : vector<4x4xf32> to vector<4xf32>
    %301 = vector.shape_cast %300 : vector<4xf32> to vector<4x1xf32>
    %302 = tpu.reciprocal %301 {approx = true} : vector<4x1xf32> -> vector<4x1xf32>
    %303 = vector.broadcast %302 : vector<4x1xf32> to vector<4x4xf32>
    %304 = arith.mulf %299, %303 : vector<4x4xf32>
    %305 = arith.truncf %304 : vector<4x4xf32> to vector<4x4xbf16>
    %306 = vector.extract_strided_slice %227 {offsets = [0, 32], sizes = [4, 8], strides = [1, 1]} : vector<4x64xbf16> to vector<4x8xbf16>
    %cst_99 = arith.constant dense<0.000000e+00> : vector<4x8xf32>
    %307 = tpu.matmul %305, %306, %cst_99 {dimension_numbers = #tpu.dot_dimension_numbers<[1], [0], [0], [1], [0, 0, 1, 1], [], []>} : vector<4x4xbf16>, vector<4x8xbf16>, vector<4x8xf32> -> vector<4x8xf32>
    %308 = vector.extract_strided_slice %225 {offsets = [0, 40], sizes = [4, 8], strides = [1, 1]} : vector<4x64xbf16> to vector<4x8xbf16>
    %309 = vector.extract_strided_slice %226 {offsets = [0, 40], sizes = [4, 8], strides = [1, 1]} : vector<4x64xbf16> to vector<4x8xbf16>
    "tpu.trace_start"() <{level = 10 : i32, message = "md,nd->mn"}> : () -> ()
    %cst_100 = arith.constant dense<0.000000e+00> : vector<4x4xf32>
    %310 = tpu.matmul %308, %309, %cst_100 {dimension_numbers = #tpu.dot_dimension_numbers<[1], [1], [0], [0], [0, 0, 1, 0], [], []>} : vector<4x8xbf16>, vector<4x8xbf16>, vector<4x4xf32> -> vector<4x4xf32>
    "tpu.trace_stop"() : () -> ()
    %cst_101 = arith.constant dense<0xFF800000> : vector<4xf32>
    %311 = vector.multi_reduction <maximumf>, %310, %cst_101 [1] : vector<4x4xf32> to vector<4xf32>
    %312 = vector.shape_cast %311 : vector<4xf32> to vector<4x1xf32>
    %313 = vector.broadcast %312 : vector<4x1xf32> to vector<4x4xf32>
    %314 = arith.subf %310, %313 : vector<4x4xf32>
    %315 = math.exp %314 : vector<4x4xf32>
    %cst_102 = arith.constant dense<0.000000e+00> : vector<4xf32>
    %316 = vector.multi_reduction <add>, %315, %cst_102 [1] : vector<4x4xf32> to vector<4xf32>
    %317 = vector.shape_cast %316 : vector<4xf32> to vector<4x1xf32>
    %318 = tpu.reciprocal %317 {approx = true} : vector<4x1xf32> -> vector<4x1xf32>
    %319 = vector.broadcast %318 : vector<4x1xf32> to vector<4x4xf32>
    %320 = arith.mulf %315, %319 : vector<4x4xf32>
    %321 = arith.truncf %320 : vector<4x4xf32> to vector<4x4xbf16>
    %322 = vector.extract_strided_slice %227 {offsets = [0, 40], sizes = [4, 8], strides = [1, 1]} : vector<4x64xbf16> to vector<4x8xbf16>
    %cst_103 = arith.constant dense<0.000000e+00> : vector<4x8xf32>
    %323 = tpu.matmul %321, %322, %cst_103 {dimension_numbers = #tpu.dot_dimension_numbers<[1], [0], [0], [1], [0, 0, 1, 1], [], []>} : vector<4x4xbf16>, vector<4x8xbf16>, vector<4x8xf32> -> vector<4x8xf32>
    %324 = vector.extract_strided_slice %225 {offsets = [0, 48], sizes = [4, 8], strides = [1, 1]} : vector<4x64xbf16> to vector<4x8xbf16>
    %325 = vector.extract_strided_slice %226 {offsets = [0, 48], sizes = [4, 8], strides = [1, 1]} : vector<4x64xbf16> to vector<4x8xbf16>
    "tpu.trace_start"() <{level = 10 : i32, message = "md,nd->mn"}> : () -> ()
    %cst_104 = arith.constant dense<0.000000e+00> : vector<4x4xf32>
    %326 = tpu.matmul %324, %325, %cst_104 {dimension_numbers = #tpu.dot_dimension_numbers<[1], [1], [0], [0], [0, 0, 1, 0], [], []>} : vector<4x8xbf16>, vector<4x8xbf16>, vector<4x4xf32> -> vector<4x4xf32>
    "tpu.trace_stop"() : () -> ()
    %cst_105 = arith.constant dense<0xFF800000> : vector<4xf32>
    %327 = vector.multi_reduction <maximumf>, %326, %cst_105 [1] : vector<4x4xf32> to vector<4xf32>
    %328 = vector.shape_cast %327 : vector<4xf32> to vector<4x1xf32>
    %329 = vector.broadcast %328 : vector<4x1xf32> to vector<4x4xf32>
    %330 = arith.subf %326, %329 : vector<4x4xf32>
    %331 = math.exp %330 : vector<4x4xf32>
    %cst_106 = arith.constant dense<0.000000e+00> : vector<4xf32>
    %332 = vector.multi_reduction <add>, %331, %cst_106 [1] : vector<4x4xf32> to vector<4xf32>
    %333 = vector.shape_cast %332 : vector<4xf32> to vector<4x1xf32>
    %334 = tpu.reciprocal %333 {approx = true} : vector<4x1xf32> -> vector<4x1xf32>
    %335 = vector.broadcast %334 : vector<4x1xf32> to vector<4x4xf32>
    %336 = arith.mulf %331, %335 : vector<4x4xf32>
    %337 = arith.truncf %336 : vector<4x4xf32> to vector<4x4xbf16>
    %338 = vector.extract_strided_slice %227 {offsets = [0, 48], sizes = [4, 8], strides = [1, 1]} : vector<4x64xbf16> to vector<4x8xbf16>
    %cst_107 = arith.constant dense<0.000000e+00> : vector<4x8xf32>
    %339 = tpu.matmul %337, %338, %cst_107 {dimension_numbers = #tpu.dot_dimension_numbers<[1], [0], [0], [1], [0, 0, 1, 1], [], []>} : vector<4x4xbf16>, vector<4x8xbf16>, vector<4x8xf32> -> vector<4x8xf32>
    %340 = vector.extract_strided_slice %225 {offsets = [0, 56], sizes = [4, 8], strides = [1, 1]} : vector<4x64xbf16> to vector<4x8xbf16>
    %341 = vector.extract_strided_slice %226 {offsets = [0, 56], sizes = [4, 8], strides = [1, 1]} : vector<4x64xbf16> to vector<4x8xbf16>
    "tpu.trace_start"() <{level = 10 : i32, message = "md,nd->mn"}> : () -> ()
    %cst_108 = arith.constant dense<0.000000e+00> : vector<4x4xf32>
    %342 = tpu.matmul %340, %341, %cst_108 {dimension_numbers = #tpu.dot_dimension_numbers<[1], [1], [0], [0], [0, 0, 1, 0], [], []>} : vector<4x8xbf16>, vector<4x8xbf16>, vector<4x4xf32> -> vector<4x4xf32>
    "tpu.trace_stop"() : () -> ()
    %cst_109 = arith.constant dense<0xFF800000> : vector<4xf32>
    %343 = vector.multi_reduction <maximumf>, %342, %cst_109 [1] : vector<4x4xf32> to vector<4xf32>
    %344 = vector.shape_cast %343 : vector<4xf32> to vector<4x1xf32>
    %345 = vector.broadcast %344 : vector<4x1xf32> to vector<4x4xf32>
    %346 = arith.subf %342, %345 : vector<4x4xf32>
    %347 = math.exp %346 : vector<4x4xf32>
    %cst_110 = arith.constant dense<0.000000e+00> : vector<4xf32>
    %348 = vector.multi_reduction <add>, %347, %cst_110 [1] : vector<4x4xf32> to vector<4xf32>
    %349 = vector.shape_cast %348 : vector<4xf32> to vector<4x1xf32>
    %350 = tpu.reciprocal %349 {approx = true} : vector<4x1xf32> -> vector<4x1xf32>
    %351 = vector.broadcast %350 : vector<4x1xf32> to vector<4x4xf32>
    %352 = arith.mulf %347, %351 : vector<4x4xf32>
    %353 = arith.truncf %352 : vector<4x4xf32> to vector<4x4xbf16>
    %354 = vector.extract_strided_slice %227 {offsets = [0, 56], sizes = [4, 8], strides = [1, 1]} : vector<4x64xbf16> to vector<4x8xbf16>
    %cst_111 = arith.constant dense<0.000000e+00> : vector<4x8xf32>
    %355 = tpu.matmul %353, %354, %cst_111 {dimension_numbers = #tpu.dot_dimension_numbers<[1], [0], [0], [1], [0, 0, 1, 1], [], []>} : vector<4x4xbf16>, vector<4x8xbf16>, vector<4x8xf32> -> vector<4x8xf32>
    %356 = tpu.concatenate %243, %259, %275, %291, %307, %323, %339, %355 in 1 : vector<4x8xf32>, vector<4x8xf32>, vector<4x8xf32>, vector<4x8xf32>, vector<4x8xf32>, vector<4x8xf32>, vector<4x8xf32>, vector<4x8xf32> -> vector<4x64xf32>
    %357 = arith.truncf %356 : vector<4x64xf32> to vector<4x64xbf16>
    %cst_112 = arith.constant dense<0.000000e+00> : vector<4x64xf32>
    %358 = tpu.matmul %357, %2, %cst_112 {dimension_numbers = #tpu.dot_dimension_numbers<[1], [0], [0], [1], [0, 0, 1, 1], [], []>} : vector<4x64xbf16>, vector<64x64xbf16>, vector<4x64xf32> -> vector<4x64xf32>
    %359 = vector.broadcast %3 : vector<1x64xf32> to vector<4x64xf32>
    %360 = arith.addf %358, %359 : vector<4x64xf32>
    %361 = arith.addf %215, %360 : vector<4x64xf32>
    %cst_113 = arith.constant dense<0.000000e+00> : vector<4xf32>
    %362 = vector.multi_reduction <add>, %361, %cst_113 [1] : vector<4x64xf32> to vector<4xf32>
    %363 = vector.shape_cast %362 : vector<4xf32> to vector<4x1xf32>
    %cst_114 = arith.constant 6.400000e+01 : f32
    %364 = vector.broadcast %cst_114 : f32 to vector<4x1xf32>
    %365 = arith.divf %363, %364 : vector<4x1xf32>
    %366 = vector.broadcast %365 : vector<4x1xf32> to vector<4x64xf32>
    %367 = arith.subf %361, %366 : vector<4x64xf32>
    %368 = arith.mulf %367, %367 : vector<4x64xf32>
    %cst_115 = arith.constant dense<0.000000e+00> : vector<4xf32>
    %369 = vector.multi_reduction <add>, %368, %cst_115 [1] : vector<4x64xf32> to vector<4xf32>
    %370 = vector.shape_cast %369 : vector<4xf32> to vector<4x1xf32>
    %cst_116 = arith.constant 6.400000e+01 : f32
    %371 = vector.broadcast %cst_116 : f32 to vector<4x1xf32>
    %372 = arith.divf %370, %371 : vector<4x1xf32>
    %cst_117 = arith.constant 9.99999974E-6 : f32
    %373 = vector.broadcast %cst_117 : f32 to vector<4x1xf32>
    %374 = arith.addf %372, %373 : vector<4x1xf32>
    %375 = math.rsqrt %374 : vector<4x1xf32>
    %376 = vector.broadcast %375 : vector<4x1xf32> to vector<4x64xf32>
    %377 = arith.mulf %367, %376 : vector<4x64xf32>
    %378 = vector.broadcast %8 : vector<1x64xf32> to vector<4x64xf32>
    %379 = arith.mulf %377, %378 : vector<4x64xf32>
    %380 = vector.broadcast %9 : vector<1x64xf32> to vector<4x64xf32>
    %381 = arith.addf %379, %380 : vector<4x64xf32>
    %382 = arith.truncf %381 : vector<4x64xf32> to vector<4x64xbf16>
    %cst_118 = arith.constant dense<0.000000e+00> : vector<4x2048xf32>
    %383 = tpu.matmul %382, %4, %cst_118 {dimension_numbers = #tpu.dot_dimension_numbers<[1], [0], [0], [1], [0, 0, 1, 1], [], []>} : vector<4x64xbf16>, vector<64x2048xbf16>, vector<4x2048xf32> -> vector<4x2048xf32>
    %384 = vector.broadcast %5 : vector<1x2048xf32> to vector<4x2048xf32>
    %385 = arith.addf %383, %384 : vector<4x2048xf32>
    %cst_119 = arith.constant 0.000000e+00 : f32
    %386 = vector.broadcast %cst_119 : f32 to vector<4x2048xf32>
    %387 = arith.maximumf %385, %386 : vector<4x2048xf32>
    %388 = arith.truncf %387 : vector<4x2048xf32> to vector<4x2048xbf16>
    %cst_120 = arith.constant dense<0.000000e+00> : vector<4x64xf32>
    %389 = tpu.matmul %388, %6, %cst_120 {dimension_numbers = #tpu.dot_dimension_numbers<[1], [0], [0], [1], [0, 0, 1, 1], [], []>} : vector<4x2048xbf16>, vector<2048x64xbf16>, vector<4x64xf32> -> vector<4x64xf32>
    %390 = vector.broadcast %7 : vector<1x64xf32> to vector<4x64xf32>
    %391 = arith.addf %389, %390 : vector<4x64xf32>
    %392 = arith.addf %381, %391 : vector<4x64xf32>
    %cst_121 = arith.constant dense<0.000000e+00> : vector<4xf32>
    %393 = vector.multi_reduction <add>, %392, %cst_121 [1] : vector<4x64xf32> to vector<4xf32>
    %394 = vector.shape_cast %393 : vector<4xf32> to vector<4x1xf32>
    %cst_122 = arith.constant 6.400000e+01 : f32
    %395 = vector.broadcast %cst_122 : f32 to vector<4x1xf32>
    %396 = arith.divf %394, %395 : vector<4x1xf32>
    %397 = vector.broadcast %396 : vector<4x1xf32> to vector<4x64xf32>
    %398 = arith.subf %392, %397 : vector<4x64xf32>
    %399 = arith.mulf %398, %398 : vector<4x64xf32>
    %cst_123 = arith.constant dense<0.000000e+00> : vector<4xf32>
    %400 = vector.multi_reduction <add>, %399, %cst_123 [1] : vector<4x64xf32> to vector<4xf32>
    %401 = vector.shape_cast %400 : vector<4xf32> to vector<4x1xf32>
    %cst_124 = arith.constant 6.400000e+01 : f32
    %402 = vector.broadcast %cst_124 : f32 to vector<4x1xf32>
    %403 = arith.divf %401, %402 : vector<4x1xf32>
    %cst_125 = arith.constant 9.99999974E-6 : f32
    %404 = vector.broadcast %cst_125 : f32 to vector<4x1xf32>
    %405 = arith.addf %403, %404 : vector<4x1xf32>
    %406 = math.rsqrt %405 : vector<4x1xf32>
    %407 = vector.broadcast %406 : vector<4x1xf32> to vector<4x64xf32>
    %408 = arith.mulf %398, %407 : vector<4x64xf32>
    %409 = vector.broadcast %10 : vector<1x64xf32> to vector<4x64xf32>
    %410 = arith.mulf %408, %409 : vector<4x64xf32>
    %411 = vector.broadcast %11 : vector<1x64xf32> to vector<4x64xf32>
    %412 = arith.addf %410, %411 : vector<4x64xf32>
    %c1_126 = arith.constant 1 : index
    %c0_127 = arith.constant 0 : index
    %c0_128 = arith.constant 0 : index
    %413 = vector.load %arg14[%c1_126, %c0_127, %c0_128] : memref<2x4x64xf32, #tpu.memory_space<vmem>>, vector<1x4x64xf32>
    %414 = vector.shape_cast %413 : vector<1x4x64xf32> to vector<4x64xf32>
    %415 = vector.shape_cast %412 : vector<4x64xf32> to vector<1x4x64xf32>
    tpu.vector_store %arg14[%c1_126, %c0_127, %c0_128], %415 {strides = array<i32>} : memref<2x4x64xf32, #tpu.memory_space<vmem>>, vector<1x4x64xf32>,
    return
  }
  func.func @transform_0(%arg0: i32) -> (i32, i32, i32) {
    %c0_i32 = arith.constant 0 : i32
    %c0_i32_0 = arith.constant 0 : i32
    %c0_i32_1 = arith.constant 0 : i32
    return %arg0, %c0_i32, %c0_i32_0 : i32, i32, i32
  }
  func.func @transform_1(%arg0: i32) -> (i32, i32) {
    %c0_i32 = arith.constant 0 : i32
    %c0_i32_0 = arith.constant 0 : i32
    %c0_i32_1 = arith.constant 0 : i32
    return %c0_i32, %c0_i32_0 : i32, i32
  }
  func.func @transform_2(%arg0: i32) -> (i32, i32) {
    %c0_i32 = arith.constant 0 : i32
    %c0_i32_0 = arith.constant 0 : i32
    %c0_i32_1 = arith.constant 0 : i32
    return %c0_i32, %c0_i32_0 : i32, i32
  }
  func.func @transform_3(%arg0: i32) -> (i32, i32) {
    %c0_i32 = arith.constant 0 : i32
    %c0_i32_0 = arith.constant 0 : i32
    %c0_i32_1 = arith.constant 0 : i32
    return %c0_i32, %c0_i32_0 : i32, i32
  }
  func.func @transform_4(%arg0: i32) -> (i32, i32) {
    %c0_i32 = arith.constant 0 : i32
    %c0_i32_0 = arith.constant 0 : i32
    %c0_i32_1 = arith.constant 0 : i32
    return %c0_i32, %c0_i32_0 : i32, i32
  }
  func.func @transform_5(%arg0: i32) -> (i32, i32) {
    %c0_i32 = arith.constant 0 : i32
    %c0_i32_0 = arith.constant 0 : i32
    %c0_i32_1 = arith.constant 0 : i32
    return %c0_i32, %c0_i32_0 : i32, i32
  }
  func.func @transform_6(%arg0: i32) -> (i32, i32) {
    %c0_i32 = arith.constant 0 : i32
    %c0_i32_0 = arith.constant 0 : i32
    %c0_i32_1 = arith.constant 0 : i32
    return %c0_i32, %c0_i32_0 : i32, i32
  }
  func.func @transform_7(%arg0: i32) -> (i32, i32) {
    %c0_i32 = arith.constant 0 : i32
    %c0_i32_0 = arith.constant 0 : i32
    %c0_i32_1 = arith.constant 0 : i32
    return %c0_i32, %c0_i32_0 : i32, i32
  }
  func.func @transform_8(%arg0: i32) -> (i32, i32) {
    %c0_i32 = arith.constant 0 : i32
    %c0_i32_0 = arith.constant 0 : i32
    %c0_i32_1 = arith.constant 0 : i32
    return %c0_i32, %c0_i32_0 : i32, i32
  }
  func.func @transform_9(%arg0: i32) -> (i32, i32) {
    %c0_i32 = arith.constant 0 : i32
    %c0_i32_0 = arith.constant 0 : i32
    %c0_i32_1 = arith.constant 0 : i32
    return %c0_i32, %c0_i32_0 : i32, i32
  }
  func.func @transform_10(%arg0: i32) -> (i32, i32) {
    %c0_i32 = arith.constant 0 : i32
    %c0_i32_0 = arith.constant 0 : i32
    %c0_i32_1 = arith.constant 0 : i32
    return %c0_i32, %c0_i32_0 : i32, i32
  }
  func.func @transform_11(%arg0: i32) -> (i32, i32) {
    %c0_i32 = arith.constant 0 : i32
    %c0_i32_0 = arith.constant 0 : i32
    %c0_i32_1 = arith.constant 0 : i32
    return %c0_i32, %c0_i32_0 : i32, i32
  }
  func.func @transform_12(%arg0: i32) -> (i32, i32) {
    %c0_i32 = arith.constant 0 : i32
    %c0_i32_0 = arith.constant 0 : i32
    %c0_i32_1 = arith.constant 0 : i32
    return %c0_i32, %c0_i32_0 : i32, i32
  }
  func.func @transform_13(%arg0: i32) -> (i32, i32, i32) {
    %c0_i32 = arith.constant 0 : i32
    %c0_i32_0 = arith.constant 0 : i32
    %c0_i32_1 = arith.constant 0 : i32
    return %arg0, %c0_i32, %c0_i32_0 : i32, i32, i32
  }
}

module attributes {stable_mosaic.version = 11 : i64} {
  func.func @_item_head_kernel(%arg0: i32, %arg1: memref<128x64xbf16, #tpu.memory_space<vmem>>, %arg2: memref<64x1024xbf16, #tpu.memory_space<vmem>>, %arg3: memref<1x1024xf32, #tpu.memory_space<vmem>>, %arg4: memref<128x1024xf32, #tpu.memory_space<vmem>>) attributes {dimension_semantics = [#tpu.dimension_semantics<parallel>], iteration_bounds = array<i64: 2>, scalar_prefetch = 0 : i64, scratch_operands = 0 : i64, tpu.core_type = #tpu.core_type<tc>, window_params = [{pipeline_mode = #tpu.pipeline_mode<synchronous>, transform_indices = @transform_0, window_bounds = array<i64: 128, 64>}, {transform_indices = @transform_1, window_bounds = array<i64: 64, 1024>}, {transform_indices = @transform_2, window_bounds = array<i64: 1, 1024>}, {transform_indices = @transform_3, window_bounds = array<i64: 128, 1024>}]} {
    %c0 = arith.constant 0 : index
    %c0_0 = arith.constant 0 : index
    %0 = vector.load %arg1[%c0, %c0_0] : memref<128x64xbf16, #tpu.memory_space<vmem>>, vector<128x64xbf16>
    %c0_1 = arith.constant 0 : index
    %c0_2 = arith.constant 0 : index
    %1 = vector.load %arg2[%c0_1, %c0_2] : memref<64x1024xbf16, #tpu.memory_space<vmem>>, vector<64x1024xbf16>
    %cst = arith.constant dense<0.000000e+00> : vector<128x1024xf32>
    %2 = tpu.matmul %0, %1, %cst {dimension_numbers = #tpu.dot_dimension_numbers<[1], [0], [0], [1], [0, 0, 1, 1], [], []>} : vector<128x64xbf16>, vector<64x1024xbf16>, vector<128x1024xf32> -> vector<128x1024xf32>
    %c0_3 = arith.constant 0 : index
    %c0_4 = arith.constant 0 : index
    %3 = vector.load %arg3[%c0_3, %c0_4] : memref<1x1024xf32, #tpu.memory_space<vmem>>, vector<1x1024xf32>
    %4 = vector.broadcast %3 : vector<1x1024xf32> to vector<128x1024xf32>
    %5 = arith.addf %2, %4 : vector<128x1024xf32>
    %c0_5 = arith.constant 0 : index
    %c0_6 = arith.constant 0 : index
    %6 = vector.load %arg4[%c0_5, %c0_6] : memref<128x1024xf32, #tpu.memory_space<vmem>>, vector<128x1024xf32>
    tpu.vector_store %arg4[%c0_5, %c0_6], %5 {strides = array<i32>} : memref<128x1024xf32, #tpu.memory_space<vmem>>, vector<128x1024xf32>,
    return
  }
  func.func @transform_0(%arg0: i32) -> (i32, i32) {
    %c0_i32 = arith.constant 0 : i32
    %c0_i32_0 = arith.constant 0 : i32
    %c0_i32_1 = arith.constant 0 : i32
    return %c0_i32, %c0_i32_0 : i32, i32
  }
  func.func @transform_1(%arg0: i32) -> (i32, i32) {
    %c0_i32 = arith.constant 0 : i32
    %c0_i32_0 = arith.constant 0 : i32
    return %c0_i32, %arg0 : i32, i32
  }
  func.func @transform_2(%arg0: i32) -> (i32, i32) {
    %c0_i32 = arith.constant 0 : i32
    %c0_i32_0 = arith.constant 0 : i32
    return %c0_i32, %arg0 : i32, i32
  }
  func.func @transform_3(%arg0: i32) -> (i32, i32) {
    %c0_i32 = arith.constant 0 : i32
    %c0_i32_0 = arith.constant 0 : i32
    return %c0_i32, %arg0 : i32, i32
  }
}

</mosaic_0001>

<llo_original>
// kernel: _forward_core.5
$region0: #{_forward_core.5}
  #allocation0 [shape = 'u32[]', space=smem, size = 0x4, offset = 0x4, fixed_abs, tag = 'smem constant byte address 0x4 - core index']
  #allocation1 [shape = 'u32[144,128]{1,0:T(1,128)}', space=vmem, size = 0x12000, scoped, tag = 'internal scratch']
  %s0 = inlined_call_operand.vmem [shape: bf16[128,64], index: 0, kind: input, shape index: {}]
  %s1 = inlined_call_operand.vmem [shape: bf16[64,2048], index: 1, kind: input, shape index: {}]
  %s2 = inlined_call_operand.vmem [shape: f32[1,2048], index: 2, kind: input, shape index: {}]
  %s3 = inlined_call_operand.vmem [shape: f32[128,2000], index: 3, kind: output, shape index: {}]
  %s4 = sld [smem:[#allocation0]]
  $region87: #{_forward_core.5} parent=0
    _
  %s6 = ssub.s32 1, %s4
  %s7 = scalar_select 0, %s6, %s4
  $region1: #{_forward_core.5} parent=0
    #allocation2 [shape = 'u8[262144]{0}', space=vmem, size = 0x40000, scoped, tag = 'input window, operand 1']
    #allocation3 [shape = 'u8[1048576]{0}', space=vmem, size = 0x100000, scoped, tag = 'output window, operand 0']
    loop: start=0, step=1, limit=4
    $region2: #{_forward_core.5} parent=1 // loop_pre_header
      _
    $region3: #{_forward_core.5} parent=1 // loop_header
      %s9 = sphi 0, %s13
      %p10 = scmp.ge.s32.totalorder %s9, 4
      %s17 = sphi 0, %s17
      %s19 = sphi 0, %s17
      %s20 = sphi 0, %s19
      %s34 = sphi 0, %s20
      %s40 = sphi 0, %s42
      %s43 = sphi 0, %s40
      %s44 = sphi 0, %s43
      %s60 = sphi 0, %s44
      %s66 = sphi 0, %s68
      %s69 = sphi 0, %s66
      %s70 = sphi 0, %s69
      %s86 = sphi 0, %s70
      %s92 = sphi 0, %s94
      %s95 = sphi 0, %s92
      %s96 = sphi 0, %s95
      %s112 = sphi 0, %s96
    $region4: #{_forward_core.5} parent=1 // loop_header_branch
      %12 = sbr.rel (%p10) target = $region8
    $region5: #{_forward_core.5} parent=1 // loop_body
      %s14 = ssub.s32 %s9, 1
      %s15 = ssub.s32 %s9, 2
      %s16 = sadd.s32 %s9, 1
      %s18 = sadd.s32 %s17, 1
      %p21 = scmp.eq.s32.totalorder %s9, 1
      %p22 = scmp.ne.s32.totalorder %s17, %s19
      %p23 = scmp.eq.s32.totalorder %s9, 0
      %p24 = por %p22, %p23
      %p25 = scmp.ne.s32.totalorder %s17, %s19
      %p26 = scmp.eq.s32.totalorder %s14, 1
      %p27 = por %p25, %p26
      %p28 = scmp.ne.s32.totalorder %s19, %s20
      %p29 = scmp.eq.s32.totalorder %s14, 0
      %p30 = por %p28, %p29
      %p31 = scmp.ne.s32.totalorder %s19, %s20
      %p32 = scmp.eq.s32.totalorder %s15, 1
      %p33 = por %p31, %p32
      %p35 = scmp.ne.s32.totalorder %s20, %s34
      %p36 = scmp.eq.s32.totalorder %s15, 0
      %p37 = por %p35, %p36
      %s38 = ssub.s32 %s9, %s16
      %p39 = scmp.eq.s32.totalorder %s38, 0
      %s41 = sadd.s32 %s40, 1
      %s42 = scalar_select %p39, %s40, %s41
      %p45 = pneg %p39
      %p46 = scmp.eq.s32.totalorder %s9, 1
      %p47 = por %p45, %p46
      %p48 = scmp.ne.s32.totalorder %s40, %s43
      %p49 = scmp.eq.s32.totalorder %s9, 0
      %p50 = por %p48, %p49
      %p51 = scmp.ne.s32.totalorder %s40, %s43
      %p52 = scmp.eq.s32.totalorder %s14, 1
      %p53 = por %p51, %p52
      %p54 = scmp.ne.s32.totalorder %s43, %s44
      %p55 = scmp.eq.s32.totalorder %s14, 0
      %p56 = por %p54, %p55
      %p57 = scmp.ne.s32.totalorder %s43, %s44
      %p58 = scmp.eq.s32.totalorder %s15, 1
      %p59 = por %p57, %p58
      %p61 = scmp.ne.s32.totalorder %s44, %s60
      %p62 = scmp.eq.s32.totalorder %s15, 0
      %p63 = por %p61, %p62
      %s64 = ssub.s32 %s9, %s16
      %p65 = scmp.eq.s32.totalorder %s64, 0
      %s67 = sadd.s32 %s66, 1
      %s68 = scalar_select %p65, %s66, %s67
      %p71 = pneg %p65
      %p72 = scmp.eq.s32.totalorder %s9, 1
      %p73 = por %p71, %p72
      %p74 = scmp.ne.s32.totalorder %s66, %s69
      %p75 = scmp.eq.s32.totalorder %s9, 0
      %p76 = por %p74, %p75
      %p77 = scmp.ne.s32.totalorder %s66, %s69
      %p78 = scmp.eq.s32.totalorder %s14, 1
      %p79 = por %p77, %p78
      %p80 = scmp.ne.s32.totalorder %s69, %s70
      %p81 = scmp.eq.s32.totalorder %s14, 0
      %p82 = por %p80, %p81
      %p83 = scmp.ne.s32.totalorder %s69, %s70
      %p84 = scmp.eq.s32.totalorder %s15, 1
      %p85 = por %p83, %p84
      %p87 = scmp.ne.s32.totalorder %s70, %s86
      %p88 = scmp.eq.s32.totalorder %s15, 0
      %p89 = por %p87, %p88
      %s90 = ssub.s32 %s9, %s16
      %p91 = scmp.eq.s32.totalorder %s90, 0
      %s93 = sadd.s32 %s92, 1
      %s94 = scalar_select %p91, %s92, %s93
      %p97 = pneg %p91
      %p98 = scmp.eq.s32.totalorder %s9, 1
      %p99 = por %p97, %p98
      %p100 = scmp.ne.s32.totalorder %s92, %s95
      %p101 = scmp.eq.s32.totalorder %s9, 0
      %p102 = por %p100, %p101
      %p103 = scmp.ne.s32.totalorder %s92, %s95
      %p104 = scmp.eq.s32.totalorder %s14, 1
      %p105 = por %p103, %p104
      %p106 = scmp.ne.s32.totalorder %s95, %s96
      %p107 = scmp.eq.s32.totalorder %s14, 0
      %p108 = por %p106, %p107
      %p109 = scmp.ne.s32.totalorder %s95, %s96
      %p110 = scmp.eq.s32.totalorder %s15, 1
      %p111 = por %p109, %p110
      %p113 = scmp.ne.s32.totalorder %s96, %s112
      %p114 = scmp.eq.s32.totalorder %s15, 0
      %p115 = por %p113, %p114
      %p116 = scmp.le.s32.totalorder 1, %s9
      %p117 = scmp.lt.s32.totalorder %s9, 3
      %p118 = pnand %p116, %p117
      %p119 = pneg %p118
      // Predicated region
      $region9: #{_forward_core.5} parent=5 // pred_check
        _
      $region10: #{_forward_core.5} parent=5 // pred_check_branch
        %121 = sbr.rel (%p118) target = $region12
      $region11: #{_forward_core.5} parent=5 // pred_region
        %s122 = ssub.s32 %s9, 1
        // Predicated region
        $region13: #{_forward_core.5} parent=11 // pred_check
          %p123 = pneg %p30
        $region14: #{_forward_core.5} parent=11 // pred_check_branch
          %125 = sbr.rel (%p123) target = $region16
        $region15: #{_forward_core.5} parent=11 // pred_region
          _
        $region16: #{_forward_core.5} parent=11 // pred_fallthru
          _
      $region12: #{_forward_core.5} parent=5 // pred_fallthru
        _
      %p126 = scmp.lt.s32.totalorder %s9, 2
      // Predicated region
      $region17: #{_forward_core.5} parent=5 // pred_check
        %p127 = pneg %p126
      $region18: #{_forward_core.5} parent=5 // pred_check_branch
        %129 = sbr.rel (%p127) target = $region20
      $region19: #{_forward_core.5} parent=5 // pred_region
        // Predicated region
        $region21: #{_forward_core.5} parent=19 // pred_check
          %p130 = pneg %p50
        $region22: #{_forward_core.5} parent=19 // pred_check_branch
          %132 = sbr.rel (%p130) target = $region24
        $region23: #{_forward_core.5} parent=19 // pred_region
          %s133 = sand.u32 %s40, 1
          %s134 = sand.u32 %s40, 1
          %s135 = smul.addr %s134, 256
          %s136 = scalar_lea.vmem [#allocation2], %s135
          %s137 = smul.u32 8, %s9
          %s138 = smul.addr %s137, 4
          %s139 = scalar_lea.vmem %s1, %s138
          // Predicated region
          $region25: #{_forward_core.5} parent=23 // pred_check
            _
          $region26: #{_forward_core.5} parent=23 // pred_check_branch
            %141 = sbr.rel (0) target = $region28
          $region27: #{_forward_core.5} parent=23 // pred_region
            // Predicated region
            $region29: #{_forward_core.5} parent=27 // pred_check
              _
            $region30: #{_forward_core.5} parent=27 // pred_check_branch
              %143 = sbr.rel (0) target = $region32
            $region31: #{_forward_core.5} parent=27 // pred_region
              loop: start=0, step=1, limit=1
              $region33: #{_forward_core.5} parent=31 // loop_pre_header
                _
              $region34: #{_forward_core.5} parent=31 // loop_header
                %s145 = sphi 0, %s149
                %p146 = scmp.ge.s32.totalorder %s145, 1
                %s150 = sphi %s139, %s139
                %s151 = sphi %s136, %s136
              $region35: #{_forward_core.5} parent=31 // loop_header_branch
                %148 = sbr.rel (%p146) target = $region39
              $region36: #{_forward_core.5} parent=31 // loop_body
                %v152 = vld [vmem:[%s150] sm:$0xff]
                %153 = vst [vmem:[%s151] sm:$0xff] %v152
                %v154 = vld [vmem:[%s150 + $0x8] sm:$0xff]
                %155 = vst [vmem:[%s151 + $0x8] sm:$0xff] %v154
                %v156 = vld [vmem:[%s150 + $0x10] sm:$0xff]
                %157 = vst [vmem:[%s151 + $0x10] sm:$0xff] %v156
                %v158 = vld [vmem:[%s150 + $0x18] sm:$0xff]
                %159 = vst [vmem:[%s151 + $0x18] sm:$0xff] %v158
                %v160 = vld [vmem:[%s150 + $0x40] sm:$0xff]
                %161 = vst [vmem:[%s151 + $0x20] sm:$0xff] %v160
                %v162 = vld [vmem:[%s150 + $0x48] sm:$0xff]
                %163 = vst [vmem:[%s151 + $0x28] sm:$0xff] %v162
                %v164 = vld [vmem:[%s150 + $0x50] sm:$0xff]
                %165 = vst [vmem:[%s151 + $0x30] sm:$0xff] %v164
                %v166 = vld [vmem:[%s150 + $0x58] sm:$0xff]
                %167 = vst [vmem:[%s151 + $0x38] sm:$0xff] %v166
                %v168 = vld [vmem:[%s150 + $0x80] sm:$0xff]
                %169 = vst [vmem:[%s151 + $0x40] sm:$0xff] %v168
                %v170 = vld [vmem:[%s150 + $0x88] sm:$0xff]
                %171 = vst [vmem:[%s151 + $0x48] sm:$0xff] %v170
                %v172 = vld [vmem:[%s150 + $0x90] sm:$0xff]
                %173 = vst [vmem:[%s151 + $0x50] sm:$0xff] %v172
                %v174 = vld [vmem:[%s150 + $0x98] sm:$0xff]
                %175 = vst [vmem:[%s151 + $0x58] sm:$0xff] %v174
                %v176 = vld [vmem:[%s150 + $0xc0] sm:$0xff]
                %177 = vst [vmem:[%s151 + $0x60] sm:$0xff] %v176
                %v178 = vld [vmem:[%s150 + $0xc8] sm:$0xff]
                %179 = vst [vmem:[%s151 + $0x68] sm:$0xff] %v178
                %v180 = vld [vmem:[%s150 + $0xd0] sm:$0xff]
                %181 = vst [vmem:[%s151 + $0x70] sm:$0xff] %v180
                %v182 = vld [vmem:[%s150 + $0xd8] sm:$0xff]
                %183 = vst [vmem:[%s151 + $0x78] sm:$0xff] %v182
                %v184 = vld [vmem:[%s150 + $0x100] sm:$0xff]
                %185 = vst [vmem:[%s151 + $0x80] sm:$0xff] %v184
                %v186 = vld [vmem:[%s150 + $0x108] sm:$0xff]
                %187 = vst [vmem:[%s151 + $0x88] sm:$0xff] %v186
                %v188 = vld [vmem:[%s150 + $0x110] sm:$0xff]
                %189 = vst [vmem:[%s151 + $0x90] sm:$0xff] %v188
                %v190 = vld [vmem:[%s150 + $0x118] sm:$0xff]
                %191 = vst [vmem:[%s151 + $0x98] sm:$0xff] %v190
                %v192 = vld [vmem:[%s150 + $0x140] sm:$0xff]
                %193 = vst [vmem:[%s151 + $0xa0] sm:$0xff] %v192
                %v194 = vld [vmem:[%s150 + $0x148] sm:$0xff]
                %195 = vst [vmem:[%s151 + $0xa8] sm:$0xff] %v194
                %v196 = vld [vmem:[%s150 + $0x150] sm:$0xff]
                %197 = vst [vmem:[%s151 + $0xb0] sm:$0xff] %v196
                %v198 = vld [vmem:[%s150 + $0x158] sm:$0xff]
                %199 = vst [vmem:[%s151 + $0xb8] sm:$0xff] %v198
                %v200 = vld [vmem:[%s150 + $0x180] sm:$0xff]
                %201 = vst [vmem:[%s151 + $0xc0] sm:$0xff] %v200
                %v202 = vld [vmem:[%s150 + $0x188] sm:$0xff]
                %203 = vst [vmem:[%s151 + $0xc8] sm:$0xff] %v202
                %v204 = vld [vmem:[%s150 + $0x190] sm:$0xff]
                %205 = vst [vmem:[%s151 + $0xd0] sm:$0xff] %v204
                %v206 = vld [vmem:[%s150 + $0x198] sm:$0xff]
                %207 = vst [vmem:[%s151 + $0xd8] sm:$0xff] %v206
                %v208 = vld [vmem:[%s150 + $0x1c0] sm:$0xff]
                %209 = vst [vmem:[%s151 + $0xe0] sm:$0xff] %v208
                %v210 = vld [vmem:[%s150 + $0x1c8] sm:$0xff]
                %211 = vst [vmem:[%s151 + $0xe8] sm:$0xff] %v210
                %v212 = vld [vmem:[%s150 + $0x1d0] sm:$0xff]
                %213 = vst [vmem:[%s151 + $0xf0] sm:$0xff] %v212
                %v214 = vld [vmem:[%s150 + $0x1d8] sm:$0xff]
                %215 = vst [vmem:[%s151 + $0xf8] sm:$0xff] %v214
              $region37: #{_forward_core.5} parent=31 // loop_footer
                %s149 = sadd.s32 1, %s145
              $region38: #{_forward_core.5} parent=31 // loop_footer_branch
                %144 = sbr.rel target = $region34
              $region39: #{_forward_core.5} parent=31 // loop_exit
                _
            $region32: #{_forward_core.5} parent=27 // pred_fallthru
              _
            // Predicated region
            $region40: #{_forward_core.5} parent=27 // pred_check
              _
            $region41: #{_forward_core.5} parent=27 // pred_check_branch
              %217 = sbr.rel target = $region43
            $region42: #{_forward_core.5} parent=27 // pred_region
              _
            $region43: #{_forward_core.5} parent=27 // pred_fallthru
              _
          $region28: #{_forward_core.5} parent=23 // pred_fallthru
            _
          %218 = vnop
        $region24: #{_forward_core.5} parent=19 // pred_fallthru
          _
        // Predicated region
        $region44: #{_forward_core.5} parent=19 // pred_check
          %p219 = pneg %p76
        $region45: #{_forward_core.5} parent=19 // pred_check_branch
          %221 = sbr.rel (%p219) target = $region47
        $region46: #{_forward_core.5} parent=19 // pred_region
          %s222 = smul.u32 8, %s9
          %p223 = scmp.lt.s32.totalorder %s222, 15
          %s224 = scalar_select %p223, %s222, 15
          %s225 = scalar_lea.vmem %s2, %s224
          %s226 = smul.u32 8, %s9
        $region47: #{_forward_core.5} parent=19 // pred_fallthru
          _
      $region20: #{_forward_core.5} parent=5 // pred_fallthru
        _
      %p227 = scmp.le.s32.totalorder 1, %s9
      %p228 = scmp.lt.s32.totalorder %s9, 3
      %p229 = pnand %p227, %p228
      %p230 = pneg %p229
      // Predicated region
      $region48: #{_forward_core.5} parent=5 // pred_check
        _
      $region49: #{_forward_core.5} parent=5 // pred_check_branch
        %232 = sbr.rel (%p229) target = $region51
      $region50: #{_forward_core.5} parent=5 // pred_region
        %s233 = ssub.s32 %s9, 1
        %s234 = sand.u32 %s43, 1
        %s235 = sand.u32 %s43, 1
        %s236 = smul.addr %s235, 256
        %s237 = scalar_lea.vmem [#allocation2], %s236
        // Predicated region
        $region52: #{_forward_core.5} parent=50 // pred_check
          %p238 = pneg %p56
        $region53: #{_forward_core.5} parent=50 // pred_check_branch
          %240 = sbr.rel (%p238) target = $region55
        $region54: #{_forward_core.5} parent=50 // pred_region
          _
        $region55: #{_forward_core.5} parent=50 // pred_fallthru
          _
        %p241 = pneg %p30
        %p242 = pneg %p27
        %s243 = sand.u32 %s43, 1
        %s244 = sand.u32 %s43, 1
        %s245 = smul.addr %s244, 256
        %s246 = scalar_lea.vmem [#allocation2], %s245
        %p247 = pneg %p56
        %p248 = pneg %p53
        %s249 = smul.u32 8, %s14
        %p250 = scmp.lt.s32.totalorder %s249, 15
        %s251 = scalar_select %p250, %s249, 15
        %s252 = scalar_lea.vmem %s2, %s251
        %p253 = pneg %p82
        %p254 = pneg %p79
        %p255 = pneg %p108
        %p256 = pneg %p105
        %s257 = sand.u32 %s95, 1
        %s258 = sand.u32 %s95, 1
        %s259 = smul.addr %s258, 1024
        %s260 = scalar_lea.vmem [#allocation3], %s259
        %s261 = smul.u32 8, %s14
        %s262 = smul.u32 8, %s14
        %p263 = scmp.lt.s32.totalorder %s262, 15
        %s264 = scalar_select %p263, %s262, 15
        %s265 = scalar_lea.vmem %s2, %s264
        %s266 = smul.u32 8, %s14
        %s267 = smul.u32 8, %s14
        %v269 = vld [vmem:[%s0] sm:$0xf]
        %v270 = vld [vmem:[%s0 + $0x4] sm:$0xf]
        %v271 = vld [vmem:[%s0 + $0x8] sm:$0xf]
        %v272 = vld [vmem:[%s0 + $0xc] sm:$0xf]
        %v273 = vld [vmem:[%s0 + $0x10] sm:$0xf]
        %v274 = vld [vmem:[%s0 + $0x14] sm:$0xf]
        %v275 = vld [vmem:[%s0 + $0x18] sm:$0xf]
        %v276 = vld [vmem:[%s0 + $0x1c] sm:$0xf]
        %v277 = vld [vmem:[%s0 + $0x20] sm:$0xf]
        %v278 = vld [vmem:[%s0 + $0x24] sm:$0xf]
        %v279 = vld [vmem:[%s0 + $0x28] sm:$0xf]
        %v280 = vld [vmem:[%s0 + $0x2c] sm:$0xf]
        %v281 = vld [vmem:[%s0 + $0x30] sm:$0xf]
        %v282 = vld [vmem:[%s0 + $0x34] sm:$0xf]
        %v283 = vld [vmem:[%s0 + $0x38] sm:$0xf]
        %v284 = vld [vmem:[%s0 + $0x3c] sm:$0xf]
        %v285 = vld [vmem:[%s237] sm:$0xff]
        %v286 = vld [vmem:[%s237 + $0x8] sm:$0xff]
        %v287 = vld [vmem:[%s237 + $0x10] sm:$0xff]
        %v288 = vld [vmem:[%s237 + $0x18] sm:$0xff]
        %v289 = vld [vmem:[%s237 + $0x20] sm:$0xff]
        %v290 = vld [vmem:[%s237 + $0x28] sm:$0xff]
        %v291 = vld [vmem:[%s237 + $0x30] sm:$0xff]
        %v292 = vld [vmem:[%s237 + $0x38] sm:$0xff]
        %v293 = vld [vmem:[%s237 + $0x40] sm:$0xff]
        %v294 = vld [vmem:[%s237 + $0x48] sm:$0xff]
        %v295 = vld [vmem:[%s237 + $0x50] sm:$0xff]
        %v296 = vld [vmem:[%s237 + $0x58] sm:$0xff]
        %v297 = vld [vmem:[%s237 + $0x60] sm:$0xff]
        %v298 = vld [vmem:[%s237 + $0x68] sm:$0xff]
        %v299 = vld [vmem:[%s237 + $0x70] sm:$0xff]
        %v300 = vld [vmem:[%s237 + $0x78] sm:$0xff]
        %v301 = vld [vmem:[%s237 + $0x80] sm:$0xff]
        %v302 = vld [vmem:[%s237 + $0x88] sm:$0xff]
        %v303 = vld [vmem:[%s237 + $0x90] sm:$0xff]
        %v304 = vld [vmem:[%s237 + $0x98] sm:$0xff]
        %v305 = vld [vmem:[%s237 + $0xa0] sm:$0xff]
        %v306 = vld [vmem:[%s237 + $0xa8] sm:$0xff]
        %v307 = vld [vmem:[%s237 + $0xb0] sm:$0xff]
        %v308 = vld [vmem:[%s237 + $0xb8] sm:$0xff]
        %v309 = vld [vmem:[%s237 + $0xc0] sm:$0xff]
        %v310 = vld [vmem:[%s237 + $0xc8] sm:$0xff]
        %v311 = vld [vmem:[%s237 + $0xd0] sm:$0xff]
        %v312 = vld [vmem:[%s237 + $0xd8] sm:$0xff]
        %v313 = vld [vmem:[%s237 + $0xe0] sm:$0xff]
        %v314 = vld [vmem:[%s237 + $0xe8] sm:$0xff]
        %v315 = vld [vmem:[%s237 + $0xf0] sm:$0xff]
        %v316 = vld [vmem:[%s237 + $0xf8] sm:$0xff]
        %v317 = vld [vmem:[%s265] sm:$0xff]
        %v319 = vlaneseq
        %v320 = vshrl.u32 %v319, 7
        %v321 = vsub.s32 0, %v320
        %v322 = vrot.slane %v317, %v321
        %v323 = vlaneseq
        %v324 = vshrl.u32 %v323, 7
        %v325 = vsub.s32 1, %v324
        %v326 = vrot.slane %v317, %v325
        %v327 = vlaneseq
        %v328 = vshrl.u32 %v327, 7
        %v329 = vsub.s32 2, %v328
        %v330 = vrot.slane %v317, %v329
        %v331 = vlaneseq
        %v332 = vshrl.u32 %v331, 7
        %v333 = vsub.s32 3, %v332
        %v334 = vrot.slane %v317, %v333
        %v335 = vlaneseq
        %v336 = vshrl.u32 %v335, 7
        %v337 = vsub.s32 4, %v336
        %v338 = vrot.slane %v317, %v337
        %v339 = vlaneseq
        %v340 = vshrl.u32 %v339, 7
        %v341 = vsub.s32 5, %v340
        %v342 = vrot.slane %v317, %v341
        %v343 = vlaneseq
        %v344 = vshrl.u32 %v343, 7
        %v345 = vsub.s32 6, %v344
        %v346 = vrot.slane %v317, %v345
        %v347 = vlaneseq
        %v348 = vshrl.u32 %v347, 7
        %v349 = vsub.s32 7, %v348
        %v350 = vrot.slane %v317, %v349
        %v375 = vunpack.c.l.b16 %v269
        %v376 = vunpack.c.l.b16 %v270
        %v377 = vunpack.c.l.b16 %v271
        %v378 = vunpack.c.l.b16 %v272
        %v379 = vunpack.c.l.b16 %v273
        %v380 = vunpack.c.l.b16 %v274
        %v381 = vunpack.c.l.b16 %v275
        %v382 = vunpack.c.l.b16 %v276
        %v383 = vunpack.c.l.b16 %v277
        %v384 = vunpack.c.l.b16 %v278
        %v385 = vunpack.c.l.b16 %v279
        %v386 = vunpack.c.l.b16 %v280
        %v387 = vunpack.c.l.b16 %v281
        %v388 = vunpack.c.l.b16 %v282
        %v389 = vunpack.c.l.b16 %v283
        %v390 = vunpack.c.l.b16 %v284
        %v391 = vpack.c.b16 %v376, %v375
        %v392 = vpack.c.b16 %v378, %v377
        %v393 = vpack.c.b16 %v380, %v379
        %v394 = vpack.c.b16 %v382, %v381
        %v395 = vpack.c.b16 %v384, %v383
        %v396 = vpack.c.b16 %v386, %v385
        %v397 = vpack.c.b16 %v388, %v387
        %v398 = vpack.c.b16 %v390, %v389
        %v431 = vunpack.c.l.b16 %v285
        %v432 = vunpack.c.h.b16 %v285
        %v433 = vunpack.c.l.b16 %v286
        %v434 = vunpack.c.h.b16 %v286
        %v435 = vunpack.c.l.b16 %v287
        %v436 = vunpack.c.h.b16 %v287
        %v437 = vunpack.c.l.b16 %v288
        %v438 = vunpack.c.h.b16 %v288
        %v439 = vunpack.c.l.b16 %v289
        %v440 = vunpack.c.h.b16 %v289
        %v441 = vunpack.c.l.b16 %v290
        %v442 = vunpack.c.h.b16 %v290
        %v443 = vunpack.c.l.b16 %v291
        %v444 = vunpack.c.h.b16 %v291
        %v445 = vunpack.c.l.b16 %v292
        %v446 = vunpack.c.h.b16 %v292
        %v447 = vunpack.c.l.b16 %v293
        %v448 = vunpack.c.h.b16 %v293
        %v449 = vunpack.c.l.b16 %v294
        %v450 = vunpack.c.h.b16 %v294
        %v451 = vunpack.c.l.b16 %v295
        %v452 = vunpack.c.h.b16 %v295
        %v453 = vunpack.c.l.b16 %v296
        %v454 = vunpack.c.h.b16 %v296
        %v455 = vunpack.c.l.b16 %v297
        %v456 = vunpack.c.h.b16 %v297
        %v457 = vunpack.c.l.b16 %v298
        %v458 = vunpack.c.h.b16 %v298
        %v459 = vunpack.c.l.b16 %v299
        %v460 = vunpack.c.h.b16 %v299
        %v461 = vunpack.c.l.b16 %v300
        %v462 = vunpack.c.h.b16 %v300
        %v463 = vunpack.c.l.b16 %v301
        %v464 = vunpack.c.h.b16 %v301
        %v465 = vunpack.c.l.b16 %v302
        %v466 = vunpack.c.h.b16 %v302
        %v467 = vunpack.c.l.b16 %v303
        %v468 = vunpack.c.h.b16 %v303
        %v469 = vunpack.c.l.b16 %v304
        %v470 = vunpack.c.h.b16 %v304
        %v471 = vunpack.c.l.b16 %v305
        %v472 = vunpack.c.h.b16 %v305
        %v473 = vunpack.c.l.b16 %v306
        %v474 = vunpack.c.h.b16 %v306
        %v475 = vunpack.c.l.b16 %v307
        %v476 = vunpack.c.h.b16 %v307
        %v477 = vunpack.c.l.b16 %v308
        %v478 = vunpack.c.h.b16 %v308
        %v479 = vunpack.c.l.b16 %v309
        %v480 = vunpack.c.h.b16 %v309
        %v481 = vunpack.c.l.b16 %v310
        %v482 = vunpack.c.h.b16 %v310
        %v483 = vunpack.c.l.b16 %v311
        %v484 = vunpack.c.h.b16 %v311
        %v485 = vunpack.c.l.b16 %v312
        %v486 = vunpack.c.h.b16 %v312
        %v487 = vunpack.c.l.b16 %v313
        %v488 = vunpack.c.h.b16 %v313
        %v489 = vunpack.c.l.b16 %v314
        %v490 = vunpack.c.h.b16 %v314
        %v491 = vunpack.c.l.b16 %v315
        %v492 = vunpack.c.h.b16 %v315
        %v493 = vunpack.c.l.b16 %v316
        %v494 = vunpack.c.h.b16 %v316
        %v495 = vpack.c.b16 %v439, %v431
        %v496 = vpack.c.b16 %v440, %v432
        %v497 = vpack.c.b16 %v441, %v433
        %v498 = vpack.c.b16 %v442, %v434
        %v499 = vpack.c.b16 %v443, %v435
        %v500 = vpack.c.b16 %v444, %v436
        %v501 = vpack.c.b16 %v445, %v437
        %v502 = vpack.c.b16 %v446, %v438
        %v503 = vpack.c.b16 %v455, %v447
        %v504 = vpack.c.b16 %v456, %v448
        %v505 = vpack.c.b16 %v457, %v449
        %v506 = vpack.c.b16 %v458, %v450
        %v507 = vpack.c.b16 %v459, %v451
        %v508 = vpack.c.b16 %v460, %v452
        %v509 = vpack.c.b16 %v461, %v453
        %v510 = vpack.c.b16 %v462, %v454
        %v511 = vpack.c.b16 %v471, %v463
        %v512 = vpack.c.b16 %v472, %v464
        %v513 = vpack.c.b16 %v473, %v465
        %v514 = vpack.c.b16 %v474, %v466
        %v515 = vpack.c.b16 %v475, %v467
        %v516 = vpack.c.b16 %v476, %v468
        %v517 = vpack.c.b16 %v477, %v469
        %v518 = vpack.c.b16 %v478, %v470
        %v519 = vpack.c.b16 %v487, %v479
        %v520 = vpack.c.b16 %v488, %v480
        %v521 = vpack.c.b16 %v489, %v481
        %v522 = vpack.c.b16 %v490, %v482
        %v523 = vpack.c.b16 %v491, %v483
        %v524 = vpack.c.b16 %v492, %v484
        %v525 = vpack.c.b16 %v493, %v485
        %v526 = vpack.c.b16 %v494, %v486
        %vm559 = vcmask 523264
        %v561 = vsel %vm559, %v391, 0
        %v564 = vsel %vm559, %v392, 0
        %v567 = vsel %vm559, %v393, 0
        %v570 = vsel %vm559, %v394, 0
        %v573 = vsel %vm559, %v395, 0
        %v576 = vsel %vm559, %v396, 0
        %v579 = vsel %vm559, %v397, 0
        %v582 = vsel %vm559, %v398, 0
        %584 = vmatprep.subr.bf16.mxu0 %v496
        %585 = vmatpush1.bf16.msra.mxu0 %v495
        %586 = vmatprep.subr.bf16.mxu0 %v504
        %587 = vmatpush1.bf16.msra.mxu0 %v503
        %588 = vmatprep.subr.bf16.mxu0 %v512
        %589 = vmatpush1.bf16.msra.mxu0 %v511
        %590 = vmatprep.subr.bf16.mxu0 %v520
        %591 = vmatpush1.bf16.msra.mxu0 %v519
        %592 = vmatprep.subr.bf16.mxu0 0
        %593 = vmatpush1.bf16.msra.mxu0 0
        %594 = vmatprep.subr.bf16.mxu0 0
        %595 = vmatpush1.bf16.msra.mxu0 0
        %596 = vmatprep.subr.bf16.mxu0 0
        %597 = vmatpush1.bf16.msra.mxu0 0
        %598 = vmatprep.subr.bf16.mxu0 0
        %599 = vmatpush1.bf16.msra.mxu0 0
        %600 = vmatprep.subr.bf16.mxu0 0
        %601 = vmatpush1.bf16.msra.mxu0 0
        %602 = vmatprep.subr.bf16.mxu0 0
        %603 = vmatpush1.bf16.msra.mxu0 0
        %604 = vmatprep.subr.bf16.mxu0 0
        %605 = vmatpush1.bf16.msra.mxu0 0
        %606 = vmatprep.subr.bf16.mxu0 0
        %607 = vmatpush1.bf16.msra.mxu0 0
        %608 = vmatprep.subr.bf16.mxu0 0
        %609 = vmatpush1.bf16.msra.mxu0 0
        %610 = vmatprep.subr.bf16.mxu0 0
        %611 = vmatpush1.bf16.msra.mxu0 0
        %612 = vmatprep.subr.bf16.mxu0 0
        %613 = vmatpush1.bf16.msra.mxu0 0
        %614 = vmatprep.subr.bf16.mxu0 0
        %615 = vmatpush1.bf16.msra.mxu0 0
        %616 = vmatprep.mubr.bf16.mxu0 0
        %617 = vmatmul.mubr.bf16.gmra.mrb[0].mxu0 %v561
        %v618 = vpop.f32.mrb[0].mxu0
        %v619 = vadd.f32 %v322, %v618
        %v620 = vpop.f32.mrb[0].mxu0
        %v621 = vadd.f32 %v326, %v620
        %v622 = vpop.f32.mrb[0].mxu0
        %v623 = vadd.f32 %v322, %v622
        %v624 = vpop.f32.mrb[0].mxu0
        %v625 = vadd.f32 %v326, %v624
        %626 = vmatprep.mubr.bf16.mxu0 0
        %627 = vmatmul.mubr.bf16.gmra.mrb[0].mxu0 %v564
        %v628 = vpop.f32.mrb[0].mxu0
        %v629 = vadd.f32 %v322, %v628
        %v630 = vpop.f32.mrb[0].mxu0
        %v631 = vadd.f32 %v326, %v630
        %v632 = vpop.f32.mrb[0].mxu0
        %v633 = vadd.f32 %v322, %v632
        %v634 = vpop.f32.mrb[0].mxu0
        %v635 = vadd.f32 %v326, %v634
        %636 = vmatprep.mubr.bf16.mxu0 0
        %637 = vmatmul.mubr.bf16.gmra.mrb[0].mxu0 %v567
        %v638 = vpop.f32.mrb[0].mxu0
        %v639 = vadd.f32 %v322, %v638
        %v640 = vpop.f32.mrb[0].mxu0
        %v641 = vadd.f32 %v326, %v640
        %v642 = vpop.f32.mrb[0].mxu0
        %v643 = vadd.f32 %v322, %v642
        %v644 = vpop.f32.mrb[0].mxu0
        %v645 = vadd.f32 %v326, %v644
        %646 = vmatprep.mubr.bf16.mxu0 0
        %647 = vmatmul.mubr.bf16.gmra.mrb[0].mxu0 %v570
        %v648 = vpop.f32.mrb[0].mxu0
        %v649 = vadd.f32 %v322, %v648
        %v650 = vpop.f32.mrb[0].mxu0
        %v651 = vadd.f32 %v326, %v650
        %v652 = vpop.f32.mrb[0].mxu0
        %v653 = vadd.f32 %v322, %v652
        %v654 = vpop.f32.mrb[0].mxu0
        %v655 = vadd.f32 %v326, %v654
        %656 = vmatprep.mubr.bf16.mxu0 0
        %657 = vmatmul.mubr.bf16.gmra.mrb[0].mxu0 %v573
        %v658 = vpop.f32.mrb[0].mxu0
        %v659 = vadd.f32 %v322, %v658
        %v660 = vpop.f32.mrb[0].mxu0
        %v661 = vadd.f32 %v326, %v660
        %v662 = vpop.f32.mrb[0].mxu0
        %v663 = vadd.f32 %v322, %v662
        %v664 = vpop.f32.mrb[0].mxu0
        %v665 = vadd.f32 %v326, %v664
        %666 = vmatprep.mubr.bf16.mxu0 0
        %667 = vmatmul.mubr.bf16.gmra.mrb[0].mxu0 %v576
        %v668 = vpop.f32.mrb[0].mxu0
        %v669 = vadd.f32 %v322, %v668
        %v670 = vpop.f32.mrb[0].mxu0
        %v671 = vadd.f32 %v326, %v670
        %v672 = vpop.f32.mrb[0].mxu0
        %v673 = vadd.f32 %v322, %v672
        %v674 = vpop.f32.mrb[0].mxu0
        %v675 = vadd.f32 %v326, %v674
        %676 = vmatprep.mubr.bf16.mxu0 0
        %677 = vmatmul.mubr.bf16.gmra.mrb[0].mxu0 %v579
        %v678 = vpop.f32.mrb[0].mxu0
        %v679 = vadd.f32 %v322, %v678
        %v680 = vpop.f32.mrb[0].mxu0
        %v681 = vadd.f32 %v326, %v680
        %v682 = vpop.f32.mrb[0].mxu0
        %v683 = vadd.f32 %v322, %v682
        %v684 = vpop.f32.mrb[0].mxu0
        %v685 = vadd.f32 %v326, %v684
        %686 = vmatprep.mubr.bf16.mxu0 0
        %687 = vmatmul.mubr.bf16.gmra.mrb[0].mxu0 %v582
        %v688 = vpop.f32.mrb[0].mxu0
        %v689 = vadd.f32 %v322, %v688
        %v690 = vpop.f32.mrb[0].mxu0
        %v691 = vadd.f32 %v326, %v690
        %v692 = vpop.f32.mrb[0].mxu0
        %v693 = vadd.f32 %v322, %v692
        %v694 = vpop.f32.mrb[0].mxu0
        %v695 = vadd.f32 %v326, %v694
        %696 = vdwg.mxu0
        %697 = vmatprep.subr.bf16.mxu0 %v498
        %698 = vmatpush1.bf16.msra.mxu0 %v497
        %699 = vmatprep.subr.bf16.mxu0 %v506
        %700 = vmatpush1.bf16.msra.mxu0 %v505
        %701 = vmatprep.subr.bf16.mxu0 %v514
        %702 = vmatpush1.bf16.msra.mxu0 %v513
        %703 = vmatprep.subr.bf16.mxu0 %v522
        %704 = vmatpush1.bf16.msra.mxu0 %v521
        %705 = vmatprep.subr.bf16.mxu0 0
        %706 = vmatpush1.bf16.msra.mxu0 0
        %707 = vmatprep.subr.bf16.mxu0 0
        %708 = vmatpush1.bf16.msra.mxu0 0
        %709 = vmatprep.subr.bf16.mxu0 0
        %710 = vmatpush1.bf16.msra.mxu0 0
        %711 = vmatprep.subr.bf16.mxu0 0
        %712 = vmatpush1.bf16.msra.mxu0 0
        %713 = vmatprep.subr.bf16.mxu0 0
        %714 = vmatpush1.bf16.msra.mxu0 0
        %715 = vmatprep.subr.bf16.mxu0 0
        %716 = vmatpush1.bf16.msra.mxu0 0
        %717 = vmatprep.subr.bf16.mxu0 0
        %718 = vmatpush1.bf16.msra.mxu0 0
        %719 = vmatprep.subr.bf16.mxu0 0
        %720 = vmatpush1.bf16.msra.mxu0 0
        %721 = vmatprep.subr.bf16.mxu0 0
        %722 = vmatpush1.bf16.msra.mxu0 0
        %723 = vmatprep.subr.bf16.mxu0 0
        %724 = vmatpush1.bf16.msra.mxu0 0
        %725 = vmatprep.subr.bf16.mxu0 0
        %726 = vmatpush1.bf16.msra.mxu0 0
        %727 = vmatprep.subr.bf16.mxu0 0
        %728 = vmatpush1.bf16.msra.mxu0 0
        %729 = vmatprep.mubr.bf16.mxu0 0
        %730 = vmatmul.mubr.bf16.gmra.mrb[0].mxu0 %v561
        %v731 = vpop.f32.mrb[0].mxu0
        %v732 = vadd.f32 %v330, %v731
        %v733 = vpop.f32.mrb[0].mxu0
        %v734 = vadd.f32 %v334, %v733
        %v735 = vpop.f32.mrb[0].mxu0
        %v736 = vadd.f32 %v330, %v735
        %v737 = vpop.f32.mrb[0].mxu0
        %v738 = vadd.f32 %v334, %v737
        %739 = vmatprep.mubr.bf16.mxu0 0
        %740 = vmatmul.mubr.bf16.gmra.mrb[0].mxu0 %v564
        %v741 = vpop.f32.mrb[0].mxu0
        %v742 = vadd.f32 %v330, %v741
        %v743 = vpop.f32.mrb[0].mxu0
        %v744 = vadd.f32 %v334, %v743
        %v745 = vpop.f32.mrb[0].mxu0
        %v746 = vadd.f32 %v330, %v745
        %v747 = vpop.f32.mrb[0].mxu0
        %v748 = vadd.f32 %v334, %v747
        %749 = vmatprep.mubr.bf16.mxu0 0
        %750 = vmatmul.mubr.bf16.gmra.mrb[0].mxu0 %v567
        %v751 = vpop.f32.mrb[0].mxu0
        %v752 = vadd.f32 %v330, %v751
        %v753 = vpop.f32.mrb[0].mxu0
        %v754 = vadd.f32 %v334, %v753
        %v755 = vpop.f32.mrb[0].mxu0
        %v756 = vadd.f32 %v330, %v755
        %v757 = vpop.f32.mrb[0].mxu0
        %v758 = vadd.f32 %v334, %v757
        %759 = vmatprep.mubr.bf16.mxu0 0
        %760 = vmatmul.mubr.bf16.gmra.mrb[0].mxu0 %v570
        %v761 = vpop.f32.mrb[0].mxu0
        %v762 = vadd.f32 %v330, %v761
        %v763 = vpop.f32.mrb[0].mxu0
        %v764 = vadd.f32 %v334, %v763
        %v765 = vpop.f32.mrb[0].mxu0
        %v766 = vadd.f32 %v330, %v765
        %v767 = vpop.f32.mrb[0].mxu0
        %v768 = vadd.f32 %v334, %v767
        %769 = vmatprep.mubr.bf16.mxu0 0
        %770 = vmatmul.mubr.bf16.gmra.mrb[0].mxu0 %v573
        %v771 = vpop.f32.mrb[0].mxu0
        %v772 = vadd.f32 %v330, %v771
        %v773 = vpop.f32.mrb[0].mxu0
        %v774 = vadd.f32 %v334, %v773
        %v775 = vpop.f32.mrb[0].mxu0
        %v776 = vadd.f32 %v330, %v775
        %v777 = vpop.f32.mrb[0].mxu0
        %v778 = vadd.f32 %v334, %v777
        %779 = vmatprep.mubr.bf16.mxu0 0
        %780 = vmatmul.mubr.bf16.gmra.mrb[0].mxu0 %v576
        %v781 = vpop.f32.mrb[0].mxu0
        %v782 = vadd.f32 %v330, %v781
        %v783 = vpop.f32.mrb[0].mxu0
        %v784 = vadd.f32 %v334, %v783
        %v785 = vpop.f32.mrb[0].mxu0
        %v786 = vadd.f32 %v330, %v785
        %v787 = vpop.f32.mrb[0].mxu0
        %v788 = vadd.f32 %v334, %v787
        %789 = vmatprep.mubr.bf16.mxu0 0
        %790 = vmatmul.mubr.bf16.gmra.mrb[0].mxu0 %v579
        %v791 = vpop.f32.mrb[0].mxu0
        %v792 = vadd.f32 %v330, %v791
        %v793 = vpop.f32.mrb[0].mxu0
        %v794 = vadd.f32 %v334, %v793
        %v795 = vpop.f32.mrb[0].mxu0
        %v796 = vadd.f32 %v330, %v795
        %v797 = vpop.f32.mrb[0].mxu0
        %v798 = vadd.f32 %v334, %v797
        %799 = vmatprep.mubr.bf16.mxu0 0
        %800 = vmatmul.mubr.bf16.gmra.mrb[0].mxu0 %v582
        %v801 = vpop.f32.mrb[0].mxu0
        %v802 = vadd.f32 %v330, %v801
        %v803 = vpop.f32.mrb[0].mxu0
        %v804 = vadd.f32 %v334, %v803
        %v805 = vpop.f32.mrb[0].mxu0
        %v806 = vadd.f32 %v330, %v805
        %v807 = vpop.f32.mrb[0].mxu0
        %v808 = vadd.f32 %v334, %v807
        %809 = vdwg.mxu0
        %810 = vmatprep.subr.bf16.mxu0 %v500
        %811 = vmatpush1.bf16.msra.mxu0 %v499
        %812 = vmatprep.subr.bf16.mxu0 %v508
        %813 = vmatpush1.bf16.msra.mxu0 %v507
        %814 = vmatprep.subr.bf16.mxu0 %v516
        %815 = vmatpush1.bf16.msra.mxu0 %v515
        %816 = vmatprep.subr.bf16.mxu0 %v524
        %817 = vmatpush1.bf16.msra.mxu0 %v523
        %818 = vmatprep.subr.bf16.mxu0 0
        %819 = vmatpush1.bf16.msra.mxu0 0
        %820 = vmatprep.subr.bf16.mxu0 0
        %821 = vmatpush1.bf16.msra.mxu0 0
        %822 = vmatprep.subr.bf16.mxu0 0
        %823 = vmatpush1.bf16.msra.mxu0 0
        %824 = vmatprep.subr.bf16.mxu0 0
        %825 = vmatpush1.bf16.msra.mxu0 0
        %826 = vmatprep.subr.bf16.mxu0 0
        %827 = vmatpush1.bf16.msra.mxu0 0
        %828 = vmatprep.subr.bf16.mxu0 0
        %829 = vmatpush1.bf16.msra.mxu0 0
        %830 = vmatprep.subr.bf16.mxu0 0
        %831 = vmatpush1.bf16.msra.mxu0 0
        %832 = vmatprep.subr.bf16.mxu0 0
        %833 = vmatpush1.bf16.msra.mxu0 0
        %834 = vmatprep.subr.bf16.mxu0 0
        %835 = vmatpush1.bf16.msra.mxu0 0
        %836 = vmatprep.subr.bf16.mxu0 0
        %837 = vmatpush1.bf16.msra.mxu0 0
        %838 = vmatprep.subr.bf16.mxu0 0
        %839 = vmatpush1.bf16.msra.mxu0 0
        %840 = vmatprep.subr.bf16.mxu0 0
        %841 = vmatpush1.bf16.msra.mxu0 0
        %842 = vmatprep.mubr.bf16.mxu0 0
        %843 = vmatmul.mubr.bf16.gmra.mrb[0].mxu0 %v561
        %v844 = vpop.f32.mrb[0].mxu0
        %v845 = vadd.f32 %v338, %v844
        %v846 = vpop.f32.mrb[0].mxu0
        %v847 = vadd.f32 %v342, %v846
        %v848 = vpop.f32.mrb[0].mxu0
        %v849 = vadd.f32 %v338, %v848
        %v850 = vpop.f32.mrb[0].mxu0
        %v851 = vadd.f32 %v342, %v850
        %852 = vmatprep.mubr.bf16.mxu0 0
        %853 = vmatmul.mubr.bf16.gmra.mrb[0].mxu0 %v564
        %v854 = vpop.f32.mrb[0].mxu0
        %v855 = vadd.f32 %v338, %v854
        %v856 = vpop.f32.mrb[0].mxu0
        %v857 = vadd.f32 %v342, %v856
        %v858 = vpop.f32.mrb[0].mxu0
        %v859 = vadd.f32 %v338, %v858
        %v860 = vpop.f32.mrb[0].mxu0
        %v861 = vadd.f32 %v342, %v860
        %862 = vmatprep.mubr.bf16.mxu0 0
        %863 = vmatmul.mubr.bf16.gmra.mrb[0].mxu0 %v567
        %v864 = vpop.f32.mrb[0].mxu0
        %v865 = vadd.f32 %v338, %v864
        %v866 = vpop.f32.mrb[0].mxu0
        %v867 = vadd.f32 %v342, %v866
        %v868 = vpop.f32.mrb[0].mxu0
        %v869 = vadd.f32 %v338, %v868
        %v870 = vpop.f32.mrb[0].mxu0
        %v871 = vadd.f32 %v342, %v870
        %872 = vmatprep.mubr.bf16.mxu0 0
        %873 = vmatmul.mubr.bf16.gmra.mrb[0].mxu0 %v570
        %v874 = vpop.f32.mrb[0].mxu0
        %v875 = vadd.f32 %v338, %v874
        %v876 = vpop.f32.mrb[0].mxu0
        %v877 = vadd.f32 %v342, %v876
        %v878 = vpop.f32.mrb[0].mxu0
        %v879 = vadd.f32 %v338, %v878
        %v880 = vpop.f32.mrb[0].mxu0
        %v881 = vadd.f32 %v342, %v880
        %882 = vmatprep.mubr.bf16.mxu0 0
        %883 = vmatmul.mubr.bf16.gmra.mrb[0].mxu0 %v573
        %v884 = vpop.f32.mrb[0].mxu0
        %v885 = vadd.f32 %v338, %v884
        %v886 = vpop.f32.mrb[0].mxu0
        %v887 = vadd.f32 %v342, %v886
        %v888 = vpop.f32.mrb[0].mxu0
        %v889 = vadd.f32 %v338, %v888
        %v890 = vpop.f32.mrb[0].mxu0
        %v891 = vadd.f32 %v342, %v890
        %892 = vmatprep.mubr.bf16.mxu0 0
        %893 = vmatmul.mubr.bf16.gmra.mrb[0].mxu0 %v576
        %v894 = vpop.f32.mrb[0].mxu0
        %v895 = vadd.f32 %v338, %v894
        %v896 = vpop.f32.mrb[0].mxu0
        %v897 = vadd.f32 %v342, %v896
        %v898 = vpop.f32.mrb[0].mxu0
        %v899 = vadd.f32 %v338, %v898
        %v900 = vpop.f32.mrb[0].mxu0
        %v901 = vadd.f32 %v342, %v900
        %902 = vmatprep.mubr.bf16.mxu0 0
        %903 = vmatmul.mubr.bf16.gmra.mrb[0].mxu0 %v579
        %v904 = vpop.f32.mrb[0].mxu0
        %v905 = vadd.f32 %v338, %v904
        %v906 = vpop.f32.mrb[0].mxu0
        %v907 = vadd.f32 %v342, %v906
        %v908 = vpop.f32.mrb[0].mxu0
        %v909 = vadd.f32 %v338, %v908
        %v910 = vpop.f32.mrb[0].mxu0
        %v911 = vadd.f32 %v342, %v910
        %912 = vmatprep.mubr.bf16.mxu0 0
        %913 = vmatmul.mubr.bf16.gmra.mrb[0].mxu0 %v582
        %v914 = vpop.f32.mrb[0].mxu0
        %v915 = vadd.f32 %v338, %v914
        %v916 = vpop.f32.mrb[0].mxu0
        %v917 = vadd.f32 %v342, %v916
        %v918 = vpop.f32.mrb[0].mxu0
        %v919 = vadd.f32 %v338, %v918
        %v920 = vpop.f32.mrb[0].mxu0
        %v921 = vadd.f32 %v342, %v920
        %922 = vdwg.mxu0
        %923 = vmatprep.subr.bf16.mxu0 %v502
        %924 = vmatpush1.bf16.msra.mxu0 %v501
        %925 = vmatprep.subr.bf16.mxu0 %v510
        %926 = vmatpush1.bf16.msra.mxu0 %v509
        %927 = vmatprep.subr.bf16.mxu0 %v518
        %928 = vmatpush1.bf16.msra.mxu0 %v517
        %929 = vmatprep.subr.bf16.mxu0 %v526
        %930 = vmatpush1.bf16.msra.mxu0 %v525
        %931 = vmatprep.subr.bf16.mxu0 0
        %932 = vmatpush1.bf16.msra.mxu0 0
        %933 = vmatprep.subr.bf16.mxu0 0
        %934 = vmatpush1.bf16.msra.mxu0 0
        %935 = vmatprep.subr.bf16.mxu0 0
        %936 = vmatpush1.bf16.msra.mxu0 0
        %937 = vmatprep.subr.bf16.mxu0 0
        %938 = vmatpush1.bf16.msra.mxu0 0
        %939 = vmatprep.subr.bf16.mxu0 0
        %940 = vmatpush1.bf16.msra.mxu0 0
        %941 = vmatprep.subr.bf16.mxu0 0
        %942 = vmatpush1.bf16.msra.mxu0 0
        %943 = vmatprep.subr.bf16.mxu0 0
        %944 = vmatpush1.bf16.msra.mxu0 0
        %945 = vmatprep.subr.bf16.mxu0 0
        %946 = vmatpush1.bf16.msra.mxu0 0
        %947 = vmatprep.subr.bf16.mxu0 0
        %948 = vmatpush1.bf16.msra.mxu0 0
        %949 = vmatprep.subr.bf16.mxu0 0
        %950 = vmatpush1.bf16.msra.mxu0 0
        %951 = vmatprep.subr.bf16.mxu0 0
        %952 = vmatpush1.bf16.msra.mxu0 0
        %953 = vmatprep.subr.bf16.mxu0 0
        %954 = vmatpush1.bf16.msra.mxu0 0
        %955 = vmatprep.mubr.bf16.mxu0 0
        %956 = vmatmul.mubr.bf16.gmra.mrb[0].mxu0 %v561
        %v957 = vpop.f32.mrb[0].mxu0
        %v958 = vadd.f32 %v346, %v957
        %v959 = vpop.f32.mrb[0].mxu0
        %v960 = vadd.f32 %v350, %v959
        %v961 = vpop.f32.mrb[0].mxu0
        %v962 = vadd.f32 %v346, %v961
        %v963 = vpop.f32.mrb[0].mxu0
        %v964 = vadd.f32 %v350, %v963
        %965 = vmatprep.mubr.bf16.mxu0 0
        %966 = vmatmul.mubr.bf16.gmra.mrb[0].mxu0 %v564
        %v967 = vpop.f32.mrb[0].mxu0
        %v968 = vadd.f32 %v346, %v967
        %v969 = vpop.f32.mrb[0].mxu0
        %v970 = vadd.f32 %v350, %v969
        %v971 = vpop.f32.mrb[0].mxu0
        %v972 = vadd.f32 %v346, %v971
        %v973 = vpop.f32.mrb[0].mxu0
        %v974 = vadd.f32 %v350, %v973
        %975 = vmatprep.mubr.bf16.mxu0 0
        %976 = vmatmul.mubr.bf16.gmra.mrb[0].mxu0 %v567
        %v977 = vpop.f32.mrb[0].mxu0
        %v978 = vadd.f32 %v346, %v977
        %v979 = vpop.f32.mrb[0].mxu0
        %v980 = vadd.f32 %v350, %v979
        %v981 = vpop.f32.mrb[0].mxu0
        %v982 = vadd.f32 %v346, %v981
        %v983 = vpop.f32.mrb[0].mxu0
        %v984 = vadd.f32 %v350, %v983
        %985 = vmatprep.mubr.bf16.mxu0 0
        %986 = vmatmul.mubr.bf16.gmra.mrb[0].mxu0 %v570
        %v987 = vpop.f32.mrb[0].mxu0
        %v988 = vadd.f32 %v346, %v987
        %v989 = vpop.f32.mrb[0].mxu0
        %v990 = vadd.f32 %v350, %v989
        %v991 = vpop.f32.mrb[0].mxu0
        %v992 = vadd.f32 %v346, %v991
        %v993 = vpop.f32.mrb[0].mxu0
        %v994 = vadd.f32 %v350, %v993
        %995 = vmatprep.mubr.bf16.mxu0 0
        %996 = vmatmul.mubr.bf16.gmra.mrb[0].mxu0 %v573
        %v997 = vpop.f32.mrb[0].mxu0
        %v998 = vadd.f32 %v346, %v997
        %v999 = vpop.f32.mrb[0].mxu0
        %v1000 = vadd.f32 %v350, %v999
        %v1001 = vpop.f32.mrb[0].mxu0
        %v1002 = vadd.f32 %v346, %v1001
        %v1003 = vpop.f32.mrb[0].mxu0
        %v1004 = vadd.f32 %v350, %v1003
        %1005 = vmatprep.mubr.bf16.mxu0 0
        %1006 = vmatmul.mubr.bf16.gmra.mrb[0].mxu0 %v576
        %v1007 = vpop.f32.mrb[0].mxu0
        %v1008 = vadd.f32 %v346, %v1007
        %v1009 = vpop.f32.mrb[0].mxu0
        %v1010 = vadd.f32 %v350, %v1009
        %v1011 = vpop.f32.mrb[0].mxu0
        %v1012 = vadd.f32 %v346, %v1011
        %v1013 = vpop.f32.mrb[0].mxu0
        %v1014 = vadd.f32 %v350, %v1013
        %1015 = vmatprep.mubr.bf16.mxu0 0
        %1016 = vmatmul.mubr.bf16.gmra.mrb[0].mxu0 %v579
        %v1017 = vpop.f32.mrb[0].mxu0
        %v1018 = vadd.f32 %v346, %v1017
        %v1019 = vpop.f32.mrb[0].mxu0
        %v1020 = vadd.f32 %v350, %v1019
        %v1021 = vpop.f32.mrb[0].mxu0
        %v1022 = vadd.f32 %v346, %v1021
        %v1023 = vpop.f32.mrb[0].mxu0
        %v1024 = vadd.f32 %v350, %v1023
        %1025 = vmatprep.mubr.bf16.mxu0 0
        %1026 = vmatmul.mubr.bf16.gmra.mrb[0].mxu0 %v582
        %v1027 = vpop.f32.mrb[0].mxu0
        %v1028 = vadd.f32 %v346, %v1027
        %v1029 = vpop.f32.mrb[0].mxu0
        %v1030 = vadd.f32 %v350, %v1029
        %v1031 = vpop.f32.mrb[0].mxu0
        %v1032 = vadd.f32 %v346, %v1031
        %v1033 = vpop.f32.mrb[0].mxu0
        %v1034 = vadd.f32 %v350, %v1033
        %1035 = vdwg.mxu0
        %1036 = vst [vmem:[%s260] sm:$0xff] %v619
        %1037 = vst [vmem:[%s260 + $0x8] sm:$0xff] %v621
        %1038 = vst [vmem:[%s260 + $0x10] sm:$0xff] %v732
        %1039 = vst [vmem:[%s260 + $0x18] sm:$0xff] %v734
        %1040 = vst [vmem:[%s260 + $0x20] sm:$0xff] %v845
        %1041 = vst [vmem:[%s260 + $0x28] sm:$0xff] %v847
        %1042 = vst [vmem:[%s260 + $0x30] sm:$0xff] %v958
        %1043 = vst [vmem:[%s260 + $0x38] sm:$0xff] %v960
        %1044 = vst [vmem:[%s260 + $0x40] sm:$0xff] %v623
        %1045 = vst [vmem:[%s260 + $0x48] sm:$0xff] %v625
        %1046 = vst [vmem:[%s260 + $0x50] sm:$0xff] %v736
        %1047 = vst [vmem:[%s260 + $0x58] sm:$0xff] %v738
        %1048 = vst [vmem:[%s260 + $0x60] sm:$0xff] %v849
        %1049 = vst [vmem:[%s260 + $0x68] sm:$0xff] %v851
        %1050 = vst [vmem:[%s260 + $0x70] sm:$0xff] %v962
        %1051 = vst [vmem:[%s260 + $0x78] sm:$0xff] %v964
        %1052 = vst [vmem:[%s260 + $0x80] sm:$0xff] %v629
        %1053 = vst [vmem:[%s260 + $0x88] sm:$0xff] %v631
        %1054 = vst [vmem:[%s260 + $0x90] sm:$0xff] %v742
        %1055 = vst [vmem:[%s260 + $0x98] sm:$0xff] %v744
        %1056 = vst [vmem:[%s260 + $0xa0] sm:$0xff] %v855
        %1057 = vst [vmem:[%s260 + $0xa8] sm:$0xff] %v857
        %1058 = vst [vmem:[%s260 + $0xb0] sm:$0xff] %v968
        %1059 = vst [vmem:[%s260 + $0xb8] sm:$0xff] %v970
        %1060 = vst [vmem:[%s260 + $0xc0] sm:$0xff] %v633
        %1061 = vst [vmem:[%s260 + $0xc8] sm:$0xff] %v635
        %1062 = vst [vmem:[%s260 + $0xd0] sm:$0xff] %v746
        %1063 = vst [vmem:[%s260 + $0xd8] sm:$0xff] %v748
        %1064 = vst [vmem:[%s260 + $0xe0] sm:$0xff] %v859
        %1065 = vst [vmem:[%s260 + $0xe8] sm:$0xff] %v861
        %1066 = vst [vmem:[%s260 + $0xf0] sm:$0xff] %v972
        %1067 = vst [vmem:[%s260 + $0xf8] sm:$0xff] %v974
        %1068 = vst [vmem:[%s260 + $0x100] sm:$0xff] %v639
        %1069 = vst [vmem:[%s260 + $0x108] sm:$0xff] %v641
        %1070 = vst [vmem:[%s260 + $0x110] sm:$0xff] %v752
        %1071 = vst [vmem:[%s260 + $0x118] sm:$0xff] %v754
        %1072 = vst [vmem:[%s260 + $0x120] sm:$0xff] %v865
        %1073 = vst [vmem:[%s260 + $0x128] sm:$0xff] %v867
        %1074 = vst [vmem:[%s260 + $0x130] sm:$0xff] %v978
        %1075 = vst [vmem:[%s260 + $0x138] sm:$0xff] %v980
        %1076 = vst [vmem:[%s260 + $0x140] sm:$0xff] %v643
        %1077 = vst [vmem:[%s260 + $0x148] sm:$0xff] %v645
        %1078 = vst [vmem:[%s260 + $0x150] sm:$0xff] %v756
        %1079 = vst [vmem:[%s260 + $0x158] sm:$0xff] %v758
        %1080 = vst [vmem:[%s260 + $0x160] sm:$0xff] %v869
        %1081 = vst [vmem:[%s260 + $0x168] sm:$0xff] %v871
        %1082 = vst [vmem:[%s260 + $0x170] sm:$0xff] %v982
        %1083 = vst [vmem:[%s260 + $0x178] sm:$0xff] %v984
        %1084 = vst [vmem:[%s260 + $0x180] sm:$0xff] %v649
        %1085 = vst [vmem:[%s260 + $0x188] sm:$0xff] %v651
        %1086 = vst [vmem:[%s260 + $0x190] sm:$0xff] %v762
        %1087 = vst [vmem:[%s260 + $0x198] sm:$0xff] %v764
        %1088 = vst [vmem:[%s260 + $0x1a0] sm:$0xff] %v875
        %1089 = vst [vmem:[%s260 + $0x1a8] sm:$0xff] %v877
        %1090 = vst [vmem:[%s260 + $0x1b0] sm:$0xff] %v988
        %1091 = vst [vmem:[%s260 + $0x1b8] sm:$0xff] %v990
        %1092 = vst [vmem:[%s260 + $0x1c0] sm:$0xff] %v653
        %1093 = vst [vmem:[%s260 + $0x1c8] sm:$0xff] %v655
        %1094 = vst [vmem:[%s260 + $0x1d0] sm:$0xff] %v766
        %1095 = vst [vmem:[%s260 + $0x1d8] sm:$0xff] %v768
        %1096 = vst [vmem:[%s260 + $0x1e0] sm:$0xff] %v879
        %1097 = vst [vmem:[%s260 + $0x1e8] sm:$0xff] %v881
        %1098 = vst [vmem:[%s260 + $0x1f0] sm:$0xff] %v992
        %1099 = vst [vmem:[%s260 + $0x1f8] sm:$0xff] %v994
        %1100 = vst [vmem:[%s260 + $0x200] sm:$0xff] %v659
        %1101 = vst [vmem:[%s260 + $0x208] sm:$0xff] %v661
        %1102 = vst [vmem:[%s260 + $0x210] sm:$0xff] %v772
        %1103 = vst [vmem:[%s260 + $0x218] sm:$0xff] %v774
        %1104 = vst [vmem:[%s260 + $0x220] sm:$0xff] %v885
        %1105 = vst [vmem:[%s260 + $0x228] sm:$0xff] %v887
        %1106 = vst [vmem:[%s260 + $0x230] sm:$0xff] %v998
        %1107 = vst [vmem:[%s260 + $0x238] sm:$0xff] %v1000
        %1108 = vst [vmem:[%s260 + $0x240] sm:$0xff] %v663
        %1109 = vst [vmem:[%s260 + $0x248] sm:$0xff] %v665
        %1110 = vst [vmem:[%s260 + $0x250] sm:$0xff] %v776
        %1111 = vst [vmem:[%s260 + $0x258] sm:$0xff] %v778
        %1112 = vst [vmem:[%s260 + $0x260] sm:$0xff] %v889
        %1113 = vst [vmem:[%s260 + $0x268] sm:$0xff] %v891
        %1114 = vst [vmem:[%s260 + $0x270] sm:$0xff] %v1002
        %1115 = vst [vmem:[%s260 + $0x278] sm:$0xff] %v1004
        %1116 = vst [vmem:[%s260 + $0x280] sm:$0xff] %v669
        %1117 = vst [vmem:[%s260 + $0x288] sm:$0xff] %v671
        %1118 = vst [vmem:[%s260 + $0x290] sm:$0xff] %v782
        %1119 = vst [vmem:[%s260 + $0x298] sm:$0xff] %v784
        %1120 = vst [vmem:[%s260 + $0x2a0] sm:$0xff] %v895
        %1121 = vst [vmem:[%s260 + $0x2a8] sm:$0xff] %v897
        %1122 = vst [vmem:[%s260 + $0x2b0] sm:$0xff] %v1008
        %1123 = vst [vmem:[%s260 + $0x2b8] sm:$0xff] %v1010
        %1124 = vst [vmem:[%s260 + $0x2c0] sm:$0xff] %v673
        %1125 = vst [vmem:[%s260 + $0x2c8] sm:$0xff] %v675
        %1126 = vst [vmem:[%s260 + $0x2d0] sm:$0xff] %v786
        %1127 = vst [vmem:[%s260 + $0x2d8] sm:$0xff] %v788
        %1128 = vst [vmem:[%s260 + $0x2e0] sm:$0xff] %v899
        %1129 = vst [vmem:[%s260 + $0x2e8] sm:$0xff] %v901
        %1130 = vst [vmem:[%s260 + $0x2f0] sm:$0xff] %v1012
        %1131 = vst [vmem:[%s260 + $0x2f8] sm:$0xff] %v1014
        %1132 = vst [vmem:[%s260 + $0x300] sm:$0xff] %v679
        %1133 = vst [vmem:[%s260 + $0x308] sm:$0xff] %v681
        %1134 = vst [vmem:[%s260 + $0x310] sm:$0xff] %v792
        %1135 = vst [vmem:[%s260 + $0x318] sm:$0xff] %v794
        %1136 = vst [vmem:[%s260 + $0x320] sm:$0xff] %v905
        %1137 = vst [vmem:[%s260 + $0x328] sm:$0xff] %v907
        %1138 = vst [vmem:[%s260 + $0x330] sm:$0xff] %v1018
        %1139 = vst [vmem:[%s260 + $0x338] sm:$0xff] %v1020
        %1140 = vst [vmem:[%s260 + $0x340] sm:$0xff] %v683
        %1141 = vst [vmem:[%s260 + $0x348] sm:$0xff] %v685
        %1142 = vst [vmem:[%s260 + $0x350] sm:$0xff] %v796
        %1143 = vst [vmem:[%s260 + $0x358] sm:$0xff] %v798
        %1144 = vst [vmem:[%s260 + $0x360] sm:$0xff] %v909
        %1145 = vst [vmem:[%s260 + $0x368] sm:$0xff] %v911
        %1146 = vst [vmem:[%s260 + $0x370] sm:$0xff] %v1022
        %1147 = vst [vmem:[%s260 + $0x378] sm:$0xff] %v1024
        %1148 = vst [vmem:[%s260 + $0x380] sm:$0xff] %v689
        %1149 = vst [vmem:[%s260 + $0x388] sm:$0xff] %v691
        %1150 = vst [vmem:[%s260 + $0x390] sm:$0xff] %v802
        %1151 = vst [vmem:[%s260 + $0x398] sm:$0xff] %v804
        %1152 = vst [vmem:[%s260 + $0x3a0] sm:$0xff] %v915
        %1153 = vst [vmem:[%s260 + $0x3a8] sm:$0xff] %v917
        %1154 = vst [vmem:[%s260 + $0x3b0] sm:$0xff] %v1028
        %1155 = vst [vmem:[%s260 + $0x3b8] sm:$0xff] %v1030
        %1156 = vst [vmem:[%s260 + $0x3c0] sm:$0xff] %v693
        %1157 = vst [vmem:[%s260 + $0x3c8] sm:$0xff] %v695
        %1158 = vst [vmem:[%s260 + $0x3d0] sm:$0xff] %v806
        %1159 = vst [vmem:[%s260 + $0x3d8] sm:$0xff] %v808
        %1160 = vst [vmem:[%s260 + $0x3e0] sm:$0xff] %v919
        %1161 = vst [vmem:[%s260 + $0x3e8] sm:$0xff] %v921
        %1162 = vst [vmem:[%s260 + $0x3f0] sm:$0xff] %v1032
        %1163 = vst [vmem:[%s260 + $0x3f8] sm:$0xff] %v1034
        %s1164 = sand.u32 %s95, 1
        %s1165 = sand.u32 %s95, 1
        %s1166 = smul.addr %s1165, 1024
        %s1167 = scalar_lea.vmem [#allocation3], %s1166
        // Predicated region
        $region56: #{_forward_core.5} parent=50 // pred_check
          %p1168 = pneg %p105
        $region57: #{_forward_core.5} parent=50 // pred_check_branch
          %1170 = sbr.rel (%p1168) target = $region59
        $region58: #{_forward_core.5} parent=50 // pred_region
          %s1171 = smul.u32 8, %s14
          %s1172 = smul.addr %s1171, 8
          %s1173 = scalar_lea.vmem %s3, %s1172
          // Predicated region
          $region60: #{_forward_core.5} parent=58 // pred_check
            _
          $region61: #{_forward_core.5} parent=58 // pred_check_branch
            %1175 = sbr.rel (0) target = $region63
          $region62: #{_forward_core.5} parent=58 // pred_region
            // Predicated region
            $region64: #{_forward_core.5} parent=62 // pred_check
              _
            $region65: #{_forward_core.5} parent=62 // pred_check_branch
              %1177 = sbr.rel (0) target = $region67
            $region66: #{_forward_core.5} parent=62 // pred_region
              loop: start=0, step=1, limit=1
              $region68: #{_forward_core.5} parent=66 // loop_pre_header
                _
              $region69: #{_forward_core.5} parent=66 // loop_header
                %s1179 = sphi 0, %s1183
                %p1180 = scmp.ge.s32.totalorder %s1179, 1
                %s1184 = sphi %s1167, %s1167
                %s1185 = sphi %s1173, %s1173
              $region70: #{_forward_core.5} parent=66 // loop_header_branch
                %1182 = sbr.rel (%p1180) target = $region74
              $region71: #{_forward_core.5} parent=66 // loop_body
                %v1186 = vld [vmem:[%s1184] sm:$0xff]
                %1187 = vst [vmem:[%s1185] sm:$0xff] %v1186
                %v1188 = vld [vmem:[%s1184 + $0x8] sm:$0xff]
                %1189 = vst [vmem:[%s1185 + $0x8] sm:$0xff] %v1188
                %v1190 = vld [vmem:[%s1184 + $0x10] sm:$0xff]
                %1191 = vst [vmem:[%s1185 + $0x10] sm:$0xff] %v1190
                %v1192 = vld [vmem:[%s1184 + $0x18] sm:$0xff]
                %1193 = vst [vmem:[%s1185 + $0x18] sm:$0xff] %v1192
                %v1194 = vld [vmem:[%s1184 + $0x20] sm:$0xff]
                %1195 = vst [vmem:[%s1185 + $0x20] sm:$0xff] %v1194
                %v1196 = vld [vmem:[%s1184 + $0x28] sm:$0xff]
                %1197 = vst [vmem:[%s1185 + $0x28] sm:$0xff] %v1196
                %v1198 = vld [vmem:[%s1184 + $0x30] sm:$0xff]
                %1199 = vst [vmem:[%s1185 + $0x30] sm:$0xff] %v1198
                %v1200 = vld [vmem:[%s1184 + $0x38] sm:$0xff]
                %1201 = vst [vmem:[%s1185 + $0x38] sm:$0xff] %v1200
                %v1202 = vld [vmem:[%s1184 + $0x40] sm:$0xff]
                %1203 = vst [vmem:[%s1185 + $0x80] sm:$0xff] %v1202
                %v1204 = vld [vmem:[%s1184 + $0x48] sm:$0xff]
                %1205 = vst [vmem:[%s1185 + $0x88] sm:$0xff] %v1204
                %v1206 = vld [vmem:[%s1184 + $0x50] sm:$0xff]
                %1207 = vst [vmem:[%s1185 + $0x90] sm:$0xff] %v1206
                %v1208 = vld [vmem:[%s1184 + $0x58] sm:$0xff]
                %1209 = vst [vmem:[%s1185 + $0x98] sm:$0xff] %v1208
                %v1210 = vld [vmem:[%s1184 + $0x60] sm:$0xff]
                %1211 = vst [vmem:[%s1185 + $0xa0] sm:$0xff] %v1210
                %v1212 = vld [vmem:[%s1184 + $0x68] sm:$0xff]
                %1213 = vst [vmem:[%s1185 + $0xa8] sm:$0xff] %v1212
                %v1214 = vld [vmem:[%s1184 + $0x70] sm:$0xff]
                %1215 = vst [vmem:[%s1185 + $0xb0] sm:$0xff] %v1214
                %v1216 = vld [vmem:[%s1184 + $0x78] sm:$0xff]
                %1217 = vst [vmem:[%s1185 + $0xb8] sm:$0xff] %v1216
                %v1218 = vld [vmem:[%s1184 + $0x80] sm:$0xff]
                %1219 = vst [vmem:[%s1185 + $0x100] sm:$0xff] %v1218
                %v1220 = vld [vmem:[%s1184 + $0x88] sm:$0xff]
                %1221 = vst [vmem:[%s1185 + $0x108] sm:$0xff] %v1220
                %v1222 = vld [vmem:[%s1184 + $0x90] sm:$0xff]
                %1223 = vst [vmem:[%s1185 + $0x110] sm:$0xff] %v1222
                %v1224 = vld [vmem:[%s1184 + $0x98] sm:$0xff]
                %1225 = vst [vmem:[%s1185 + $0x118] sm:$0xff] %v1224
                %v1226 = vld [vmem:[%s1184 + $0xa0] sm:$0xff]
                %1227 = vst [vmem:[%s1185 + $0x120] sm:$0xff] %v1226
                %v1228 = vld [vmem:[%s1184 + $0xa8] sm:$0xff]
                %1229 = vst [vmem:[%s1185 + $0x128] sm:$0xff] %v1228
                %v1230 = vld [vmem:[%s1184 + $0xb0] sm:$0xff]
                %1231 = vst [vmem:[%s1185 + $0x130] sm:$0xff] %v1230
                %v1232 = vld [vmem:[%s1184 + $0xb8] sm:$0xff]
                %1233 = vst [vmem:[%s1185 + $0x138] sm:$0xff] %v1232
                %v1234 = vld [vmem:[%s1184 + $0xc0] sm:$0xff]
                %1235 = vst [vmem:[%s1185 + $0x180] sm:$0xff] %v1234
                %v1236 = vld [vmem:[%s1184 + $0xc8] sm:$0xff]
                %1237 = vst [vmem:[%s1185 + $0x188] sm:$0xff] %v1236
                %v1238 = vld [vmem:[%s1184 + $0xd0] sm:$0xff]
                %1239 = vst [vmem:[%s1185 + $0x190] sm:$0xff] %v1238
                %v1240 = vld [vmem:[%s1184 + $0xd8] sm:$0xff]
                %1241 = vst [vmem:[%s1185 + $0x198] sm:$0xff] %v1240
                %v1242 = vld [vmem:[%s1184 + $0xe0] sm:$0xff]
                %1243 = vst [vmem:[%s1185 + $0x1a0] sm:$0xff] %v1242
                %v1244 = vld [vmem:[%s1184 + $0xe8] sm:$0xff]
                %1245 = vst [vmem:[%s1185 + $0x1a8] sm:$0xff] %v1244
                %v1246 = vld [vmem:[%s1184 + $0xf0] sm:$0xff]
                %1247 = vst [vmem:[%s1185 + $0x1b0] sm:$0xff] %v1246
                %v1248 = vld [vmem:[%s1184 + $0xf8] sm:$0xff]
                %1249 = vst [vmem:[%s1185 + $0x1b8] sm:$0xff] %v1248
                %v1250 = vld [vmem:[%s1184 + $0x100] sm:$0xff]
                %1251 = vst [vmem:[%s1185 + $0x200] sm:$0xff] %v1250
                %v1252 = vld [vmem:[%s1184 + $0x108] sm:$0xff]
                %1253 = vst [vmem:[%s1185 + $0x208] sm:$0xff] %v1252
                %v1254 = vld [vmem:[%s1184 + $0x110] sm:$0xff]
                %1255 = vst [vmem:[%s1185 + $0x210] sm:$0xff] %v1254
                %v1256 = vld [vmem:[%s1184 + $0x118] sm:$0xff]
                %1257 = vst [vmem:[%s1185 + $0x218] sm:$0xff] %v1256
                %v1258 = vld [vmem:[%s1184 + $0x120] sm:$0xff]
                %1259 = vst [vmem:[%s1185 + $0x220] sm:$0xff] %v1258
                %v1260 = vld [vmem:[%s1184 + $0x128] sm:$0xff]
                %1261 = vst [vmem:[%s1185 + $0x228] sm:$0xff] %v1260
                %v1262 = vld [vmem:[%s1184 + $0x130] sm:$0xff]
                %1263 = vst [vmem:[%s1185 + $0x230] sm:$0xff] %v1262
                %v1264 = vld [vmem:[%s1184 + $0x138] sm:$0xff]
                %1265 = vst [vmem:[%s1185 + $0x238] sm:$0xff] %v1264
                %v1266 = vld [vmem:[%s1184 + $0x140] sm:$0xff]
                %1267 = vst [vmem:[%s1185 + $0x280] sm:$0xff] %v1266
                %v1268 = vld [vmem:[%s1184 + $0x148] sm:$0xff]
                %1269 = vst [vmem:[%s1185 + $0x288] sm:$0xff] %v1268
                %v1270 = vld [vmem:[%s1184 + $0x150] sm:$0xff]
                %1271 = vst [vmem:[%s1185 + $0x290] sm:$0xff] %v1270
                %v1272 = vld [vmem:[%s1184 + $0x158] sm:$0xff]
                %1273 = vst [vmem:[%s1185 + $0x298] sm:$0xff] %v1272
                %v1274 = vld [vmem:[%s1184 + $0x160] sm:$0xff]
                %1275 = vst [vmem:[%s1185 + $0x2a0] sm:$0xff] %v1274
                %v1276 = vld [vmem:[%s1184 + $0x168] sm:$0xff]
                %1277 = vst [vmem:[%s1185 + $0x2a8] sm:$0xff] %v1276
                %v1278 = vld [vmem:[%s1184 + $0x170] sm:$0xff]
                %1279 = vst [vmem:[%s1185 + $0x2b0] sm:$0xff] %v1278
                %v1280 = vld [vmem:[%s1184 + $0x178] sm:$0xff]
                %1281 = vst [vmem:[%s1185 + $0x2b8] sm:$0xff] %v1280
                %v1282 = vld [vmem:[%s1184 + $0x180] sm:$0xff]
                %1283 = vst [vmem:[%s1185 + $0x300] sm:$0xff] %v1282
                %v1284 = vld [vmem:[%s1184 + $0x188] sm:$0xff]
                %1285 = vst [vmem:[%s1185 + $0x308] sm:$0xff] %v1284
                %v1286 = vld [vmem:[%s1184 + $0x190] sm:$0xff]
                %1287 = vst [vmem:[%s1185 + $0x310] sm:$0xff] %v1286
                %v1288 = vld [vmem:[%s1184 + $0x198] sm:$0xff]
                %1289 = vst [vmem:[%s1185 + $0x318] sm:$0xff] %v1288
                %v1290 = vld [vmem:[%s1184 + $0x1a0] sm:$0xff]
                %1291 = vst [vmem:[%s1185 + $0x320] sm:$0xff] %v1290
                %v1292 = vld [vmem:[%s1184 + $0x1a8] sm:$0xff]
                %1293 = vst [vmem:[%s1185 + $0x328] sm:$0xff] %v1292
                %v1294 = vld [vmem:[%s1184 + $0x1b0] sm:$0xff]
                %1295 = vst [vmem:[%s1185 + $0x330] sm:$0xff] %v1294
                %v1296 = vld [vmem:[%s1184 + $0x1b8] sm:$0xff]
                %1297 = vst [vmem:[%s1185 + $0x338] sm:$0xff] %v1296
                %v1298 = vld [vmem:[%s1184 + $0x1c0] sm:$0xff]
                %1299 = vst [vmem:[%s1185 + $0x380] sm:$0xff] %v1298
                %v1300 = vld [vmem:[%s1184 + $0x1c8] sm:$0xff]
                %1301 = vst [vmem:[%s1185 + $0x388] sm:$0xff] %v1300
                %v1302 = vld [vmem:[%s1184 + $0x1d0] sm:$0xff]
                %1303 = vst [vmem:[%s1185 + $0x390] sm:$0xff] %v1302
                %v1304 = vld [vmem:[%s1184 + $0x1d8] sm:$0xff]
                %1305 = vst [vmem:[%s1185 + $0x398] sm:$0xff] %v1304
                %v1306 = vld [vmem:[%s1184 + $0x1e0] sm:$0xff]
                %1307 = vst [vmem:[%s1185 + $0x3a0] sm:$0xff] %v1306
                %v1308 = vld [vmem:[%s1184 + $0x1e8] sm:$0xff]
                %1309 = vst [vmem:[%s1185 + $0x3a8] sm:$0xff] %v1308
                %v1310 = vld [vmem:[%s1184 + $0x1f0] sm:$0xff]
                %1311 = vst [vmem:[%s1185 + $0x3b0] sm:$0xff] %v1310
                %v1312 = vld [vmem:[%s1184 + $0x1f8] sm:$0xff]
                %1313 = vst [vmem:[%s1185 + $0x3b8] sm:$0xff] %v1312
                %v1314 = vld [vmem:[%s1184 + $0x200] sm:$0xff]
                %1315 = vst [vmem:[%s1185 + $0x400] sm:$0xff] %v1314
                %v1316 = vld [vmem:[%s1184 + $0x208] sm:$0xff]
                %1317 = vst [vmem:[%s1185 + $0x408] sm:$0xff] %v1316
                %v1318 = vld [vmem:[%s1184 + $0x210] sm:$0xff]
                %1319 = vst [vmem:[%s1185 + $0x410] sm:$0xff] %v1318
                %v1320 = vld [vmem:[%s1184 + $0x218] sm:$0xff]
                %1321 = vst [vmem:[%s1185 + $0x418] sm:$0xff] %v1320
                %v1322 = vld [vmem:[%s1184 + $0x220] sm:$0xff]
                %1323 = vst [vmem:[%s1185 + $0x420] sm:$0xff] %v1322
                %v1324 = vld [vmem:[%s1184 + $0x228] sm:$0xff]
                %1325 = vst [vmem:[%s1185 + $0x428] sm:$0xff] %v1324
                %v1326 = vld [vmem:[%s1184 + $0x230] sm:$0xff]
                %1327 = vst [vmem:[%s1185 + $0x430] sm:$0xff] %v1326
                %v1328 = vld [vmem:[%s1184 + $0x238] sm:$0xff]
                %1329 = vst [vmem:[%s1185 + $0x438] sm:$0xff] %v1328
                %v1330 = vld [vmem:[%s1184 + $0x240] sm:$0xff]
                %1331 = vst [vmem:[%s1185 + $0x480] sm:$0xff] %v1330
                %v1332 = vld [vmem:[%s1184 + $0x248] sm:$0xff]
                %1333 = vst [vmem:[%s1185 + $0x488] sm:$0xff] %v1332
                %v1334 = vld [vmem:[%s1184 + $0x250] sm:$0xff]
                %1335 = vst [vmem:[%s1185 + $0x490] sm:$0xff] %v1334
                %v1336 = vld [vmem:[%s1184 + $0x258] sm:$0xff]
                %1337 = vst [vmem:[%s1185 + $0x498] sm:$0xff] %v1336
                %v1338 = vld [vmem:[%s1184 + $0x260] sm:$0xff]
                %1339 = vst [vmem:[%s1185 + $0x4a0] sm:$0xff] %v1338
                %v1340 = vld [vmem:[%s1184 + $0x268] sm:$0xff]
                %1341 = vst [vmem:[%s1185 + $0x4a8] sm:$0xff] %v1340
                %v1342 = vld [vmem:[%s1184 + $0x270] sm:$0xff]
                %1343 = vst [vmem:[%s1185 + $0x4b0] sm:$0xff] %v1342
                %v1344 = vld [vmem:[%s1184 + $0x278] sm:$0xff]
                %1345 = vst [vmem:[%s1185 + $0x4b8] sm:$0xff] %v1344
                %v1346 = vld [vmem:[%s1184 + $0x280] sm:$0xff]
                %1347 = vst [vmem:[%s1185 + $0x500] sm:$0xff] %v1346
                %v1348 = vld [vmem:[%s1184 + $0x288] sm:$0xff]
                %1349 = vst [vmem:[%s1185 + $0x508] sm:$0xff] %v1348
                %v1350 = vld [vmem:[%s1184 + $0x290] sm:$0xff]
                %1351 = vst [vmem:[%s1185 + $0x510] sm:$0xff] %v1350
                %v1352 = vld [vmem:[%s1184 + $0x298] sm:$0xff]
                %1353 = vst [vmem:[%s1185 + $0x518] sm:$0xff] %v1352
                %v1354 = vld [vmem:[%s1184 + $0x2a0] sm:$0xff]
                %1355 = vst [vmem:[%s1185 + $0x520] sm:$0xff] %v1354
                %v1356 = vld [vmem:[%s1184 + $0x2a8] sm:$0xff]
                %1357 = vst [vmem:[%s1185 + $0x528] sm:$0xff] %v1356
                %v1358 = vld [vmem:[%s1184 + $0x2b0] sm:$0xff]
                %1359 = vst [vmem:[%s1185 + $0x530] sm:$0xff] %v1358
                %v1360 = vld [vmem:[%s1184 + $0x2b8] sm:$0xff]
                %1361 = vst [vmem:[%s1185 + $0x538] sm:$0xff] %v1360
                %v1362 = vld [vmem:[%s1184 + $0x2c0] sm:$0xff]
                %1363 = vst [vmem:[%s1185 + $0x580] sm:$0xff] %v1362
                %v1364 = vld [vmem:[%s1184 + $0x2c8] sm:$0xff]
                %1365 = vst [vmem:[%s1185 + $0x588] sm:$0xff] %v1364
                %v1366 = vld [vmem:[%s1184 + $0x2d0] sm:$0xff]
                %1367 = vst [vmem:[%s1185 + $0x590] sm:$0xff] %v1366
                %v1368 = vld [vmem:[%s1184 + $0x2d8] sm:$0xff]
                %1369 = vst [vmem:[%s1185 + $0x598] sm:$0xff] %v1368
                %v1370 = vld [vmem:[%s1184 + $0x2e0] sm:$0xff]
                %1371 = vst [vmem:[%s1185 + $0x5a0] sm:$0xff] %v1370
                %v1372 = vld [vmem:[%s1184 + $0x2e8] sm:$0xff]
                %1373 = vst [vmem:[%s1185 + $0x5a8] sm:$0xff] %v1372
                %v1374 = vld [vmem:[%s1184 + $0x2f0] sm:$0xff]
                %1375 = vst [vmem:[%s1185 + $0x5b0] sm:$0xff] %v1374
                %v1376 = vld [vmem:[%s1184 + $0x2f8] sm:$0xff]
                %1377 = vst [vmem:[%s1185 + $0x5b8] sm:$0xff] %v1376
                %v1378 = vld [vmem:[%s1184 + $0x300] sm:$0xff]
                %1379 = vst [vmem:[%s1185 + $0x600] sm:$0xff] %v1378
                %v1380 = vld [vmem:[%s1184 + $0x308] sm:$0xff]
                %1381 = vst [vmem:[%s1185 + $0x608] sm:$0xff] %v1380
                %v1382 = vld [vmem:[%s1184 + $0x310] sm:$0xff]
                %1383 = vst [vmem:[%s1185 + $0x610] sm:$0xff] %v1382
                %v1384 = vld [vmem:[%s1184 + $0x318] sm:$0xff]
                %1385 = vst [vmem:[%s1185 + $0x618] sm:$0xff] %v1384
                %v1386 = vld [vmem:[%s1184 + $0x320] sm:$0xff]
                %1387 = vst [vmem:[%s1185 + $0x620] sm:$0xff] %v1386
                %v1388 = vld [vmem:[%s1184 + $0x328] sm:$0xff]
                %1389 = vst [vmem:[%s1185 + $0x628] sm:$0xff] %v1388
                %v1390 = vld [vmem:[%s1184 + $0x330] sm:$0xff]
                %1391 = vst [vmem:[%s1185 + $0x630] sm:$0xff] %v1390
                %v1392 = vld [vmem:[%s1184 + $0x338] sm:$0xff]
                %1393 = vst [vmem:[%s1185 + $0x638] sm:$0xff] %v1392
                %v1394 = vld [vmem:[%s1184 + $0x340] sm:$0xff]
                %1395 = vst [vmem:[%s1185 + $0x680] sm:$0xff] %v1394
                %v1396 = vld [vmem:[%s1184 + $0x348] sm:$0xff]
                %1397 = vst [vmem:[%s1185 + $0x688] sm:$0xff] %v1396
                %v1398 = vld [vmem:[%s1184 + $0x350] sm:$0xff]
                %1399 = vst [vmem:[%s1185 + $0x690] sm:$0xff] %v1398
                %v1400 = vld [vmem:[%s1184 + $0x358] sm:$0xff]
                %1401 = vst [vmem:[%s1185 + $0x698] sm:$0xff] %v1400
                %v1402 = vld [vmem:[%s1184 + $0x360] sm:$0xff]
                %1403 = vst [vmem:[%s1185 + $0x6a0] sm:$0xff] %v1402
                %v1404 = vld [vmem:[%s1184 + $0x368] sm:$0xff]
                %1405 = vst [vmem:[%s1185 + $0x6a8] sm:$0xff] %v1404
                %v1406 = vld [vmem:[%s1184 + $0x370] sm:$0xff]
                %1407 = vst [vmem:[%s1185 + $0x6b0] sm:$0xff] %v1406
                %v1408 = vld [vmem:[%s1184 + $0x378] sm:$0xff]
                %1409 = vst [vmem:[%s1185 + $0x6b8] sm:$0xff] %v1408
                %v1410 = vld [vmem:[%s1184 + $0x380] sm:$0xff]
                %1411 = vst [vmem:[%s1185 + $0x700] sm:$0xff] %v1410
                %v1412 = vld [vmem:[%s1184 + $0x388] sm:$0xff]
                %1413 = vst [vmem:[%s1185 + $0x708] sm:$0xff] %v1412
                %v1414 = vld [vmem:[%s1184 + $0x390] sm:$0xff]
                %1415 = vst [vmem:[%s1185 + $0x710] sm:$0xff] %v1414
                %v1416 = vld [vmem:[%s1184 + $0x398] sm:$0xff]
                %1417 = vst [vmem:[%s1185 + $0x718] sm:$0xff] %v1416
                %v1418 = vld [vmem:[%s1184 + $0x3a0] sm:$0xff]
                %1419 = vst [vmem:[%s1185 + $0x720] sm:$0xff] %v1418
                %v1420 = vld [vmem:[%s1184 + $0x3a8] sm:$0xff]
                %1421 = vst [vmem:[%s1185 + $0x728] sm:$0xff] %v1420
                %v1422 = vld [vmem:[%s1184 + $0x3b0] sm:$0xff]
                %1423 = vst [vmem:[%s1185 + $0x730] sm:$0xff] %v1422
                %v1424 = vld [vmem:[%s1184 + $0x3b8] sm:$0xff]
                %1425 = vst [vmem:[%s1185 + $0x738] sm:$0xff] %v1424
                %v1426 = vld [vmem:[%s1184 + $0x3c0] sm:$0xff]
                %1427 = vst [vmem:[%s1185 + $0x780] sm:$0xff] %v1426
                %v1428 = vld [vmem:[%s1184 + $0x3c8] sm:$0xff]
                %1429 = vst [vmem:[%s1185 + $0x788] sm:$0xff] %v1428
                %v1430 = vld [vmem:[%s1184 + $0x3d0] sm:$0xff]
                %1431 = vst [vmem:[%s1185 + $0x790] sm:$0xff] %v1430
                %v1432 = vld [vmem:[%s1184 + $0x3d8] sm:$0xff]
                %1433 = vst [vmem:[%s1185 + $0x798] sm:$0xff] %v1432
                %v1434 = vld [vmem:[%s1184 + $0x3e0] sm:$0xff]
                %1435 = vst [vmem:[%s1185 + $0x7a0] sm:$0xff] %v1434
                %v1436 = vld [vmem:[%s1184 + $0x3e8] sm:$0xff]
                %1437 = vst [vmem:[%s1185 + $0x7a8] sm:$0xff] %v1436
                %v1438 = vld [vmem:[%s1184 + $0x3f0] sm:$0xff]
                %1439 = vst [vmem:[%s1185 + $0x7b0] sm:$0xff] %v1438
                %v1440 = vld [vmem:[%s1184 + $0x3f8] sm:$0xff]
                %1441 = vst [vmem:[%s1185 + $0x7b8] sm:$0xff] %v1440
              $region72: #{_forward_core.5} parent=66 // loop_footer
                %s1183 = sadd.s32 1, %s1179
              $region73: #{_forward_core.5} parent=66 // loop_footer_branch
                %1178 = sbr.rel target = $region69
              $region74: #{_forward_core.5} parent=66 // loop_exit
                _
            $region67: #{_forward_core.5} parent=62 // pred_fallthru
              _
            // Predicated region
            $region75: #{_forward_core.5} parent=62 // pred_check
              _
            $region76: #{_forward_core.5} parent=62 // pred_check_branch
              %1443 = sbr.rel target = $region78
            $region77: #{_forward_core.5} parent=62 // pred_region
              _
            $region78: #{_forward_core.5} parent=62 // pred_fallthru
              _
          $region63: #{_forward_core.5} parent=58 // pred_fallthru
            _
          %1444 = vnop
        $region59: #{_forward_core.5} parent=50 // pred_fallthru
          _
      $region51: #{_forward_core.5} parent=5 // pred_fallthru
        _
      %p1445 = scmp.le.s32.totalorder 2, %s9
      // Predicated region
      $region79: #{_forward_core.5} parent=5 // pred_check
        %p1446 = pneg %p1445
      $region80: #{_forward_core.5} parent=5 // pred_check_branch
        %1448 = sbr.rel (%p1446) target = $region82
      $region81: #{_forward_core.5} parent=5 // pred_region
        %s1449 = ssub.s32 %s9, 2
        // Predicated region
        $region83: #{_forward_core.5} parent=81 // pred_check
          %p1450 = pneg %p111
        $region84: #{_forward_core.5} parent=81 // pred_check_branch
          %1452 = sbr.rel (%p1450) target = $region86
        $region85: #{_forward_core.5} parent=81 // pred_region
          %s1453 = sand.u32 %s96, 1
          %s1454 = sand.u32 %s96, 1
          %s1455 = smul.addr %s1454, 1024
          %s1456 = scalar_lea.vmem [#allocation3], %s1455
        $region86: #{_forward_core.5} parent=81 // pred_fallthru
          _
      $region82: #{_forward_core.5} parent=5 // pred_fallthru
        _
    $region6: #{_forward_core.5} parent=1 // loop_footer
      %s13 = sadd.s32 1, %s9
    $region7: #{_forward_core.5} parent=1 // loop_footer_branch
      %8 = sbr.rel target = $region3
    $region8: #{_forward_core.5} parent=1 // loop_exit
      _

// kernel: _forward_core.3
$region0: #{_forward_core.3}
  #allocation0 [shape = 'u32[]', space=smem, size = 0x4, offset = 0x4, fixed_abs, tag = 'smem constant byte address 0x4 - core index']
  #allocation1 [shape = 'u32[144,128]{1,0:T(1,128)}', space=vmem, size = 0x12000, scoped, tag = 'internal scratch']
  %s0 = inlined_call_operand.vmem [shape: f32[8,4,64], index: 0, kind: input, shape index: {}]
  %s1 = inlined_call_operand.vmem [shape: bf16[64,192], index: 1, kind: input, shape index: {}]
  %s2 = inlined_call_operand.vmem [shape: f32[1,192], index: 2, kind: input, shape index: {}]
  %s3 = inlined_call_operand.vmem [shape: bf16[64,64], index: 3, kind: input, shape index: {}]
  %s4 = inlined_call_operand.vmem [shape: f32[1,64], index: 4, kind: input, shape index: {}]
  %s5 = inlined_call_operand.vmem [shape: f32[1,64], index: 5, kind: input, shape index: {}]
  %s6 = inlined_call_operand.vmem [shape: f32[1,64], index: 6, kind: input, shape index: {}]
  %s7 = inlined_call_operand.vmem [shape: bf16[64,2048], index: 7, kind: input, shape index: {}]
  %s8 = inlined_call_operand.vmem [shape: f32[1,2048], index: 8, kind: input, shape index: {}]
  %s9 = inlined_call_operand.vmem [shape: bf16[2048,64], index: 9, kind: input, shape index: {}]
  %s10 = inlined_call_operand.vmem [shape: f32[1,64], index: 10, kind: input, shape index: {}]
  %s11 = inlined_call_operand.vmem [shape: f32[1,64], index: 11, kind: input, shape index: {}]
  %s12 = inlined_call_operand.vmem [shape: f32[1,64], index: 12, kind: input, shape index: {}]
  %s13 = inlined_call_operand.vmem [shape: f32[8,4,64], index: 13, kind: output, shape index: {}]
  %s14 = sld [smem:[#allocation0]]
  $region85: #{_forward_core.3} parent=0
    _
  %s16 = ssub.s32 1, %s14
  %s17 = scalar_select 0, %s16, %s14
  loop: start=0, step=1, limit=6
  $region2: #{_forward_core.3} parent=0 // loop_pre_header
    _
  $region3: #{_forward_core.3} parent=0 // loop_header
    %s19 = sphi 0, %s23
    %p20 = scmp.ge.s32.totalorder %s19, 6
    %s29 = sphi 0, %s31
    %s32 = sphi 0, %s29
    %s33 = sphi 0, %s32
    %s49 = sphi 0, %s33
    %s53 = sphi 0, %s53
    %s55 = sphi 0, %s53
    %s56 = sphi 0, %s55
    %s70 = sphi 0, %s56
    %s74 = sphi 0, %s74
    %s76 = sphi 0, %s74
    %s77 = sphi 0, %s76
    %s91 = sphi 0, %s77
    %s95 = sphi 0, %s95
    %s97 = sphi 0, %s95
    %s98 = sphi 0, %s97
    %s112 = sphi 0, %s98
    %s116 = sphi 0, %s116
    %s118 = sphi 0, %s116
    %s119 = sphi 0, %s118
    %s133 = sphi 0, %s119
    %s137 = sphi 0, %s137
    %s139 = sphi 0, %s137
    %s140 = sphi 0, %s139
    %s154 = sphi 0, %s140
    %s158 = sphi 0, %s158
    %s160 = sphi 0, %s158
    %s161 = sphi 0, %s160
    %s175 = sphi 0, %s161
    %s179 = sphi 0, %s179
    %s181 = sphi 0, %s179
    %s182 = sphi 0, %s181
    %s196 = sphi 0, %s182
    %s200 = sphi 0, %s200
    %s202 = sphi 0, %s200
    %s203 = sphi 0, %s202
    %s217 = sphi 0, %s203
    %s221 = sphi 0, %s221
    %s223 = sphi 0, %s221
    %s224 = sphi 0, %s223
    %s238 = sphi 0, %s224
    %s242 = sphi 0, %s242
    %s244 = sphi 0, %s242
    %s245 = sphi 0, %s244
    %s259 = sphi 0, %s245
    %s263 = sphi 0, %s263
    %s265 = sphi 0, %s263
    %s266 = sphi 0, %s265
    %s280 = sphi 0, %s266
    %s284 = sphi 0, %s284
    %s286 = sphi 0, %s284
    %s287 = sphi 0, %s286
    %s301 = sphi 0, %s287
    %s307 = sphi 0, %s309
    %s310 = sphi 0, %s307
    %s311 = sphi 0, %s310
    %s327 = sphi 0, %s311
  $region4: #{_forward_core.3} parent=0 // loop_header_branch
    %22 = sbr.rel (%p20) target = $region8
  $region5: #{_forward_core.3} parent=0 // loop_body
    %s24 = ssub.s32 %s19, 1
    %s25 = ssub.s32 %s19, 2
    %s26 = sadd.s32 %s19, 1
    %s27 = ssub.s32 %s19, %s26
    %p28 = scmp.eq.s32.totalorder %s27, 0
    %s30 = sadd.s32 %s29, 1
    %s31 = scalar_select %p28, %s29, %s30
    %p34 = pneg %p28
    %p35 = scmp.eq.s32.totalorder %s19, 3
    %p36 = por %p34, %p35
    %p37 = scmp.ne.s32.totalorder %s29, %s32
    %p38 = scmp.eq.s32.totalorder %s19, 0
    %p39 = por %p37, %p38
    %p40 = scmp.ne.s32.totalorder %s29, %s32
    %p41 = scmp.eq.s32.totalorder %s24, 3
    %p42 = por %p40, %p41
    %p43 = scmp.ne.s32.totalorder %s32, %s33
    %p44 = scmp.eq.s32.totalorder %s24, 0
    %p45 = por %p43, %p44
    %p46 = scmp.ne.s32.totalorder %s32, %s33
    %p47 = scmp.eq.s32.totalorder %s25, 3
    %p48 = por %p46, %p47
    %p50 = scmp.ne.s32.totalorder %s33, %s49
    %p51 = scmp.eq.s32.totalorder %s25, 0
    %p52 = por %p50, %p51
    %s54 = sadd.s32 %s53, 1
    %p57 = scmp.eq.s32.totalorder %s19, 3
    %p58 = scmp.ne.s32.totalorder %s53, %s55
    %p59 = scmp.eq.s32.totalorder %s19, 0
    %p60 = por %p58, %p59
    %p61 = scmp.ne.s32.totalorder %s53, %s55
    %p62 = scmp.eq.s32.totalorder %s24, 3
    %p63 = por %p61, %p62
    %p64 = scmp.ne.s32.totalorder %s55, %s56
    %p65 = scmp.eq.s32.totalorder %s24, 0
    %p66 = por %p64, %p65
    %p67 = scmp.ne.s32.totalorder %s55, %s56
    %p68 = scmp.eq.s32.totalorder %s25, 3
    %p69 = por %p67, %p68
    %p71 = scmp.ne.s32.totalorder %s56, %s70
    %p72 = scmp.eq.s32.totalorder %s25, 0
    %p73 = por %p71, %p72
    %s75 = sadd.s32 %s74, 1
    %p78 = scmp.eq.s32.totalorder %s19, 3
    %p79 = scmp.ne.s32.totalorder %s74, %s76
    %p80 = scmp.eq.s32.totalorder %s19, 0
    %p81 = por %p79, %p80
    %p82 = scmp.ne.s32.totalorder %s74, %s76
    %p83 = scmp.eq.s32.totalorder %s24, 3
    %p84 = por %p82, %p83
    %p85 = scmp.ne.s32.totalorder %s76, %s77
    %p86 = scmp.eq.s32.totalorder %s24, 0
    %p87 = por %p85, %p86
    %p88 = scmp.ne.s32.totalorder %s76, %s77
    %p89 = scmp.eq.s32.totalorder %s25, 3
    %p90 = por %p88, %p89
    %p92 = scmp.ne.s32.totalorder %s77, %s91
    %p93 = scmp.eq.s32.totalorder %s25, 0
    %p94 = por %p92, %p93
    %s96 = sadd.s32 %s95, 1
    %p99 = scmp.eq.s32.totalorder %s19, 3
    %p100 = scmp.ne.s32.totalorder %s95, %s97
    %p101 = scmp.eq.s32.totalorder %s19, 0
    %p102 = por %p100, %p101
    %p103 = scmp.ne.s32.totalorder %s95, %s97
    %p104 = scmp.eq.s32.totalorder %s24, 3
    %p105 = por %p103, %p104
    %p106 = scmp.ne.s32.totalorder %s97, %s98
    %p107 = scmp.eq.s32.totalorder %s24, 0
    %p108 = por %p106, %p107
    %p109 = scmp.ne.s32.totalorder %s97, %s98
    %p110 = scmp.eq.s32.totalorder %s25, 3
    %p111 = por %p109, %p110
    %p113 = scmp.ne.s32.totalorder %s98, %s112
    %p114 = scmp.eq.s32.totalorder %s25, 0
    %p115 = por %p113, %p114
    %s117 = sadd.s32 %s116, 1
    %p120 = scmp.eq.s32.totalorder %s19, 3
    %p121 = scmp.ne.s32.totalorder %s116, %s118
    %p122 = scmp.eq.s32.totalorder %s19, 0
    %p123 = por %p121, %p122
    %p124 = scmp.ne.s32.totalorder %s116, %s118
    %p125 = scmp.eq.s32.totalorder %s24, 3
    %p126 = por %p124, %p125
    %p127 = scmp.ne.s32.totalorder %s118, %s119
    %p128 = scmp.eq.s32.totalorder %s24, 0
    %p129 = por %p127, %p128
    %p130 = scmp.ne.s32.totalorder %s118, %s119
    %p131 = scmp.eq.s32.totalorder %s25, 3
    %p132 = por %p130, %p131
    %p134 = scmp.ne.s32.totalorder %s119, %s133
    %p135 = scmp.eq.s32.totalorder %s25, 0
    %p136 = por %p134, %p135
    %s138 = sadd.s32 %s137, 1
    %p141 = scmp.eq.s32.totalorder %s19, 3
    %p142 = scmp.ne.s32.totalorder %s137, %s139
    %p143 = scmp.eq.s32.totalorder %s19, 0
    %p144 = por %p142, %p143
    %p145 = scmp.ne.s32.totalorder %s137, %s139
    %p146 = scmp.eq.s32.totalorder %s24, 3
    %p147 = por %p145, %p146
    %p148 = scmp.ne.s32.totalorder %s139, %s140
    %p149 = scmp.eq.s32.totalorder %s24, 0
    %p150 = por %p148, %p149
    %p151 = scmp.ne.s32.totalorder %s139, %s140
    %p152 = scmp.eq.s32.totalorder %s25, 3
    %p153 = por %p151, %p152
    %p155 = scmp.ne.s32.totalorder %s140, %s154
    %p156 = scmp.eq.s32.totalorder %s25, 0
    %p157 = por %p155, %p156
    %s159 = sadd.s32 %s158, 1
    %p162 = scmp.eq.s32.totalorder %s19, 3
    %p163 = scmp.ne.s32.totalorder %s158, %s160
    %p164 = scmp.eq.s32.totalorder %s19, 0
    %p165 = por %p163, %p164
    %p166 = scmp.ne.s32.totalorder %s158, %s160
    %p167 = scmp.eq.s32.totalorder %s24, 3
    %p168 = por %p166, %p167
    %p169 = scmp.ne.s32.totalorder %s160, %s161
    %p170 = scmp.eq.s32.totalorder %s24, 0
    %p171 = por %p169, %p170
    %p172 = scmp.ne.s32.totalorder %s160, %s161
    %p173 = scmp.eq.s32.totalorder %s25, 3
    %p174 = por %p172, %p173
    %p176 = scmp.ne.s32.totalorder %s161, %s175
    %p177 = scmp.eq.s32.totalorder %s25, 0
    %p178 = por %p176, %p177
    %s180 = sadd.s32 %s179, 1
    %p183 = scmp.eq.s32.totalorder %s19, 3
    %p184 = scmp.ne.s32.totalorder %s179, %s181
    %p185 = scmp.eq.s32.totalorder %s19, 0
    %p186 = por %p184, %p185
    %p187 = scmp.ne.s32.totalorder %s179, %s181
    %p188 = scmp.eq.s32.totalorder %s24, 3
    %p189 = por %p187, %p188
    %p190 = scmp.ne.s32.totalorder %s181, %s182
    %p191 = scmp.eq.s32.totalorder %s24, 0
    %p192 = por %p190, %p191
    %p193 = scmp.ne.s32.totalorder %s181, %s182
    %p194 = scmp.eq.s32.totalorder %s25, 3
    %p195 = por %p193, %p194
    %p197 = scmp.ne.s32.totalorder %s182, %s196
    %p198 = scmp.eq.s32.totalorder %s25, 0
    %p199 = por %p197, %p198
    %s201 = sadd.s32 %s200, 1
    %p204 = scmp.eq.s32.totalorder %s19, 3
    %p205 = scmp.ne.s32.totalorder %s200, %s202
    %p206 = scmp.eq.s32.totalorder %s19, 0
    %p207 = por %p205, %p206
    %p208 = scmp.ne.s32.totalorder %s200, %s202
    %p209 = scmp.eq.s32.totalorder %s24, 3
    %p210 = por %p208, %p209
    %p211 = scmp.ne.s32.totalorder %s202, %s203
    %p212 = scmp.eq.s32.totalorder %s24, 0
    %p213 = por %p211, %p212
    %p214 = scmp.ne.s32.totalorder %s202, %s203
    %p215 = scmp.eq.s32.totalorder %s25, 3
    %p216 = por %p214, %p215
    %p218 = scmp.ne.s32.totalorder %s203, %s217
    %p219 = scmp.eq.s32.totalorder %s25, 0
    %p220 = por %p218, %p219
    %s222 = sadd.s32 %s221, 1
    %p225 = scmp.eq.s32.totalorder %s19, 3
    %p226 = scmp.ne.s32.totalorder %s221, %s223
    %p227 = scmp.eq.s32.totalorder %s19, 0
    %p228 = por %p226, %p227
    %p229 = scmp.ne.s32.totalorder %s221, %s223
    %p230 = scmp.eq.s32.totalorder %s24, 3
    %p231 = por %p229, %p230
    %p232 = scmp.ne.s32.totalorder %s223, %s224
    %p233 = scmp.eq.s32.totalorder %s24, 0
    %p234 = por %p232, %p233
    %p235 = scmp.ne.s32.totalorder %s223, %s224
    %p236 = scmp.eq.s32.totalorder %s25, 3
    %p237 = por %p235, %p236
    %p239 = scmp.ne.s32.totalorder %s224, %s238
    %p240 = scmp.eq.s32.totalorder %s25, 0
    %p241 = por %p239, %p240
    %s243 = sadd.s32 %s242, 1
    %p246 = scmp.eq.s32.totalorder %s19, 3
    %p247 = scmp.ne.s32.totalorder %s242, %s244
    %p248 = scmp.eq.s32.totalorder %s19, 0
    %p249 = por %p247, %p248
    %p250 = scmp.ne.s32.totalorder %s242, %s244
    %p251 = scmp.eq.s32.totalorder %s24, 3
    %p252 = por %p250, %p251
    %p253 = scmp.ne.s32.totalorder %s244, %s245
    %p254 = scmp.eq.s32.totalorder %s24, 0
    %p255 = por %p253, %p254
    %p256 = scmp.ne.s32.totalorder %s244, %s245
    %p257 = scmp.eq.s32.totalorder %s25, 3
    %p258 = por %p256, %p257
    %p260 = scmp.ne.s32.totalorder %s245, %s259
    %p261 = scmp.eq.s32.totalorder %s25, 0
    %p262 = por %p260, %p261
    %s264 = sadd.s32 %s263, 1
    %p267 = scmp.eq.s32.totalorder %s19, 3
    %p268 = scmp.ne.s32.totalorder %s263, %s265
    %p269 = scmp.eq.s32.totalorder %s19, 0
    %p270 = por %p268, %p269
    %p271 = scmp.ne.s32.totalorder %s263, %s265
    %p272 = scmp.eq.s32.totalorder %s24, 3
    %p273 = por %p271, %p272
    %p274 = scmp.ne.s32.totalorder %s265, %s266
    %p275 = scmp.eq.s32.totalorder %s24, 0
    %p276 = por %p274, %p275
    %p277 = scmp.ne.s32.totalorder %s265, %s266
    %p278 = scmp.eq.s32.totalorder %s25, 3
    %p279 = por %p277, %p278
    %p281 = scmp.ne.s32.totalorder %s266, %s280
    %p282 = scmp.eq.s32.totalorder %s25, 0
    %p283 = por %p281, %p282
    %s285 = sadd.s32 %s284, 1
    %p288 = scmp.eq.s32.totalorder %s19, 3
    %p289 = scmp.ne.s32.totalorder %s284, %s286
    %p290 = scmp.eq.s32.totalorder %s19, 0
    %p291 = por %p289, %p290
    %p292 = scmp.ne.s32.totalorder %s284, %s286
    %p293 = scmp.eq.s32.totalorder %s24, 3
    %p294 = por %p292, %p293
    %p295 = scmp.ne.s32.totalorder %s286, %s287
    %p296 = scmp.eq.s32.totalorder %s24, 0
    %p297 = por %p295, %p296
    %p298 = scmp.ne.s32.totalorder %s286, %s287
    %p299 = scmp.eq.s32.totalorder %s25, 3
    %p300 = por %p298, %p299
    %p302 = scmp.ne.s32.totalorder %s287, %s301
    %p303 = scmp.eq.s32.totalorder %s25, 0
    %p304 = por %p302, %p303
    %s305 = ssub.s32 %s19, %s26
    %p306 = scmp.eq.s32.totalorder %s305, 0
    %s308 = sadd.s32 %s307, 1
    %s309 = scalar_select %p306, %s307, %s308
    %p312 = pneg %p306
    %p313 = scmp.eq.s32.totalorder %s19, 3
    %p314 = por %p312, %p313
    %p315 = scmp.ne.s32.totalorder %s307, %s310
    %p316 = scmp.eq.s32.totalorder %s19, 0
    %p317 = por %p315, %p316
    %p318 = scmp.ne.s32.totalorder %s307, %s310
    %p319 = scmp.eq.s32.totalorder %s24, 3
    %p320 = por %p318, %p319
    %p321 = scmp.ne.s32.totalorder %s310, %s311
    %p322 = scmp.eq.s32.totalorder %s24, 0
    %p323 = por %p321, %p322
    %p324 = scmp.ne.s32.totalorder %s310, %s311
    %p325 = scmp.eq.s32.totalorder %s25, 3
    %p326 = por %p324, %p325
    %p328 = scmp.ne.s32.totalorder %s311, %s327
    %p329 = scmp.eq.s32.totalorder %s25, 0
    %p330 = por %p328, %p329
    %p331 = scmp.le.s32.totalorder 1, %s19
    %p332 = scmp.lt.s32.totalorder %s19, 5
    %p333 = pnand %p331, %p332
    %p334 = pneg %p333
    // Predicated region
    $region9: #{_forward_core.3} parent=5 // pred_check
      _
    $region10: #{_forward_core.3} parent=5 // pred_check_branch
      %336 = sbr.rel (%p333) target = $region12
    $region11: #{_forward_core.3} parent=5 // pred_region
      %s337 = ssub.s32 %s19, 1
      // Predicated region
      $region13: #{_forward_core.3} parent=11 // pred_check
        %p338 = pneg %p66
      $region14: #{_forward_core.3} parent=11 // pred_check_branch
        %340 = sbr.rel (%p338) target = $region16
      $region15: #{_forward_core.3} parent=11 // pred_region
        _
      $region16: #{_forward_core.3} parent=11 // pred_fallthru
        _
      // Predicated region
      $region17: #{_forward_core.3} parent=11 // pred_check
        %p341 = pneg %p87
      $region18: #{_forward_core.3} parent=11 // pred_check_branch
        %343 = sbr.rel (%p341) target = $region20
      $region19: #{_forward_core.3} parent=11 // pred_region
        _
      $region20: #{_forward_core.3} parent=11 // pred_fallthru
        _
      // Predicated region
      $region21: #{_forward_core.3} parent=11 // pred_check
        %p344 = pneg %p108
      $region22: #{_forward_core.3} parent=11 // pred_check_branch
        %346 = sbr.rel (%p344) target = $region24
      $region23: #{_forward_core.3} parent=11 // pred_region
        _
      $region24: #{_forward_core.3} parent=11 // pred_fallthru
        _
      // Predicated region
      $region25: #{_forward_core.3} parent=11 // pred_check
        %p347 = pneg %p129
      $region26: #{_forward_core.3} parent=11 // pred_check_branch
        %349 = sbr.rel (%p347) target = $region28
      $region27: #{_forward_core.3} parent=11 // pred_region
        _
      $region28: #{_forward_core.3} parent=11 // pred_fallthru
        _
      // Predicated region
      $region29: #{_forward_core.3} parent=11 // pred_check
        %p350 = pneg %p150
      $region30: #{_forward_core.3} parent=11 // pred_check_branch
        %352 = sbr.rel (%p350) target = $region32
      $region31: #{_forward_core.3} parent=11 // pred_region
        _
      $region32: #{_forward_core.3} parent=11 // pred_fallthru
        _
      // Predicated region
      $region33: #{_forward_core.3} parent=11 // pred_check
        %p353 = pneg %p171
      $region34: #{_forward_core.3} parent=11 // pred_check_branch
        %355 = sbr.rel (%p353) target = $region36
      $region35: #{_forward_core.3} parent=11 // pred_region
        _
      $region36: #{_forward_core.3} parent=11 // pred_fallthru
        _
      // Predicated region
      $region37: #{_forward_core.3} parent=11 // pred_check
        %p356 = pneg %p192
      $region38: #{_forward_core.3} parent=11 // pred_check_branch
        %358 = sbr.rel (%p356) target = $region40
      $region39: #{_forward_core.3} parent=11 // pred_region
        _
      $region40: #{_forward_core.3} parent=11 // pred_fallthru
        _
      // Predicated region
      $region41: #{_forward_core.3} parent=11 // pred_check
        %p359 = pneg %p213
      $region42: #{_forward_core.3} parent=11 // pred_check_branch
        %361 = sbr.rel (%p359) target = $region44
      $region43: #{_forward_core.3} parent=11 // pred_region
        _
      $region44: #{_forward_core.3} parent=11 // pred_fallthru
        _
      // Predicated region
      $region45: #{_forward_core.3} parent=11 // pred_check
        %p362 = pneg %p234
      $region46: #{_forward_core.3} parent=11 // pred_check_branch
        %364 = sbr.rel (%p362) target = $region48
      $region47: #{_forward_core.3} parent=11 // pred_region
        _
      $region48: #{_forward_core.3} parent=11 // pred_fallthru
        _
      // Predicated region
      $region49: #{_forward_core.3} parent=11 // pred_check
        %p365 = pneg %p255
      $region50: #{_forward_core.3} parent=11 // pred_check_branch
        %367 = sbr.rel (%p365) target = $region52
      $region51: #{_forward_core.3} parent=11 // pred_region
        _
      $region52: #{_forward_core.3} parent=11 // pred_fallthru
        _
      // Predicated region
      $region53: #{_forward_core.3} parent=11 // pred_check
        %p368 = pneg %p276
      $region54: #{_forward_core.3} parent=11 // pred_check_branch
        %370 = sbr.rel (%p368) target = $region56
      $region55: #{_forward_core.3} parent=11 // pred_region
        _
      $region56: #{_forward_core.3} parent=11 // pred_fallthru
        _
      // Predicated region
      $region57: #{_forward_core.3} parent=11 // pred_check
        %p371 = pneg %p297
      $region58: #{_forward_core.3} parent=11 // pred_check_branch
        %373 = sbr.rel (%p371) target = $region60
      $region59: #{_forward_core.3} parent=11 // pred_region
        _
      $region60: #{_forward_core.3} parent=11 // pred_fallthru
        _
    $region12: #{_forward_core.3} parent=5 // pred_fallthru
      _
    %p374 = scmp.lt.s32.totalorder %s19, 4
    // Predicated region
    $region61: #{_forward_core.3} parent=5 // pred_check
      %p375 = pneg %p374
    $region62: #{_forward_core.3} parent=5 // pred_check_branch
      %377 = sbr.rel (%p375) target = $region64
    $region63: #{_forward_core.3} parent=5 // pred_region
      // Predicated region
      $region65: #{_forward_core.3} parent=63 // pred_check
        %p378 = pneg %p39
      $region66: #{_forward_core.3} parent=63 // pred_check_branch
        %380 = sbr.rel (%p378) target = $region68
      $region67: #{_forward_core.3} parent=63 // pred_region
        %s381 = smul.u32 2, %s19
        %p382 = scmp.lt.s32.totalorder %s381, 7
        %s383 = scalar_select %p382, %s381, 7
        %s384 = smul.addr %s383, 4
        %s385 = scalar_lea.vmem %s0, %s384
        %s386 = smul.u32 2, %s19
      $region68: #{_forward_core.3} parent=63 // pred_fallthru
        _
    $region64: #{_forward_core.3} parent=5 // pred_fallthru
      _
    %p387 = scmp.le.s32.totalorder 1, %s19
    %p388 = scmp.lt.s32.totalorder %s19, 5
    %p389 = pnand %p387, %p388
    %p390 = pneg %p389
    // Predicated region
    $region69: #{_forward_core.3} parent=5 // pred_check
      _
    $region70: #{_forward_core.3} parent=5 // pred_check_branch
      %392 = sbr.rel (%p389) target = $region72
    $region71: #{_forward_core.3} parent=5 // pred_region
      %s393 = ssub.s32 %s19, 1
      %s394 = smul.u32 2, %s24
      %p395 = scmp.lt.s32.totalorder %s394, 7
      %s396 = scalar_select %p395, %s394, 7
      %s397 = smul.addr %s396, 4
      %s398 = scalar_lea.vmem %s0, %s397
      %p399 = pneg %p45
      %p400 = pneg %p42
      %p401 = pneg %p66
      %p402 = pneg %p63
      %p403 = pneg %p87
      %p404 = pneg %p84
      %p405 = pneg %p108
      %p406 = pneg %p105
      %p407 = pneg %p129
      %p408 = pneg %p126
      %p409 = pneg %p150
      %p410 = pneg %p147
      %p411 = pneg %p171
      %p412 = pneg %p168
      %p413 = pneg %p192
      %p414 = pneg %p189
      %p415 = pneg %p213
      %p416 = pneg %p210
      %p417 = pneg %p234
      %p418 = pneg %p231
      %p419 = pneg %p255
      %p420 = pneg %p252
      %p421 = pneg %p276
      %p422 = pneg %p273
      %p423 = pneg %p297
      %p424 = pneg %p294
      %p425 = pneg %p323
      %p426 = pneg %p320
      %s427 = smul.u32 2, %s24
      %p428 = scmp.lt.s32.totalorder %s427, 7
      %s429 = scalar_select %p428, %s427, 7
      %s430 = smul.addr %s429, 4
      %s431 = scalar_lea.vmem %s13, %s430
      %s432 = smul.u32 2, %s24
      %p433 = scmp.lt.s32.totalorder %s432, 7
      %s434 = scalar_select %p433, %s432, 7
      %s435 = smul.addr %s434, 4
      %s436 = scalar_lea.vmem %s0, %s435
      %s437 = smul.u32 2, %s24
      %s438 = smul.u32 2, %s24
      %p439 = scmp.lt.s32.totalorder %s438, 7
      %s440 = scalar_select %p439, %s438, 7
      %s441 = smul.addr %s440, 4
      %s442 = scalar_lea.vmem %s13, %s441
      %s443 = smul.u32 2, %s24
      %v445 = vld [vmem:[%s1] sm:$0xff]
      %v446 = vld [vmem:[%s1 + $0x8] sm:$0xff]
      %v447 = vld [vmem:[%s1 + $0x10] sm:$0xff]
      %v448 = vld [vmem:[%s1 + $0x18] sm:$0xff]
      %v449 = vld [vmem:[%s1 + $0x20] sm:$0xff]
      %v450 = vld [vmem:[%s1 + $0x28] sm:$0xff]
      %v451 = vld [vmem:[%s1 + $0x30] sm:$0xff]
      %v452 = vld [vmem:[%s1 + $0x38] sm:$0xff]
      %v453 = vld [vmem:[%s2] sm:$0x3]
      %v454 = vld [vmem:[%s3] sm:$0xf]
      %v455 = vld [vmem:[%s3 + $0x4] sm:$0xf]
      %v456 = vld [vmem:[%s3 + $0x8] sm:$0xf]
      %v457 = vld [vmem:[%s3 + $0xc] sm:$0xf]
      %v458 = vld [vmem:[%s3 + $0x10] sm:$0xf]
      %v459 = vld [vmem:[%s3 + $0x14] sm:$0xf]
      %v460 = vld [vmem:[%s3 + $0x18] sm:$0xf]
      %v461 = vld [vmem:[%s3 + $0x1c] sm:$0xf]
      %v462 = vld [vmem:[%s4] sm:$0x1]
      %v463 = vld [vmem:[%s7] sm:$0xff]
      %v464 = vld [vmem:[%s7 + $0x8] sm:$0xff]
      %v465 = vld [vmem:[%s7 + $0x10] sm:$0xff]
      %v466 = vld [vmem:[%s7 + $0x18] sm:$0xff]
      %v467 = vld [vmem:[%s7 + $0x20] sm:$0xff]
      %v468 = vld [vmem:[%s7 + $0x28] sm:$0xff]
      %v469 = vld [vmem:[%s7 + $0x30] sm:$0xff]
      %v470 = vld [vmem:[%s7 + $0x38] sm:$0xff]
      %v471 = vld [vmem:[%s7 + $0x40] sm:$0xff]
      %v472 = vld [vmem:[%s7 + $0x48] sm:$0xff]
      %v473 = vld [vmem:[%s7 + $0x50] sm:$0xff]
      %v474 = vld [vmem:[%s7 + $0x58] sm:$0xff]
      %v475 = vld [vmem:[%s7 + $0x60] sm:$0xff]
      %v476 = vld [vmem:[%s7 + $0x68] sm:$0xff]
      %v477 = vld [vmem:[%s7 + $0x70] sm:$0xff]
      %v478 = vld [vmem:[%s7 + $0x78] sm:$0xff]
      %v479 = vld [vmem:[%s7 + $0x80] sm:$0xff]
      %v480 = vld [vmem:[%s7 + $0x88] sm:$0xff]
      %v481 = vld [vmem:[%s7 + $0x90] sm:$0xff]
      %v482 = vld [vmem:[%s7 + $0x98] sm:$0xff]
      %v483 = vld [vmem:[%s7 + $0xa0] sm:$0xff]
      %v484 = vld [vmem:[%s7 + $0xa8] sm:$0xff]
      %v485 = vld [vmem:[%s7 + $0xb0] sm:$0xff]
      %v486 = vld [vmem:[%s7 + $0xb8] sm:$0xff]
      %v487 = vld [vmem:[%s7 + $0xc0] sm:$0xff]
      %v488 = vld [vmem:[%s7 + $0xc8] sm:$0xff]
      %v489 = vld [vmem:[%s7 + $0xd0] sm:$0xff]
      %v490 = vld [vmem:[%s7 + $0xd8] sm:$0xff]
      %v491 = vld [vmem:[%s7 + $0xe0] sm:$0xff]
      %v492 = vld [vmem:[%s7 + $0xe8] sm:$0xff]
      %v493 = vld [vmem:[%s7 + $0xf0] sm:$0xff]
      %v494 = vld [vmem:[%s7 + $0xf8] sm:$0xff]
      %v495 = vld [vmem:[%s7 + $0x100] sm:$0xff]
      %v496 = vld [vmem:[%s7 + $0x108] sm:$0xff]
      %v497 = vld [vmem:[%s7 + $0x110] sm:$0xff]
      %v498 = vld [vmem:[%s7 + $0x118] sm:$0xff]
      %v499 = vld [vmem:[%s7 + $0x120] sm:$0xff]
      %v500 = vld [vmem:[%s7 + $0x128] sm:$0xff]
      %v501 = vld [vmem:[%s7 + $0x130] sm:$0xff]
      %v502 = vld [vmem:[%s7 + $0x138] sm:$0xff]
      %v503 = vld [vmem:[%s7 + $0x140] sm:$0xff]
      %v504 = vld [vmem:[%s7 + $0x148] sm:$0xff]
      %v505 = vld [vmem:[%s7 + $0x150] sm:$0xff]
      %v506 = vld [vmem:[%s7 + $0x158] sm:$0xff]
      %v507 = vld [vmem:[%s7 + $0x160] sm:$0xff]
      %v508 = vld [vmem:[%s7 + $0x168] sm:$0xff]
      %v509 = vld [vmem:[%s7 + $0x170] sm:$0xff]
      %v510 = vld [vmem:[%s7 + $0x178] sm:$0xff]
      %v511 = vld [vmem:[%s7 + $0x180] sm:$0xff]
      %v512 = vld [vmem:[%s7 + $0x188] sm:$0xff]
      %v513 = vld [vmem:[%s7 + $0x190] sm:$0xff]
      %v514 = vld [vmem:[%s7 + $0x198] sm:$0xff]
      %v515 = vld [vmem:[%s7 + $0x1a0] sm:$0xff]
      %v516 = vld [vmem:[%s7 + $0x1a8] sm:$0xff]
      %v517 = vld [vmem:[%s7 + $0x1b0] sm:$0xff]
      %v518 = vld [vmem:[%s7 + $0x1b8] sm:$0xff]
      %v519 = vld [vmem:[%s7 + $0x1c0] sm:$0xff]
      %v520 = vld [vmem:[%s7 + $0x1c8] sm:$0xff]
      %v521 = vld [vmem:[%s7 + $0x1d0] sm:$0xff]
      %v522 = vld [vmem:[%s7 + $0x1d8] sm:$0xff]
      %v523 = vld [vmem:[%s7 + $0x1e0] sm:$0xff]
      %v524 = vld [vmem:[%s7 + $0x1e8] sm:$0xff]
      %v525 = vld [vmem:[%s7 + $0x1f0] sm:$0xff]
      %v526 = vld [vmem:[%s7 + $0x1f8] sm:$0xff]
      %v527 = vld [vmem:[%s8] sm:$0xff]
      %v528 = vld [vmem:[%s8 + $0x8] sm:$0xff]
      %v529 = vld [vmem:[%s9] sm:$0xf]
      %v530 = vld [vmem:[%s9 + $0x4] sm:$0xf]
      %v531 = vld [vmem:[%s9 + $0x8] sm:$0xf]
      %v532 = vld [vmem:[%s9 + $0xc] sm:$0xf]
      %v533 = vld [vmem:[%s9 + $0x10] sm:$0xf]
      %v534 = vld [vmem:[%s9 + $0x14] sm:$0xf]
      %v535 = vld [vmem:[%s9 + $0x18] sm:$0xf]
      %v536 = vld [vmem:[%s9 + $0x1c] sm:$0xf]
      %v537 = vld [vmem:[%s9 + $0x20] sm:$0xf]
      %v538 = vld [vmem:[%s9 + $0x24] sm:$0xf]
      %v539 = vld [vmem:[%s9 + $0x28] sm:$0xf]
      %v540 = vld [vmem:[%s9 + $0x2c] sm:$0xf]
      %v541 = vld [vmem:[%s9 + $0x30] sm:$0xf]
      %v542 = vld [vmem:[%s9 + $0x34] sm:$0xf]
      %v543 = vld [vmem:[%s9 + $0x38] sm:$0xf]
      %v544 = vld [vmem:[%s9 + $0x3c] sm:$0xf]
      %v545 = vld [vmem:[%s9 + $0x40] sm:$0xf]
      %v546 = vld [vmem:[%s9 + $0x44] sm:$0xf]
      %v547 = vld [vmem:[%s9 + $0x48] sm:$0xf]
      %v548 = vld [vmem:[%s9 + $0x4c] sm:$0xf]
      %v549 = vld [vmem:[%s9 + $0x50] sm:$0xf]
      %v550 = vld [vmem:[%s9 + $0x54] sm:$0xf]
      %v551 = vld [vmem:[%s9 + $0x58] sm:$0xf]
      %v552 = vld [vmem:[%s9 + $0x5c] sm:$0xf]
      %v553 = vld [vmem:[%s9 + $0x60] sm:$0xf]
      %v554 = vld [vmem:[%s9 + $0x64] sm:$0xf]
      %v555 = vld [vmem:[%s9 + $0x68] sm:$0xf]
      %v556 = vld [vmem:[%s9 + $0x6c] sm:$0xf]
      %v557 = vld [vmem:[%s9 + $0x70] sm:$0xf]
      %v558 = vld [vmem:[%s9 + $0x74] sm:$0xf]
      %v559 = vld [vmem:[%s9 + $0x78] sm:$0xf]
      %v560 = vld [vmem:[%s9 + $0x7c] sm:$0xf]
      %v561 = vld [vmem:[%s9 + $0x80] sm:$0xf]
      %v562 = vld [vmem:[%s9 + $0x84] sm:$0xf]
      %v563 = vld [vmem:[%s9 + $0x88] sm:$0xf]
      %v564 = vld [vmem:[%s9 + $0x8c] sm:$0xf]
      %v565 = vld [vmem:[%s9 + $0x90] sm:$0xf]
      %v566 = vld [vmem:[%s9 + $0x94] sm:$0xf]
      %v567 = vld [vmem:[%s9 + $0x98] sm:$0xf]
      %v568 = vld [vmem:[%s9 + $0x9c] sm:$0xf]
      %v569 = vld [vmem:[%s9 + $0xa0] sm:$0xf]
      %v570 = vld [vmem:[%s9 + $0xa4] sm:$0xf]
      %v571 = vld [vmem:[%s9 + $0xa8] sm:$0xf]
      %v572 = vld [vmem:[%s9 + $0xac] sm:$0xf]
      %v573 = vld [vmem:[%s9 + $0xb0] sm:$0xf]
      %v574 = vld [vmem:[%s9 + $0xb4] sm:$0xf]
      %v575 = vld [vmem:[%s9 + $0xb8] sm:$0xf]
      %v576 = vld [vmem:[%s9 + $0xbc] sm:$0xf]
      %v577 = vld [vmem:[%s9 + $0xc0] sm:$0xf]
      %v578 = vld [vmem:[%s9 + $0xc4] sm:$0xf]
      %v579 = vld [vmem:[%s9 + $0xc8] sm:$0xf]
      %v580 = vld [vmem:[%s9 + $0xcc] sm:$0xf]
      %v581 = vld [vmem:[%s9 + $0xd0] sm:$0xf]
      %v582 = vld [vmem:[%s9 + $0xd4] sm:$0xf]
      %v583 = vld [vmem:[%s9 + $0xd8] sm:$0xf]
      %v584 = vld [vmem:[%s9 + $0xdc] sm:$0xf]
      %v585 = vld [vmem:[%s9 + $0xe0] sm:$0xf]
      %v586 = vld [vmem:[%s9 + $0xe4] sm:$0xf]
      %v587 = vld [vmem:[%s9 + $0xe8] sm:$0xf]
      %v588 = vld [vmem:[%s9 + $0xec] sm:$0xf]
      %v589 = vld [vmem:[%s9 + $0xf0] sm:$0xf]
      %v590 = vld [vmem:[%s9 + $0xf4] sm:$0xf]
      %v591 = vld [vmem:[%s9 + $0xf8] sm:$0xf]
      %v592 = vld [vmem:[%s9 + $0xfc] sm:$0xf]
      %v593 = vld [vmem:[%s9 + $0x100] sm:$0xf]
      %v594 = vld [vmem:[%s9 + $0x104] sm:$0xf]
      %v595 = vld [vmem:[%s9 + $0x108] sm:$0xf]
      %v596 = vld [vmem:[%s9 + $0x10c] sm:$0xf]
      %v597 = vld [vmem:[%s9 + $0x110] sm:$0xf]
      %v598 = vld [vmem:[%s9 + $0x114] sm:$0xf]
      %v599 = vld [vmem:[%s9 + $0x118] sm:$0xf]
      %v600 = vld [vmem:[%s9 + $0x11c] sm:$0xf]
      %v601 = vld [vmem:[%s9 + $0x120] sm:$0xf]
      %v602 = vld [vmem:[%s9 + $0x124] sm:$0xf]
      %v603 = vld [vmem:[%s9 + $0x128] sm:$0xf]
      %v604 = vld [vmem:[%s9 + $0x12c] sm:$0xf]
      %v605 = vld [vmem:[%s9 + $0x130] sm:$0xf]
      %v606 = vld [vmem:[%s9 + $0x134] sm:$0xf]
      %v607 = vld [vmem:[%s9 + $0x138] sm:$0xf]
      %v608 = vld [vmem:[%s9 + $0x13c] sm:$0xf]
      %v609 = vld [vmem:[%s9 + $0x140] sm:$0xf]
      %v610 = vld [vmem:[%s9 + $0x144] sm:$0xf]
      %v611 = vld [vmem:[%s9 + $0x148] sm:$0xf]
      %v612 = vld [vmem:[%s9 + $0x14c] sm:$0xf]
      %v613 = vld [vmem:[%s9 + $0x150] sm:$0xf]
      %v614 = vld [vmem:[%s9 + $0x154] sm:$0xf]
      %v615 = vld [vmem:[%s9 + $0x158] sm:$0xf]
      %v616 = vld [vmem:[%s9 + $0x15c] sm:$0xf]
      %v617 = vld [vmem:[%s9 + $0x160] sm:$0xf]
      %v618 = vld [vmem:[%s9 + $0x164] sm:$0xf]
      %v619 = vld [vmem:[%s9 + $0x168] sm:$0xf]
      %v620 = vld [vmem:[%s9 + $0x16c] sm:$0xf]
      %v621 = vld [vmem:[%s9 + $0x170] sm:$0xf]
      %v622 = vld [vmem:[%s9 + $0x174] sm:$0xf]
      %v623 = vld [vmem:[%s9 + $0x178] sm:$0xf]
      %v624 = vld [vmem:[%s9 + $0x17c] sm:$0xf]
      %v625 = vld [vmem:[%s9 + $0x180] sm:$0xf]
      %v626 = vld [vmem:[%s9 + $0x184] sm:$0xf]
      %v627 = vld [vmem:[%s9 + $0x188] sm:$0xf]
      %v628 = vld [vmem:[%s9 + $0x18c] sm:$0xf]
      %v629 = vld [vmem:[%s9 + $0x190] sm:$0xf]
      %v630 = vld [vmem:[%s9 + $0x194] sm:$0xf]
      %v631 = vld [vmem:[%s9 + $0x198] sm:$0xf]
      %v632 = vld [vmem:[%s9 + $0x19c] sm:$0xf]
      %v633 = vld [vmem:[%s9 + $0x1a0] sm:$0xf]
      %v634 = vld [vmem:[%s9 + $0x1a4] sm:$0xf]
      %v635 = vld [vmem:[%s9 + $0x1a8] sm:$0xf]
      %v636 = vld [vmem:[%s9 + $0x1ac] sm:$0xf]
      %v637 = vld [vmem:[%s9 + $0x1b0] sm:$0xf]
      %v638 = vld [vmem:[%s9 + $0x1b4] sm:$0xf]
      %v639 = vld [vmem:[%s9 + $0x1b8] sm:$0xf]
      %v640 = vld [vmem:[%s9 + $0x1bc] sm:$0xf]
      %v641 = vld [vmem:[%s9 + $0x1c0] sm:$0xf]
      %v642 = vld [vmem:[%s9 + $0x1c4] sm:$0xf]
      %v643 = vld [vmem:[%s9 + $0x1c8] sm:$0xf]
      %v644 = vld [vmem:[%s9 + $0x1cc] sm:$0xf]
      %v645 = vld [vmem:[%s9 + $0x1d0] sm:$0xf]
      %v646 = vld [vmem:[%s9 + $0x1d4] sm:$0xf]
      %v647 = vld [vmem:[%s9 + $0x1d8] sm:$0xf]
      %v648 = vld [vmem:[%s9 + $0x1dc] sm:$0xf]
      %v649 = vld [vmem:[%s9 + $0x1e0] sm:$0xf]
      %v650 = vld [vmem:[%s9 + $0x1e4] sm:$0xf]
      %v651 = vld [vmem:[%s9 + $0x1e8] sm:$0xf]
      %v652 = vld [vmem:[%s9 + $0x1ec] sm:$0xf]
      %v653 = vld [vmem:[%s9 + $0x1f0] sm:$0xf]
      %v654 = vld [vmem:[%s9 + $0x1f4] sm:$0xf]
      %v655 = vld [vmem:[%s9 + $0x1f8] sm:$0xf]
      %v656 = vld [vmem:[%s9 + $0x1fc] sm:$0xf]
      %v657 = vld [vmem:[%s9 + $0x200] sm:$0xf]
      %v658 = vld [vmem:[%s9 + $0x204] sm:$0xf]
      %v659 = vld [vmem:[%s9 + $0x208] sm:$0xf]
      %v660 = vld [vmem:[%s9 + $0x20c] sm:$0xf]
      %v661 = vld [vmem:[%s9 + $0x210] sm:$0xf]
      %v662 = vld [vmem:[%s9 + $0x214] sm:$0xf]
      %v663 = vld [vmem:[%s9 + $0x218] sm:$0xf]
      %v664 = vld [vmem:[%s9 + $0x21c] sm:$0xf]
      %v665 = vld [vmem:[%s9 + $0x220] sm:$0xf]
      %v666 = vld [vmem:[%s9 + $0x224] sm:$0xf]
      %v667 = vld [vmem:[%s9 + $0x228] sm:$0xf]
      %v668 = vld [vmem:[%s9 + $0x22c] sm:$0xf]
      %v669 = vld [vmem:[%s9 + $0x230] sm:$0xf]
      %v670 = vld [vmem:[%s9 + $0x234] sm:$0xf]
      %v671 = vld [vmem:[%s9 + $0x238] sm:$0xf]
      %v672 = vld [vmem:[%s9 + $0x23c] sm:$0xf]
      %v673 = vld [vmem:[%s9 + $0x240] sm:$0xf]
      %v674 = vld [vmem:[%s9 + $0x244] sm:$0xf]
      %v675 = vld [vmem:[%s9 + $0x248] sm:$0xf]
      %v676 = vld [vmem:[%s9 + $0x24c] sm:$0xf]
      %v677 = vld [vmem:[%s9 + $0x250] sm:$0xf]
      %v678 = vld [vmem:[%s9 + $0x254] sm:$0xf]
      %v679 = vld [vmem:[%s9 + $0x258] sm:$0xf]
      %v680 = vld [vmem:[%s9 + $0x25c] sm:$0xf]
      %v681 = vld [vmem:[%s9 + $0x260] sm:$0xf]
      %v682 = vld [vmem:[%s9 + $0x264] sm:$0xf]
      %v683 = vld [vmem:[%s9 + $0x268] sm:$0xf]
      %v684 = vld [vmem:[%s9 + $0x26c] sm:$0xf]
      %v685 = vld [vmem:[%s9 + $0x270] sm:$0xf]
      %v686 = vld [vmem:[%s9 + $0x274] sm:$0xf]
      %v687 = vld [vmem:[%s9 + $0x278] sm:$0xf]
      %v688 = vld [vmem:[%s9 + $0x27c] sm:$0xf]
      %v689 = vld [vmem:[%s9 + $0x280] sm:$0xf]
      %v690 = vld [vmem:[%s9 + $0x284] sm:$0xf]
      %v691 = vld [vmem:[%s9 + $0x288] sm:$0xf]
      %v692 = vld [vmem:[%s9 + $0x28c] sm:$0xf]
      %v693 = vld [vmem:[%s9 + $0x290] sm:$0xf]
      %v694 = vld [vmem:[%s9 + $0x294] sm:$0xf]
      %v695 = vld [vmem:[%s9 + $0x298] sm:$0xf]
      %v696 = vld [vmem:[%s9 + $0x29c] sm:$0xf]
      %v697 = vld [vmem:[%s9 + $0x2a0] sm:$0xf]
      %v698 = vld [vmem:[%s9 + $0x2a4] sm:$0xf]
      %v699 = vld [vmem:[%s9 + $0x2a8] sm:$0xf]
      %v700 = vld [vmem:[%s9 + $0x2ac] sm:$0xf]
      %v701 = vld [vmem:[%s9 + $0x2b0] sm:$0xf]
      %v702 = vld [vmem:[%s9 + $0x2b4] sm:$0xf]
      %v703 = vld [vmem:[%s9 + $0x2b8] sm:$0xf]
      %v704 = vld [vmem:[%s9 + $0x2bc] sm:$0xf]
      %v705 = vld [vmem:[%s9 + $0x2c0] sm:$0xf]
      %v706 = vld [vmem:[%s9 + $0x2c4] sm:$0xf]
      %v707 = vld [vmem:[%s9 + $0x2c8] sm:$0xf]
      %v708 = vld [vmem:[%s9 + $0x2cc] sm:$0xf]
      %v709 = vld [vmem:[%s9 + $0x2d0] sm:$0xf]
      %v710 = vld [vmem:[%s9 + $0x2d4] sm:$0xf]
      %v711 = vld [vmem:[%s9 + $0x2d8] sm:$0xf]
      %v712 = vld [vmem:[%s9 + $0x2dc] sm:$0xf]
      %v713 = vld [vmem:[%s9 + $0x2e0] sm:$0xf]
      %v714 = vld [vmem:[%s9 + $0x2e4] sm:$0xf]
      %v715 = vld [vmem:[%s9 + $0x2e8] sm:$0xf]
      %v716 = vld [vmem:[%s9 + $0x2ec] sm:$0xf]
      %v717 = vld [vmem:[%s9 + $0x2f0] sm:$0xf]
      %v718 = vld [vmem:[%s9 + $0x2f4] sm:$0xf]
      %v719 = vld [vmem:[%s9 + $0x2f8] sm:$0xf]
      %v720 = vld [vmem:[%s9 + $0x2fc] sm:$0xf]
      %v721 = vld [vmem:[%s9 + $0x300] sm:$0xf]
      %v722 = vld [vmem:[%s9 + $0x304] sm:$0xf]
      %v723 = vld [vmem:[%s9 + $0x308] sm:$0xf]
      %v724 = vld [vmem:[%s9 + $0x30c] sm:$0xf]
      %v725 = vld [vmem:[%s9 + $0x310] sm:$0xf]
      %v726 = vld [vmem:[%s9 + $0x314] sm:$0xf]
      %v727 = vld [vmem:[%s9 + $0x318] sm:$0xf]
      %v728 = vld [vmem:[%s9 + $0x31c] sm:$0xf]
      %v729 = vld [vmem:[%s9 + $0x320] sm:$0xf]
      %v730 = vld [vmem:[%s9 + $0x324] sm:$0xf]
      %v731 = vld [vmem:[%s9 + $0x328] sm:$0xf]
      %v732 = vld [vmem:[%s9 + $0x32c] sm:$0xf]
      %v733 = vld [vmem:[%s9 + $0x330] sm:$0xf]
      %v734 = vld [vmem:[%s9 + $0x334] sm:$0xf]
      %v735 = vld [vmem:[%s9 + $0x338] sm:$0xf]
      %v736 = vld [vmem:[%s9 + $0x33c] sm:$0xf]
      %v737 = vld [vmem:[%s9 + $0x340] sm:$0xf]
      %v738 = vld [vmem:[%s9 + $0x344] sm:$0xf]
      %v739 = vld [vmem:[%s9 + $0x348] sm:$0xf]
      %v740 = vld [vmem:[%s9 + $0x34c] sm:$0xf]
      %v741 = vld [vmem:[%s9 + $0x350] sm:$0xf]
      %v742 = vld [vmem:[%s9 + $0x354] sm:$0xf]
      %v743 = vld [vmem:[%s9 + $0x358] sm:$0xf]
      %v744 = vld [vmem:[%s9 + $0x35c] sm:$0xf]
      %v745 = vld [vmem:[%s9 + $0x360] sm:$0xf]
      %v746 = vld [vmem:[%s9 + $0x364] sm:$0xf]
      %v747 = vld [vmem:[%s9 + $0x368] sm:$0xf]
      %v748 = vld [vmem:[%s9 + $0x36c] sm:$0xf]
      %v749 = vld [vmem:[%s9 + $0x370] sm:$0xf]
      %v750 = vld [vmem:[%s9 + $0x374] sm:$0xf]
      %v751 = vld [vmem:[%s9 + $0x378] sm:$0xf]
      %v752 = vld [vmem:[%s9 + $0x37c] sm:$0xf]
      %v753 = vld [vmem:[%s9 + $0x380] sm:$0xf]
      %v754 = vld [vmem:[%s9 + $0x384] sm:$0xf]
      %v755 = vld [vmem:[%s9 + $0x388] sm:$0xf]
      %v756 = vld [vmem:[%s9 + $0x38c] sm:$0xf]
      %v757 = vld [vmem:[%s9 + $0x390] sm:$0xf]
      %v758 = vld [vmem:[%s9 + $0x394] sm:$0xf]
      %v759 = vld [vmem:[%s9 + $0x398] sm:$0xf]
      %v760 = vld [vmem:[%s9 + $0x39c] sm:$0xf]
      %v761 = vld [vmem:[%s9 + $0x3a0] sm:$0xf]
      %v762 = vld [vmem:[%s9 + $0x3a4] sm:$0xf]
      %v763 = vld [vmem:[%s9 + $0x3a8] sm:$0xf]
      %v764 = vld [vmem:[%s9 + $0x3ac] sm:$0xf]
      %v765 = vld [vmem:[%s9 + $0x3b0] sm:$0xf]
      %v766 = vld [vmem:[%s9 + $0x3b4] sm:$0xf]
      %v767 = vld [vmem:[%s9 + $0x3b8] sm:$0xf]
      %v768 = vld [vmem:[%s9 + $0x3bc] sm:$0xf]
      %v769 = vld [vmem:[%s9 + $0x3c0] sm:$0xf]
      %v770 = vld [vmem:[%s9 + $0x3c4] sm:$0xf]
      %v771 = vld [vmem:[%s9 + $0x3c8] sm:$0xf]
      %v772 = vld [vmem:[%s9 + $0x3cc] sm:$0xf]
      %v773 = vld [vmem:[%s9 + $0x3d0] sm:$0xf]
      %v774 = vld [vmem:[%s9 + $0x3d4] sm:$0xf]
      %v775 = vld [vmem:[%s9 + $0x3d8] sm:$0xf]
      %v776 = vld [vmem:[%s9 + $0x3dc] sm:$0xf]
      %v777 = vld [vmem:[%s9 + $0x3e0] sm:$0xf]
      %v778 = vld [vmem:[%s9 + $0x3e4] sm:$0xf]
      %v779 = vld [vmem:[%s9 + $0x3e8] sm:$0xf]
      %v780 = vld [vmem:[%s9 + $0x3ec] sm:$0xf]
      %v781 = vld [vmem:[%s9 + $0x3f0] sm:$0xf]
      %v782 = vld [vmem:[%s9 + $0x3f4] sm:$0xf]
      %v783 = vld [vmem:[%s9 + $0x3f8] sm:$0xf]
      %v784 = vld [vmem:[%s9 + $0x3fc] sm:$0xf]
      %v785 = vld [vmem:[%s10] sm:$0x1]
      %v786 = vld [vmem:[%s5] sm:$0x1]
      %v787 = vld [vmem:[%s6] sm:$0x1]
      %v788 = vld [vmem:[%s11] sm:$0x1]
      %v789 = vld [vmem:[%s12] sm:$0x1]
      %v790 = vld [vmem:[%s436] sm:$0xf]
      %v791 = vpack.c.bf16 %v790, %v790
      %v793 = vlaneseq
      %v794 = vshrl.u32 %v793, 7
      %v795 = vsub.s32 0, %v794
      %v796 = vrot.slane %v453, %v795
      %v797 = vlaneseq
      %v798 = vshrl.u32 %v797, 7
      %v799 = vsub.s32 1, %v798
      %v800 = vrot.slane %v453, %v799
      %v811 = vunpack.c.l.b16 %v445
      %v812 = vunpack.c.h.b16 %v445
      %v813 = vunpack.c.l.b16 %v446
      %v814 = vunpack.c.h.b16 %v446
      %v815 = vunpack.c.l.b16 %v447
      %v816 = vunpack.c.h.b16 %v447
      %v817 = vunpack.c.l.b16 %v448
      %v818 = vunpack.c.h.b16 %v448
      %v819 = vunpack.c.l.b16 %v449
      %v820 = vunpack.c.h.b16 %v449
      %v821 = vunpack.c.l.b16 %v450
      %v822 = vunpack.c.h.b16 %v450
      %v823 = vunpack.c.l.b16 %v451
      %v824 = vunpack.c.h.b16 %v451
      %v825 = vunpack.c.l.b16 %v452
      %v826 = vunpack.c.h.b16 %v452
      %v827 = vpack.c.b16 %v813, %v811
      %v828 = vpack.c.b16 %v814, %v812
      %v829 = vpack.c.b16 %v817, %v815
      %v830 = vpack.c.b16 %v818, %v816
      %v831 = vpack.c.b16 %v821, %v819
      %v832 = vpack.c.b16 %v822, %v820
      %v833 = vpack.c.b16 %v825, %v823
      %v834 = vpack.c.b16 %v826, %v824
      %vm843 = vcmask 523264
      %v845 = vsel %vm843, %v791, 0
      %847 = vmatprep.subr.bf16.mxu0 %v828
      %848 = vmatpush1.bf16.msra.mxu0 %v827
      %849 = vmatprep.subr.bf16.mxu0 %v830
      %850 = vmatpush1.bf16.msra.mxu0 %v829
      %851 = vmatprep.subr.bf16.mxu0 %v832
      %852 = vmatpush1.bf16.msra.mxu0 %v831
      %853 = vmatprep.subr.bf16.mxu0 %v834
      %854 = vmatpush1.bf16.msra.mxu0 %v833
      %855 = vmatprep.subr.bf16.mxu0 0
      %856 = vmatpush1.bf16.msra.mxu0 0
      %857 = vmatprep.subr.bf16.mxu0 0
      %858 = vmatpush1.bf16.msra.mxu0 0
      %859 = vmatprep.subr.bf16.mxu0 0
      %860 = vmatpush1.bf16.msra.mxu0 0
      %861 = vmatprep.subr.bf16.mxu0 0
      %862 = vmatpush1.bf16.msra.mxu0 0
      %863 = vmatprep.subr.bf16.mxu0 0
      %864 = vmatpush1.bf16.msra.mxu0 0
      %865 = vmatprep.subr.bf16.mxu0 0
      %866 = vmatpush1.bf16.msra.mxu0 0
      %867 = vmatprep.subr.bf16.mxu0 0
      %868 = vmatpush1.bf16.msra.mxu0 0
      %869 = vmatprep.subr.bf16.mxu0 0
      %870 = vmatpush1.bf16.msra.mxu0 0
      %871 = vmatprep.subr.bf16.mxu0 0
      %872 = vmatpush1.bf16.msra.mxu0 0
      %873 = vmatprep.subr.bf16.mxu0 0
      %874 = vmatpush1.bf16.msra.mxu0 0
      %875 = vmatprep.subr.bf16.mxu0 0
      %876 = vmatpush1.bf16.msra.mxu0 0
      %877 = vmatprep.subr.bf16.mxu0 0
      %878 = vmatpush1.bf16.msra.mxu0 0
      %879 = vmatprep.mubr.bf16.mxu0 0
      %880 = vmatmul.mubr.bf16.gmra.mrb[0].mxu0 %v845
      %v881 = vpop.f32.mrb[0].mxu0
      %v882 = vadd.f32 %v796, %v881
      %v883 = vpop.f32.mrb[0].mxu0
      %v884 = vadd.f32 %v800, %v883
      %v885 = vpop.f32.mrb[0].mxu0
      %v886 = vpop.f32.mrb[0].mxu0
      %887 = vdwg.mxu0
      %v888 = vmul.f32 %v882, 0.35355338
      %v889 = vpack.c.bf16 %v888, %v888
      %v890 = vpack.c.bf16 %v882, %v882
      %v891 = vpack.c.bf16 %v884, %v884
      %893 = vrot.lane.b32.xlu0 %v890, 64
      %v894 = vpop.permute.xlu0 %893
      %vm895 = vcmask 64512
      %v897 = vsel %vm895, %v889, 0
      %v900 = vsel %vm895, %v894, 0
      %902 = vmatprep.subr.bf16.mxu0 0
      %903 = vmatpush1.bf16.xpose.msra.mxu0 %v900
      %904 = vmatprep.subr.bf16.mxu0 0
      %905 = vmatpush1.bf16.xpose.msra.mxu0 0
      %906 = vmatprep.subr.bf16.mxu0 0
      %907 = vmatpush1.bf16.xpose.msra.mxu0 0
      %908 = vmatprep.subr.bf16.mxu0 0
      %909 = vmatpush1.bf16.xpose.msra.mxu0 0
      %910 = vmatprep.subr.bf16.mxu0 0
      %911 = vmatpush1.bf16.xpose.msra.mxu0 0
      %912 = vmatprep.subr.bf16.mxu0 0
      %913 = vmatpush1.bf16.xpose.msra.mxu0 0
      %914 = vmatprep.subr.bf16.mxu0 0
      %915 = vmatpush1.bf16.xpose.msra.mxu0 0
      %916 = vmatprep.subr.bf16.mxu0 0
      %917 = vmatpush1.bf16.xpose.msra.mxu0 0
      %918 = vmatprep.subr.bf16.mxu0 0
      %919 = vmatpush1.bf16.xpose.msra.mxu0 0
      %920 = vmatprep.subr.bf16.mxu0 0
      %921 = vmatpush1.bf16.xpose.msra.mxu0 0
      %922 = vmatprep.subr.bf16.mxu0 0
      %923 = vmatpush1.bf16.xpose.msra.mxu0 0
      %924 = vmatprep.subr.bf16.mxu0 0
      %925 = vmatpush1.bf16.xpose.msra.mxu0 0
      %926 = vmatprep.subr.bf16.mxu0 0
      %927 = vmatpush1.bf16.xpose.msra.mxu0 0
      %928 = vmatprep.subr.bf16.mxu0 0
      %929 = vmatpush1.bf16.xpose.msra.mxu0 0
      %930 = vmatprep.subr.bf16.mxu0 0
      %931 = vmatpush1.bf16.xpose.msra.mxu0 0
      %932 = vmatprep.subr.bf16.mxu0 0
      %933 = vmatpush1.bf16.xpose.msra.mxu0 0
      %934 = vmatprep.mubr.bf16.mxu0 0
      %935 = vmatmul.mubr.bf16.gmra.mrb[0].mxu0 %v897
      %v936 = vpop.f32.mrb[0].mxu0
      %v937 = vadd.f32 0.0, %v936
      %v938 = vpop.f32.mrb[0].mxu0
      %v939 = vpop.f32.mrb[0].mxu0
      %v940 = vpop.f32.mrb[0].mxu0
      %941 = vdwg.mxu0
      %vm942 = vcmask 27648
      %v943 = vsel %vm942, %v937, -inf
      %944 = vmax.xlane.f32.xlu0 %v943
      %v945 = vpop.xlane.xlu0 %944
      %v946 = vsub.f32 %v937, %v945
      %v947 = vmul.f32 %v946, 1.442695
      %v948 = vpow.pop %v947
      %v949 = vsel %vm942, %v948, 0.0
      %950 = vadd.xlane.f32.xlu0 %v949
      %v951 = vpop.xlane.xlu0 %950
      %v952 = vrcp.pop %v951
      %v953 = vmul.f32 %v948, %v952
      %v954 = vpack.c.bf16 %v953, %v953
      %vm955 = vcmask 31744
      %v957 = vsel %vm955, %v954, 0
      %vm959 = vcmask 1041408
      %v961 = vsel %vm959, %v891, 0
      %963 = vmatprep.subr.bf16.mxu0 0
      %964 = vmatpush1.bf16.msra.mxu0 %v961
      %965 = vmatprep.subr.bf16.mxu0 0
      %966 = vmatpush1.bf16.msra.mxu0 0
      %967 = vmatprep.subr.bf16.mxu0 0
      %968 = vmatpush1.bf16.msra.mxu0 0
      %969 = vmatprep.subr.bf16.mxu0 0
      %970 = vmatpush1.bf16.msra.mxu0 0
      %971 = vmatprep.subr.bf16.mxu0 0
      %972 = vmatpush1.bf16.msra.mxu0 0
      %973 = vmatprep.subr.bf16.mxu0 0
      %974 = vmatpush1.bf16.msra.mxu0 0
      %975 = vmatprep.subr.bf16.mxu0 0
      %976 = vmatpush1.bf16.msra.mxu0 0
      %977 = vmatprep.subr.bf16.mxu0 0
      %978 = vmatpush1.bf16.msra.mxu0 0
      %979 = vmatprep.subr.bf16.mxu0 0
      %980 = vmatpush1.bf16.msra.mxu0 0
      %981 = vmatprep.subr.bf16.mxu0 0
      %982 = vmatpush1.bf16.msra.mxu0 0
      %983 = vmatprep.subr.bf16.mxu0 0
      %984 = vmatpush1.bf16.msra.mxu0 0
      %985 = vmatprep.subr.bf16.mxu0 0
      %986 = vmatpush1.bf16.msra.mxu0 0
      %987 = vmatprep.subr.bf16.mxu0 0
      %988 = vmatpush1.bf16.msra.mxu0 0
      %989 = vmatprep.subr.bf16.mxu0 0
      %990 = vmatpush1.bf16.msra.mxu0 0
      %991 = vmatprep.subr.bf16.mxu0 0
      %992 = vmatpush1.bf16.msra.mxu0 0
      %993 = vmatprep.subr.bf16.mxu0 0
      %994 = vmatpush1.bf16.msra.mxu0 0
      %995 = vmatprep.mubr.bf16.mxu0 0
      %996 = vmatmul.mubr.bf16.gmra.mrb[0].mxu0 %v957
      %v997 = vpop.f32.mrb[0].mxu0
      %v998 = vadd.f32 0.0, %v997
      %v999 = vpop.f32.mrb[0].mxu0
      %v1000 = vpop.f32.mrb[0].mxu0
      %v1001 = vpop.f32.mrb[0].mxu0
      %1002 = vdwg.mxu0
      %1004 = vrot.lane.b32.xlu0 %v889, 120
      %v1005 = vpop.permute.xlu0 %1004
      %1006 = vrot.lane.b32.xlu0 %v890, 56
      %v1007 = vpop.permute.xlu0 %1006
      %v1009 = vsel %vm895, %v1005, 0
      %v1012 = vsel %vm895, %v1007, 0
      %1014 = vmatprep.subr.bf16.mxu0 0
      %1015 = vmatpush1.bf16.xpose.msra.mxu0 %v1012
      %1016 = vmatprep.subr.bf16.mxu0 0
      %1017 = vmatpush1.bf16.xpose.msra.mxu0 0
      %1018 = vmatprep.subr.bf16.mxu0 0
      %1019 = vmatpush1.bf16.xpose.msra.mxu0 0
      %1020 = vmatprep.subr.bf16.mxu0 0
      %1021 = vmatpush1.bf16.xpose.msra.mxu0 0
      %1022 = vmatprep.subr.bf16.mxu0 0
      %1023 = vmatpush1.bf16.xpose.msra.mxu0 0
      %1024 = vmatprep.subr.bf16.mxu0 0
      %1025 = vmatpush1.bf16.xpose.msra.mxu0 0
      %1026 = vmatprep.subr.bf16.mxu0 0
      %1027 = vmatpush1.bf16.xpose.msra.mxu0 0
      %1028 = vmatprep.subr.bf16.mxu0 0
      %1029 = vmatpush1.bf16.xpose.msra.mxu0 0
      %1030 = vmatprep.subr.bf16.mxu0 0
      %1031 = vmatpush1.bf16.xpose.msra.mxu0 0
      %1032 = vmatprep.subr.bf16.mxu0 0
      %1033 = vmatpush1.bf16.xpose.msra.mxu0 0
      %1034 = vmatprep.subr.bf16.mxu0 0
      %1035 = vmatpush1.bf16.xpose.msra.mxu0 0
      %1036 = vmatprep.subr.bf16.mxu0 0
      %1037 = vmatpush1.bf16.xpose.msra.mxu0 0
      %1038 = vmatprep.subr.bf16.mxu0 0
      %1039 = vmatpush1.bf16.xpose.msra.mxu0 0
      %1040 = vmatprep.subr.bf16.mxu0 0
      %1041 = vmatpush1.bf16.xpose.msra.mxu0 0
      %1042 = vmatprep.subr.bf16.mxu0 0
      %1043 = vmatpush1.bf16.xpose.msra.mxu0 0
      %1044 = vmatprep.subr.bf16.mxu0 0
      %1045 = vmatpush1.bf16.xpose.msra.mxu0 0
      %1046 = vmatprep.mubr.bf16.mxu0 0
      %1047 = vmatmul.mubr.bf16.gmra.mrb[0].mxu0 %v1009
      %v1048 = vpop.f32.mrb[0].mxu0
      %v1049 = vadd.f32 0.0, %v1048
      %v1050 = vpop.f32.mrb[0].mxu0
      %v1051 = vpop.f32.mrb[0].mxu0
      %v1052 = vpop.f32.mrb[0].mxu0
      %1053 = vdwg.mxu0
      %v1054 = vsel %vm942, %v1049, -inf
      %1055 = vmax.xlane.f32.xlu0 %v1054
      %v1056 = vpop.xlane.xlu0 %1055
      %v1057 = vsub.f32 %v1049, %v1056
      %v1058 = vmul.f32 %v1057, 1.442695
      %v1059 = vpow.pop %v1058
      %v1060 = vsel %vm942, %v1059, 0.0
      %1061 = vadd.xlane.f32.xlu0 %v1060
      %v1062 = vpop.xlane.xlu0 %1061
      %v1063 = vrcp.pop %v1062
      %v1064 = vmul.f32 %v1059, %v1063
      %v1065 = vpack.c.bf16 %v1064, %v1064
      %1067 = vrot.lane.b32.xlu0 %v891, 120
      %v1068 = vpop.permute.xlu0 %1067
      %v1070 = vsel %vm955, %v1065, 0
      %v1073 = vsel %vm959, %v1068, 0
      %1075 = vmatprep.subr.bf16.mxu0 0
      %1076 = vmatpush1.bf16.msra.mxu0 %v1073
      %1077 = vmatprep.subr.bf16.mxu0 0
      %1078 = vmatpush1.bf16.msra.mxu0 0
      %1079 = vmatprep.subr.bf16.mxu0 0
      %1080 = vmatpush1.bf16.msra.mxu0 0
      %1081 = vmatprep.subr.bf16.mxu0 0
      %1082 = vmatpush1.bf16.msra.mxu0 0
      %1083 = vmatprep.subr.bf16.mxu0 0
      %1084 = vmatpush1.bf16.msra.mxu0 0
      %1085 = vmatprep.subr.bf16.mxu0 0
      %1086 = vmatpush1.bf16.msra.mxu0 0
      %1087 = vmatprep.subr.bf16.mxu0 0
      %1088 = vmatpush1.bf16.msra.mxu0 0
      %1089 = vmatprep.subr.bf16.mxu0 0
      %1090 = vmatpush1.bf16.msra.mxu0 0
      %1091 = vmatprep.subr.bf16.mxu0 0
      %1092 = vmatpush1.bf16.msra.mxu0 0
      %1093 = vmatprep.subr.bf16.mxu0 0
      %1094 = vmatpush1.bf16.msra.mxu0 0
      %1095 = vmatprep.subr.bf16.mxu0 0
      %1096 = vmatpush1.bf16.msra.mxu0 0
      %1097 = vmatprep.subr.bf16.mxu0 0
      %1098 = vmatpush1.bf16.msra.mxu0 0
      %1099 = vmatprep.subr.bf16.mxu0 0
      %1100 = vmatpush1.bf16.msra.mxu0 0
      %1101 = vmatprep.subr.bf16.mxu0 0
      %1102 = vmatpush1.bf16.msra.mxu0 0
      %1103 = vmatprep.subr.bf16.mxu0 0
      %1104 = vmatpush1.bf16.msra.mxu0 0
      %1105 = vmatprep.subr.bf16.mxu0 0
      %1106 = vmatpush1.bf16.msra.mxu0 0
      %1107 = vmatprep.mubr.bf16.mxu0 0
      %1108 = vmatmul.mubr.bf16.gmra.mrb[0].mxu0 %v1070
      %v1109 = vpop.f32.mrb[0].mxu0
      %v1110 = vadd.f32 0.0, %v1109
      %v1111 = vpop.f32.mrb[0].mxu0
      %v1112 = vpop.f32.mrb[0].mxu0
      %v1113 = vpop.f32.mrb[0].mxu0
      %1114 = vdwg.mxu0
      %1115 = vrot.lane.b32.xlu0 %v889, 112
      %v1116 = vpop.permute.xlu0 %1115
      %1117 = vrot.lane.b32.xlu0 %v890, 48
      %v1118 = vpop.permute.xlu0 %1117
      %v1120 = vsel %vm895, %v1116, 0
      %v1123 = vsel %vm895, %v1118, 0
      %1125 = vmatprep.subr.bf16.mxu0 0
      %1126 = vmatpush1.bf16.xpose.msra.mxu0 %v1123
      %1127 = vmatprep.subr.bf16.mxu0 0
      %1128 = vmatpush1.bf16.xpose.msra.mxu0 0
      %1129 = vmatprep.subr.bf16.mxu0 0
      %1130 = vmatpush1.bf16.xpose.msra.mxu0 0
      %1131 = vmatprep.subr.bf16.mxu0 0
      %1132 = vmatpush1.bf16.xpose.msra.mxu0 0
      %1133 = vmatprep.subr.bf16.mxu0 0
      %1134 = vmatpush1.bf16.xpose.msra.mxu0 0
      %1135 = vmatprep.subr.bf16.mxu0 0
      %1136 = vmatpush1.bf16.xpose.msra.mxu0 0
      %1137 = vmatprep.subr.bf16.mxu0 0
      %1138 = vmatpush1.bf16.xpose.msra.mxu0 0
      %1139 = vmatprep.subr.bf16.mxu0 0
      %1140 = vmatpush1.bf16.xpose.msra.mxu0 0
      %1141 = vmatprep.subr.bf16.mxu0 0
      %1142 = vmatpush1.bf16.xpose.msra.mxu0 0
      %1143 = vmatprep.subr.bf16.mxu0 0
      %1144 = vmatpush1.bf16.xpose.msra.mxu0 0
      %1145 = vmatprep.subr.bf16.mxu0 0
      %1146 = vmatpush1.bf16.xpose.msra.mxu0 0
      %1147 = vmatprep.subr.bf16.mxu0 0
      %1148 = vmatpush1.bf16.xpose.msra.mxu0 0
      %1149 = vmatprep.subr.bf16.mxu0 0
      %1150 = vmatpush1.bf16.xpose.msra.mxu0 0
      %1151 = vmatprep.subr.bf16.mxu0 0
      %1152 = vmatpush1.bf16.xpose.msra.mxu0 0
      %1153 = vmatprep.subr.bf16.mxu0 0
      %1154 = vmatpush1.bf16.xpose.msra.mxu0 0
      %1155 = vmatprep.subr.bf16.mxu0 0
      %1156 = vmatpush1.bf16.xpose.msra.mxu0 0
      %1157 = vmatprep.mubr.bf16.mxu0 0
      %1158 = vmatmul.mubr.bf16.gmra.mrb[0].mxu0 %v1120
      %v1159 = vpop.f32.mrb[0].mxu0
      %v1160 = vadd.f32 0.0, %v1159
      %v1161 = vpop.f32.mrb[0].mxu0
      %v1162 = vpop.f32.mrb[0].mxu0
      %v1163 = vpop.f32.mrb[0].mxu0
      %1164 = vdwg.mxu0
      %v1165 = vsel %vm942, %v1160, -inf
      %1166 = vmax.xlane.f32.xlu0 %v1165
      %v1167 = vpop.xlane.xlu0 %1166
      %v1168 = vsub.f32 %v1160, %v1167
      %v1169 = vmul.f32 %v1168, 1.442695
      %v1170 = vpow.pop %v1169
      %v1171 = vsel %vm942, %v1170, 0.0
      %1172 = vadd.xlane.f32.xlu0 %v1171
      %v1173 = vpop.xlane.xlu0 %1172
      %v1174 = vrcp.pop %v1173
      %v1175 = vmul.f32 %v1170, %v1174
      %v1176 = vpack.c.bf16 %v1175, %v1175
      %1177 = vrot.lane.b32.xlu0 %v891, 112
      %v1178 = vpop.permute.xlu0 %1177
      %v1180 = vsel %vm955, %v1176, 0
      %v1183 = vsel %vm959, %v1178, 0
      %1185 = vmatprep.subr.bf16.mxu0 0
      %1186 = vmatpush1.bf16.msra.mxu0 %v1183
      %1187 = vmatprep.subr.bf16.mxu0 0
      %1188 = vmatpush1.bf16.msra.mxu0 0
      %1189 = vmatprep.subr.bf16.mxu0 0
      %1190 = vmatpush1.bf16.msra.mxu0 0
      %1191 = vmatprep.subr.bf16.mxu0 0
      %1192 = vmatpush1.bf16.msra.mxu0 0
      %1193 = vmatprep.subr.bf16.mxu0 0
      %1194 = vmatpush1.bf16.msra.mxu0 0
      %1195 = vmatprep.subr.bf16.mxu0 0
      %1196 = vmatpush1.bf16.msra.mxu0 0
      %1197 = vmatprep.subr.bf16.mxu0 0
      %1198 = vmatpush1.bf16.msra.mxu0 0
      %1199 = vmatprep.subr.bf16.mxu0 0
      %1200 = vmatpush1.bf16.msra.mxu0 0
      %1201 = vmatprep.subr.bf16.mxu0 0
      %1202 = vmatpush1.bf16.msra.mxu0 0
      %1203 = vmatprep.subr.bf16.mxu0 0
      %1204 = vmatpush1.bf16.msra.mxu0 0
      %1205 = vmatprep.subr.bf16.mxu0 0
      %1206 = vmatpush1.bf16.msra.mxu0 0
      %1207 = vmatprep.subr.bf16.mxu0 0
      %1208 = vmatpush1.bf16.msra.mxu0 0
      %1209 = vmatprep.subr.bf16.mxu0 0
      %1210 = vmatpush1.bf16.msra.mxu0 0
      %1211 = vmatprep.subr.bf16.mxu0 0
      %1212 = vmatpush1.bf16.msra.mxu0 0
      %1213 = vmatprep.subr.bf16.mxu0 0
      %1214 = vmatpush1.bf16.msra.mxu0 0
      %1215 = vmatprep.subr.bf16.mxu0 0
      %1216 = vmatpush1.bf16.msra.mxu0 0
      %1217 = vmatprep.mubr.bf16.mxu0 0
      %1218 = vmatmul.mubr.bf16.gmra.mrb[0].mxu0 %v1180
      %v1219 = vpop.f32.mrb[0].mxu0
      %v1220 = vadd.f32 0.0, %v1219
      %v1221 = vpop.f32.mrb[0].mxu0
      %v1222 = vpop.f32.mrb[0].mxu0
      %v1223 = vpop.f32.mrb[0].mxu0
      %1224 = vdwg.mxu0
      %1225 = vrot.lane.b32.xlu0 %v889, 104
      %v1226 = vpop.permute.xlu0 %1225
      %1227 = vrot.lane.b32.xlu0 %v890, 40
      %v1228 = vpop.permute.xlu0 %1227
      %v1230 = vsel %vm895, %v1226, 0
      %v1233 = vsel %vm895, %v1228, 0
      %1235 = vmatprep.subr.bf16.mxu0 0
      %1236 = vmatpush1.bf16.xpose.msra.mxu0 %v1233
      %1237 = vmatprep.subr.bf16.mxu0 0
      %1238 = vmatpush1.bf16.xpose.msra.mxu0 0
      %1239 = vmatprep.subr.bf16.mxu0 0
      %1240 = vmatpush1.bf16.xpose.msra.mxu0 0
      %1241 = vmatprep.subr.bf16.mxu0 0
      %1242 = vmatpush1.bf16.xpose.msra.mxu0 0
      %1243 = vmatprep.subr.bf16.mxu0 0
      %1244 = vmatpush1.bf16.xpose.msra.mxu0 0
      %1245 = vmatprep.subr.bf16.mxu0 0
      %1246 = vmatpush1.bf16.xpose.msra.mxu0 0
      %1247 = vmatprep.subr.bf16.mxu0 0
      %1248 = vmatpush1.bf16.xpose.msra.mxu0 0
      %1249 = vmatprep.subr.bf16.mxu0 0
      %1250 = vmatpush1.bf16.xpose.msra.mxu0 0
      %1251 = vmatprep.subr.bf16.mxu0 0
      %1252 = vmatpush1.bf16.xpose.msra.mxu0 0
      %1253 = vmatprep.subr.bf16.mxu0 0
      %1254 = vmatpush1.bf16.xpose.msra.mxu0 0
      %1255 = vmatprep.subr.bf16.mxu0 0
      %1256 = vmatpush1.bf16.xpose.msra.mxu0 0
      %1257 = vmatprep.subr.bf16.mxu0 0
      %1258 = vmatpush1.bf16.xpose.msra.mxu0 0
      %1259 = vmatprep.subr.bf16.mxu0 0
      %1260 = vmatpush1.bf16.xpose.msra.mxu0 0
      %1261 = vmatprep.subr.bf16.mxu0 0
      %1262 = vmatpush1.bf16.xpose.msra.mxu0 0
      %1263 = vmatprep.subr.bf16.mxu0 0
      %1264 = vmatpush1.bf16.xpose.msra.mxu0 0
      %1265 = vmatprep.subr.bf16.mxu0 0
      %1266 = vmatpush1.bf16.xpose.msra.mxu0 0
      %1267 = vmatprep.mubr.bf16.mxu0 0
      %1268 = vmatmul.mubr.bf16.gmra.mrb[0].mxu0 %v1230
      %v1269 = vpop.f32.mrb[0].mxu0
      %v1270 = vadd.f32 0.0, %v1269
      %v1271 = vpop.f32.mrb[0].mxu0
      %v1272 = vpop.f32.mrb[0].mxu0
      %v1273 = vpop.f32.mrb[0].mxu0
      %1274 = vdwg.mxu0
      %v1275 = vsel %vm942, %v1270, -inf
      %1276 = vmax.xlane.f32.xlu0 %v1275
      %v1277 = vpop.xlane.xlu0 %1276
      %v1278 = vsub.f32 %v1270, %v1277
      %v1279 = vmul.f32 %v1278, 1.442695
      %v1280 = vpow.pop %v1279
      %v1281 = vsel %vm942, %v1280, 0.0
      %1282 = vadd.xlane.f32.xlu0 %v1281
      %v1283 = vpop.xlane.xlu0 %1282
      %v1284 = vrcp.pop %v1283
      %v1285 = vmul.f32 %v1280, %v1284
      %v1286 = vpack.c.bf16 %v1285, %v1285
      %1287 = vrot.lane.b32.xlu0 %v891, 104
      %v1288 = vpop.permute.xlu0 %1287
      %v1290 = vsel %vm955, %v1286, 0
      %v1293 = vsel %vm959, %v1288, 0
      %1295 = vmatprep.subr.bf16.mxu0 0
      %1296 = vmatpush1.bf16.msra.mxu0 %v1293
      %1297 = vmatprep.subr.bf16.mxu0 0
      %1298 = vmatpush1.bf16.msra.mxu0 0
      %1299 = vmatprep.subr.bf16.mxu0 0
      %1300 = vmatpush1.bf16.msra.mxu0 0
      %1301 = vmatprep.subr.bf16.mxu0 0
      %1302 = vmatpush1.bf16.msra.mxu0 0
      %1303 = vmatprep.subr.bf16.mxu0 0
      %1304 = vmatpush1.bf16.msra.mxu0 0
      %1305 = vmatprep.subr.bf16.mxu0 0
      %1306 = vmatpush1.bf16.msra.mxu0 0
      %1307 = vmatprep.subr.bf16.mxu0 0
      %1308 = vmatpush1.bf16.msra.mxu0 0
      %1309 = vmatprep.subr.bf16.mxu0 0
      %1310 = vmatpush1.bf16.msra.mxu0 0
      %1311 = vmatprep.subr.bf16.mxu0 0
      %1312 = vmatpush1.bf16.msra.mxu0 0
      %1313 = vmatprep.subr.bf16.mxu0 0
      %1314 = vmatpush1.bf16.msra.mxu0 0
      %1315 = vmatprep.subr.bf16.mxu0 0
      %1316 = vmatpush1.bf16.msra.mxu0 0
      %1317 = vmatprep.subr.bf16.mxu0 0
      %1318 = vmatpush1.bf16.msra.mxu0 0
      %1319 = vmatprep.subr.bf16.mxu0 0
      %1320 = vmatpush1.bf16.msra.mxu0 0
      %1321 = vmatprep.subr.bf16.mxu0 0
      %1322 = vmatpush1.bf16.msra.mxu0 0
      %1323 = vmatprep.subr.bf16.mxu0 0
      %1324 = vmatpush1.bf16.msra.mxu0 0
      %1325 = vmatprep.subr.bf16.mxu0 0
      %1326 = vmatpush1.bf16.msra.mxu0 0
      %1327 = vmatprep.mubr.bf16.mxu0 0
      %1328 = vmatmul.mubr.bf16.gmra.mrb[0].mxu0 %v1290
      %v1329 = vpop.f32.mrb[0].mxu0
      %v1330 = vadd.f32 0.0, %v1329
      %v1331 = vpop.f32.mrb[0].mxu0
      %v1332 = vpop.f32.mrb[0].mxu0
      %v1333 = vpop.f32.mrb[0].mxu0
      %1334 = vdwg.mxu0
      %1335 = vrot.lane.b32.xlu0 %v889, 96
      %v1336 = vpop.permute.xlu0 %1335
      %1337 = vrot.lane.b32.xlu0 %v890, 32
      %v1338 = vpop.permute.xlu0 %1337
      %v1340 = vsel %vm895, %v1336, 0
      %v1343 = vsel %vm895, %v1338, 0
      %1345 = vmatprep.subr.bf16.mxu0 0
      %1346 = vmatpush1.bf16.xpose.msra.mxu0 %v1343
      %1347 = vmatprep.subr.bf16.mxu0 0
      %1348 = vmatpush1.bf16.xpose.msra.mxu0 0
      %1349 = vmatprep.subr.bf16.mxu0 0
      %1350 = vmatpush1.bf16.xpose.msra.mxu0 0
      %1351 = vmatprep.subr.bf16.mxu0 0
      %1352 = vmatpush1.bf16.xpose.msra.mxu0 0
      %1353 = vmatprep.subr.bf16.mxu0 0
      %1354 = vmatpush1.bf16.xpose.msra.mxu0 0
      %1355 = vmatprep.subr.bf16.mxu0 0
      %1356 = vmatpush1.bf16.xpose.msra.mxu0 0
      %1357 = vmatprep.subr.bf16.mxu0 0
      %1358 = vmatpush1.bf16.xpose.msra.mxu0 0
      %1359 = vmatprep.subr.bf16.mxu0 0
      %1360 = vmatpush1.bf16.xpose.msra.mxu0 0
      %1361 = vmatprep.subr.bf16.mxu0 0
      %1362 = vmatpush1.bf16.xpose.msra.mxu0 0
      %1363 = vmatprep.subr.bf16.mxu0 0
      %1364 = vmatpush1.bf16.xpose.msra.mxu0 0
      %1365 = vmatprep.subr.bf16.mxu0 0
      %1366 = vmatpush1.bf16.xpose.msra.mxu0 0
      %1367 = vmatprep.subr.bf16.mxu0 0
      %1368 = vmatpush1.bf16.xpose.msra.mxu0 0
      %1369 = vmatprep.subr.bf16.mxu0 0
      %1370 = vmatpush1.bf16.xpose.msra.mxu0 0
      %1371 = vmatprep.subr.bf16.mxu0 0
      %1372 = vmatpush1.bf16.xpose.msra.mxu0 0
      %1373 = vmatprep.subr.bf16.mxu0 0
      %1374 = vmatpush1.bf16.xpose.msra.mxu0 0
      %1375 = vmatprep.subr.bf16.mxu0 0
      %1376 = vmatpush1.bf16.xpose.msra.mxu0 0
      %1377 = vmatprep.mubr.bf16.mxu0 0
      %1378 = vmatmul.mubr.bf16.gmra.mrb[0].mxu0 %v1340
      %v1379 = vpop.f32.mrb[0].mxu0
      %v1380 = vadd.f32 0.0, %v1379
      %v1381 = vpop.f32.mrb[0].mxu0
      %v1382 = vpop.f32.mrb[0].mxu0
      %v1383 = vpop.f32.mrb[0].mxu0
      %1384 = vdwg.mxu0
      %v1385 = vsel %vm942, %v1380, -inf
      %1386 = vmax.xlane.f32.xlu0 %v1385
      %v1387 = vpop.xlane.xlu0 %1386
      %v1388 = vsub.f32 %v1380, %v1387
      %v1389 = vmul.f32 %v1388, 1.442695
      %v1390 = vpow.pop %v1389
      %v1391 = vsel %vm942, %v1390, 0.0
      %1392 = vadd.xlane.f32.xlu0 %v1391
      %v1393 = vpop.xlane.xlu0 %1392
      %v1394 = vrcp.pop %v1393
      %v1395 = vmul.f32 %v1390, %v1394
      %v1396 = vpack.c.bf16 %v1395, %v1395
      %1397 = vrot.lane.b32.xlu0 %v891, 96
      %v1398 = vpop.permute.xlu0 %1397
      %v1400 = vsel %vm955, %v1396, 0
      %v1403 = vsel %vm959, %v1398, 0
      %1405 = vmatprep.subr.bf16.mxu0 0
      %1406 = vmatpush1.bf16.msra.mxu0 %v1403
      %1407 = vmatprep.subr.bf16.mxu0 0
      %1408 = vmatpush1.bf16.msra.mxu0 0
      %1409 = vmatprep.subr.bf16.mxu0 0
      %1410 = vmatpush1.bf16.msra.mxu0 0
      %1411 = vmatprep.subr.bf16.mxu0 0
      %1412 = vmatpush1.bf16.msra.mxu0 0
      %1413 = vmatprep.subr.bf16.mxu0 0
      %1414 = vmatpush1.bf16.msra.mxu0 0
      %1415 = vmatprep.subr.bf16.mxu0 0
      %1416 = vmatpush1.bf16.msra.mxu0 0
      %1417 = vmatprep.subr.bf16.mxu0 0
      %1418 = vmatpush1.bf16.msra.mxu0 0
      %1419 = vmatprep.subr.bf16.mxu0 0
      %1420 = vmatpush1.bf16.msra.mxu0 0
      %1421 = vmatprep.subr.bf16.mxu0 0
      %1422 = vmatpush1.bf16.msra.mxu0 0
      %1423 = vmatprep.subr.bf16.mxu0 0
      %1424 = vmatpush1.bf16.msra.mxu0 0
      %1425 = vmatprep.subr.bf16.mxu0 0
      %1426 = vmatpush1.bf16.msra.mxu0 0
      %1427 = vmatprep.subr.bf16.mxu0 0
      %1428 = vmatpush1.bf16.msra.mxu0 0
      %1429 = vmatprep.subr.bf16.mxu0 0
      %1430 = vmatpush1.bf16.msra.mxu0 0
      %1431 = vmatprep.subr.bf16.mxu0 0
      %1432 = vmatpush1.bf16.msra.mxu0 0
      %1433 = vmatprep.subr.bf16.mxu0 0
      %1434 = vmatpush1.bf16.msra.mxu0 0
      %1435 = vmatprep.subr.bf16.mxu0 0
      %1436 = vmatpush1.bf16.msra.mxu0 0
      %1437 = vmatprep.mubr.bf16.mxu0 0
      %1438 = vmatmul.mubr.bf16.gmra.mrb[0].mxu0 %v1400
      %v1439 = vpop.f32.mrb[0].mxu0
      %v1440 = vadd.f32 0.0, %v1439
      %v1441 = vpop.f32.mrb[0].mxu0
      %v1442 = vpop.f32.mrb[0].mxu0
      %v1443 = vpop.f32.mrb[0].mxu0
      %1444 = vdwg.mxu0
      %1445 = vrot.lane.b32.xlu0 %v889, 88
      %v1446 = vpop.permute.xlu0 %1445
      %1447 = vrot.lane.b32.xlu0 %v890, 24
      %v1448 = vpop.permute.xlu0 %1447
      %v1450 = vsel %vm895, %v1446, 0
      %v1453 = vsel %vm895, %v1448, 0
      %1455 = vmatprep.subr.bf16.mxu0 0
      %1456 = vmatpush1.bf16.xpose.msra.mxu0 %v1453
      %1457 = vmatprep.subr.bf16.mxu0 0
      %1458 = vmatpush1.bf16.xpose.msra.mxu0 0
      %1459 = vmatprep.subr.bf16.mxu0 0
      %1460 = vmatpush1.bf16.xpose.msra.mxu0 0
      %1461 = vmatprep.subr.bf16.mxu0 0
      %1462 = vmatpush1.bf16.xpose.msra.mxu0 0
      %1463 = vmatprep.subr.bf16.mxu0 0
      %1464 = vmatpush1.bf16.xpose.msra.mxu0 0
      %1465 = vmatprep.subr.bf16.mxu0 0
      %1466 = vmatpush1.bf16.xpose.msra.mxu0 0
      %1467 = vmatprep.subr.bf16.mxu0 0
      %1468 = vmatpush1.bf16.xpose.msra.mxu0 0
      %1469 = vmatprep.subr.bf16.mxu0 0
      %1470 = vmatpush1.bf16.xpose.msra.mxu0 0
      %1471 = vmatprep.subr.bf16.mxu0 0
      %1472 = vmatpush1.bf16.xpose.msra.mxu0 0
      %1473 = vmatprep.subr.bf16.mxu0 0
      %1474 = vmatpush1.bf16.xpose.msra.mxu0 0
      %1475 = vmatprep.subr.bf16.mxu0 0
      %1476 = vmatpush1.bf16.xpose.msra.mxu0 0
      %1477 = vmatprep.subr.bf16.mxu0 0
      %1478 = vmatpush1.bf16.xpose.msra.mxu0 0
      %1479 = vmatprep.subr.bf16.mxu0 0
      %1480 = vmatpush1.bf16.xpose.msra.mxu0 0
      %1481 = vmatprep.subr.bf16.mxu0 0
      %1482 = vmatpush1.bf16.xpose.msra.mxu0 0
      %1483 = vmatprep.subr.bf16.mxu0 0
      %1484 = vmatpush1.bf16.xpose.msra.mxu0 0
      %1485 = vmatprep.subr.bf16.mxu0 0
      %1486 = vmatpush1.bf16.xpose.msra.mxu0 0
      %1487 = vmatprep.mubr.bf16.mxu0 0
      %1488 = vmatmul.mubr.bf16.gmra.mrb[0].mxu0 %v1450
      %v1489 = vpop.f32.mrb[0].mxu0
      %v1490 = vadd.f32 0.0, %v1489
      %v1491 = vpop.f32.mrb[0].mxu0
      %v1492 = vpop.f32.mrb[0].mxu0
      %v1493 = vpop.f32.mrb[0].mxu0
      %1494 = vdwg.mxu0
      %v1495 = vsel %vm942, %v1490, -inf
      %1496 = vmax.xlane.f32.xlu0 %v1495
      %v1497 = vpop.xlane.xlu0 %1496
      %v1498 = vsub.f32 %v1490, %v1497
      %v1499 = vmul.f32 %v1498, 1.442695
      %v1500 = vpow.pop %v1499
      %v1501 = vsel %vm942, %v1500, 0.0
      %1502 = vadd.xlane.f32.xlu0 %v1501
      %v1503 = vpop.xlane.xlu0 %1502
      %v1504 = vrcp.pop %v1503
      %v1505 = vmul.f32 %v1500, %v1504
      %v1506 = vpack.c.bf16 %v1505, %v1505
      %1507 = vrot.lane.b32.xlu0 %v891, 88
      %v1508 = vpop.permute.xlu0 %1507
      %v1510 = vsel %vm955, %v1506, 0
      %v1513 = vsel %vm959, %v1508, 0
      %1515 = vmatprep.subr.bf16.mxu0 0
      %1516 = vmatpush1.bf16.msra.mxu0 %v1513
      %1517 = vmatprep.subr.bf16.mxu0 0
      %1518 = vmatpush1.bf16.msra.mxu0 0
      %1519 = vmatprep.subr.bf16.mxu0 0
      %1520 = vmatpush1.bf16.msra.mxu0 0
      %1521 = vmatprep.subr.bf16.mxu0 0
      %1522 = vmatpush1.bf16.msra.mxu0 0
      %1523 = vmatprep.subr.bf16.mxu0 0
      %1524 = vmatpush1.bf16.msra.mxu0 0
      %1525 = vmatprep.subr.bf16.mxu0 0
      %1526 = vmatpush1.bf16.msra.mxu0 0
      %1527 = vmatprep.subr.bf16.mxu0 0
      %1528 = vmatpush1.bf16.msra.mxu0 0
      %1529 = vmatprep.subr.bf16.mxu0 0
      %1530 = vmatpush1.bf16.msra.mxu0 0
      %1531 = vmatprep.subr.bf16.mxu0 0
      %1532 = vmatpush1.bf16.msra.mxu0 0
      %1533 = vmatprep.subr.bf16.mxu0 0
      %1534 = vmatpush1.bf16.msra.mxu0 0
      %1535 = vmatprep.subr.bf16.mxu0 0
      %1536 = vmatpush1.bf16.msra.mxu0 0
      %1537 = vmatprep.subr.bf16.mxu0 0
      %1538 = vmatpush1.bf16.msra.mxu0 0
      %1539 = vmatprep.subr.bf16.mxu0 0
      %1540 = vmatpush1.bf16.msra.mxu0 0
      %1541 = vmatprep.subr.bf16.mxu0 0
      %1542 = vmatpush1.bf16.msra.mxu0 0
      %1543 = vmatprep.subr.bf16.mxu0 0
      %1544 = vmatpush1.bf16.msra.mxu0 0
      %1545 = vmatprep.subr.bf16.mxu0 0
      %1546 = vmatpush1.bf16.msra.mxu0 0
      %1547 = vmatprep.mubr.bf16.mxu0 0
      %1548 = vmatmul.mubr.bf16.gmra.mrb[0].mxu0 %v1510
      %v1549 = vpop.f32.mrb[0].mxu0
      %v1550 = vadd.f32 0.0, %v1549
      %v1551 = vpop.f32.mrb[0].mxu0
      %v1552 = vpop.f32.mrb[0].mxu0
      %v1553 = vpop.f32.mrb[0].mxu0
      %1554 = vdwg.mxu0
      %1555 = vrot.lane.b32.xlu0 %v889, 80
      %v1556 = vpop.permute.xlu0 %1555
      %1557 = vrot.lane.b32.xlu0 %v890, 16
      %v1558 = vpop.permute.xlu0 %1557
      %v1560 = vsel %vm895, %v1556, 0
      %v1563 = vsel %vm895, %v1558, 0
      %1565 = vmatprep.subr.bf16.mxu0 0
      %1566 = vmatpush1.bf16.xpose.msra.mxu0 %v1563
      %1567 = vmatprep.subr.bf16.mxu0 0
      %1568 = vmatpush1.bf16.xpose.msra.mxu0 0
      %1569 = vmatprep.subr.bf16.mxu0 0
      %1570 = vmatpush1.bf16.xpose.msra.mxu0 0
      %1571 = vmatprep.subr.bf16.mxu0 0
      %1572 = vmatpush1.bf16.xpose.msra.mxu0 0
      %1573 = vmatprep.subr.bf16.mxu0 0
      %1574 = vmatpush1.bf16.xpose.msra.mxu0 0
      %1575 = vmatprep.subr.bf16.mxu0 0
      %1576 = vmatpush1.bf16.xpose.msra.mxu0 0
      %1577 = vmatprep.subr.bf16.mxu0 0
      %1578 = vmatpush1.bf16.xpose.msra.mxu0 0
      %1579 = vmatprep.subr.bf16.mxu0 0
      %1580 = vmatpush1.bf16.xpose.msra.mxu0 0
      %1581 = vmatprep.subr.bf16.mxu0 0
      %1582 = vmatpush1.bf16.xpose.msra.mxu0 0
      %1583 = vmatprep.subr.bf16.mxu0 0
      %1584 = vmatpush1.bf16.xpose.msra.mxu0 0
      %1585 = vmatprep.subr.bf16.mxu0 0
      %1586 = vmatpush1.bf16.xpose.msra.mxu0 0
      %1587 = vmatprep.subr.bf16.mxu0 0
      %1588 = vmatpush1.bf16.xpose.msra.mxu0 0
      %1589 = vmatprep.subr.bf16.mxu0 0
      %1590 = vmatpush1.bf16.xpose.msra.mxu0 0
      %1591 = vmatprep.subr.bf16.mxu0 0
      %1592 = vmatpush1.bf16.xpose.msra.mxu0 0
      %1593 = vmatprep.subr.bf16.mxu0 0
      %1594 = vmatpush1.bf16.xpose.msra.mxu0 0
      %1595 = vmatprep.subr.bf16.mxu0 0
      %1596 = vmatpush1.bf16.xpose.msra.mxu0 0
      %1597 = vmatprep.mubr.bf16.mxu0 0
      %1598 = vmatmul.mubr.bf16.gmra.mrb[0].mxu0 %v1560
      %v1599 = vpop.f32.mrb[0].mxu0
      %v1600 = vadd.f32 0.0, %v1599
      %v1601 = vpop.f32.mrb[0].mxu0
      %v1602 = vpop.f32.mrb[0].mxu0
      %v1603 = vpop.f32.mrb[0].mxu0
      %1604 = vdwg.mxu0
      %v1605 = vsel %vm942, %v1600, -inf
      %1606 = vmax.xlane.f32.xlu0 %v1605
      %v1607 = vpop.xlane.xlu0 %1606
      %v1608 = vsub.f32 %v1600, %v1607
      %v1609 = vmul.f32 %v1608, 1.442695
      %v1610 = vpow.pop %v1609
      %v1611 = vsel %vm942, %v1610, 0.0
      %1612 = vadd.xlane.f32.xlu0 %v1611
      %v1613 = vpop.xlane.xlu0 %1612
      %v1614 = vrcp.pop %v1613
      %v1615 = vmul.f32 %v1610, %v1614
      %v1616 = vpack.c.bf16 %v1615, %v1615
      %1617 = vrot.lane.b32.xlu0 %v891, 80
      %v1618 = vpop.permute.xlu0 %1617
      %v1620 = vsel %vm955, %v1616, 0
      %v1623 = vsel %vm959, %v1618, 0
      %1625 = vmatprep.subr.bf16.mxu0 0
      %1626 = vmatpush1.bf16.msra.mxu0 %v1623
      %1627 = vmatprep.subr.bf16.mxu0 0
      %1628 = vmatpush1.bf16.msra.mxu0 0
      %1629 = vmatprep.subr.bf16.mxu0 0
      %1630 = vmatpush1.bf16.msra.mxu0 0
      %1631 = vmatprep.subr.bf16.mxu0 0
      %1632 = vmatpush1.bf16.msra.mxu0 0
      %1633 = vmatprep.subr.bf16.mxu0 0
      %1634 = vmatpush1.bf16.msra.mxu0 0
      %1635 = vmatprep.subr.bf16.mxu0 0
      %1636 = vmatpush1.bf16.msra.mxu0 0
      %1637 = vmatprep.subr.bf16.mxu0 0
      %1638 = vmatpush1.bf16.msra.mxu0 0
      %1639 = vmatprep.subr.bf16.mxu0 0
      %1640 = vmatpush1.bf16.msra.mxu0 0
      %1641 = vmatprep.subr.bf16.mxu0 0
      %1642 = vmatpush1.bf16.msra.mxu0 0
      %1643 = vmatprep.subr.bf16.mxu0 0
      %1644 = vmatpush1.bf16.msra.mxu0 0
      %1645 = vmatprep.subr.bf16.mxu0 0
      %1646 = vmatpush1.bf16.msra.mxu0 0
      %1647 = vmatprep.subr.bf16.mxu0 0
      %1648 = vmatpush1.bf16.msra.mxu0 0
      %1649 = vmatprep.subr.bf16.mxu0 0
      %1650 = vmatpush1.bf16.msra.mxu0 0
      %1651 = vmatprep.subr.bf16.mxu0 0
      %1652 = vmatpush1.bf16.msra.mxu0 0
      %1653 = vmatprep.subr.bf16.mxu0 0
      %1654 = vmatpush1.bf16.msra.mxu0 0
      %1655 = vmatprep.subr.bf16.mxu0 0
      %1656 = vmatpush1.bf16.msra.mxu0 0
      %1657 = vmatprep.mubr.bf16.mxu0 0
      %1658 = vmatmul.mubr.bf16.gmra.mrb[0].mxu0 %v1620
      %v1659 = vpop.f32.mrb[0].mxu0
      %v1660 = vadd.f32 0.0, %v1659
      %v1661 = vpop.f32.mrb[0].mxu0
      %v1662 = vpop.f32.mrb[0].mxu0
      %v1663 = vpop.f32.mrb[0].mxu0
      %1664 = vdwg.mxu0
      %1665 = vrot.lane.b32.xlu0 %v889, 72
      %v1666 = vpop.permute.xlu0 %1665
      %1667 = vrot.lane.b32.xlu0 %v890, 8
      %v1668 = vpop.permute.xlu0 %1667
      %v1670 = vsel %vm895, %v1666, 0
      %v1673 = vsel %vm895, %v1668, 0
      %1675 = vmatprep.subr.bf16.mxu0 0
      %1676 = vmatpush1.bf16.xpose.msra.mxu0 %v1673
      %1677 = vmatprep.subr.bf16.mxu0 0
      %1678 = vmatpush1.bf16.xpose.msra.mxu0 0
      %1679 = vmatprep.subr.bf16.mxu0 0
      %1680 = vmatpush1.bf16.xpose.msra.mxu0 0
      %1681 = vmatprep.subr.bf16.mxu0 0
      %1682 = vmatpush1.bf16.xpose.msra.mxu0 0
      %1683 = vmatprep.subr.bf16.mxu0 0
      %1684 = vmatpush1.bf16.xpose.msra.mxu0 0
      %1685 = vmatprep.subr.bf16.mxu0 0
      %1686 = vmatpush1.bf16.xpose.msra.mxu0 0
      %1687 = vmatprep.subr.bf16.mxu0 0
      %1688 = vmatpush1.bf16.xpose.msra.mxu0 0
      %1689 = vmatprep.subr.bf16.mxu0 0
      %1690 = vmatpush1.bf16.xpose.msra.mxu0 0
      %1691 = vmatprep.subr.bf16.mxu0 0
      %1692 = vmatpush1.bf16.xpose.msra.mxu0 0
      %1693 = vmatprep.subr.bf16.mxu0 0
      %1694 = vmatpush1.bf16.xpose.msra.mxu0 0
      %1695 = vmatprep.subr.bf16.mxu0 0
      %1696 = vmatpush1.bf16.xpose.msra.mxu0 0
      %1697 = vmatprep.subr.bf16.mxu0 0
      %1698 = vmatpush1.bf16.xpose.msra.mxu0 0
      %1699 = vmatprep.subr.bf16.mxu0 0
      %1700 = vmatpush1.bf16.xpose.msra.mxu0 0
      %1701 = vmatprep.subr.bf16.mxu0 0
      %1702 = vmatpush1.bf16.xpose.msra.mxu0 0
      %1703 = vmatprep.subr.bf16.mxu0 0
      %1704 = vmatpush1.bf16.xpose.msra.mxu0 0
      %1705 = vmatprep.subr.bf16.mxu0 0
      %1706 = vmatpush1.bf16.xpose.msra.mxu0 0
      %1707 = vmatprep.mubr.bf16.mxu0 0
      %1708 = vmatmul.mubr.bf16.gmra.mrb[0].mxu0 %v1670
      %v1709 = vpop.f32.mrb[0].mxu0
      %v1710 = vadd.f32 0.0, %v1709
      %v1711 = vpop.f32.mrb[0].mxu0
      %v1712 = vpop.f32.mrb[0].mxu0
      %v1713 = vpop.f32.mrb[0].mxu0
      %1714 = vdwg.mxu0
      %v1715 = vsel %vm942, %v1710, -inf
      %1716 = vmax.xlane.f32.xlu0 %v1715
      %v1717 = vpop.xlane.xlu0 %1716
      %v1718 = vsub.f32 %v1710, %v1717
      %v1719 = vmul.f32 %v1718, 1.442695
      %v1720 = vpow.pop %v1719
      %v1721 = vsel %vm942, %v1720, 0.0
      %1722 = vadd.xlane.f32.xlu0 %v1721
      %v1723 = vpop.xlane.xlu0 %1722
      %v1724 = vrcp.pop %v1723
      %v1725 = vmul.f32 %v1720, %v1724
      %v1726 = vpack.c.bf16 %v1725, %v1725
      %1727 = vrot.lane.b32.xlu0 %v891, 72
      %v1728 = vpop.permute.xlu0 %1727
      %v1730 = vsel %vm955, %v1726, 0
      %v1733 = vsel %vm959, %v1728, 0
      %1735 = vmatprep.subr.bf16.mxu0 0
      %1736 = vmatpush1.bf16.msra.mxu0 %v1733
      %1737 = vmatprep.subr.bf16.mxu0 0
      %1738 = vmatpush1.bf16.msra.mxu0 0
      %1739 = vmatprep.subr.bf16.mxu0 0
      %1740 = vmatpush1.bf16.msra.mxu0 0
      %1741 = vmatprep.subr.bf16.mxu0 0
      %1742 = vmatpush1.bf16.msra.mxu0 0
      %1743 = vmatprep.subr.bf16.mxu0 0
      %1744 = vmatpush1.bf16.msra.mxu0 0
      %1745 = vmatprep.subr.bf16.mxu0 0
      %1746 = vmatpush1.bf16.msra.mxu0 0
      %1747 = vmatprep.subr.bf16.mxu0 0
      %1748 = vmatpush1.bf16.msra.mxu0 0
      %1749 = vmatprep.subr.bf16.mxu0 0
      %1750 = vmatpush1.bf16.msra.mxu0 0
      %1751 = vmatprep.subr.bf16.mxu0 0
      %1752 = vmatpush1.bf16.msra.mxu0 0
      %1753 = vmatprep.subr.bf16.mxu0 0
      %1754 = vmatpush1.bf16.msra.mxu0 0
      %1755 = vmatprep.subr.bf16.mxu0 0
      %1756 = vmatpush1.bf16.msra.mxu0 0
      %1757 = vmatprep.subr.bf16.mxu0 0
      %1758 = vmatpush1.bf16.msra.mxu0 0
      %1759 = vmatprep.subr.bf16.mxu0 0
      %1760 = vmatpush1.bf16.msra.mxu0 0
      %1761 = vmatprep.subr.bf16.mxu0 0
      %1762 = vmatpush1.bf16.msra.mxu0 0
      %1763 = vmatprep.subr.bf16.mxu0 0
      %1764 = vmatpush1.bf16.msra.mxu0 0
      %1765 = vmatprep.subr.bf16.mxu0 0
      %1766 = vmatpush1.bf16.msra.mxu0 0
      %1767 = vmatprep.mubr.bf16.mxu0 0
      %1768 = vmatmul.mubr.bf16.gmra.mrb[0].mxu0 %v1730
      %v1769 = vpop.f32.mrb[0].mxu0
      %v1770 = vadd.f32 0.0, %v1769
      %v1771 = vpop.f32.mrb[0].mxu0
      %v1772 = vpop.f32.mrb[0].mxu0
      %v1773 = vpop.f32.mrb[0].mxu0
      %1774 = vdwg.mxu0
      %1776 = vrot.lane.b32.xlu0 %v1110, 8
      %v1777 = vpop.permute.xlu0 %1776
      %1780 = vrot.lane.b32.xlu0 %v1220, 16
      %v1781 = vpop.permute.xlu0 %1780
      %1784 = vrot.lane.b32.xlu0 %v1330, 24
      %v1785 = vpop.permute.xlu0 %1784
      %1788 = vrot.lane.b32.xlu0 %v1440, 32
      %v1789 = vpop.permute.xlu0 %1788
      %1792 = vrot.lane.b32.xlu0 %v1550, 40
      %v1793 = vpop.permute.xlu0 %1792
      %1796 = vrot.lane.b32.xlu0 %v1660, 48
      %v1797 = vpop.permute.xlu0 %1796
      %1800 = vrot.lane.b32.xlu0 %v1770, 56
      %v1801 = vpop.permute.xlu0 %1800
      %v1803 = vsel %vm895, %v998, %v1777
      %vm1804 = vcmask 130048
      %v1805 = vsel %vm1804, %v1803, %v1781
      %vm1806 = vcmask 195584
      %v1807 = vsel %vm1806, %v1805, %v1785
      %vm1808 = vcmask 261120
      %v1809 = vsel %vm1808, %v1807, %v1789
      %vm1810 = vcmask 326656
      %v1811 = vsel %vm1810, %v1809, %v1793
      %vm1812 = vcmask 392192
      %v1813 = vsel %vm1812, %v1811, %v1797
      %vm1814 = vcmask 457728
      %v1815 = vsel %vm1814, %v1813, %v1801
      %v1816 = vpack.c.bf16 %v1815, %v1815
      %v1818 = vlaneseq
      %v1819 = vshrl.u32 %v1818, 7
      %v1820 = vsub.s32 0, %v1819
      %v1821 = vrot.slane %v462, %v1820
      %v1831 = vunpack.c.l.b16 %v454
      %v1832 = vunpack.c.l.b16 %v455
      %v1833 = vunpack.c.l.b16 %v456
      %v1834 = vunpack.c.l.b16 %v457
      %v1835 = vunpack.c.l.b16 %v458
      %v1836 = vunpack.c.l.b16 %v459
      %v1837 = vunpack.c.l.b16 %v460
      %v1838 = vunpack.c.l.b16 %v461
      %v1839 = vpack.c.b16 %v1832, %v1831
      %v1840 = vpack.c.b16 %v1834, %v1833
      %v1841 = vpack.c.b16 %v1836, %v1835
      %v1842 = vpack.c.b16 %v1838, %v1837
      %v1848 = vsel %vm843, %v1816, 0
      %1850 = vmatprep.subr.bf16.mxu0 0
      %1851 = vmatpush1.bf16.msra.mxu0 %v1839
      %1852 = vmatprep.subr.bf16.mxu0 0
      %1853 = vmatpush1.bf16.msra.mxu0 %v1840
      %1854 = vmatprep.subr.bf16.mxu0 0
      %1855 = vmatpush1.bf16.msra.mxu0 %v1841
      %1856 = vmatprep.subr.bf16.mxu0 0
      %1857 = vmatpush1.bf16.msra.mxu0 %v1842
      %1858 = vmatprep.subr.bf16.mxu0 0
      %1859 = vmatpush1.bf16.msra.mxu0 0
      %1860 = vmatprep.subr.bf16.mxu0 0
      %1861 = vmatpush1.bf16.msra.mxu0 0
      %1862 = vmatprep.subr.bf16.mxu0 0
      %1863 = vmatpush1.bf16.msra.mxu0 0
      %1864 = vmatprep.subr.bf16.mxu0 0
      %1865 = vmatpush1.bf16.msra.mxu0 0
      %1866 = vmatprep.subr.bf16.mxu0 0
      %1867 = vmatpush1.bf16.msra.mxu0 0
      %1868 = vmatprep.subr.bf16.mxu0 0
      %1869 = vmatpush1.bf16.msra.mxu0 0
      %1870 = vmatprep.subr.bf16.mxu0 0
      %1871 = vmatpush1.bf16.msra.mxu0 0
      %1872 = vmatprep.subr.bf16.mxu0 0
      %1873 = vmatpush1.bf16.msra.mxu0 0
      %1874 = vmatprep.subr.bf16.mxu0 0
      %1875 = vmatpush1.bf16.msra.mxu0 0
      %1876 = vmatprep.subr.bf16.mxu0 0
      %1877 = vmatpush1.bf16.msra.mxu0 0
      %1878 = vmatprep.subr.bf16.mxu0 0
      %1879 = vmatpush1.bf16.msra.mxu0 0
      %1880 = vmatprep.subr.bf16.mxu0 0
      %1881 = vmatpush1.bf16.msra.mxu0 0
      %1882 = vmatprep.mubr.bf16.mxu0 0
      %1883 = vmatmul.mubr.bf16.gmra.mrb[0].mxu0 %v1848
      %v1884 = vpop.f32.mrb[0].mxu0
      %v1885 = vadd.f32 %v1821, %v1884
      %v1886 = vpop.f32.mrb[0].mxu0
      %v1887 = vpop.f32.mrb[0].mxu0
      %v1888 = vpop.f32.mrb[0].mxu0
      %1889 = vdwg.mxu0
      %v1890 = vadd.f32 %v790, %v1885
      %vm1891 = vcmask 519168
      %v1892 = vsel %vm1891, %v1890, 0.0
      %1893 = vadd.xlane.f32.xlu0 %v1892
      %v1894 = vpop.xlane.xlu0 %1893
      %v1895 = vrcp.pop 64.0
      %v1896 = vmul.f32 %v1894, %v1895
      %v1897 = vsub.f32 %v1890, %v1896
      %v1898 = vmul.f32 %v1897, %v1897
      %v1899 = vsel %vm1891, %v1898, 0.0
      %1900 = vadd.xlane.f32.xlu0 %v1899
      %v1901 = vpop.xlane.xlu0 %1900
      %v1902 = vmul.f32 %v1901, %v1895
      %v1903 = vadd.f32 %v1902, 1e-05
      %v1904 = vrsqrt.pop %v1903
      %v1905 = vmul.f32 %v1897, %v1904
      %v1907 = vlaneseq
      %v1908 = vshrl.u32 %v1907, 7
      %v1909 = vsub.s32 0, %v1908
      %v1910 = vrot.slane %v786, %v1909
      %v1912 = vmul.f32 %v1905, %v1910
      %v1914 = vlaneseq
      %v1915 = vshrl.u32 %v1914, 7
      %v1916 = vsub.s32 0, %v1915
      %v1917 = vrot.slane %v787, %v1916
      %v1919 = vadd.f32 %v1912, %v1917
      %v1920 = vpack.c.bf16 %v1919, %v1919
      %v1923 = vlaneseq
      %v1924 = vshrl.u32 %v1923, 7
      %v1925 = vsub.s32 0, %v1924
      %v1926 = vrot.slane %v527, %v1925
      %v1927 = vlaneseq
      %v1928 = vshrl.u32 %v1927, 7
      %v1929 = vsub.s32 1, %v1928
      %v1930 = vrot.slane %v527, %v1929
      %v1931 = vlaneseq
      %v1932 = vshrl.u32 %v1931, 7
      %v1933 = vsub.s32 2, %v1932
      %v1934 = vrot.slane %v527, %v1933
      %v1935 = vlaneseq
      %v1936 = vshrl.u32 %v1935, 7
      %v1937 = vsub.s32 3, %v1936
      %v1938 = vrot.slane %v527, %v1937
      %v1939 = vlaneseq
      %v1940 = vshrl.u32 %v1939, 7
      %v1941 = vsub.s32 4, %v1940
      %v1942 = vrot.slane %v527, %v1941
      %v1943 = vlaneseq
      %v1944 = vshrl.u32 %v1943, 7
      %v1945 = vsub.s32 5, %v1944
      %v1946 = vrot.slane %v527, %v1945
      %v1947 = vlaneseq
      %v1948 = vshrl.u32 %v1947, 7
      %v1949 = vsub.s32 6, %v1948
      %v1950 = vrot.slane %v527, %v1949
      %v1951 = vlaneseq
      %v1952 = vshrl.u32 %v1951, 7
      %v1953 = vsub.s32 7, %v1952
      %v1954 = vrot.slane %v527, %v1953
      %v1955 = vlaneseq
      %v1956 = vshrl.u32 %v1955, 7
      %v1957 = vsub.s32 0, %v1956
      %v1958 = vrot.slane %v528, %v1957
      %v1959 = vlaneseq
      %v1960 = vshrl.u32 %v1959, 7
      %v1961 = vsub.s32 1, %v1960
      %v1962 = vrot.slane %v528, %v1961
      %v1963 = vlaneseq
      %v1964 = vshrl.u32 %v1963, 7
      %v1965 = vsub.s32 2, %v1964
      %v1966 = vrot.slane %v528, %v1965
      %v1967 = vlaneseq
      %v1968 = vshrl.u32 %v1967, 7
      %v1969 = vsub.s32 3, %v1968
      %v1970 = vrot.slane %v528, %v1969
      %v1971 = vlaneseq
      %v1972 = vshrl.u32 %v1971, 7
      %v1973 = vsub.s32 4, %v1972
      %v1974 = vrot.slane %v528, %v1973
      %v1975 = vlaneseq
      %v1976 = vshrl.u32 %v1975, 7
      %v1977 = vsub.s32 5, %v1976
      %v1978 = vrot.slane %v528, %v1977
      %v1979 = vlaneseq
      %v1980 = vshrl.u32 %v1979, 7
      %v1981 = vsub.s32 6, %v1980
      %v1982 = vrot.slane %v528, %v1981
      %v1983 = vlaneseq
      %v1984 = vshrl.u32 %v1983, 7
      %v1985 = vsub.s32 7, %v1984
      %v1986 = vrot.slane %v528, %v1985
      %v2067 = vunpack.c.l.b16 %v463
      %v2068 = vunpack.c.h.b16 %v463
      %v2069 = vunpack.c.l.b16 %v464
      %v2070 = vunpack.c.h.b16 %v464
      %v2071 = vunpack.c.l.b16 %v465
      %v2072 = vunpack.c.h.b16 %v465
      %v2073 = vunpack.c.l.b16 %v466
      %v2074 = vunpack.c.h.b16 %v466
      %v2075 = vunpack.c.l.b16 %v467
      %v2076 = vunpack.c.h.b16 %v467
      %v2077 = vunpack.c.l.b16 %v468
      %v2078 = vunpack.c.h.b16 %v468
      %v2079 = vunpack.c.l.b16 %v469
      %v2080 = vunpack.c.h.b16 %v469
      %v2081 = vunpack.c.l.b16 %v470
      %v2082 = vunpack.c.h.b16 %v470
      %v2083 = vunpack.c.l.b16 %v471
      %v2084 = vunpack.c.h.b16 %v471
      %v2085 = vunpack.c.l.b16 %v472
      %v2086 = vunpack.c.h.b16 %v472
      %v2087 = vunpack.c.l.b16 %v473
      %v2088 = vunpack.c.h.b16 %v473
      %v2089 = vunpack.c.l.b16 %v474
      %v2090 = vunpack.c.h.b16 %v474
      %v2091 = vunpack.c.l.b16 %v475
      %v2092 = vunpack.c.h.b16 %v475
      %v2093 = vunpack.c.l.b16 %v476
      %v2094 = vunpack.c.h.b16 %v476
      %v2095 = vunpack.c.l.b16 %v477
      %v2096 = vunpack.c.h.b16 %v477
      %v2097 = vunpack.c.l.b16 %v478
      %v2098 = vunpack.c.h.b16 %v478
      %v2099 = vunpack.c.l.b16 %v479
      %v2100 = vunpack.c.h.b16 %v479
      %v2101 = vunpack.c.l.b16 %v480
      %v2102 = vunpack.c.h.b16 %v480
      %v2103 = vunpack.c.l.b16 %v481
      %v2104 = vunpack.c.h.b16 %v481
      %v2105 = vunpack.c.l.b16 %v482
      %v2106 = vunpack.c.h.b16 %v482
      %v2107 = vunpack.c.l.b16 %v483
      %v2108 = vunpack.c.h.b16 %v483
      %v2109 = vunpack.c.l.b16 %v484
      %v2110 = vunpack.c.h.b16 %v484
      %v2111 = vunpack.c.l.b16 %v485
      %v2112 = vunpack.c.h.b16 %v485
      %v2113 = vunpack.c.l.b16 %v486
      %v2114 = vunpack.c.h.b16 %v486
      %v2115 = vunpack.c.l.b16 %v487
      %v2116 = vunpack.c.h.b16 %v487
      %v2117 = vunpack.c.l.b16 %v488
      %v2118 = vunpack.c.h.b16 %v488
      %v2119 = vunpack.c.l.b16 %v489
      %v2120 = vunpack.c.h.b16 %v489
      %v2121 = vunpack.c.l.b16 %v490
      %v2122 = vunpack.c.h.b16 %v490
      %v2123 = vunpack.c.l.b16 %v491
      %v2124 = vunpack.c.h.b16 %v491
      %v2125 = vunpack.c.l.b16 %v492
      %v2126 = vunpack.c.h.b16 %v492
      %v2127 = vunpack.c.l.b16 %v493
      %v2128 = vunpack.c.h.b16 %v493
      %v2129 = vunpack.c.l.b16 %v494
      %v2130 = vunpack.c.h.b16 %v494
      %v2131 = vunpack.c.l.b16 %v495
      %v2132 = vunpack.c.h.b16 %v495
      %v2133 = vunpack.c.l.b16 %v496
      %v2134 = vunpack.c.h.b16 %v496
      %v2135 = vunpack.c.l.b16 %v497
      %v2136 = vunpack.c.h.b16 %v497
      %v2137 = vunpack.c.l.b16 %v498
      %v2138 = vunpack.c.h.b16 %v498
      %v2139 = vunpack.c.l.b16 %v499
      %v2140 = vunpack.c.h.b16 %v499
      %v2141 = vunpack.c.l.b16 %v500
      %v2142 = vunpack.c.h.b16 %v500
      %v2143 = vunpack.c.l.b16 %v501
      %v2144 = vunpack.c.h.b16 %v501
      %v2145 = vunpack.c.l.b16 %v502
      %v2146 = vunpack.c.h.b16 %v502
      %v2147 = vunpack.c.l.b16 %v503
      %v2148 = vunpack.c.h.b16 %v503
      %v2149 = vunpack.c.l.b16 %v504
      %v2150 = vunpack.c.h.b16 %v504
      %v2151 = vunpack.c.l.b16 %v505
      %v2152 = vunpack.c.h.b16 %v505
      %v2153 = vunpack.c.l.b16 %v506
      %v2154 = vunpack.c.h.b16 %v506
      %v2155 = vunpack.c.l.b16 %v507
      %v2156 = vunpack.c.h.b16 %v507
      %v2157 = vunpack.c.l.b16 %v508
      %v2158 = vunpack.c.h.b16 %v508
      %v2159 = vunpack.c.l.b16 %v509
      %v2160 = vunpack.c.h.b16 %v509
      %v2161 = vunpack.c.l.b16 %v510
      %v2162 = vunpack.c.h.b16 %v510
      %v2163 = vunpack.c.l.b16 %v511
      %v2164 = vunpack.c.h.b16 %v511
      %v2165 = vunpack.c.l.b16 %v512
      %v2166 = vunpack.c.h.b16 %v512
      %v2167 = vunpack.c.l.b16 %v513
      %v2168 = vunpack.c.h.b16 %v513
      %v2169 = vunpack.c.l.b16 %v514
      %v2170 = vunpack.c.h.b16 %v514
      %v2171 = vunpack.c.l.b16 %v515
      %v2172 = vunpack.c.h.b16 %v515
      %v2173 = vunpack.c.l.b16 %v516
      %v2174 = vunpack.c.h.b16 %v516
      %v2175 = vunpack.c.l.b16 %v517
      %v2176 = vunpack.c.h.b16 %v517
      %v2177 = vunpack.c.l.b16 %v518
      %v2178 = vunpack.c.h.b16 %v518
      %v2179 = vunpack.c.l.b16 %v519
      %v2180 = vunpack.c.h.b16 %v519
      %v2181 = vunpack.c.l.b16 %v520
      %v2182 = vunpack.c.h.b16 %v520
      %v2183 = vunpack.c.l.b16 %v521
      %v2184 = vunpack.c.h.b16 %v521
      %v2185 = vunpack.c.l.b16 %v522
      %v2186 = vunpack.c.h.b16 %v522
      %v2187 = vunpack.c.l.b16 %v523
      %v2188 = vunpack.c.h.b16 %v523
      %v2189 = vunpack.c.l.b16 %v524
      %v2190 = vunpack.c.h.b16 %v524
      %v2191 = vunpack.c.l.b16 %v525
      %v2192 = vunpack.c.h.b16 %v525
      %v2193 = vunpack.c.l.b16 %v526
      %v2194 = vunpack.c.h.b16 %v526
      %v2195 = vpack.c.b16 %v2083, %v2067
      %v2196 = vpack.c.b16 %v2084, %v2068
      %v2197 = vpack.c.b16 %v2085, %v2069
      %v2198 = vpack.c.b16 %v2086, %v2070
      %v2199 = vpack.c.b16 %v2087, %v2071
      %v2200 = vpack.c.b16 %v2088, %v2072
      %v2201 = vpack.c.b16 %v2089, %v2073
      %v2202 = vpack.c.b16 %v2090, %v2074
      %v2203 = vpack.c.b16 %v2091, %v2075
      %v2204 = vpack.c.b16 %v2092, %v2076
      %v2205 = vpack.c.b16 %v2093, %v2077
      %v2206 = vpack.c.b16 %v2094, %v2078
      %v2207 = vpack.c.b16 %v2095, %v2079
      %v2208 = vpack.c.b16 %v2096, %v2080
      %v2209 = vpack.c.b16 %v2097, %v2081
      %v2210 = vpack.c.b16 %v2098, %v2082
      %v2211 = vpack.c.b16 %v2115, %v2099
      %v2212 = vpack.c.b16 %v2116, %v2100
      %v2213 = vpack.c.b16 %v2117, %v2101
      %v2214 = vpack.c.b16 %v2118, %v2102
      %v2215 = vpack.c.b16 %v2119, %v2103
      %v2216 = vpack.c.b16 %v2120, %v2104
      %v2217 = vpack.c.b16 %v2121, %v2105
      %v2218 = vpack.c.b16 %v2122, %v2106
      %v2219 = vpack.c.b16 %v2123, %v2107
      %v2220 = vpack.c.b16 %v2124, %v2108
      %v2221 = vpack.c.b16 %v2125, %v2109
      %v2222 = vpack.c.b16 %v2126, %v2110
      %v2223 = vpack.c.b16 %v2127, %v2111
      %v2224 = vpack.c.b16 %v2128, %v2112
      %v2225 = vpack.c.b16 %v2129, %v2113
      %v2226 = vpack.c.b16 %v2130, %v2114
      %v2227 = vpack.c.b16 %v2147, %v2131
      %v2228 = vpack.c.b16 %v2148, %v2132
      %v2229 = vpack.c.b16 %v2149, %v2133
      %v2230 = vpack.c.b16 %v2150, %v2134
      %v2231 = vpack.c.b16 %v2151, %v2135
      %v2232 = vpack.c.b16 %v2152, %v2136
      %v2233 = vpack.c.b16 %v2153, %v2137
      %v2234 = vpack.c.b16 %v2154, %v2138
      %v2235 = vpack.c.b16 %v2155, %v2139
      %v2236 = vpack.c.b16 %v2156, %v2140
      %v2237 = vpack.c.b16 %v2157, %v2141
      %v2238 = vpack.c.b16 %v2158, %v2142
      %v2239 = vpack.c.b16 %v2159, %v2143
      %v2240 = vpack.c.b16 %v2160, %v2144
      %v2241 = vpack.c.b16 %v2161, %v2145
      %v2242 = vpack.c.b16 %v2162, %v2146
      %v2243 = vpack.c.b16 %v2179, %v2163
      %v2244 = vpack.c.b16 %v2180, %v2164
      %v2245 = vpack.c.b16 %v2181, %v2165
      %v2246 = vpack.c.b16 %v2182, %v2166
      %v2247 = vpack.c.b16 %v2183, %v2167
      %v2248 = vpack.c.b16 %v2184, %v2168
      %v2249 = vpack.c.b16 %v2185, %v2169
      %v2250 = vpack.c.b16 %v2186, %v2170
      %v2251 = vpack.c.b16 %v2187, %v2171
      %v2252 = vpack.c.b16 %v2188, %v2172
      %v2253 = vpack.c.b16 %v2189, %v2173
      %v2254 = vpack.c.b16 %v2190, %v2174
      %v2255 = vpack.c.b16 %v2191, %v2175
      %v2256 = vpack.c.b16 %v2192, %v2176
      %v2257 = vpack.c.b16 %v2193, %v2177
      %v2258 = vpack.c.b16 %v2194, %v2178
      %v2324 = vsel %vm843, %v1920, 0
      %2326 = vmatprep.subr.bf16.mxu0 %v2196
      %2327 = vmatpush1.bf16.msra.mxu0 %v2195
      %2328 = vmatprep.subr.bf16.mxu0 %v2212
      %2329 = vmatpush1.bf16.msra.mxu0 %v2211
      %2330 = vmatprep.subr.bf16.mxu0 %v2228
      %2331 = vmatpush1.bf16.msra.mxu0 %v2227
      %2332 = vmatprep.subr.bf16.mxu0 %v2244
      %2333 = vmatpush1.bf16.msra.mxu0 %v2243
      %2334 = vmatprep.subr.bf16.mxu0 0
      %2335 = vmatpush1.bf16.msra.mxu0 0
      %2336 = vmatprep.subr.bf16.mxu0 0
      %2337 = vmatpush1.bf16.msra.mxu0 0
      %2338 = vmatprep.subr.bf16.mxu0 0
      %2339 = vmatpush1.bf16.msra.mxu0 0
      %2340 = vmatprep.subr.bf16.mxu0 0
      %2341 = vmatpush1.bf16.msra.mxu0 0
      %2342 = vmatprep.subr.bf16.mxu0 0
      %2343 = vmatpush1.bf16.msra.mxu0 0
      %2344 = vmatprep.subr.bf16.mxu0 0
      %2345 = vmatpush1.bf16.msra.mxu0 0
      %2346 = vmatprep.subr.bf16.mxu0 0
      %2347 = vmatpush1.bf16.msra.mxu0 0
      %2348 = vmatprep.subr.bf16.mxu0 0
      %2349 = vmatpush1.bf16.msra.mxu0 0
      %2350 = vmatprep.subr.bf16.mxu0 0
      %2351 = vmatpush1.bf16.msra.mxu0 0
      %2352 = vmatprep.subr.bf16.mxu0 0
      %2353 = vmatpush1.bf16.msra.mxu0 0
      %2354 = vmatprep.subr.bf16.mxu0 0
      %2355 = vmatpush1.bf16.msra.mxu0 0
      %2356 = vmatprep.subr.bf16.mxu0 0
      %2357 = vmatpush1.bf16.msra.mxu0 0
      %2358 = vmatprep.mubr.bf16.mxu0 0
      %2359 = vmatmul.mubr.bf16.gmra.mrb[0].mxu0 %v2324
      %v2360 = vpop.f32.mrb[0].mxu0
      %v2361 = vadd.f32 %v1926, %v2360
      %v2362 = vpop.f32.mrb[0].mxu0
      %v2363 = vadd.f32 %v1930, %v2362
      %v2364 = vpop.f32.mrb[0].mxu0
      %v2365 = vpop.f32.mrb[0].mxu0
      %2366 = vdwg.mxu0
      %2367 = vmatprep.subr.bf16.mxu0 %v2198
      %2368 = vmatpush1.bf16.msra.mxu0 %v2197
      %2369 = vmatprep.subr.bf16.mxu0 %v2214
      %2370 = vmatpush1.bf16.msra.mxu0 %v2213
      %2371 = vmatprep.subr.bf16.mxu0 %v2230
      %2372 = vmatpush1.bf16.msra.mxu0 %v2229
      %2373 = vmatprep.subr.bf16.mxu0 %v2246
      %2374 = vmatpush1.bf16.msra.mxu0 %v2245
      %2375 = vmatprep.subr.bf16.mxu0 0
      %2376 = vmatpush1.bf16.msra.mxu0 0
      %2377 = vmatprep.subr.bf16.mxu0 0
      %2378 = vmatpush1.bf16.msra.mxu0 0
      %2379 = vmatprep.subr.bf16.mxu0 0
      %2380 = vmatpush1.bf16.msra.mxu0 0
      %2381 = vmatprep.subr.bf16.mxu0 0
      %2382 = vmatpush1.bf16.msra.mxu0 0
      %2383 = vmatprep.subr.bf16.mxu0 0
      %2384 = vmatpush1.bf16.msra.mxu0 0
      %2385 = vmatprep.subr.bf16.mxu0 0
      %2386 = vmatpush1.bf16.msra.mxu0 0
      %2387 = vmatprep.subr.bf16.mxu0 0
      %2388 = vmatpush1.bf16.msra.mxu0 0
      %2389 = vmatprep.subr.bf16.mxu0 0
      %2390 = vmatpush1.bf16.msra.mxu0 0
      %2391 = vmatprep.subr.bf16.mxu0 0
      %2392 = vmatpush1.bf16.msra.mxu0 0
      %2393 = vmatprep.subr.bf16.mxu0 0
      %2394 = vmatpush1.bf16.msra.mxu0 0
      %2395 = vmatprep.subr.bf16.mxu0 0
      %2396 = vmatpush1.bf16.msra.mxu0 0
      %2397 = vmatprep.subr.bf16.mxu0 0
      %2398 = vmatpush1.bf16.msra.mxu0 0
      %2399 = vmatprep.mubr.bf16.mxu0 0
      %2400 = vmatmul.mubr.bf16.gmra.mrb[0].mxu0 %v2324
      %v2401 = vpop.f32.mrb[0].mxu0
      %v2402 = vadd.f32 %v1934, %v2401
      %v2403 = vpop.f32.mrb[0].mxu0
      %v2404 = vadd.f32 %v1938, %v2403
      %v2405 = vpop.f32.mrb[0].mxu0
      %v2406 = vpop.f32.mrb[0].mxu0
      %2407 = vdwg.mxu0
      %2408 = vmatprep.subr.bf16.mxu0 %v2200
      %2409 = vmatpush1.bf16.msra.mxu0 %v2199
      %2410 = vmatprep.subr.bf16.mxu0 %v2216
      %2411 = vmatpush1.bf16.msra.mxu0 %v2215
      %2412 = vmatprep.subr.bf16.mxu0 %v2232
      %2413 = vmatpush1.bf16.msra.mxu0 %v2231
      %2414 = vmatprep.subr.bf16.mxu0 %v2248
      %2415 = vmatpush1.bf16.msra.mxu0 %v2247
      %2416 = vmatprep.subr.bf16.mxu0 0
      %2417 = vmatpush1.bf16.msra.mxu0 0
      %2418 = vmatprep.subr.bf16.mxu0 0
      %2419 = vmatpush1.bf16.msra.mxu0 0
      %2420 = vmatprep.subr.bf16.mxu0 0
      %2421 = vmatpush1.bf16.msra.mxu0 0
      %2422 = vmatprep.subr.bf16.mxu0 0
      %2423 = vmatpush1.bf16.msra.mxu0 0
      %2424 = vmatprep.subr.bf16.mxu0 0
      %2425 = vmatpush1.bf16.msra.mxu0 0
      %2426 = vmatprep.subr.bf16.mxu0 0
      %2427 = vmatpush1.bf16.msra.mxu0 0
      %2428 = vmatprep.subr.bf16.mxu0 0
      %2429 = vmatpush1.bf16.msra.mxu0 0
      %2430 = vmatprep.subr.bf16.mxu0 0
      %2431 = vmatpush1.bf16.msra.mxu0 0
      %2432 = vmatprep.subr.bf16.mxu0 0
      %2433 = vmatpush1.bf16.msra.mxu0 0
      %2434 = vmatprep.subr.bf16.mxu0 0
      %2435 = vmatpush1.bf16.msra.mxu0 0
      %2436 = vmatprep.subr.bf16.mxu0 0
      %2437 = vmatpush1.bf16.msra.mxu0 0
      %2438 = vmatprep.subr.bf16.mxu0 0
      %2439 = vmatpush1.bf16.msra.mxu0 0
      %2440 = vmatprep.mubr.bf16.mxu0 0
      %2441 = vmatmul.mubr.bf16.gmra.mrb[0].mxu0 %v2324
      %v2442 = vpop.f32.mrb[0].mxu0
      %v2443 = vadd.f32 %v1942, %v2442
      %v2444 = vpop.f32.mrb[0].mxu0
      %v2445 = vadd.f32 %v1946, %v2444
      %v2446 = vpop.f32.mrb[0].mxu0
      %v2447 = vpop.f32.mrb[0].mxu0
      %2448 = vdwg.mxu0
      %2449 = vmatprep.subr.bf16.mxu0 %v2202
      %2450 = vmatpush1.bf16.msra.mxu0 %v2201
      %2451 = vmatprep.subr.bf16.mxu0 %v2218
      %2452 = vmatpush1.bf16.msra.mxu0 %v2217
      %2453 = vmatprep.subr.bf16.mxu0 %v2234
      %2454 = vmatpush1.bf16.msra.mxu0 %v2233
      %2455 = vmatprep.subr.bf16.mxu0 %v2250
      %2456 = vmatpush1.bf16.msra.mxu0 %v2249
      %2457 = vmatprep.subr.bf16.mxu0 0
      %2458 = vmatpush1.bf16.msra.mxu0 0
      %2459 = vmatprep.subr.bf16.mxu0 0
      %2460 = vmatpush1.bf16.msra.mxu0 0
      %2461 = vmatprep.subr.bf16.mxu0 0
      %2462 = vmatpush1.bf16.msra.mxu0 0
      %2463 = vmatprep.subr.bf16.mxu0 0
      %2464 = vmatpush1.bf16.msra.mxu0 0
      %2465 = vmatprep.subr.bf16.mxu0 0
      %2466 = vmatpush1.bf16.msra.mxu0 0
      %2467 = vmatprep.subr.bf16.mxu0 0
      %2468 = vmatpush1.bf16.msra.mxu0 0
      %2469 = vmatprep.subr.bf16.mxu0 0
      %2470 = vmatpush1.bf16.msra.mxu0 0
      %2471 = vmatprep.subr.bf16.mxu0 0
      %2472 = vmatpush1.bf16.msra.mxu0 0
      %2473 = vmatprep.subr.bf16.mxu0 0
      %2474 = vmatpush1.bf16.msra.mxu0 0
      %2475 = vmatprep.subr.bf16.mxu0 0
      %2476 = vmatpush1.bf16.msra.mxu0 0
      %2477 = vmatprep.subr.bf16.mxu0 0
      %2478 = vmatpush1.bf16.msra.mxu0 0
      %2479 = vmatprep.subr.bf16.mxu0 0
      %2480 = vmatpush1.bf16.msra.mxu0 0
      %2481 = vmatprep.mubr.bf16.mxu0 0
      %2482 = vmatmul.mubr.bf16.gmra.mrb[0].mxu0 %v2324
      %v2483 = vpop.f32.mrb[0].mxu0
      %v2484 = vadd.f32 %v1950, %v2483
      %v2485 = vpop.f32.mrb[0].mxu0
      %v2486 = vadd.f32 %v1954, %v2485
      %v2487 = vpop.f32.mrb[0].mxu0
      %v2488 = vpop.f32.mrb[0].mxu0
      %2489 = vdwg.mxu0
      %2490 = vmatprep.subr.bf16.mxu0 %v2204
      %2491 = vmatpush1.bf16.msra.mxu0 %v2203
      %2492 = vmatprep.subr.bf16.mxu0 %v2220
      %2493 = vmatpush1.bf16.msra.mxu0 %v2219
      %2494 = vmatprep.subr.bf16.mxu0 %v2236
      %2495 = vmatpush1.bf16.msra.mxu0 %v2235
      %2496 = vmatprep.subr.bf16.mxu0 %v2252
      %2497 = vmatpush1.bf16.msra.mxu0 %v2251
      %2498 = vmatprep.subr.bf16.mxu0 0
      %2499 = vmatpush1.bf16.msra.mxu0 0
      %2500 = vmatprep.subr.bf16.mxu0 0
      %2501 = vmatpush1.bf16.msra.mxu0 0
      %2502 = vmatprep.subr.bf16.mxu0 0
      %2503 = vmatpush1.bf16.msra.mxu0 0
      %2504 = vmatprep.subr.bf16.mxu0 0
      %2505 = vmatpush1.bf16.msra.mxu0 0
      %2506 = vmatprep.subr.bf16.mxu0 0
      %2507 = vmatpush1.bf16.msra.mxu0 0
      %2508 = vmatprep.subr.bf16.mxu0 0
      %2509 = vmatpush1.bf16.msra.mxu0 0
      %2510 = vmatprep.subr.bf16.mxu0 0
      %2511 = vmatpush1.bf16.msra.mxu0 0
      %2512 = vmatprep.subr.bf16.mxu0 0
      %2513 = vmatpush1.bf16.msra.mxu0 0
      %2514 = vmatprep.subr.bf16.mxu0 0
      %2515 = vmatpush1.bf16.msra.mxu0 0
      %2516 = vmatprep.subr.bf16.mxu0 0
      %2517 = vmatpush1.bf16.msra.mxu0 0
      %2518 = vmatprep.subr.bf16.mxu0 0
      %2519 = vmatpush1.bf16.msra.mxu0 0
      %2520 = vmatprep.subr.bf16.mxu0 0
      %2521 = vmatpush1.bf16.msra.mxu0 0
      %2522 = vmatprep.mubr.bf16.mxu0 0
      %2523 = vmatmul.mubr.bf16.gmra.mrb[0].mxu0 %v2324
      %v2524 = vpop.f32.mrb[0].mxu0
      %v2525 = vadd.f32 %v1958, %v2524
      %v2526 = vpop.f32.mrb[0].mxu0
      %v2527 = vadd.f32 %v1962, %v2526
      %v2528 = vpop.f32.mrb[0].mxu0
      %v2529 = vpop.f32.mrb[0].mxu0
      %2530 = vdwg.mxu0
      %2531 = vmatprep.subr.bf16.mxu0 %v2206
      %2532 = vmatpush1.bf16.msra.mxu0 %v2205
      %2533 = vmatprep.subr.bf16.mxu0 %v2222
      %2534 = vmatpush1.bf16.msra.mxu0 %v2221
      %2535 = vmatprep.subr.bf16.mxu0 %v2238
      %2536 = vmatpush1.bf16.msra.mxu0 %v2237
      %2537 = vmatprep.subr.bf16.mxu0 %v2254
      %2538 = vmatpush1.bf16.msra.mxu0 %v2253
      %2539 = vmatprep.subr.bf16.mxu0 0
      %2540 = vmatpush1.bf16.msra.mxu0 0
      %2541 = vmatprep.subr.bf16.mxu0 0
      %2542 = vmatpush1.bf16.msra.mxu0 0
      %2543 = vmatprep.subr.bf16.mxu0 0
      %2544 = vmatpush1.bf16.msra.mxu0 0
      %2545 = vmatprep.subr.bf16.mxu0 0
      %2546 = vmatpush1.bf16.msra.mxu0 0
      %2547 = vmatprep.subr.bf16.mxu0 0
      %2548 = vmatpush1.bf16.msra.mxu0 0
      %2549 = vmatprep.subr.bf16.mxu0 0
      %2550 = vmatpush1.bf16.msra.mxu0 0
      %2551 = vmatprep.subr.bf16.mxu0 0
      %2552 = vmatpush1.bf16.msra.mxu0 0
      %2553 = vmatprep.subr.bf16.mxu0 0
      %2554 = vmatpush1.bf16.msra.mxu0 0
      %2555 = vmatprep.subr.bf16.mxu0 0
      %2556 = vmatpush1.bf16.msra.mxu0 0
      %2557 = vmatprep.subr.bf16.mxu0 0
      %2558 = vmatpush1.bf16.msra.mxu0 0
      %2559 = vmatprep.subr.bf16.mxu0 0
      %2560 = vmatpush1.bf16.msra.mxu0 0
      %2561 = vmatprep.subr.bf16.mxu0 0
      %2562 = vmatpush1.bf16.msra.mxu0 0
      %2563 = vmatprep.mubr.bf16.mxu0 0
      %2564 = vmatmul.mubr.bf16.gmra.mrb[0].mxu0 %v2324
      %v2565 = vpop.f32.mrb[0].mxu0
      %v2566 = vadd.f32 %v1966, %v2565
      %v2567 = vpop.f32.mrb[0].mxu0
      %v2568 = vadd.f32 %v1970, %v2567
      %v2569 = vpop.f32.mrb[0].mxu0
      %v2570 = vpop.f32.mrb[0].mxu0
      %2571 = vdwg.mxu0
      %2572 = vmatprep.subr.bf16.mxu0 %v2208
      %2573 = vmatpush1.bf16.msra.mxu0 %v2207
      %2574 = vmatprep.subr.bf16.mxu0 %v2224
      %2575 = vmatpush1.bf16.msra.mxu0 %v2223
      %2576 = vmatprep.subr.bf16.mxu0 %v2240
      %2577 = vmatpush1.bf16.msra.mxu0 %v2239
      %2578 = vmatprep.subr.bf16.mxu0 %v2256
      %2579 = vmatpush1.bf16.msra.mxu0 %v2255
      %2580 = vmatprep.subr.bf16.mxu0 0
      %2581 = vmatpush1.bf16.msra.mxu0 0
      %2582 = vmatprep.subr.bf16.mxu0 0
      %2583 = vmatpush1.bf16.msra.mxu0 0
      %2584 = vmatprep.subr.bf16.mxu0 0
      %2585 = vmatpush1.bf16.msra.mxu0 0
      %2586 = vmatprep.subr.bf16.mxu0 0
      %2587 = vmatpush1.bf16.msra.mxu0 0
      %2588 = vmatprep.subr.bf16.mxu0 0
      %2589 = vmatpush1.bf16.msra.mxu0 0
      %2590 = vmatprep.subr.bf16.mxu0 0
      %2591 = vmatpush1.bf16.msra.mxu0 0
      %2592 = vmatprep.subr.bf16.mxu0 0
      %2593 = vmatpush1.bf16.msra.mxu0 0
      %2594 = vmatprep.subr.bf16.mxu0 0
      %2595 = vmatpush1.bf16.msra.mxu0 0
      %2596 = vmatprep.subr.bf16.mxu0 0
      %2597 = vmatpush1.bf16.msra.mxu0 0
      %2598 = vmatprep.subr.bf16.mxu0 0
      %2599 = vmatpush1.bf16.msra.mxu0 0
      %2600 = vmatprep.subr.bf16.mxu0 0
      %2601 = vmatpush1.bf16.msra.mxu0 0
      %2602 = vmatprep.subr.bf16.mxu0 0
      %2603 = vmatpush1.bf16.msra.mxu0 0
      %2604 = vmatprep.mubr.bf16.mxu0 0
      %2605 = vmatmul.mubr.bf16.gmra.mrb[0].mxu0 %v2324
      %v2606 = vpop.f32.mrb[0].mxu0
      %v2607 = vadd.f32 %v1974, %v2606
      %v2608 = vpop.f32.mrb[0].mxu0
      %v2609 = vadd.f32 %v1978, %v2608
      %v2610 = vpop.f32.mrb[0].mxu0
      %v2611 = vpop.f32.mrb[0].mxu0
      %2612 = vdwg.mxu0
      %2613 = vmatprep.subr.bf16.mxu0 %v2210
      %2614 = vmatpush1.bf16.msra.mxu0 %v2209
      %2615 = vmatprep.subr.bf16.mxu0 %v2226
      %2616 = vmatpush1.bf16.msra.mxu0 %v2225
      %2617 = vmatprep.subr.bf16.mxu0 %v2242
      %2618 = vmatpush1.bf16.msra.mxu0 %v2241
      %2619 = vmatprep.subr.bf16.mxu0 %v2258
      %2620 = vmatpush1.bf16.msra.mxu0 %v2257
      %2621 = vmatprep.subr.bf16.mxu0 0
      %2622 = vmatpush1.bf16.msra.mxu0 0
      %2623 = vmatprep.subr.bf16.mxu0 0
      %2624 = vmatpush1.bf16.msra.mxu0 0
      %2625 = vmatprep.subr.bf16.mxu0 0
      %2626 = vmatpush1.bf16.msra.mxu0 0
      %2627 = vmatprep.subr.bf16.mxu0 0
      %2628 = vmatpush1.bf16.msra.mxu0 0
      %2629 = vmatprep.subr.bf16.mxu0 0
      %2630 = vmatpush1.bf16.msra.mxu0 0
      %2631 = vmatprep.subr.bf16.mxu0 0
      %2632 = vmatpush1.bf16.msra.mxu0 0
      %2633 = vmatprep.subr.bf16.mxu0 0
      %2634 = vmatpush1.bf16.msra.mxu0 0
      %2635 = vmatprep.subr.bf16.mxu0 0
      %2636 = vmatpush1.bf16.msra.mxu0 0
      %2637 = vmatprep.subr.bf16.mxu0 0
      %2638 = vmatpush1.bf16.msra.mxu0 0
      %2639 = vmatprep.subr.bf16.mxu0 0
      %2640 = vmatpush1.bf16.msra.mxu0 0
      %2641 = vmatprep.subr.bf16.mxu0 0
      %2642 = vmatpush1.bf16.msra.mxu0 0
      %2643 = vmatprep.subr.bf16.mxu0 0
      %2644 = vmatpush1.bf16.msra.mxu0 0
      %2645 = vmatprep.mubr.bf16.mxu0 0
      %2646 = vmatmul.mubr.bf16.gmra.mrb[0].mxu0 %v2324
      %v2647 = vpop.f32.mrb[0].mxu0
      %v2648 = vadd.f32 %v1982, %v2647
      %v2649 = vpop.f32.mrb[0].mxu0
      %v2650 = vadd.f32 %v1986, %v2649
      %v2651 = vpop.f32.mrb[0].mxu0
      %v2652 = vpop.f32.mrb[0].mxu0
      %2653 = vdwg.mxu0
      %v2654 = vmax.f32 %v2361, 0.0
      %v2655 = vmax.f32 %v2363, 0.0
      %v2656 = vmax.f32 %v2402, 0.0
      %v2657 = vmax.f32 %v2404, 0.0
      %v2658 = vmax.f32 %v2443, 0.0
      %v2659 = vmax.f32 %v2445, 0.0
      %v2660 = vmax.f32 %v2484, 0.0
      %v2661 = vmax.f32 %v2486, 0.0
      %v2662 = vmax.f32 %v2525, 0.0
      %v2663 = vmax.f32 %v2527, 0.0
      %v2664 = vmax.f32 %v2566, 0.0
      %v2665 = vmax.f32 %v2568, 0.0
      %v2666 = vmax.f32 %v2607, 0.0
      %v2667 = vmax.f32 %v2609, 0.0
      %v2668 = vmax.f32 %v2648, 0.0
      %v2669 = vmax.f32 %v2650, 0.0
      %v2670 = vpack.c.bf16 %v2654, %v2654
      %v2671 = vpack.c.bf16 %v2655, %v2655
      %v2672 = vpack.c.bf16 %v2656, %v2656
      %v2673 = vpack.c.bf16 %v2657, %v2657
      %v2674 = vpack.c.bf16 %v2658, %v2658
      %v2675 = vpack.c.bf16 %v2659, %v2659
      %v2676 = vpack.c.bf16 %v2660, %v2660
      %v2677 = vpack.c.bf16 %v2661, %v2661
      %v2678 = vpack.c.bf16 %v2662, %v2662
      %v2679 = vpack.c.bf16 %v2663, %v2663
      %v2680 = vpack.c.bf16 %v2664, %v2664
      %v2681 = vpack.c.bf16 %v2665, %v2665
      %v2682 = vpack.c.bf16 %v2666, %v2666
      %v2683 = vpack.c.bf16 %v2667, %v2667
      %v2684 = vpack.c.bf16 %v2668, %v2668
      %v2685 = vpack.c.bf16 %v2669, %v2669
      %v2687 = vlaneseq
      %v2688 = vshrl.u32 %v2687, 7
      %v2689 = vsub.s32 0, %v2688
      %v2690 = vrot.slane %v785, %v2689
      %v2948 = vunpack.c.l.b16 %v529
      %v2949 = vunpack.c.l.b16 %v530
      %v2950 = vunpack.c.l.b16 %v531
      %v2951 = vunpack.c.l.b16 %v532
      %v2952 = vunpack.c.l.b16 %v533
      %v2953 = vunpack.c.l.b16 %v534
      %v2954 = vunpack.c.l.b16 %v535
      %v2955 = vunpack.c.l.b16 %v536
      %v2956 = vunpack.c.l.b16 %v537
      %v2957 = vunpack.c.l.b16 %v538
      %v2958 = vunpack.c.l.b16 %v539
      %v2959 = vunpack.c.l.b16 %v540
      %v2960 = vunpack.c.l.b16 %v541
      %v2961 = vunpack.c.l.b16 %v542
      %v2962 = vunpack.c.l.b16 %v543
      %v2963 = vunpack.c.l.b16 %v544
      %v2964 = vunpack.c.l.b16 %v545
      %v2965 = vunpack.c.l.b16 %v546
      %v2966 = vunpack.c.l.b16 %v547
      %v2967 = vunpack.c.l.b16 %v548
      %v2968 = vunpack.c.l.b16 %v549
      %v2969 = vunpack.c.l.b16 %v550
      %v2970 = vunpack.c.l.b16 %v551
      %v2971 = vunpack.c.l.b16 %v552
      %v2972 = vunpack.c.l.b16 %v553
      %v2973 = vunpack.c.l.b16 %v554
      %v2974 = vunpack.c.l.b16 %v555
      %v2975 = vunpack.c.l.b16 %v556
      %v2976 = vunpack.c.l.b16 %v557
      %v2977 = vunpack.c.l.b16 %v558
      %v2978 = vunpack.c.l.b16 %v559
      %v2979 = vunpack.c.l.b16 %v560
      %v2980 = vunpack.c.l.b16 %v561
      %v2981 = vunpack.c.l.b16 %v562
      %v2982 = vunpack.c.l.b16 %v563
      %v2983 = vunpack.c.l.b16 %v564
      %v2984 = vunpack.c.l.b16 %v565
      %v2985 = vunpack.c.l.b16 %v566
      %v2986 = vunpack.c.l.b16 %v567
      %v2987 = vunpack.c.l.b16 %v568
      %v2988 = vunpack.c.l.b16 %v569
      %v2989 = vunpack.c.l.b16 %v570
      %v2990 = vunpack.c.l.b16 %v571
      %v2991 = vunpack.c.l.b16 %v572
      %v2992 = vunpack.c.l.b16 %v573
      %v2993 = vunpack.c.l.b16 %v574
      %v2994 = vunpack.c.l.b16 %v575
      %v2995 = vunpack.c.l.b16 %v576
      %v2996 = vunpack.c.l.b16 %v577
      %v2997 = vunpack.c.l.b16 %v578
      %v2998 = vunpack.c.l.b16 %v579
      %v2999 = vunpack.c.l.b16 %v580
      %v3000 = vunpack.c.l.b16 %v581
      %v3001 = vunpack.c.l.b16 %v582
      %v3002 = vunpack.c.l.b16 %v583
      %v3003 = vunpack.c.l.b16 %v584
      %v3004 = vunpack.c.l.b16 %v585
      %v3005 = vunpack.c.l.b16 %v586
      %v3006 = vunpack.c.l.b16 %v587
      %v3007 = vunpack.c.l.b16 %v588
      %v3008 = vunpack.c.l.b16 %v589
      %v3009 = vunpack.c.l.b16 %v590
      %v3010 = vunpack.c.l.b16 %v591
      %v3011 = vunpack.c.l.b16 %v592
      %v3012 = vunpack.c.l.b16 %v593
      %v3013 = vunpack.c.l.b16 %v594
      %v3014 = vunpack.c.l.b16 %v595
      %v3015 = vunpack.c.l.b16 %v596
      %v3016 = vunpack.c.l.b16 %v597
      %v3017 = vunpack.c.l.b16 %v598
      %v3018 = vunpack.c.l.b16 %v599
      %v3019 = vunpack.c.l.b16 %v600
      %v3020 = vunpack.c.l.b16 %v601
      %v3021 = vunpack.c.l.b16 %v602
      %v3022 = vunpack.c.l.b16 %v603
      %v3023 = vunpack.c.l.b16 %v604
      %v3024 = vunpack.c.l.b16 %v605
      %v3025 = vunpack.c.l.b16 %v606
      %v3026 = vunpack.c.l.b16 %v607
      %v3027 = vunpack.c.l.b16 %v608
      %v3028 = vunpack.c.l.b16 %v609
      %v3029 = vunpack.c.l.b16 %v610
      %v3030 = vunpack.c.l.b16 %v611
      %v3031 = vunpack.c.l.b16 %v612
      %v3032 = vunpack.c.l.b16 %v613
      %v3033 = vunpack.c.l.b16 %v614
      %v3034 = vunpack.c.l.b16 %v615
      %v3035 = vunpack.c.l.b16 %v616
      %v3036 = vunpack.c.l.b16 %v617
      %v3037 = vunpack.c.l.b16 %v618
      %v3038 = vunpack.c.l.b16 %v619
      %v3039 = vunpack.c.l.b16 %v620
      %v3040 = vunpack.c.l.b16 %v621
      %v3041 = vunpack.c.l.b16 %v622
      %v3042 = vunpack.c.l.b16 %v623
      %v3043 = vunpack.c.l.b16 %v624
      %v3044 = vunpack.c.l.b16 %v625
      %v3045 = vunpack.c.l.b16 %v626
      %v3046 = vunpack.c.l.b16 %v627
      %v3047 = vunpack.c.l.b16 %v628
      %v3048 = vunpack.c.l.b16 %v629
      %v3049 = vunpack.c.l.b16 %v630
      %v3050 = vunpack.c.l.b16 %v631
      %v3051 = vunpack.c.l.b16 %v632
      %v3052 = vunpack.c.l.b16 %v633
      %v3053 = vunpack.c.l.b16 %v634
      %v3054 = vunpack.c.l.b16 %v635
      %v3055 = vunpack.c.l.b16 %v636
      %v3056 = vunpack.c.l.b16 %v637
      %v3057 = vunpack.c.l.b16 %v638
      %v3058 = vunpack.c.l.b16 %v639
      %v3059 = vunpack.c.l.b16 %v640
      %v3060 = vunpack.c.l.b16 %v641
      %v3061 = vunpack.c.l.b16 %v642
      %v3062 = vunpack.c.l.b16 %v643
      %v3063 = vunpack.c.l.b16 %v644
      %v3064 = vunpack.c.l.b16 %v645
      %v3065 = vunpack.c.l.b16 %v646
      %v3066 = vunpack.c.l.b16 %v647
      %v3067 = vunpack.c.l.b16 %v648
      %v3068 = vunpack.c.l.b16 %v649
      %v3069 = vunpack.c.l.b16 %v650
      %v3070 = vunpack.c.l.b16 %v651
      %v3071 = vunpack.c.l.b16 %v652
      %v3072 = vunpack.c.l.b16 %v653
      %v3073 = vunpack.c.l.b16 %v654
      %v3074 = vunpack.c.l.b16 %v655
      %v3075 = vunpack.c.l.b16 %v656
      %v3076 = vunpack.c.l.b16 %v657
      %v3077 = vunpack.c.l.b16 %v658
      %v3078 = vunpack.c.l.b16 %v659
      %v3079 = vunpack.c.l.b16 %v660
      %v3080 = vunpack.c.l.b16 %v661
      %v3081 = vunpack.c.l.b16 %v662
      %v3082 = vunpack.c.l.b16 %v663
      %v3083 = vunpack.c.l.b16 %v664
      %v3084 = vunpack.c.l.b16 %v665
      %v3085 = vunpack.c.l.b16 %v666
      %v3086 = vunpack.c.l.b16 %v667
      %v3087 = vunpack.c.l.b16 %v668
      %v3088 = vunpack.c.l.b16 %v669
      %v3089 = vunpack.c.l.b16 %v670
      %v3090 = vunpack.c.l.b16 %v671
      %v3091 = vunpack.c.l.b16 %v672
      %v3092 = vunpack.c.l.b16 %v673
      %v3093 = vunpack.c.l.b16 %v674
      %v3094 = vunpack.c.l.b16 %v675
      %v3095 = vunpack.c.l.b16 %v676
      %v3096 = vunpack.c.l.b16 %v677
      %v3097 = vunpack.c.l.b16 %v678
      %v3098 = vunpack.c.l.b16 %v679
      %v3099 = vunpack.c.l.b16 %v680
      %v3100 = vunpack.c.l.b16 %v681
      %v3101 = vunpack.c.l.b16 %v682
      %v3102 = vunpack.c.l.b16 %v683
      %v3103 = vunpack.c.l.b16 %v684
      %v3104 = vunpack.c.l.b16 %v685
      %v3105 = vunpack.c.l.b16 %v686
      %v3106 = vunpack.c.l.b16 %v687
      %v3107 = vunpack.c.l.b16 %v688
      %v3108 = vunpack.c.l.b16 %v689
      %v3109 = vunpack.c.l.b16 %v690
      %v3110 = vunpack.c.l.b16 %v691
      %v3111 = vunpack.c.l.b16 %v692
      %v3112 = vunpack.c.l.b16 %v693
      %v3113 = vunpack.c.l.b16 %v694
      %v3114 = vunpack.c.l.b16 %v695
      %v3115 = vunpack.c.l.b16 %v696
      %v3116 = vunpack.c.l.b16 %v697
      %v3117 = vunpack.c.l.b16 %v698
      %v3118 = vunpack.c.l.b16 %v699
      %v3119 = vunpack.c.l.b16 %v700
      %v3120 = vunpack.c.l.b16 %v701
      %v3121 = vunpack.c.l.b16 %v702
      %v3122 = vunpack.c.l.b16 %v703
      %v3123 = vunpack.c.l.b16 %v704
      %v3124 = vunpack.c.l.b16 %v705
      %v3125 = vunpack.c.l.b16 %v706
      %v3126 = vunpack.c.l.b16 %v707
      %v3127 = vunpack.c.l.b16 %v708
      %v3128 = vunpack.c.l.b16 %v709
      %v3129 = vunpack.c.l.b16 %v710
      %v3130 = vunpack.c.l.b16 %v711
      %v3131 = vunpack.c.l.b16 %v712
      %v3132 = vunpack.c.l.b16 %v713
      %v3133 = vunpack.c.l.b16 %v714
      %v3134 = vunpack.c.l.b16 %v715
      %v3135 = vunpack.c.l.b16 %v716
      %v3136 = vunpack.c.l.b16 %v717
      %v3137 = vunpack.c.l.b16 %v718
      %v3138 = vunpack.c.l.b16 %v719
      %v3139 = vunpack.c.l.b16 %v720
      %v3140 = vunpack.c.l.b16 %v721
      %v3141 = vunpack.c.l.b16 %v722
      %v3142 = vunpack.c.l.b16 %v723
      %v3143 = vunpack.c.l.b16 %v724
      %v3144 = vunpack.c.l.b16 %v725
      %v3145 = vunpack.c.l.b16 %v726
      %v3146 = vunpack.c.l.b16 %v727
      %v3147 = vunpack.c.l.b16 %v728
      %v3148 = vunpack.c.l.b16 %v729
      %v3149 = vunpack.c.l.b16 %v730
      %v3150 = vunpack.c.l.b16 %v731
      %v3151 = vunpack.c.l.b16 %v732
      %v3152 = vunpack.c.l.b16 %v733
      %v3153 = vunpack.c.l.b16 %v734
      %v3154 = vunpack.c.l.b16 %v735
      %v3155 = vunpack.c.l.b16 %v736
      %v3156 = vunpack.c.l.b16 %v737
      %v3157 = vunpack.c.l.b16 %v738
      %v3158 = vunpack.c.l.b16 %v739
      %v3159 = vunpack.c.l.b16 %v740
      %v3160 = vunpack.c.l.b16 %v741
      %v3161 = vunpack.c.l.b16 %v742
      %v3162 = vunpack.c.l.b16 %v743
      %v3163 = vunpack.c.l.b16 %v744
      %v3164 = vunpack.c.l.b16 %v745
      %v3165 = vunpack.c.l.b16 %v746
      %v3166 = vunpack.c.l.b16 %v747
      %v3167 = vunpack.c.l.b16 %v748
      %v3168 = vunpack.c.l.b16 %v749
      %v3169 = vunpack.c.l.b16 %v750
      %v3170 = vunpack.c.l.b16 %v751
      %v3171 = vunpack.c.l.b16 %v752
      %v3172 = vunpack.c.l.b16 %v753
      %v3173 = vunpack.c.l.b16 %v754
      %v3174 = vunpack.c.l.b16 %v755
      %v3175 = vunpack.c.l.b16 %v756
      %v3176 = vunpack.c.l.b16 %v757
      %v3177 = vunpack.c.l.b16 %v758
      %v3178 = vunpack.c.l.b16 %v759
      %v3179 = vunpack.c.l.b16 %v760
      %v3180 = vunpack.c.l.b16 %v761
      %v3181 = vunpack.c.l.b16 %v762
      %v3182 = vunpack.c.l.b16 %v763
      %v3183 = vunpack.c.l.b16 %v764
      %v3184 = vunpack.c.l.b16 %v765
      %v3185 = vunpack.c.l.b16 %v766
      %v3186 = vunpack.c.l.b16 %v767
      %v3187 = vunpack.c.l.b16 %v768
      %v3188 = vunpack.c.l.b16 %v769
      %v3189 = vunpack.c.l.b16 %v770
      %v3190 = vunpack.c.l.b16 %v771
      %v3191 = vunpack.c.l.b16 %v772
      %v3192 = vunpack.c.l.b16 %v773
      %v3193 = vunpack.c.l.b16 %v774
      %v3194 = vunpack.c.l.b16 %v775
      %v3195 = vunpack.c.l.b16 %v776
      %v3196 = vunpack.c.l.b16 %v777
      %v3197 = vunpack.c.l.b16 %v778
      %v3198 = vunpack.c.l.b16 %v779
      %v3199 = vunpack.c.l.b16 %v780
      %v3200 = vunpack.c.l.b16 %v781
      %v3201 = vunpack.c.l.b16 %v782
      %v3202 = vunpack.c.l.b16 %v783
      %v3203 = vunpack.c.l.b16 %v784
      %v3204 = vpack.c.b16 %v2949, %v2948
      %v3205 = vpack.c.b16 %v2951, %v2950
      %v3206 = vpack.c.b16 %v2953, %v2952
      %v3207 = vpack.c.b16 %v2955, %v2954
      %v3208 = vpack.c.b16 %v2957, %v2956
      %v3209 = vpack.c.b16 %v2959, %v2958
      %v3210 = vpack.c.b16 %v2961, %v2960
      %v3211 = vpack.c.b16 %v2963, %v2962
      %v3212 = vpack.c.b16 %v2965, %v2964
      %v3213 = vpack.c.b16 %v2967, %v2966
      %v3214 = vpack.c.b16 %v2969, %v2968
      %v3215 = vpack.c.b16 %v2971, %v2970
      %v3216 = vpack.c.b16 %v2973, %v2972
      %v3217 = vpack.c.b16 %v2975, %v2974
      %v3218 = vpack.c.b16 %v2977, %v2976
      %v3219 = vpack.c.b16 %v2979, %v2978
      %v3220 = vpack.c.b16 %v2981, %v2980
      %v3221 = vpack.c.b16 %v2983, %v2982
      %v3222 = vpack.c.b16 %v2985, %v2984
      %v3223 = vpack.c.b16 %v2987, %v2986
      %v3224 = vpack.c.b16 %v2989, %v2988
      %v3225 = vpack.c.b16 %v2991, %v2990
      %v3226 = vpack.c.b16 %v2993, %v2992
      %v3227 = vpack.c.b16 %v2995, %v2994
      %v3228 = vpack.c.b16 %v2997, %v2996
      %v3229 = vpack.c.b16 %v2999, %v2998
      %v3230 = vpack.c.b16 %v3001, %v3000
      %v3231 = vpack.c.b16 %v3003, %v3002
      %v3232 = vpack.c.b16 %v3005, %v3004
      %v3233 = vpack.c.b16 %v3007, %v3006
      %v3234 = vpack.c.b16 %v3009, %v3008
      %v3235 = vpack.c.b16 %v3011, %v3010
      %v3236 = vpack.c.b16 %v3013, %v3012
      %v3237 = vpack.c.b16 %v3015, %v3014
      %v3238 = vpack.c.b16 %v3017, %v3016
      %v3239 = vpack.c.b16 %v3019, %v3018
      %v3240 = vpack.c.b16 %v3021, %v3020
      %v3241 = vpack.c.b16 %v3023, %v3022
      %v3242 = vpack.c.b16 %v3025, %v3024
      %v3243 = vpack.c.b16 %v3027, %v3026
      %v3244 = vpack.c.b16 %v3029, %v3028
      %v3245 = vpack.c.b16 %v3031, %v3030
      %v3246 = vpack.c.b16 %v3033, %v3032
      %v3247 = vpack.c.b16 %v3035, %v3034
      %v3248 = vpack.c.b16 %v3037, %v3036
      %v3249 = vpack.c.b16 %v3039, %v3038
      %v3250 = vpack.c.b16 %v3041, %v3040
      %v3251 = vpack.c.b16 %v3043, %v3042
      %v3252 = vpack.c.b16 %v3045, %v3044
      %v3253 = vpack.c.b16 %v3047, %v3046
      %v3254 = vpack.c.b16 %v3049, %v3048
      %v3255 = vpack.c.b16 %v3051, %v3050
      %v3256 = vpack.c.b16 %v3053, %v3052
      %v3257 = vpack.c.b16 %v3055, %v3054
      %v3258 = vpack.c.b16 %v3057, %v3056
      %v3259 = vpack.c.b16 %v3059, %v3058
      %v3260 = vpack.c.b16 %v3061, %v3060
      %v3261 = vpack.c.b16 %v3063, %v3062
      %v3262 = vpack.c.b16 %v3065, %v3064
      %v3263 = vpack.c.b16 %v3067, %v3066
      %v3264 = vpack.c.b16 %v3069, %v3068
      %v3265 = vpack.c.b16 %v3071, %v3070
      %v3266 = vpack.c.b16 %v3073, %v3072
      %v3267 = vpack.c.b16 %v3075, %v3074
      %v3268 = vpack.c.b16 %v3077, %v3076
      %v3269 = vpack.c.b16 %v3079, %v3078
      %v3270 = vpack.c.b16 %v3081, %v3080
      %v3271 = vpack.c.b16 %v3083, %v3082
      %v3272 = vpack.c.b16 %v3085, %v3084
      %v3273 = vpack.c.b16 %v3087, %v3086
      %v3274 = vpack.c.b16 %v3089, %v3088
      %v3275 = vpack.c.b16 %v3091, %v3090
      %v3276 = vpack.c.b16 %v3093, %v3092
      %v3277 = vpack.c.b16 %v3095, %v3094
      %v3278 = vpack.c.b16 %v3097, %v3096
      %v3279 = vpack.c.b16 %v3099, %v3098
      %v3280 = vpack.c.b16 %v3101, %v3100
      %v3281 = vpack.c.b16 %v3103, %v3102
      %v3282 = vpack.c.b16 %v3105, %v3104
      %v3283 = vpack.c.b16 %v3107, %v3106
      %v3284 = vpack.c.b16 %v3109, %v3108
      %v3285 = vpack.c.b16 %v3111, %v3110
      %v3286 = vpack.c.b16 %v3113, %v3112
      %v3287 = vpack.c.b16 %v3115, %v3114
      %v3288 = vpack.c.b16 %v3117, %v3116
      %v3289 = vpack.c.b16 %v3119, %v3118
      %v3290 = vpack.c.b16 %v3121, %v3120
      %v3291 = vpack.c.b16 %v3123, %v3122
      %v3292 = vpack.c.b16 %v3125, %v3124
      %v3293 = vpack.c.b16 %v3127, %v3126
      %v3294 = vpack.c.b16 %v3129, %v3128
      %v3295 = vpack.c.b16 %v3131, %v3130
      %v3296 = vpack.c.b16 %v3133, %v3132
      %v3297 = vpack.c.b16 %v3135, %v3134
      %v3298 = vpack.c.b16 %v3137, %v3136
      %v3299 = vpack.c.b16 %v3139, %v3138
      %v3300 = vpack.c.b16 %v3141, %v3140
      %v3301 = vpack.c.b16 %v3143, %v3142
      %v3302 = vpack.c.b16 %v3145, %v3144
      %v3303 = vpack.c.b16 %v3147, %v3146
      %v3304 = vpack.c.b16 %v3149, %v3148
      %v3305 = vpack.c.b16 %v3151, %v3150
      %v3306 = vpack.c.b16 %v3153, %v3152
      %v3307 = vpack.c.b16 %v3155, %v3154
      %v3308 = vpack.c.b16 %v3157, %v3156
      %v3309 = vpack.c.b16 %v3159, %v3158
      %v3310 = vpack.c.b16 %v3161, %v3160
      %v3311 = vpack.c.b16 %v3163, %v3162
      %v3312 = vpack.c.b16 %v3165, %v3164
      %v3313 = vpack.c.b16 %v3167, %v3166
      %v3314 = vpack.c.b16 %v3169, %v3168
      %v3315 = vpack.c.b16 %v3171, %v3170
      %v3316 = vpack.c.b16 %v3173, %v3172
      %v3317 = vpack.c.b16 %v3175, %v3174
      %v3318 = vpack.c.b16 %v3177, %v3176
      %v3319 = vpack.c.b16 %v3179, %v3178
      %v3320 = vpack.c.b16 %v3181, %v3180
      %v3321 = vpack.c.b16 %v3183, %v3182
      %v3322 = vpack.c.b16 %v3185, %v3184
      %v3323 = vpack.c.b16 %v3187, %v3186
      %v3324 = vpack.c.b16 %v3189, %v3188
      %v3325 = vpack.c.b16 %v3191, %v3190
      %v3326 = vpack.c.b16 %v3193, %v3192
      %v3327 = vpack.c.b16 %v3195, %v3194
      %v3328 = vpack.c.b16 %v3197, %v3196
      %v3329 = vpack.c.b16 %v3199, %v3198
      %v3330 = vpack.c.b16 %v3201, %v3200
      %v3331 = vpack.c.b16 %v3203, %v3202
      %3460 = vmatprep.subr.bf16.mxu0 0
      %3461 = vmatpush1.bf16.msra.mxu0 %v3204
      %3462 = vmatprep.subr.bf16.mxu0 0
      %3463 = vmatpush1.bf16.msra.mxu0 %v3205
      %3464 = vmatprep.subr.bf16.mxu0 0
      %3465 = vmatpush1.bf16.msra.mxu0 %v3206
      %3466 = vmatprep.subr.bf16.mxu0 0
      %3467 = vmatpush1.bf16.msra.mxu0 %v3207
      %3468 = vmatprep.subr.bf16.mxu0 0
      %3469 = vmatpush1.bf16.msra.mxu0 %v3208
      %3470 = vmatprep.subr.bf16.mxu0 0
      %3471 = vmatpush1.bf16.msra.mxu0 %v3209
      %3472 = vmatprep.subr.bf16.mxu0 0
      %3473 = vmatpush1.bf16.msra.mxu0 %v3210
      %3474 = vmatprep.subr.bf16.mxu0 0
      %3475 = vmatpush1.bf16.msra.mxu0 %v3211
      %3476 = vmatprep.subr.bf16.mxu0 0
      %3477 = vmatpush1.bf16.msra.mxu0 %v3212
      %3478 = vmatprep.subr.bf16.mxu0 0
      %3479 = vmatpush1.bf16.msra.mxu0 %v3213
      %3480 = vmatprep.subr.bf16.mxu0 0
      %3481 = vmatpush1.bf16.msra.mxu0 %v3214
      %3482 = vmatprep.subr.bf16.mxu0 0
      %3483 = vmatpush1.bf16.msra.mxu0 %v3215
      %3484 = vmatprep.subr.bf16.mxu0 0
      %3485 = vmatpush1.bf16.msra.mxu0 %v3216
      %3486 = vmatprep.subr.bf16.mxu0 0
      %3487 = vmatpush1.bf16.msra.mxu0 %v3217
      %3488 = vmatprep.subr.bf16.mxu0 0
      %3489 = vmatpush1.bf16.msra.mxu0 %v3218
      %3490 = vmatprep.subr.bf16.mxu0 0
      %3491 = vmatpush1.bf16.msra.mxu0 %v3219
      %3492 = vmatprep.mubr.bf16.mxu0 %v2671
      %3493 = vmatmul.mubr.bf16.gmra.mrb[0].mxu0 %v2670
      %v3494 = vpop.f32.mrb[0].mxu0
      %v3495 = vadd.f32 %v2690, %v3494
      %v3496 = vpop.f32.mrb[0].mxu0
      %v3497 = vpop.f32.mrb[0].mxu0
      %v3498 = vpop.f32.mrb[0].mxu0
      %3499 = vdwg.mxu0
      %3500 = vmatprep.subr.bf16.mxu0 0
      %3501 = vmatpush1.bf16.msra.mxu0 %v3220
      %3502 = vmatprep.subr.bf16.mxu0 0
      %3503 = vmatpush1.bf16.msra.mxu0 %v3221
      %3504 = vmatprep.subr.bf16.mxu0 0
      %3505 = vmatpush1.bf16.msra.mxu0 %v3222
      %3506 = vmatprep.subr.bf16.mxu0 0
      %3507 = vmatpush1.bf16.msra.mxu0 %v3223
      %3508 = vmatprep.subr.bf16.mxu0 0
      %3509 = vmatpush1.bf16.msra.mxu0 %v3224
      %3510 = vmatprep.subr.bf16.mxu0 0
      %3511 = vmatpush1.bf16.msra.mxu0 %v3225
      %3512 = vmatprep.subr.bf16.mxu0 0
      %3513 = vmatpush1.bf16.msra.mxu0 %v3226
      %3514 = vmatprep.subr.bf16.mxu0 0
      %3515 = vmatpush1.bf16.msra.mxu0 %v3227
      %3516 = vmatprep.subr.bf16.mxu0 0
      %3517 = vmatpush1.bf16.msra.mxu0 %v3228
      %3518 = vmatprep.subr.bf16.mxu0 0
      %3519 = vmatpush1.bf16.msra.mxu0 %v3229
      %3520 = vmatprep.subr.bf16.mxu0 0
      %3521 = vmatpush1.bf16.msra.mxu0 %v3230
      %3522 = vmatprep.subr.bf16.mxu0 0
      %3523 = vmatpush1.bf16.msra.mxu0 %v3231
      %3524 = vmatprep.subr.bf16.mxu0 0
      %3525 = vmatpush1.bf16.msra.mxu0 %v3232
      %3526 = vmatprep.subr.bf16.mxu0 0
      %3527 = vmatpush1.bf16.msra.mxu0 %v3233
      %3528 = vmatprep.subr.bf16.mxu0 0
      %3529 = vmatpush1.bf16.msra.mxu0 %v3234
      %3530 = vmatprep.subr.bf16.mxu0 0
      %3531 = vmatpush1.bf16.msra.mxu0 %v3235
      %3532 = vmatprep.mubr.bf16.mxu0 %v2673
      %3533 = vmatmul.mubr.bf16.gmra.mrb[0].mxu0 %v2672
      %v3534 = vpop.f32.mrb[0].mxu0
      %v3535 = vadd.f32 %v3495, %v3534
      %v3536 = vpop.f32.mrb[0].mxu0
      %v3537 = vpop.f32.mrb[0].mxu0
      %v3538 = vpop.f32.mrb[0].mxu0
      %3539 = vdwg.mxu0
      %3540 = vmatprep.subr.bf16.mxu0 0
      %3541 = vmatpush1.bf16.msra.mxu0 %v3236
      %3542 = vmatprep.subr.bf16.mxu0 0
      %3543 = vmatpush1.bf16.msra.mxu0 %v3237
      %3544 = vmatprep.subr.bf16.mxu0 0
      %3545 = vmatpush1.bf16.msra.mxu0 %v3238
      %3546 = vmatprep.subr.bf16.mxu0 0
      %3547 = vmatpush1.bf16.msra.mxu0 %v3239
      %3548 = vmatprep.subr.bf16.mxu0 0
      %3549 = vmatpush1.bf16.msra.mxu0 %v3240
      %3550 = vmatprep.subr.bf16.mxu0 0
      %3551 = vmatpush1.bf16.msra.mxu0 %v3241
      %3552 = vmatprep.subr.bf16.mxu0 0
      %3553 = vmatpush1.bf16.msra.mxu0 %v3242
      %3554 = vmatprep.subr.bf16.mxu0 0
      %3555 = vmatpush1.bf16.msra.mxu0 %v3243
      %3556 = vmatprep.subr.bf16.mxu0 0
      %3557 = vmatpush1.bf16.msra.mxu0 %v3244
      %3558 = vmatprep.subr.bf16.mxu0 0
      %3559 = vmatpush1.bf16.msra.mxu0 %v3245
      %3560 = vmatprep.subr.bf16.mxu0 0
      %3561 = vmatpush1.bf16.msra.mxu0 %v3246
      %3562 = vmatprep.subr.bf16.mxu0 0
      %3563 = vmatpush1.bf16.msra.mxu0 %v3247
      %3564 = vmatprep.subr.bf16.mxu0 0
      %3565 = vmatpush1.bf16.msra.mxu0 %v3248
      %3566 = vmatprep.subr.bf16.mxu0 0
      %3567 = vmatpush1.bf16.msra.mxu0 %v3249
      %3568 = vmatprep.subr.bf16.mxu0 0
      %3569 = vmatpush1.bf16.msra.mxu0 %v3250
      %3570 = vmatprep.subr.bf16.mxu0 0
      %3571 = vmatpush1.bf16.msra.mxu0 %v3251
      %3572 = vmatprep.mubr.bf16.mxu0 %v2675
      %3573 = vmatmul.mubr.bf16.gmra.mrb[0].mxu0 %v2674
      %v3574 = vpop.f32.mrb[0].mxu0
      %v3575 = vadd.f32 %v3535, %v3574
      %v3576 = vpop.f32.mrb[0].mxu0
      %v3577 = vpop.f32.mrb[0].mxu0
      %v3578 = vpop.f32.mrb[0].mxu0
      %3579 = vdwg.mxu0
      %3580 = vmatprep.subr.bf16.mxu0 0
      %3581 = vmatpush1.bf16.msra.mxu0 %v3252
      %3582 = vmatprep.subr.bf16.mxu0 0
      %3583 = vmatpush1.bf16.msra.mxu0 %v3253
      %3584 = vmatprep.subr.bf16.mxu0 0
      %3585 = vmatpush1.bf16.msra.mxu0 %v3254
      %3586 = vmatprep.subr.bf16.mxu0 0
      %3587 = vmatpush1.bf16.msra.mxu0 %v3255
      %3588 = vmatprep.subr.bf16.mxu0 0
      %3589 = vmatpush1.bf16.msra.mxu0 %v3256
      %3590 = vmatprep.subr.bf16.mxu0 0
      %3591 = vmatpush1.bf16.msra.mxu0 %v3257
      %3592 = vmatprep.subr.bf16.mxu0 0
      %3593 = vmatpush1.bf16.msra.mxu0 %v3258
      %3594 = vmatprep.subr.bf16.mxu0 0
      %3595 = vmatpush1.bf16.msra.mxu0 %v3259
      %3596 = vmatprep.subr.bf16.mxu0 0
      %3597 = vmatpush1.bf16.msra.mxu0 %v3260
      %3598 = vmatprep.subr.bf16.mxu0 0
      %3599 = vmatpush1.bf16.msra.mxu0 %v3261
      %3600 = vmatprep.subr.bf16.mxu0 0
      %3601 = vmatpush1.bf16.msra.mxu0 %v3262
      %3602 = vmatprep.subr.bf16.mxu0 0
      %3603 = vmatpush1.bf16.msra.mxu0 %v3263
      %3604 = vmatprep.subr.bf16.mxu0 0
      %3605 = vmatpush1.bf16.msra.mxu0 %v3264
      %3606 = vmatprep.subr.bf16.mxu0 0
      %3607 = vmatpush1.bf16.msra.mxu0 %v3265
      %3608 = vmatprep.subr.bf16.mxu0 0
      %3609 = vmatpush1.bf16.msra.mxu0 %v3266
      %3610 = vmatprep.subr.bf16.mxu0 0
      %3611 = vmatpush1.bf16.msra.mxu0 %v3267
      %3612 = vmatprep.mubr.bf16.mxu0 %v2677
      %3613 = vmatmul.mubr.bf16.gmra.mrb[0].mxu0 %v2676
      %v3614 = vpop.f32.mrb[0].mxu0
      %v3615 = vadd.f32 %v3575, %v3614
      %v3616 = vpop.f32.mrb[0].mxu0
      %v3617 = vpop.f32.mrb[0].mxu0
      %v3618 = vpop.f32.mrb[0].mxu0
      %3619 = vdwg.mxu0
      %3620 = vmatprep.subr.bf16.mxu0 0
      %3621 = vmatpush1.bf16.msra.mxu0 %v3268
      %3622 = vmatprep.subr.bf16.mxu0 0
      %3623 = vmatpush1.bf16.msra.mxu0 %v3269
      %3624 = vmatprep.subr.bf16.mxu0 0
      %3625 = vmatpush1.bf16.msra.mxu0 %v3270
      %3626 = vmatprep.subr.bf16.mxu0 0
      %3627 = vmatpush1.bf16.msra.mxu0 %v3271
      %3628 = vmatprep.subr.bf16.mxu0 0
      %3629 = vmatpush1.bf16.msra.mxu0 %v3272
      %3630 = vmatprep.subr.bf16.mxu0 0
      %3631 = vmatpush1.bf16.msra.mxu0 %v3273
      %3632 = vmatprep.subr.bf16.mxu0 0
      %3633 = vmatpush1.bf16.msra.mxu0 %v3274
      %3634 = vmatprep.subr.bf16.mxu0 0
      %3635 = vmatpush1.bf16.msra.mxu0 %v3275
      %3636 = vmatprep.subr.bf16.mxu0 0
      %3637 = vmatpush1.bf16.msra.mxu0 %v3276
      %3638 = vmatprep.subr.bf16.mxu0 0
      %3639 = vmatpush1.bf16.msra.mxu0 %v3277
      %3640 = vmatprep.subr.bf16.mxu0 0
      %3641 = vmatpush1.bf16.msra.mxu0 %v3278
      %3642 = vmatprep.subr.bf16.mxu0 0
      %3643 = vmatpush1.bf16.msra.mxu0 %v3279
      %3644 = vmatprep.subr.bf16.mxu0 0
      %3645 = vmatpush1.bf16.msra.mxu0 %v3280
      %3646 = vmatprep.subr.bf16.mxu0 0
      %3647 = vmatpush1.bf16.msra.mxu0 %v3281
      %3648 = vmatprep.subr.bf16.mxu0 0
      %3649 = vmatpush1.bf16.msra.mxu0 %v3282
      %3650 = vmatprep.subr.bf16.mxu0 0
      %3651 = vmatpush1.bf16.msra.mxu0 %v3283
      %3652 = vmatprep.mubr.bf16.mxu0 %v2679
      %3653 = vmatmul.mubr.bf16.gmra.mrb[0].mxu0 %v2678
      %v3654 = vpop.f32.mrb[0].mxu0
      %v3655 = vadd.f32 %v3615, %v3654
      %v3656 = vpop.f32.mrb[0].mxu0
      %v3657 = vpop.f32.mrb[0].mxu0
      %v3658 = vpop.f32.mrb[0].mxu0
      %3659 = vdwg.mxu0
      %3660 = vmatprep.subr.bf16.mxu0 0
      %3661 = vmatpush1.bf16.msra.mxu0 %v3284
      %3662 = vmatprep.subr.bf16.mxu0 0
      %3663 = vmatpush1.bf16.msra.mxu0 %v3285
      %3664 = vmatprep.subr.bf16.mxu0 0
      %3665 = vmatpush1.bf16.msra.mxu0 %v3286
      %3666 = vmatprep.subr.bf16.mxu0 0
      %3667 = vmatpush1.bf16.msra.mxu0 %v3287
      %3668 = vmatprep.subr.bf16.mxu0 0
      %3669 = vmatpush1.bf16.msra.mxu0 %v3288
      %3670 = vmatprep.subr.bf16.mxu0 0
      %3671 = vmatpush1.bf16.msra.mxu0 %v3289
      %3672 = vmatprep.subr.bf16.mxu0 0
      %3673 = vmatpush1.bf16.msra.mxu0 %v3290
      %3674 = vmatprep.subr.bf16.mxu0 0
      %3675 = vmatpush1.bf16.msra.mxu0 %v3291
      %3676 = vmatprep.subr.bf16.mxu0 0
      %3677 = vmatpush1.bf16.msra.mxu0 %v3292
      %3678 = vmatprep.subr.bf16.mxu0 0
      %3679 = vmatpush1.bf16.msra.mxu0 %v3293
      %3680 = vmatprep.subr.bf16.mxu0 0
      %3681 = vmatpush1.bf16.msra.mxu0 %v3294
      %3682 = vmatprep.subr.bf16.mxu0 0
      %3683 = vmatpush1.bf16.msra.mxu0 %v3295
      %3684 = vmatprep.subr.bf16.mxu0 0
      %3685 = vmatpush1.bf16.msra.mxu0 %v3296
      %3686 = vmatprep.subr.bf16.mxu0 0
      %3687 = vmatpush1.bf16.msra.mxu0 %v3297
      %3688 = vmatprep.subr.bf16.mxu0 0
      %3689 = vmatpush1.bf16.msra.mxu0 %v3298
      %3690 = vmatprep.subr.bf16.mxu0 0
      %3691 = vmatpush1.bf16.msra.mxu0 %v3299
      %3692 = vmatprep.mubr.bf16.mxu0 %v2681
      %3693 = vmatmul.mubr.bf16.gmra.mrb[0].mxu0 %v2680
      %v3694 = vpop.f32.mrb[0].mxu0
      %v3695 = vadd.f32 %v3655, %v3694
      %v3696 = vpop.f32.mrb[0].mxu0
      %v3697 = vpop.f32.mrb[0].mxu0
      %v3698 = vpop.f32.mrb[0].mxu0
      %3699 = vdwg.mxu0
      %3700 = vmatprep.subr.bf16.mxu0 0
      %3701 = vmatpush1.bf16.msra.mxu0 %v3300
      %3702 = vmatprep.subr.bf16.mxu0 0
      %3703 = vmatpush1.bf16.msra.mxu0 %v3301
      %3704 = vmatprep.subr.bf16.mxu0 0
      %3705 = vmatpush1.bf16.msra.mxu0 %v3302
      %3706 = vmatprep.subr.bf16.mxu0 0
      %3707 = vmatpush1.bf16.msra.mxu0 %v3303
      %3708 = vmatprep.subr.bf16.mxu0 0
      %3709 = vmatpush1.bf16.msra.mxu0 %v3304
      %3710 = vmatprep.subr.bf16.mxu0 0
      %3711 = vmatpush1.bf16.msra.mxu0 %v3305
      %3712 = vmatprep.subr.bf16.mxu0 0
      %3713 = vmatpush1.bf16.msra.mxu0 %v3306
      %3714 = vmatprep.subr.bf16.mxu0 0
      %3715 = vmatpush1.bf16.msra.mxu0 %v3307
      %3716 = vmatprep.subr.bf16.mxu0 0
      %3717 = vmatpush1.bf16.msra.mxu0 %v3308
      %3718 = vmatprep.subr.bf16.mxu0 0
      %3719 = vmatpush1.bf16.msra.mxu0 %v3309
      %3720 = vmatprep.subr.bf16.mxu0 0
      %3721 = vmatpush1.bf16.msra.mxu0 %v3310
      %3722 = vmatprep.subr.bf16.mxu0 0
      %3723 = vmatpush1.bf16.msra.mxu0 %v3311
      %3724 = vmatprep.subr.bf16.mxu0 0
      %3725 = vmatpush1.bf16.msra.mxu0 %v3312
      %3726 = vmatprep.subr.bf16.mxu0 0
      %3727 = vmatpush1.bf16.msra.mxu0 %v3313
      %3728 = vmatprep.subr.bf16.mxu0 0
      %3729 = vmatpush1.bf16.msra.mxu0 %v3314
      %3730 = vmatprep.subr.bf16.mxu0 0
      %3731 = vmatpush1.bf16.msra.mxu0 %v3315
      %3732 = vmatprep.mubr.bf16.mxu0 %v2683
      %3733 = vmatmul.mubr.bf16.gmra.mrb[0].mxu0 %v2682
      %v3734 = vpop.f32.mrb[0].mxu0
      %v3735 = vadd.f32 %v3695, %v3734
      %v3736 = vpop.f32.mrb[0].mxu0
      %v3737 = vpop.f32.mrb[0].mxu0
      %v3738 = vpop.f32.mrb[0].mxu0
      %3739 = vdwg.mxu0
      %3740 = vmatprep.subr.bf16.mxu0 0
      %3741 = vmatpush1.bf16.msra.mxu0 %v3316
      %3742 = vmatprep.subr.bf16.mxu0 0
      %3743 = vmatpush1.bf16.msra.mxu0 %v3317
      %3744 = vmatprep.subr.bf16.mxu0 0
      %3745 = vmatpush1.bf16.msra.mxu0 %v3318
      %3746 = vmatprep.subr.bf16.mxu0 0
      %3747 = vmatpush1.bf16.msra.mxu0 %v3319
      %3748 = vmatprep.subr.bf16.mxu0 0
      %3749 = vmatpush1.bf16.msra.mxu0 %v3320
      %3750 = vmatprep.subr.bf16.mxu0 0
      %3751 = vmatpush1.bf16.msra.mxu0 %v3321
      %3752 = vmatprep.subr.bf16.mxu0 0
      %3753 = vmatpush1.bf16.msra.mxu0 %v3322
      %3754 = vmatprep.subr.bf16.mxu0 0
      %3755 = vmatpush1.bf16.msra.mxu0 %v3323
      %3756 = vmatprep.subr.bf16.mxu0 0
      %3757 = vmatpush1.bf16.msra.mxu0 %v3324
      %3758 = vmatprep.subr.bf16.mxu0 0
      %3759 = vmatpush1.bf16.msra.mxu0 %v3325
      %3760 = vmatprep.subr.bf16.mxu0 0
      %3761 = vmatpush1.bf16.msra.mxu0 %v3326
      %3762 = vmatprep.subr.bf16.mxu0 0
      %3763 = vmatpush1.bf16.msra.mxu0 %v3327
      %3764 = vmatprep.subr.bf16.mxu0 0
      %3765 = vmatpush1.bf16.msra.mxu0 %v3328
      %3766 = vmatprep.subr.bf16.mxu0 0
      %3767 = vmatpush1.bf16.msra.mxu0 %v3329
      %3768 = vmatprep.subr.bf16.mxu0 0
      %3769 = vmatpush1.bf16.msra.mxu0 %v3330
      %3770 = vmatprep.subr.bf16.mxu0 0
      %3771 = vmatpush1.bf16.msra.mxu0 %v3331
      %3772 = vmatprep.mubr.bf16.mxu0 %v2685
      %3773 = vmatmul.mubr.bf16.gmra.mrb[0].mxu0 %v2684
      %v3774 = vpop.f32.mrb[0].mxu0
      %v3775 = vadd.f32 %v3735, %v3774
      %v3776 = vpop.f32.mrb[0].mxu0
      %v3777 = vpop.f32.mrb[0].mxu0
      %v3778 = vpop.f32.mrb[0].mxu0
      %3779 = vdwg.mxu0
      %v3780 = vadd.f32 %v1919, %v3775
      %v3781 = vsel %vm1891, %v3780, 0.0
      %3782 = vadd.xlane.f32.xlu0 %v3781
      %v3783 = vpop.xlane.xlu0 %3782
      %v3784 = vmul.f32 %v3783, %v1895
      %v3785 = vsub.f32 %v3780, %v3784
      %v3786 = vmul.f32 %v3785, %v3785
      %v3787 = vsel %vm1891, %v3786, 0.0
      %3788 = vadd.xlane.f32.xlu0 %v3787
      %v3789 = vpop.xlane.xlu0 %3788
      %v3790 = vmul.f32 %v3789, %v1895
      %v3791 = vadd.f32 %v3790, 1e-05
      %v3792 = vrsqrt.pop %v3791
      %v3793 = vmul.f32 %v3785, %v3792
      %v3795 = vlaneseq
      %v3796 = vshrl.u32 %v3795, 7
      %v3797 = vsub.s32 0, %v3796
      %v3798 = vrot.slane %v788, %v3797
      %v3800 = vmul.f32 %v3793, %v3798
      %v3802 = vlaneseq
      %v3803 = vshrl.u32 %v3802, 7
      %v3804 = vsub.s32 0, %v3803
      %v3805 = vrot.slane %v789, %v3804
      %v3807 = vadd.f32 %v3800, %v3805
      %3808 = vst.msk [vmem:[%s442] sm:$0xf] %vm1891, %v3807
      %s3809 = scalar_lea.vmem %s436, 4
      %v3810 = vld [vmem:[%s3809] sm:$0xf]
      %v3811 = vpack.c.bf16 %v3810, %v3810
      %v3813 = vsel %vm843, %v3811, 0
      %3815 = vmatprep.subr.bf16.mxu0 %v828
      %3816 = vmatpush1.bf16.msra.mxu0 %v827
      %3817 = vmatprep.subr.bf16.mxu0 %v830
      %3818 = vmatpush1.bf16.msra.mxu0 %v829
      %3819 = vmatprep.subr.bf16.mxu0 %v832
      %3820 = vmatpush1.bf16.msra.mxu0 %v831
      %3821 = vmatprep.subr.bf16.mxu0 %v834
      %3822 = vmatpush1.bf16.msra.mxu0 %v833
      %3823 = vmatprep.subr.bf16.mxu0 0
      %3824 = vmatpush1.bf16.msra.mxu0 0
      %3825 = vmatprep.subr.bf16.mxu0 0
      %3826 = vmatpush1.bf16.msra.mxu0 0
      %3827 = vmatprep.subr.bf16.mxu0 0
      %3828 = vmatpush1.bf16.msra.mxu0 0
      %3829 = vmatprep.subr.bf16.mxu0 0
      %3830 = vmatpush1.bf16.msra.mxu0 0
      %3831 = vmatprep.subr.bf16.mxu0 0
      %3832 = vmatpush1.bf16.msra.mxu0 0
      %3833 = vmatprep.subr.bf16.mxu0 0
      %3834 = vmatpush1.bf16.msra.mxu0 0
      %3835 = vmatprep.subr.bf16.mxu0 0
      %3836 = vmatpush1.bf16.msra.mxu0 0
      %3837 = vmatprep.subr.bf16.mxu0 0
      %3838 = vmatpush1.bf16.msra.mxu0 0
      %3839 = vmatprep.subr.bf16.mxu0 0
      %3840 = vmatpush1.bf16.msra.mxu0 0
      %3841 = vmatprep.subr.bf16.mxu0 0
      %3842 = vmatpush1.bf16.msra.mxu0 0
      %3843 = vmatprep.subr.bf16.mxu0 0
      %3844 = vmatpush1.bf16.msra.mxu0 0
      %3845 = vmatprep.subr.bf16.mxu0 0
      %3846 = vmatpush1.bf16.msra.mxu0 0
      %3847 = vmatprep.mubr.bf16.mxu0 0
      %3848 = vmatmul.mubr.bf16.gmra.mrb[0].mxu0 %v3813
      %v3849 = vpop.f32.mrb[0].mxu0
      %v3850 = vadd.f32 %v796, %v3849
      %v3851 = vpop.f32.mrb[0].mxu0
      %v3852 = vadd.f32 %v800, %v3851
      %v3853 = vpop.f32.mrb[0].mxu0
      %v3854 = vpop.f32.mrb[0].mxu0
      %3855 = vdwg.mxu0
      %v3856 = vmul.f32 %v3850, 0.35355338
      %v3857 = vpack.c.bf16 %v3856, %v3856
      %v3858 = vpack.c.bf16 %v3850, %v3850
      %v3859 = vpack.c.bf16 %v3852, %v3852
      %3861 = vrot.lane.b32.xlu0 %v3858, 64
      %v3862 = vpop.permute.xlu0 %3861
      %v3864 = vsel %vm895, %v3857, 0
      %v3867 = vsel %vm895, %v3862, 0
      %3869 = vmatprep.subr.bf16.mxu0 0
      %3870 = vmatpush1.bf16.xpose.msra.mxu0 %v3867
      %3871 = vmatprep.subr.bf16.mxu0 0
      %3872 = vmatpush1.bf16.xpose.msra.mxu0 0
      %3873 = vmatprep.subr.bf16.mxu0 0
      %3874 = vmatpush1.bf16.xpose.msra.mxu0 0
      %3875 = vmatprep.subr.bf16.mxu0 0
      %3876 = vmatpush1.bf16.xpose.msra.mxu0 0
      %3877 = vmatprep.subr.bf16.mxu0 0
      %3878 = vmatpush1.bf16.xpose.msra.mxu0 0
      %3879 = vmatprep.subr.bf16.mxu0 0
      %3880 = vmatpush1.bf16.xpose.msra.mxu0 0
      %3881 = vmatprep.subr.bf16.mxu0 0
      %3882 = vmatpush1.bf16.xpose.msra.mxu0 0
      %3883 = vmatprep.subr.bf16.mxu0 0
      %3884 = vmatpush1.bf16.xpose.msra.mxu0 0
      %3885 = vmatprep.subr.bf16.mxu0 0
      %3886 = vmatpush1.bf16.xpose.msra.mxu0 0
      %3887 = vmatprep.subr.bf16.mxu0 0
      %3888 = vmatpush1.bf16.xpose.msra.mxu0 0
      %3889 = vmatprep.subr.bf16.mxu0 0
      %3890 = vmatpush1.bf16.xpose.msra.mxu0 0
      %3891 = vmatprep.subr.bf16.mxu0 0
      %3892 = vmatpush1.bf16.xpose.msra.mxu0 0
      %3893 = vmatprep.subr.bf16.mxu0 0
      %3894 = vmatpush1.bf16.xpose.msra.mxu0 0
      %3895 = vmatprep.subr.bf16.mxu0 0
      %3896 = vmatpush1.bf16.xpose.msra.mxu0 0
      %3897 = vmatprep.subr.bf16.mxu0 0
      %3898 = vmatpush1.bf16.xpose.msra.mxu0 0
      %3899 = vmatprep.subr.bf16.mxu0 0
      %3900 = vmatpush1.bf16.xpose.msra.mxu0 0
      %3901 = vmatprep.mubr.bf16.mxu0 0
      %3902 = vmatmul.mubr.bf16.gmra.mrb[0].mxu0 %v3864
      %v3903 = vpop.f32.mrb[0].mxu0
      %v3904 = vadd.f32 0.0, %v3903
      %v3905 = vpop.f32.mrb[0].mxu0
      %v3906 = vpop.f32.mrb[0].mxu0
      %v3907 = vpop.f32.mrb[0].mxu0
      %3908 = vdwg.mxu0
      %v3909 = vsel %vm942, %v3904, -inf
      %3910 = vmax.xlane.f32.xlu0 %v3909
      %v3911 = vpop.xlane.xlu0 %3910
      %v3912 = vsub.f32 %v3904, %v3911
      %v3913 = vmul.f32 %v3912, 1.442695
      %v3914 = vpow.pop %v3913
      %v3915 = vsel %vm942, %v3914, 0.0
      %3916 = vadd.xlane.f32.xlu0 %v3915
      %v3917 = vpop.xlane.xlu0 %3916
      %v3918 = vrcp.pop %v3917
      %v3919 = vmul.f32 %v3914, %v3918
      %v3920 = vpack.c.bf16 %v3919, %v3919
      %v3922 = vsel %vm955, %v3920, 0
      %v3925 = vsel %vm959, %v3859, 0
      %3927 = vmatprep.subr.bf16.mxu0 0
      %3928 = vmatpush1.bf16.msra.mxu0 %v3925
      %3929 = vmatprep.subr.bf16.mxu0 0
      %3930 = vmatpush1.bf16.msra.mxu0 0
      %3931 = vmatprep.subr.bf16.mxu0 0
      %3932 = vmatpush1.bf16.msra.mxu0 0
      %3933 = vmatprep.subr.bf16.mxu0 0
      %3934 = vmatpush1.bf16.msra.mxu0 0
      %3935 = vmatprep.subr.bf16.mxu0 0
      %3936 = vmatpush1.bf16.msra.mxu0 0
      %3937 = vmatprep.subr.bf16.mxu0 0
      %3938 = vmatpush1.bf16.msra.mxu0 0
      %3939 = vmatprep.subr.bf16.mxu0 0
      %3940 = vmatpush1.bf16.msra.mxu0 0
      %3941 = vmatprep.subr.bf16.mxu0 0
      %3942 = vmatpush1.bf16.msra.mxu0 0
      %3943 = vmatprep.subr.bf16.mxu0 0
      %3944 = vmatpush1.bf16.msra.mxu0 0
      %3945 = vmatprep.subr.bf16.mxu0 0
      %3946 = vmatpush1.bf16.msra.mxu0 0
      %3947 = vmatprep.subr.bf16.mxu0 0
      %3948 = vmatpush1.bf16.msra.mxu0 0
      %3949 = vmatprep.subr.bf16.mxu0 0
      %3950 = vmatpush1.bf16.msra.mxu0 0
      %3951 = vmatprep.subr.bf16.mxu0 0
      %3952 = vmatpush1.bf16.msra.mxu0 0
      %3953 = vmatprep.subr.bf16.mxu0 0
      %3954 = vmatpush1.bf16.msra.mxu0 0
      %3955 = vmatprep.subr.bf16.mxu0 0
      %3956 = vmatpush1.bf16.msra.mxu0 0
      %3957 = vmatprep.subr.bf16.mxu0 0
      %3958 = vmatpush1.bf16.msra.mxu0 0
      %3959 = vmatprep.mubr.bf16.mxu0 0
      %3960 = vmatmul.mubr.bf16.gmra.mrb[0].mxu0 %v3922
      %v3961 = vpop.f32.mrb[0].mxu0
      %v3962 = vadd.f32 0.0, %v3961
      %v3963 = vpop.f32.mrb[0].mxu0
      %v3964 = vpop.f32.mrb[0].mxu0
      %v3965 = vpop.f32.mrb[0].mxu0
      %3966 = vdwg.mxu0
      %3968 = vrot.lane.b32.xlu0 %v3857, 120
      %v3969 = vpop.permute.xlu0 %3968
      %3970 = vrot.lane.b32.xlu0 %v3858, 56
      %v3971 = vpop.permute.xlu0 %3970
      %v3973 = vsel %vm895, %v3969, 0
      %v3976 = vsel %vm895, %v3971, 0
      %3978 = vmatprep.subr.bf16.mxu0 0
      %3979 = vmatpush1.bf16.xpose.msra.mxu0 %v3976
      %3980 = vmatprep.subr.bf16.mxu0 0
      %3981 = vmatpush1.bf16.xpose.msra.mxu0 0
      %3982 = vmatprep.subr.bf16.mxu0 0
      %3983 = vmatpush1.bf16.xpose.msra.mxu0 0
      %3984 = vmatprep.subr.bf16.mxu0 0
      %3985 = vmatpush1.bf16.xpose.msra.mxu0 0
      %3986 = vmatprep.subr.bf16.mxu0 0
      %3987 = vmatpush1.bf16.xpose.msra.mxu0 0
      %3988 = vmatprep.subr.bf16.mxu0 0
      %3989 = vmatpush1.bf16.xpose.msra.mxu0 0
      %3990 = vmatprep.subr.bf16.mxu0 0
      %3991 = vmatpush1.bf16.xpose.msra.mxu0 0
      %3992 = vmatprep.subr.bf16.mxu0 0
      %3993 = vmatpush1.bf16.xpose.msra.mxu0 0
      %3994 = vmatprep.subr.bf16.mxu0 0
      %3995 = vmatpush1.bf16.xpose.msra.mxu0 0
      %3996 = vmatprep.subr.bf16.mxu0 0
      %3997 = vmatpush1.bf16.xpose.msra.mxu0 0
      %3998 = vmatprep.subr.bf16.mxu0 0
      %3999 = vmatpush1.bf16.xpose.msra.mxu0 0
      %4000 = vmatprep.subr.bf16.mxu0 0
      %4001 = vmatpush1.bf16.xpose.msra.mxu0 0
      %4002 = vmatprep.subr.bf16.mxu0 0
      %4003 = vmatpush1.bf16.xpose.msra.mxu0 0
      %4004 = vmatprep.subr.bf16.mxu0 0
      %4005 = vmatpush1.bf16.xpose.msra.mxu0 0
      %4006 = vmatprep.subr.bf16.mxu0 0
      %4007 = vmatpush1.bf16.xpose.msra.mxu0 0
      %4008 = vmatprep.subr.bf16.mxu0 0
      %4009 = vmatpush1.bf16.xpose.msra.mxu0 0
      %4010 = vmatprep.mubr.bf16.mxu0 0
      %4011 = vmatmul.mubr.bf16.gmra.mrb[0].mxu0 %v3973
      %v4012 = vpop.f32.mrb[0].mxu0
      %v4013 = vadd.f32 0.0, %v4012
      %v4014 = vpop.f32.mrb[0].mxu0
      %v4015 = vpop.f32.mrb[0].mxu0
      %v4016 = vpop.f32.mrb[0].mxu0
      %4017 = vdwg.mxu0
      %v4018 = vsel %vm942, %v4013, -inf
      %4019 = vmax.xlane.f32.xlu0 %v4018
      %v4020 = vpop.xlane.xlu0 %4019
      %v4021 = vsub.f32 %v4013, %v4020
      %v4022 = vmul.f32 %v4021, 1.442695
      %v4023 = vpow.pop %v4022
      %v4024 = vsel %vm942, %v4023, 0.0
      %4025 = vadd.xlane.f32.xlu0 %v4024
      %v4026 = vpop.xlane.xlu0 %4025
      %v4027 = vrcp.pop %v4026
      %v4028 = vmul.f32 %v4023, %v4027
      %v4029 = vpack.c.bf16 %v4028, %v4028
      %4031 = vrot.lane.b32.xlu0 %v3859, 120
      %v4032 = vpop.permute.xlu0 %4031
      %v4034 = vsel %vm955, %v4029, 0
      %v4037 = vsel %vm959, %v4032, 0
      %4039 = vmatprep.subr.bf16.mxu0 0
      %4040 = vmatpush1.bf16.msra.mxu0 %v4037
      %4041 = vmatprep.subr.bf16.mxu0 0
      %4042 = vmatpush1.bf16.msra.mxu0 0
      %4043 = vmatprep.subr.bf16.mxu0 0
      %4044 = vmatpush1.bf16.msra.mxu0 0
      %4045 = vmatprep.subr.bf16.mxu0 0
      %4046 = vmatpush1.bf16.msra.mxu0 0
      %4047 = vmatprep.subr.bf16.mxu0 0
      %4048 = vmatpush1.bf16.msra.mxu0 0
      %4049 = vmatprep.subr.bf16.mxu0 0
      %4050 = vmatpush1.bf16.msra.mxu0 0
      %4051 = vmatprep.subr.bf16.mxu0 0
      %4052 = vmatpush1.bf16.msra.mxu0 0
      %4053 = vmatprep.subr.bf16.mxu0 0
      %4054 = vmatpush1.bf16.msra.mxu0 0
      %4055 = vmatprep.subr.bf16.mxu0 0
      %4056 = vmatpush1.bf16.msra.mxu0 0
      %4057 = vmatprep.subr.bf16.mxu0 0
      %4058 = vmatpush1.bf16.msra.mxu0 0
      %4059 = vmatprep.subr.bf16.mxu0 0
      %4060 = vmatpush1.bf16.msra.mxu0 0
      %4061 = vmatprep.subr.bf16.mxu0 0
      %4062 = vmatpush1.bf16.msra.mxu0 0
      %4063 = vmatprep.subr.bf16.mxu0 0
      %4064 = vmatpush1.bf16.msra.mxu0 0
      %4065 = vmatprep.subr.bf16.mxu0 0
      %4066 = vmatpush1.bf16.msra.mxu0 0
      %4067 = vmatprep.subr.bf16.mxu0 0
      %4068 = vmatpush1.bf16.msra.mxu0 0
      %4069 = vmatprep.subr.bf16.mxu0 0
      %4070 = vmatpush1.bf16.msra.mxu0 0
      %4071 = vmatprep.mubr.bf16.mxu0 0
      %4072 = vmatmul.mubr.bf16.gmra.mrb[0].mxu0 %v4034
      %v4073 = vpop.f32.mrb[0].mxu0
      %v4074 = vadd.f32 0.0, %v4073
      %v4075 = vpop.f32.mrb[0].mxu0
      %v4076 = vpop.f32.mrb[0].mxu0
      %v4077 = vpop.f32.mrb[0].mxu0
      %4078 = vdwg.mxu0
      %4079 = vrot.lane.b32.xlu0 %v3857, 112
      %v4080 = vpop.permute.xlu0 %4079
      %4081 = vrot.lane.b32.xlu0 %v3858, 48
      %v4082 = vpop.permute.xlu0 %4081
      %v4084 = vsel %vm895, %v4080, 0
      %v4087 = vsel %vm895, %v4082, 0
      %4089 = vmatprep.subr.bf16.mxu0 0
      %4090 = vmatpush1.bf16.xpose.msra.mxu0 %v4087
      %4091 = vmatprep.subr.bf16.mxu0 0
      %4092 = vmatpush1.bf16.xpose.msra.mxu0 0
      %4093 = vmatprep.subr.bf16.mxu0 0
      %4094 = vmatpush1.bf16.xpose.msra.mxu0 0
      %4095 = vmatprep.subr.bf16.mxu0 0
      %4096 = vmatpush1.bf16.xpose.msra.mxu0 0
      %4097 = vmatprep.subr.bf16.mxu0 0
      %4098 = vmatpush1.bf16.xpose.msra.mxu0 0
      %4099 = vmatprep.subr.bf16.mxu0 0
      %4100 = vmatpush1.bf16.xpose.msra.mxu0 0
      %4101 = vmatprep.subr.bf16.mxu0 0
      %4102 = vmatpush1.bf16.xpose.msra.mxu0 0
      %4103 = vmatprep.subr.bf16.mxu0 0
      %4104 = vmatpush1.bf16.xpose.msra.mxu0 0
      %4105 = vmatprep.subr.bf16.mxu0 0
      %4106 = vmatpush1.bf16.xpose.msra.mxu0 0
      %4107 = vmatprep.subr.bf16.mxu0 0
      %4108 = vmatpush1.bf16.xpose.msra.mxu0 0
      %4109 = vmatprep.subr.bf16.mxu0 0
      %4110 = vmatpush1.bf16.xpose.msra.mxu0 0
      %4111 = vmatprep.subr.bf16.mxu0 0
      %4112 = vmatpush1.bf16.xpose.msra.mxu0 0
      %4113 = vmatprep.subr.bf16.mxu0 0
      %4114 = vmatpush1.bf16.xpose.msra.mxu0 0
      %4115 = vmatprep.subr.bf16.mxu0 0
      %4116 = vmatpush1.bf16.xpose.msra.mxu0 0
      %4117 = vmatprep.subr.bf16.mxu0 0
      %4118 = vmatpush1.bf16.xpose.msra.mxu0 0
      %4119 = vmatprep.subr.bf16.mxu0 0
      %4120 = vmatpush1.bf16.xpose.msra.mxu0 0
      %4121 = vmatprep.mubr.bf16.mxu0 0
      %4122 = vmatmul.mubr.bf16.gmra.mrb[0].mxu0 %v4084
      %v4123 = vpop.f32.mrb[0].mxu0
      %v4124 = vadd.f32 0.0, %v4123
      %v4125 = vpop.f32.mrb[0].mxu0
      %v4126 = vpop.f32.mrb[0].mxu0
      %v4127 = vpop.f32.mrb[0].mxu0
      %4128 = vdwg.mxu0
      %v4129 = vsel %vm942, %v4124, -inf
      %4130 = vmax.xlane.f32.xlu0 %v4129
      %v4131 = vpop.xlane.xlu0 %4130
      %v4132 = vsub.f32 %v4124, %v4131
      %v4133 = vmul.f32 %v4132, 1.442695
      %v4134 = vpow.pop %v4133
      %v4135 = vsel %vm942, %v4134, 0.0
      %4136 = vadd.xlane.f32.xlu0 %v4135
      %v4137 = vpop.xlane.xlu0 %4136
      %v4138 = vrcp.pop %v4137
      %v4139 = vmul.f32 %v4134, %v4138
      %v4140 = vpack.c.bf16 %v4139, %v4139
      %4141 = vrot.lane.b32.xlu0 %v3859, 112
      %v4142 = vpop.permute.xlu0 %4141
      %v4144 = vsel %vm955, %v4140, 0
      %v4147 = vsel %vm959, %v4142, 0
      %4149 = vmatprep.subr.bf16.mxu0 0
      %4150 = vmatpush1.bf16.msra.mxu0 %v4147
      %4151 = vmatprep.subr.bf16.mxu0 0
      %4152 = vmatpush1.bf16.msra.mxu0 0
      %4153 = vmatprep.subr.bf16.mxu0 0
      %4154 = vmatpush1.bf16.msra.mxu0 0
      %4155 = vmatprep.subr.bf16.mxu0 0
      %4156 = vmatpush1.bf16.msra.mxu0 0
      %4157 = vmatprep.subr.bf16.mxu0 0
      %4158 = vmatpush1.bf16.msra.mxu0 0
      %4159 = vmatprep.subr.bf16.mxu0 0
      %4160 = vmatpush1.bf16.msra.mxu0 0
      %4161 = vmatprep.subr.bf16.mxu0 0
      %4162 = vmatpush1.bf16.msra.mxu0 0
      %4163 = vmatprep.subr.bf16.mxu0 0
      %4164 = vmatpush1.bf16.msra.mxu0 0
      %4165 = vmatprep.subr.bf16.mxu0 0
      %4166 = vmatpush1.bf16.msra.mxu0 0
      %4167 = vmatprep.subr.bf16.mxu0 0
      %4168 = vmatpush1.bf16.msra.mxu0 0
      %4169 = vmatprep.subr.bf16.mxu0 0
      %4170 = vmatpush1.bf16.msra.mxu0 0
      %4171 = vmatprep.subr.bf16.mxu0 0
      %4172 = vmatpush1.bf16.msra.mxu0 0
      %4173 = vmatprep.subr.bf16.mxu0 0
      %4174 = vmatpush1.bf16.msra.mxu0 0
      %4175 = vmatprep.subr.bf16.mxu0 0
      %4176 = vmatpush1.bf16.msra.mxu0 0
      %4177 = vmatprep.subr.bf16.mxu0 0
      %4178 = vmatpush1.bf16.msra.mxu0 0
      %4179 = vmatprep.subr.bf16.mxu0 0
      %4180 = vmatpush1.bf16.msra.mxu0 0
      %4181 = vmatprep.mubr.bf16.mxu0 0
      %4182 = vmatmul.mubr.bf16.gmra.mrb[0].mxu0 %v4144
      %v4183 = vpop.f32.mrb[0].mxu0
      %v4184 = vadd.f32 0.0, %v4183
      %v4185 = vpop.f32.mrb[0].mxu0
      %v4186 = vpop.f32.mrb[0].mxu0
      %v4187 = vpop.f32.mrb[0].mxu0
      %4188 = vdwg.mxu0
      %4189 = vrot.lane.b32.xlu0 %v3857, 104
      %v4190 = vpop.permute.xlu0 %4189
      %4191 = vrot.lane.b32.xlu0 %v3858, 40
      %v4192 = vpop.permute.xlu0 %4191
      %v4194 = vsel %vm895, %v4190, 0
      %v4197 = vsel %vm895, %v4192, 0
      %4199 = vmatprep.subr.bf16.mxu0 0
      %4200 = vmatpush1.bf16.xpose.msra.mxu0 %v4197
      %4201 = vmatprep.subr.bf16.mxu0 0
      %4202 = vmatpush1.bf16.xpose.msra.mxu0 0
      %4203 = vmatprep.subr.bf16.mxu0 0
      %4204 = vmatpush1.bf16.xpose.msra.mxu0 0
      %4205 = vmatprep.subr.bf16.mxu0 0
      %4206 = vmatpush1.bf16.xpose.msra.mxu0 0
      %4207 = vmatprep.subr.bf16.mxu0 0
      %4208 = vmatpush1.bf16.xpose.msra.mxu0 0
      %4209 = vmatprep.subr.bf16.mxu0 0
      %4210 = vmatpush1.bf16.xpose.msra.mxu0 0
      %4211 = vmatprep.subr.bf16.mxu0 0
      %4212 = vmatpush1.bf16.xpose.msra.mxu0 0
      %4213 = vmatprep.subr.bf16.mxu0 0
      %4214 = vmatpush1.bf16.xpose.msra.mxu0 0
      %4215 = vmatprep.subr.bf16.mxu0 0
      %4216 = vmatpush1.bf16.xpose.msra.mxu0 0
      %4217 = vmatprep.subr.bf16.mxu0 0
      %4218 = vmatpush1.bf16.xpose.msra.mxu0 0
      %4219 = vmatprep.subr.bf16.mxu0 0
      %4220 = vmatpush1.bf16.xpose.msra.mxu0 0
      %4221 = vmatprep.subr.bf16.mxu0 0
      %4222 = vmatpush1.bf16.xpose.msra.mxu0 0
      %4223 = vmatprep.subr.bf16.mxu0 0
      %4224 = vmatpush1.bf16.xpose.msra.mxu0 0
      %4225 = vmatprep.subr.bf16.mxu0 0
      %4226 = vmatpush1.bf16.xpose.msra.mxu0 0
      %4227 = vmatprep.subr.bf16.mxu0 0
      %4228 = vmatpush1.bf16.xpose.msra.mxu0 0
      %4229 = vmatprep.subr.bf16.mxu0 0
      %4230 = vmatpush1.bf16.xpose.msra.mxu0 0
      %4231 = vmatprep.mubr.bf16.mxu0 0
      %4232 = vmatmul.mubr.bf16.gmra.mrb[0].mxu0 %v4194
      %v4233 = vpop.f32.mrb[0].mxu0
      %v4234 = vadd.f32 0.0, %v4233
      %v4235 = vpop.f32.mrb[0].mxu0
      %v4236 = vpop.f32.mrb[0].mxu0
      %v4237 = vpop.f32.mrb[0].mxu0
      %4238 = vdwg.mxu0
      %v4239 = vsel %vm942, %v4234, -inf
      %4240 = vmax.xlane.f32.xlu0 %v4239
      %v4241 = vpop.xlane.xlu0 %4240
      %v4242 = vsub.f32 %v4234, %v4241
      %v4243 = vmul.f32 %v4242, 1.442695
      %v4244 = vpow.pop %v4243
      %v4245 = vsel %vm942, %v4244, 0.0
      %4246 = vadd.xlane.f32.xlu0 %v4245
      %v4247 = vpop.xlane.xlu0 %4246
      %v4248 = vrcp.pop %v4247
      %v4249 = vmul.f32 %v4244, %v4248
      %v4250 = vpack.c.bf16 %v4249, %v4249
      %4251 = vrot.lane.b32.xlu0 %v3859, 104
      %v4252 = vpop.permute.xlu0 %4251
      %v4254 = vsel %vm955, %v4250, 0
      %v4257 = vsel %vm959, %v4252, 0
      %4259 = vmatprep.subr.bf16.mxu0 0
      %4260 = vmatpush1.bf16.msra.mxu0 %v4257
      %4261 = vmatprep.subr.bf16.mxu0 0
      %4262 = vmatpush1.bf16.msra.mxu0 0
      %4263 = vmatprep.subr.bf16.mxu0 0
      %4264 = vmatpush1.bf16.msra.mxu0 0
      %4265 = vmatprep.subr.bf16.mxu0 0
      %4266 = vmatpush1.bf16.msra.mxu0 0
      %4267 = vmatprep.subr.bf16.mxu0 0
      %4268 = vmatpush1.bf16.msra.mxu0 0
      %4269 = vmatprep.subr.bf16.mxu0 0
      %4270 = vmatpush1.bf16.msra.mxu0 0
      %4271 = vmatprep.subr.bf16.mxu0 0
      %4272 = vmatpush1.bf16.msra.mxu0 0
      %4273 = vmatprep.subr.bf16.mxu0 0
      %4274 = vmatpush1.bf16.msra.mxu0 0
      %4275 = vmatprep.subr.bf16.mxu0 0
      %4276 = vmatpush1.bf16.msra.mxu0 0
      %4277 = vmatprep.subr.bf16.mxu0 0
      %4278 = vmatpush1.bf16.msra.mxu0 0
      %4279 = vmatprep.subr.bf16.mxu0 0
      %4280 = vmatpush1.bf16.msra.mxu0 0
      %4281 = vmatprep.subr.bf16.mxu0 0
      %4282 = vmatpush1.bf16.msra.mxu0 0
      %4283 = vmatprep.subr.bf16.mxu0 0
      %4284 = vmatpush1.bf16.msra.mxu0 0
      %4285 = vmatprep.subr.bf16.mxu0 0
      %4286 = vmatpush1.bf16.msra.mxu0 0
      %4287 = vmatprep.subr.bf16.mxu0 0
      %4288 = vmatpush1.bf16.msra.mxu0 0
      %4289 = vmatprep.subr.bf16.mxu0 0
      %4290 = vmatpush1.bf16.msra.mxu0 0
      %4291 = vmatprep.mubr.bf16.mxu0 0
      %4292 = vmatmul.mubr.bf16.gmra.mrb[0].mxu0 %v4254
      %v4293 = vpop.f32.mrb[0].mxu0
      %v4294 = vadd.f32 0.0, %v4293
      %v4295 = vpop.f32.mrb[0].mxu0
      %v4296 = vpop.f32.mrb[0].mxu0
      %v4297 = vpop.f32.mrb[0].mxu0
      %4298 = vdwg.mxu0
      %4299 = vrot.lane.b32.xlu0 %v3857, 96
      %v4300 = vpop.permute.xlu0 %4299
      %4301 = vrot.lane.b32.xlu0 %v3858, 32
      %v4302 = vpop.permute.xlu0 %4301
      %v4304 = vsel %vm895, %v4300, 0
      %v4307 = vsel %vm895, %v4302, 0
      %4309 = vmatprep.subr.bf16.mxu0 0
      %4310 = vmatpush1.bf16.xpose.msra.mxu0 %v4307
      %4311 = vmatprep.subr.bf16.mxu0 0
      %4312 = vmatpush1.bf16.xpose.msra.mxu0 0
      %4313 = vmatprep.subr.bf16.mxu0 0
      %4314 = vmatpush1.bf16.xpose.msra.mxu0 0
      %4315 = vmatprep.subr.bf16.mxu0 0
      %4316 = vmatpush1.bf16.xpose.msra.mxu0 0
      %4317 = vmatprep.subr.bf16.mxu0 0
      %4318 = vmatpush1.bf16.xpose.msra.mxu0 0
      %4319 = vmatprep.subr.bf16.mxu0 0
      %4320 = vmatpush1.bf16.xpose.msra.mxu0 0
      %4321 = vmatprep.subr.bf16.mxu0 0
      %4322 = vmatpush1.bf16.xpose.msra.mxu0 0
      %4323 = vmatprep.subr.bf16.mxu0 0
      %4324 = vmatpush1.bf16.xpose.msra.mxu0 0
      %4325 = vmatprep.subr.bf16.mxu0 0
      %4326 = vmatpush1.bf16.xpose.msra.mxu0 0
      %4327 = vmatprep.subr.bf16.mxu0 0
      %4328 = vmatpush1.bf16.xpose.msra.mxu0 0
      %4329 = vmatprep.subr.bf16.mxu0 0
      %4330 = vmatpush1.bf16.xpose.msra.mxu0 0
      %4331 = vmatprep.subr.bf16.mxu0 0
      %4332 = vmatpush1.bf16.xpose.msra.mxu0 0
      %4333 = vmatprep.subr.bf16.mxu0 0
      %4334 = vmatpush1.bf16.xpose.msra.mxu0 0
      %4335 = vmatprep.subr.bf16.mxu0 0
      %4336 = vmatpush1.bf16.xpose.msra.mxu0 0
      %4337 = vmatprep.subr.bf16.mxu0 0
      %4338 = vmatpush1.bf16.xpose.msra.mxu0 0
      %4339 = vmatprep.subr.bf16.mxu0 0
      %4340 = vmatpush1.bf16.xpose.msra.mxu0 0
      %4341 = vmatprep.mubr.bf16.mxu0 0
      %4342 = vmatmul.mubr.bf16.gmra.mrb[0].mxu0 %v4304
      %v4343 = vpop.f32.mrb[0].mxu0
      %v4344 = vadd.f32 0.0, %v4343
      %v4345 = vpop.f32.mrb[0].mxu0
      %v4346 = vpop.f32.mrb[0].mxu0
      %v4347 = vpop.f32.mrb[0].mxu0
      %4348 = vdwg.mxu0
      %v4349 = vsel %vm942, %v4344, -inf
      %4350 = vmax.xlane.f32.xlu0 %v4349
      %v4351 = vpop.xlane.xlu0 %4350
      %v4352 = vsub.f32 %v4344, %v4351
      %v4353 = vmul.f32 %v4352, 1.442695
      %v4354 = vpow.pop %v4353
      %v4355 = vsel %vm942, %v4354, 0.0
      %4356 = vadd.xlane.f32.xlu0 %v4355
      %v4357 = vpop.xlane.xlu0 %4356
      %v4358 = vrcp.pop %v4357
      %v4359 = vmul.f32 %v4354, %v4358
      %v4360 = vpack.c.bf16 %v4359, %v4359
      %4361 = vrot.lane.b32.xlu0 %v3859, 96
      %v4362 = vpop.permute.xlu0 %4361
      %v4364 = vsel %vm955, %v4360, 0
      %v4367 = vsel %vm959, %v4362, 0
      %4369 = vmatprep.subr.bf16.mxu0 0
      %4370 = vmatpush1.bf16.msra.mxu0 %v4367
      %4371 = vmatprep.subr.bf16.mxu0 0
      %4372 = vmatpush1.bf16.msra.mxu0 0
      %4373 = vmatprep.subr.bf16.mxu0 0
      %4374 = vmatpush1.bf16.msra.mxu0 0
      %4375 = vmatprep.subr.bf16.mxu0 0
      %4376 = vmatpush1.bf16.msra.mxu0 0
      %4377 = vmatprep.subr.bf16.mxu0 0
      %4378 = vmatpush1.bf16.msra.mxu0 0
      %4379 = vmatprep.subr.bf16.mxu0 0
      %4380 = vmatpush1.bf16.msra.mxu0 0
      %4381 = vmatprep.subr.bf16.mxu0 0
      %4382 = vmatpush1.bf16.msra.mxu0 0
      %4383 = vmatprep.subr.bf16.mxu0 0
      %4384 = vmatpush1.bf16.msra.mxu0 0
      %4385 = vmatprep.subr.bf16.mxu0 0
      %4386 = vmatpush1.bf16.msra.mxu0 0
      %4387 = vmatprep.subr.bf16.mxu0 0
      %4388 = vmatpush1.bf16.msra.mxu0 0
      %4389 = vmatprep.subr.bf16.mxu0 0
      %4390 = vmatpush1.bf16.msra.mxu0 0
      %4391 = vmatprep.subr.bf16.mxu0 0
      %4392 = vmatpush1.bf16.msra.mxu0 0
      %4393 = vmatprep.subr.bf16.mxu0 0
      %4394 = vmatpush1.bf16.msra.mxu0 0
      %4395 = vmatprep.subr.bf16.mxu0 0
      %4396 = vmatpush1.bf16.msra.mxu0 0
      %4397 = vmatprep.subr.bf16.mxu0 0
      %4398 = vmatpush1.bf16.msra.mxu0 0
      %4399 = vmatprep.subr.bf16.mxu0 0
      %4400 = vmatpush1.bf16.msra.mxu0 0
      %4401 = vmatprep.mubr.bf16.mxu0 0
      %4402 = vmatmul.mubr.bf16.gmra.mrb[0].mxu0 %v4364
      %v4403 = vpop.f32.mrb[0].mxu0
      %v4404 = vadd.f32 0.0, %v4403
      %v4405 = vpop.f32.mrb[0].mxu0
      %v4406 = vpop.f32.mrb[0].mxu0
      %v4407 = vpop.f32.mrb[0].mxu0
      %4408 = vdwg.mxu0
      %4409 = vrot.lane.b32.xlu0 %v3857, 88
      %v4410 = vpop.permute.xlu0 %4409
      %4411 = vrot.lane.b32.xlu0 %v3858, 24
      %v4412 = vpop.permute.xlu0 %4411
      %v4414 = vsel %vm895, %v4410, 0
      %v4417 = vsel %vm895, %v4412, 0
      %4419 = vmatprep.subr.bf16.mxu0 0
      %4420 = vmatpush1.bf16.xpose.msra.mxu0 %v4417
      %4421 = vmatprep.subr.bf16.mxu0 0
      %4422 = vmatpush1.bf16.xpose.msra.mxu0 0
      %4423 = vmatprep.subr.bf16.mxu0 0
      %4424 = vmatpush1.bf16.xpose.msra.mxu0 0
      %4425 = vmatprep.subr.bf16.mxu0 0
      %4426 = vmatpush1.bf16.xpose.msra.mxu0 0
      %4427 = vmatprep.subr.bf16.mxu0 0
      %4428 = vmatpush1.bf16.xpose.msra.mxu0 0
      %4429 = vmatprep.subr.bf16.mxu0 0
      %4430 = vmatpush1.bf16.xpose.msra.mxu0 0
      %4431 = vmatprep.subr.bf16.mxu0 0
      %4432 = vmatpush1.bf16.xpose.msra.mxu0 0
      %4433 = vmatprep.subr.bf16.mxu0 0
      %4434 = vmatpush1.bf16.xpose.msra.mxu0 0
      %4435 = vmatprep.subr.bf16.mxu0 0
      %4436 = vmatpush1.bf16.xpose.msra.mxu0 0
      %4437 = vmatprep.subr.bf16.mxu0 0
      %4438 = vmatpush1.bf16.xpose.msra.mxu0 0
      %4439 = vmatprep.subr.bf16.mxu0 0
      %4440 = vmatpush1.bf16.xpose.msra.mxu0 0
      %4441 = vmatprep.subr.bf16.mxu0 0
      %4442 = vmatpush1.bf16.xpose.msra.mxu0 0
      %4443 = vmatprep.subr.bf16.mxu0 0
      %4444 = vmatpush1.bf16.xpose.msra.mxu0 0
      %4445 = vmatprep.subr.bf16.mxu0 0
      %4446 = vmatpush1.bf16.xpose.msra.mxu0 0
      %4447 = vmatprep.subr.bf16.mxu0 0
      %4448 = vmatpush1.bf16.xpose.msra.mxu0 0
      %4449 = vmatprep.subr.bf16.mxu0 0
      %4450 = vmatpush1.bf16.xpose.msra.mxu0 0
      %4451 = vmatprep.mubr.bf16.mxu0 0
      %4452 = vmatmul.mubr.bf16.gmra.mrb[0].mxu0 %v4414
      %v4453 = vpop.f32.mrb[0].mxu0
      %v4454 = vadd.f32 0.0, %v4453
      %v4455 = vpop.f32.mrb[0].mxu0
      %v4456 = vpop.f32.mrb[0].mxu0
      %v4457 = vpop.f32.mrb[0].mxu0
      %4458 = vdwg.mxu0
      %v4459 = vsel %vm942, %v4454, -inf
      %4460 = vmax.xlane.f32.xlu0 %v4459
      %v4461 = vpop.xlane.xlu0 %4460
      %v4462 = vsub.f32 %v4454, %v4461
      %v4463 = vmul.f32 %v4462, 1.442695
      %v4464 = vpow.pop %v4463
      %v4465 = vsel %vm942, %v4464, 0.0
      %4466 = vadd.xlane.f32.xlu0 %v4465
      %v4467 = vpop.xlane.xlu0 %4466
      %v4468 = vrcp.pop %v4467
      %v4469 = vmul.f32 %v4464, %v4468
      %v4470 = vpack.c.bf16 %v4469, %v4469
      %4471 = vrot.lane.b32.xlu0 %v3859, 88
      %v4472 = vpop.permute.xlu0 %4471
      %v4474 = vsel %vm955, %v4470, 0
      %v4477 = vsel %vm959, %v4472, 0
      %4479 = vmatprep.subr.bf16.mxu0 0
      %4480 = vmatpush1.bf16.msra.mxu0 %v4477
      %4481 = vmatprep.subr.bf16.mxu0 0
      %4482 = vmatpush1.bf16.msra.mxu0 0
      %4483 = vmatprep.subr.bf16.mxu0 0
      %4484 = vmatpush1.bf16.msra.mxu0 0
      %4485 = vmatprep.subr.bf16.mxu0 0
      %4486 = vmatpush1.bf16.msra.mxu0 0
      %4487 = vmatprep.subr.bf16.mxu0 0
      %4488 = vmatpush1.bf16.msra.mxu0 0
      %4489 = vmatprep.subr.bf16.mxu0 0
      %4490 = vmatpush1.bf16.msra.mxu0 0
      %4491 = vmatprep.subr.bf16.mxu0 0
      %4492 = vmatpush1.bf16.msra.mxu0 0
      %4493 = vmatprep.subr.bf16.mxu0 0
      %4494 = vmatpush1.bf16.msra.mxu0 0
      %4495 = vmatprep.subr.bf16.mxu0 0
      %4496 = vmatpush1.bf16.msra.mxu0 0
      %4497 = vmatprep.subr.bf16.mxu0 0
      %4498 = vmatpush1.bf16.msra.mxu0 0
      %4499 = vmatprep.subr.bf16.mxu0 0
      %4500 = vmatpush1.bf16.msra.mxu0 0
      %4501 = vmatprep.subr.bf16.mxu0 0
      %4502 = vmatpush1.bf16.msra.mxu0 0
      %4503 = vmatprep.subr.bf16.mxu0 0
      %4504 = vmatpush1.bf16.msra.mxu0 0
      %4505 = vmatprep.subr.bf16.mxu0 0
      %4506 = vmatpush1.bf16.msra.mxu0 0
      %4507 = vmatprep.subr.bf16.mxu0 0
      %4508 = vmatpush1.bf16.msra.mxu0 0
      %4509 = vmatprep.subr.bf16.mxu0 0
      %4510 = vmatpush1.bf16.msra.mxu0 0
      %4511 = vmatprep.mubr.bf16.mxu0 0
      %4512 = vmatmul.mubr.bf16.gmra.mrb[0].mxu0 %v4474
      %v4513 = vpop.f32.mrb[0].mxu0
      %v4514 = vadd.f32 0.0, %v4513
      %v4515 = vpop.f32.mrb[0].mxu0
      %v4516 = vpop.f32.mrb[0].mxu0
      %v4517 = vpop.f32.mrb[0].mxu0
      %4518 = vdwg.mxu0
      %4519 = vrot.lane.b32.xlu0 %v3857, 80
      %v4520 = vpop.permute.xlu0 %4519
      %4521 = vrot.lane.b32.xlu0 %v3858, 16
      %v4522 = vpop.permute.xlu0 %4521
      %v4524 = vsel %vm895, %v4520, 0
      %v4527 = vsel %vm895, %v4522, 0
      %4529 = vmatprep.subr.bf16.mxu0 0
      %4530 = vmatpush1.bf16.xpose.msra.mxu0 %v4527
      %4531 = vmatprep.subr.bf16.mxu0 0
      %4532 = vmatpush1.bf16.xpose.msra.mxu0 0
      %4533 = vmatprep.subr.bf16.mxu0 0
      %4534 = vmatpush1.bf16.xpose.msra.mxu0 0
      %4535 = vmatprep.subr.bf16.mxu0 0
      %4536 = vmatpush1.bf16.xpose.msra.mxu0 0
      %4537 = vmatprep.subr.bf16.mxu0 0
      %4538 = vmatpush1.bf16.xpose.msra.mxu0 0
      %4539 = vmatprep.subr.bf16.mxu0 0
      %4540 = vmatpush1.bf16.xpose.msra.mxu0 0
      %4541 = vmatprep.subr.bf16.mxu0 0
      %4542 = vmatpush1.bf16.xpose.msra.mxu0 0
      %4543 = vmatprep.subr.bf16.mxu0 0
      %4544 = vmatpush1.bf16.xpose.msra.mxu0 0
      %4545 = vmatprep.subr.bf16.mxu0 0
      %4546 = vmatpush1.bf16.xpose.msra.mxu0 0
      %4547 = vmatprep.subr.bf16.mxu0 0
      %4548 = vmatpush1.bf16.xpose.msra.mxu0 0
      %4549 = vmatprep.subr.bf16.mxu0 0
      %4550 = vmatpush1.bf16.xpose.msra.mxu0 0
      %4551 = vmatprep.subr.bf16.mxu0 0
      %4552 = vmatpush1.bf16.xpose.msra.mxu0 0
      %4553 = vmatprep.subr.bf16.mxu0 0
      %4554 = vmatpush1.bf16.xpose.msra.mxu0 0
      %4555 = vmatprep.subr.bf16.mxu0 0
      %4556 = vmatpush1.bf16.xpose.msra.mxu0 0
      %4557 = vmatprep.subr.bf16.mxu0 0
      %4558 = vmatpush1.bf16.xpose.msra.mxu0 0
      %4559 = vmatprep.subr.bf16.mxu0 0
      %4560 = vmatpush1.bf16.xpose.msra.mxu0 0
      %4561 = vmatprep.mubr.bf16.mxu0 0
      %4562 = vmatmul.mubr.bf16.gmra.mrb[0].mxu0 %v4524
      %v4563 = vpop.f32.mrb[0].mxu0
      %v4564 = vadd.f32 0.0, %v4563
      %v4565 = vpop.f32.mrb[0].mxu0
      %v4566 = vpop.f32.mrb[0].mxu0
      %v4567 = vpop.f32.mrb[0].mxu0
      %4568 = vdwg.mxu0
      %v4569 = vsel %vm942, %v4564, -inf
      %4570 = vmax.xlane.f32.xlu0 %v4569
      %v4571 = vpop.xlane.xlu0 %4570
      %v4572 = vsub.f32 %v4564, %v4571
      %v4573 = vmul.f32 %v4572, 1.442695
      %v4574 = vpow.pop %v4573
      %v4575 = vsel %vm942, %v4574, 0.0
      %4576 = vadd.xlane.f32.xlu0 %v4575
      %v4577 = vpop.xlane.xlu0 %4576
      %v4578 = vrcp.pop %v4577
      %v4579 = vmul.f32 %v4574, %v4578
      %v4580 = vpack.c.bf16 %v4579, %v4579
      %4581 = vrot.lane.b32.xlu0 %v3859, 80
      %v4582 = vpop.permute.xlu0 %4581
      %v4584 = vsel %vm955, %v4580, 0
      %v4587 = vsel %vm959, %v4582, 0
      %4589 = vmatprep.subr.bf16.mxu0 0
      %4590 = vmatpush1.bf16.msra.mxu0 %v4587
      %4591 = vmatprep.subr.bf16.mxu0 0
      %4592 = vmatpush1.bf16.msra.mxu0 0
      %4593 = vmatprep.subr.bf16.mxu0 0
      %4594 = vmatpush1.bf16.msra.mxu0 0
      %4595 = vmatprep.subr.bf16.mxu0 0
      %4596 = vmatpush1.bf16.msra.mxu0 0
      %4597 = vmatprep.subr.bf16.mxu0 0
      %4598 = vmatpush1.bf16.msra.mxu0 0
      %4599 = vmatprep.subr.bf16.mxu0 0
      %4600 = vmatpush1.bf16.msra.mxu0 0
      %4601 = vmatprep.subr.bf16.mxu0 0
      %4602 = vmatpush1.bf16.msra.mxu0 0
      %4603 = vmatprep.subr.bf16.mxu0 0
      %4604 = vmatpush1.bf16.msra.mxu0 0
      %4605 = vmatprep.subr.bf16.mxu0 0
      %4606 = vmatpush1.bf16.msra.mxu0 0
      %4607 = vmatprep.subr.bf16.mxu0 0
      %4608 = vmatpush1.bf16.msra.mxu0 0
      %4609 = vmatprep.subr.bf16.mxu0 0
      %4610 = vmatpush1.bf16.msra.mxu0 0
      %4611 = vmatprep.subr.bf16.mxu0 0
      %4612 = vmatpush1.bf16.msra.mxu0 0
      %4613 = vmatprep.subr.bf16.mxu0 0
      %4614 = vmatpush1.bf16.msra.mxu0 0
      %4615 = vmatprep.subr.bf16.mxu0 0
      %4616 = vmatpush1.bf16.msra.mxu0 0
      %4617 = vmatprep.subr.bf16.mxu0 0
      %4618 = vmatpush1.bf16.msra.mxu0 0
      %4619 = vmatprep.subr.bf16.mxu0 0
      %4620 = vmatpush1.bf16.msra.mxu0 0
      %4621 = vmatprep.mubr.bf16.mxu0 0
      %4622 = vmatmul.mubr.bf16.gmra.mrb[0].mxu0 %v4584
      %v4623 = vpop.f32.mrb[0].mxu0
      %v4624 = vadd.f32 0.0, %v4623
      %v4625 = vpop.f32.mrb[0].mxu0
      %v4626 = vpop.f32.mrb[0].mxu0
      %v4627 = vpop.f32.mrb[0].mxu0
      %4628 = vdwg.mxu0
      %4629 = vrot.lane.b32.xlu0 %v3857, 72
      %v4630 = vpop.permute.xlu0 %4629
      %4631 = vrot.lane.b32.xlu0 %v3858, 8
      %v4632 = vpop.permute.xlu0 %4631
      %v4634 = vsel %vm895, %v4630, 0
      %v4637 = vsel %vm895, %v4632, 0
      %4639 = vmatprep.subr.bf16.mxu0 0
      %4640 = vmatpush1.bf16.xpose.msra.mxu0 %v4637
      %4641 = vmatprep.subr.bf16.mxu0 0
      %4642 = vmatpush1.bf16.xpose.msra.mxu0 0
      %4643 = vmatprep.subr.bf16.mxu0 0
      %4644 = vmatpush1.bf16.xpose.msra.mxu0 0
      %4645 = vmatprep.subr.bf16.mxu0 0
      %4646 = vmatpush1.bf16.xpose.msra.mxu0 0
      %4647 = vmatprep.subr.bf16.mxu0 0
      %4648 = vmatpush1.bf16.xpose.msra.mxu0 0
      %4649 = vmatprep.subr.bf16.mxu0 0
      %4650 = vmatpush1.bf16.xpose.msra.mxu0 0
      %4651 = vmatprep.subr.bf16.mxu0 0
      %4652 = vmatpush1.bf16.xpose.msra.mxu0 0
      %4653 = vmatprep.subr.bf16.mxu0 0
      %4654 = vmatpush1.bf16.xpose.msra.mxu0 0
      %4655 = vmatprep.subr.bf16.mxu0 0
      %4656 = vmatpush1.bf16.xpose.msra.mxu0 0
      %4657 = vmatprep.subr.bf16.mxu0 0
      %4658 = vmatpush1.bf16.xpose.msra.mxu0 0
      %4659 = vmatprep.subr.bf16.mxu0 0
      %4660 = vmatpush1.bf16.xpose.msra.mxu0 0
      %4661 = vmatprep.subr.bf16.mxu0 0
      %4662 = vmatpush1.bf16.xpose.msra.mxu0 0
      %4663 = vmatprep.subr.bf16.mxu0 0
      %4664 = vmatpush1.bf16.xpose.msra.mxu0 0
      %4665 = vmatprep.subr.bf16.mxu0 0
      %4666 = vmatpush1.bf16.xpose.msra.mxu0 0
      %4667 = vmatprep.subr.bf16.mxu0 0
      %4668 = vmatpush1.bf16.xpose.msra.mxu0 0
      %4669 = vmatprep.subr.bf16.mxu0 0
      %4670 = vmatpush1.bf16.xpose.msra.mxu0 0
      %4671 = vmatprep.mubr.bf16.mxu0 0
      %4672 = vmatmul.mubr.bf16.gmra.mrb[0].mxu0 %v4634
      %v4673 = vpop.f32.mrb[0].mxu0
      %v4674 = vadd.f32 0.0, %v4673
      %v4675 = vpop.f32.mrb[0].mxu0
      %v4676 = vpop.f32.mrb[0].mxu0
      %v4677 = vpop.f32.mrb[0].mxu0
      %4678 = vdwg.mxu0
      %v4679 = vsel %vm942, %v4674, -inf
      %4680 = vmax.xlane.f32.xlu0 %v4679
      %v4681 = vpop.xlane.xlu0 %4680
      %v4682 = vsub.f32 %v4674, %v4681
      %v4683 = vmul.f32 %v4682, 1.442695
      %v4684 = vpow.pop %v4683
      %v4685 = vsel %vm942, %v4684, 0.0
      %4686 = vadd.xlane.f32.xlu0 %v4685
      %v4687 = vpop.xlane.xlu0 %4686
      %v4688 = vrcp.pop %v4687
      %v4689 = vmul.f32 %v4684, %v4688
      %v4690 = vpack.c.bf16 %v4689, %v4689
      %4691 = vrot.lane.b32.xlu0 %v3859, 72
      %v4692 = vpop.permute.xlu0 %4691
      %v4694 = vsel %vm955, %v4690, 0
      %v4697 = vsel %vm959, %v4692, 0
      %4699 = vmatprep.subr.bf16.mxu0 0
      %4700 = vmatpush1.bf16.msra.mxu0 %v4697
      %4701 = vmatprep.subr.bf16.mxu0 0
      %4702 = vmatpush1.bf16.msra.mxu0 0
      %4703 = vmatprep.subr.bf16.mxu0 0
      %4704 = vmatpush1.bf16.msra.mxu0 0
      %4705 = vmatprep.subr.bf16.mxu0 0
      %4706 = vmatpush1.bf16.msra.mxu0 0
      %4707 = vmatprep.subr.bf16.mxu0 0
      %4708 = vmatpush1.bf16.msra.mxu0 0
      %4709 = vmatprep.subr.bf16.mxu0 0
      %4710 = vmatpush1.bf16.msra.mxu0 0
      %4711 = vmatprep.subr.bf16.mxu0 0
      %4712 = vmatpush1.bf16.msra.mxu0 0
      %4713 = vmatprep.subr.bf16.mxu0 0
      %4714 = vmatpush1.bf16.msra.mxu0 0
      %4715 = vmatprep.subr.bf16.mxu0 0
      %4716 = vmatpush1.bf16.msra.mxu0 0
      %4717 = vmatprep.subr.bf16.mxu0 0
      %4718 = vmatpush1.bf16.msra.mxu0 0
      %4719 = vmatprep.subr.bf16.mxu0 0
      %4720 = vmatpush1.bf16.msra.mxu0 0
      %4721 = vmatprep.subr.bf16.mxu0 0
      %4722 = vmatpush1.bf16.msra.mxu0 0
      %4723 = vmatprep.subr.bf16.mxu0 0
      %4724 = vmatpush1.bf16.msra.mxu0 0
      %4725 = vmatprep.subr.bf16.mxu0 0
      %4726 = vmatpush1.bf16.msra.mxu0 0
      %4727 = vmatprep.subr.bf16.mxu0 0
      %4728 = vmatpush1.bf16.msra.mxu0 0
      %4729 = vmatprep.subr.bf16.mxu0 0
      %4730 = vmatpush1.bf16.msra.mxu0 0
      %4731 = vmatprep.mubr.bf16.mxu0 0
      %4732 = vmatmul.mubr.bf16.gmra.mrb[0].mxu0 %v4694
      %v4733 = vpop.f32.mrb[0].mxu0
      %v4734 = vadd.f32 0.0, %v4733
      %v4735 = vpop.f32.mrb[0].mxu0
      %v4736 = vpop.f32.mrb[0].mxu0
      %v4737 = vpop.f32.mrb[0].mxu0
      %4738 = vdwg.mxu0
      %4740 = vrot.lane.b32.xlu0 %v4074, 8
      %v4741 = vpop.permute.xlu0 %4740
      %4744 = vrot.lane.b32.xlu0 %v4184, 16
      %v4745 = vpop.permute.xlu0 %4744
      %4748 = vrot.lane.b32.xlu0 %v4294, 24
      %v4749 = vpop.permute.xlu0 %4748
      %4752 = vrot.lane.b32.xlu0 %v4404, 32
      %v4753 = vpop.permute.xlu0 %4752
      %4756 = vrot.lane.b32.xlu0 %v4514, 40
      %v4757 = vpop.permute.xlu0 %4756
      %4760 = vrot.lane.b32.xlu0 %v4624, 48
      %v4761 = vpop.permute.xlu0 %4760
      %4764 = vrot.lane.b32.xlu0 %v4734, 56
      %v4765 = vpop.permute.xlu0 %4764
      %v4767 = vsel %vm895, %v3962, %v4741
      %v4768 = vsel %vm1804, %v4767, %v4745
      %v4769 = vsel %vm1806, %v4768, %v4749
      %v4770 = vsel %vm1808, %v4769, %v4753
      %v4771 = vsel %vm1810, %v4770, %v4757
      %v4772 = vsel %vm1812, %v4771, %v4761
      %v4773 = vsel %vm1814, %v4772, %v4765
      %v4774 = vpack.c.bf16 %v4773, %v4773
      %v4776 = vsel %vm843, %v4774, 0
      %4778 = vmatprep.subr.bf16.mxu0 0
      %4779 = vmatpush1.bf16.msra.mxu0 %v1839
      %4780 = vmatprep.subr.bf16.mxu0 0
      %4781 = vmatpush1.bf16.msra.mxu0 %v1840
      %4782 = vmatprep.subr.bf16.mxu0 0
      %4783 = vmatpush1.bf16.msra.mxu0 %v1841
      %4784 = vmatprep.subr.bf16.mxu0 0
      %4785 = vmatpush1.bf16.msra.mxu0 %v1842
      %4786 = vmatprep.subr.bf16.mxu0 0
      %4787 = vmatpush1.bf16.msra.mxu0 0
      %4788 = vmatprep.subr.bf16.mxu0 0
      %4789 = vmatpush1.bf16.msra.mxu0 0
      %4790 = vmatprep.subr.bf16.mxu0 0
      %4791 = vmatpush1.bf16.msra.mxu0 0
      %4792 = vmatprep.subr.bf16.mxu0 0
      %4793 = vmatpush1.bf16.msra.mxu0 0
      %4794 = vmatprep.subr.bf16.mxu0 0
      %4795 = vmatpush1.bf16.msra.mxu0 0
      %4796 = vmatprep.subr.bf16.mxu0 0
      %4797 = vmatpush1.bf16.msra.mxu0 0
      %4798 = vmatprep.subr.bf16.mxu0 0
      %4799 = vmatpush1.bf16.msra.mxu0 0
      %4800 = vmatprep.subr.bf16.mxu0 0
      %4801 = vmatpush1.bf16.msra.mxu0 0
      %4802 = vmatprep.subr.bf16.mxu0 0
      %4803 = vmatpush1.bf16.msra.mxu0 0
      %4804 = vmatprep.subr.bf16.mxu0 0
      %4805 = vmatpush1.bf16.msra.mxu0 0
      %4806 = vmatprep.subr.bf16.mxu0 0
      %4807 = vmatpush1.bf16.msra.mxu0 0
      %4808 = vmatprep.subr.bf16.mxu0 0
      %4809 = vmatpush1.bf16.msra.mxu0 0
      %4810 = vmatprep.mubr.bf16.mxu0 0
      %4811 = vmatmul.mubr.bf16.gmra.mrb[0].mxu0 %v4776
      %v4812 = vpop.f32.mrb[0].mxu0
      %v4813 = vadd.f32 %v1821, %v4812
      %v4814 = vpop.f32.mrb[0].mxu0
      %v4815 = vpop.f32.mrb[0].mxu0
      %v4816 = vpop.f32.mrb[0].mxu0
      %4817 = vdwg.mxu0
      %v4818 = vadd.f32 %v3810, %v4813
      %v4819 = vsel %vm1891, %v4818, 0.0
      %4820 = vadd.xlane.f32.xlu0 %v4819
      %v4821 = vpop.xlane.xlu0 %4820
      %v4822 = vmul.f32 %v4821, %v1895
      %v4823 = vsub.f32 %v4818, %v4822
      %v4824 = vmul.f32 %v4823, %v4823
      %v4825 = vsel %vm1891, %v4824, 0.0
      %4826 = vadd.xlane.f32.xlu0 %v4825
      %v4827 = vpop.xlane.xlu0 %4826
      %v4828 = vmul.f32 %v4827, %v1895
      %v4829 = vadd.f32 %v4828, 1e-05
      %v4830 = vrsqrt.pop %v4829
      %v4831 = vmul.f32 %v4823, %v4830
      %v4832 = vmul.f32 %v4831, %v1910
      %v4833 = vadd.f32 %v4832, %v1917
      %v4834 = vpack.c.bf16 %v4833, %v4833
      %v4836 = vsel %vm843, %v4834, 0
      %4838 = vmatprep.subr.bf16.mxu0 %v2196
      %4839 = vmatpush1.bf16.msra.mxu0 %v2195
      %4840 = vmatprep.subr.bf16.mxu0 %v2212
      %4841 = vmatpush1.bf16.msra.mxu0 %v2211
      %4842 = vmatprep.subr.bf16.mxu0 %v2228
      %4843 = vmatpush1.bf16.msra.mxu0 %v2227
      %4844 = vmatprep.subr.bf16.mxu0 %v2244
      %4845 = vmatpush1.bf16.msra.mxu0 %v2243
      %4846 = vmatprep.subr.bf16.mxu0 0
      %4847 = vmatpush1.bf16.msra.mxu0 0
      %4848 = vmatprep.subr.bf16.mxu0 0
      %4849 = vmatpush1.bf16.msra.mxu0 0
      %4850 = vmatprep.subr.bf16.mxu0 0
      %4851 = vmatpush1.bf16.msra.mxu0 0
      %4852 = vmatprep.subr.bf16.mxu0 0
      %4853 = vmatpush1.bf16.msra.mxu0 0
      %4854 = vmatprep.subr.bf16.mxu0 0
      %4855 = vmatpush1.bf16.msra.mxu0 0
      %4856 = vmatprep.subr.bf16.mxu0 0
      %4857 = vmatpush1.bf16.msra.mxu0 0
      %4858 = vmatprep.subr.bf16.mxu0 0
      %4859 = vmatpush1.bf16.msra.mxu0 0
      %4860 = vmatprep.subr.bf16.mxu0 0
      %4861 = vmatpush1.bf16.msra.mxu0 0
      %4862 = vmatprep.subr.bf16.mxu0 0
      %4863 = vmatpush1.bf16.msra.mxu0 0
      %4864 = vmatprep.subr.bf16.mxu0 0
      %4865 = vmatpush1.bf16.msra.mxu0 0
      %4866 = vmatprep.subr.bf16.mxu0 0
      %4867 = vmatpush1.bf16.msra.mxu0 0
      %4868 = vmatprep.subr.bf16.mxu0 0
      %4869 = vmatpush1.bf16.msra.mxu0 0
      %4870 = vmatprep.mubr.bf16.mxu0 0
      %4871 = vmatmul.mubr.bf16.gmra.mrb[0].mxu0 %v4836
      %v4872 = vpop.f32.mrb[0].mxu0
      %v4873 = vadd.f32 %v1926, %v4872
      %v4874 = vpop.f32.mrb[0].mxu0
      %v4875 = vadd.f32 %v1930, %v4874
      %v4876 = vpop.f32.mrb[0].mxu0
      %v4877 = vpop.f32.mrb[0].mxu0
      %4878 = vdwg.mxu0
      %4879 = vmatprep.subr.bf16.mxu0 %v2198
      %4880 = vmatpush1.bf16.msra.mxu0 %v2197
      %4881 = vmatprep.subr.bf16.mxu0 %v2214
      %4882 = vmatpush1.bf16.msra.mxu0 %v2213
      %4883 = vmatprep.subr.bf16.mxu0 %v2230
      %4884 = vmatpush1.bf16.msra.mxu0 %v2229
      %4885 = vmatprep.subr.bf16.mxu0 %v2246
      %4886 = vmatpush1.bf16.msra.mxu0 %v2245
      %4887 = vmatprep.subr.bf16.mxu0 0
      %4888 = vmatpush1.bf16.msra.mxu0 0
      %4889 = vmatprep.subr.bf16.mxu0 0
      %4890 = vmatpush1.bf16.msra.mxu0 0
      %4891 = vmatprep.subr.bf16.mxu0 0
      %4892 = vmatpush1.bf16.msra.mxu0 0
      %4893 = vmatprep.subr.bf16.mxu0 0
      %4894 = vmatpush1.bf16.msra.mxu0 0
      %4895 = vmatprep.subr.bf16.mxu0 0
      %4896 = vmatpush1.bf16.msra.mxu0 0
      %4897 = vmatprep.subr.bf16.mxu0 0
      %4898 = vmatpush1.bf16.msra.mxu0 0
      %4899 = vmatprep.subr.bf16.mxu0 0
      %4900 = vmatpush1.bf16.msra.mxu0 0
      %4901 = vmatprep.subr.bf16.mxu0 0
      %4902 = vmatpush1.bf16.msra.mxu0 0
      %4903 = vmatprep.subr.bf16.mxu0 0
      %4904 = vmatpush1.bf16.msra.mxu0 0
      %4905 = vmatprep.subr.bf16.mxu0 0
      %4906 = vmatpush1.bf16.msra.mxu0 0
      %4907 = vmatprep.subr.bf16.mxu0 0
      %4908 = vmatpush1.bf16.msra.mxu0 0
      %4909 = vmatprep.subr.bf16.mxu0 0
      %4910 = vmatpush1.bf16.msra.mxu0 0
      %4911 = vmatprep.mubr.bf16.mxu0 0
      %4912 = vmatmul.mubr.bf16.gmra.mrb[0].mxu0 %v4836
      %v4913 = vpop.f32.mrb[0].mxu0
      %v4914 = vadd.f32 %v1934, %v4913
      %v4915 = vpop.f32.mrb[0].mxu0
      %v4916 = vadd.f32 %v1938, %v4915
      %v4917 = vpop.f32.mrb[0].mxu0
      %v4918 = vpop.f32.mrb[0].mxu0
      %4919 = vdwg.mxu0
      %4920 = vmatprep.subr.bf16.mxu0 %v2200
      %4921 = vmatpush1.bf16.msra.mxu0 %v2199
      %4922 = vmatprep.subr.bf16.mxu0 %v2216
      %4923 = vmatpush1.bf16.msra.mxu0 %v2215
      %4924 = vmatprep.subr.bf16.mxu0 %v2232
      %4925 = vmatpush1.bf16.msra.mxu0 %v2231
      %4926 = vmatprep.subr.bf16.mxu0 %v2248
      %4927 = vmatpush1.bf16.msra.mxu0 %v2247
      %4928 = vmatprep.subr.bf16.mxu0 0
      %4929 = vmatpush1.bf16.msra.mxu0 0
      %4930 = vmatprep.subr.bf16.mxu0 0
      %4931 = vmatpush1.bf16.msra.mxu0 0
      %4932 = vmatprep.subr.bf16.mxu0 0
      %4933 = vmatpush1.bf16.msra.mxu0 0
      %4934 = vmatprep.subr.bf16.mxu0 0
      %4935 = vmatpush1.bf16.msra.mxu0 0
      %4936 = vmatprep.subr.bf16.mxu0 0
      %4937 = vmatpush1.bf16.msra.mxu0 0
      %4938 = vmatprep.subr.bf16.mxu0 0
      %4939 = vmatpush1.bf16.msra.mxu0 0
      %4940 = vmatprep.subr.bf16.mxu0 0
      %4941 = vmatpush1.bf16.msra.mxu0 0
      %4942 = vmatprep.subr.bf16.mxu0 0
      %4943 = vmatpush1.bf16.msra.mxu0 0
      %4944 = vmatprep.subr.bf16.mxu0 0
      %4945 = vmatpush1.bf16.msra.mxu0 0
      %4946 = vmatprep.subr.bf16.mxu0 0
      %4947 = vmatpush1.bf16.msra.mxu0 0
      %4948 = vmatprep.subr.bf16.mxu0 0
      %4949 = vmatpush1.bf16.msra.mxu0 0
      %4950 = vmatprep.subr.bf16.mxu0 0
      %4951 = vmatpush1.bf16.msra.mxu0 0
      %4952 = vmatprep.mubr.bf16.mxu0 0
      %4953 = vmatmul.mubr.bf16.gmra.mrb[0].mxu0 %v4836
      %v4954 = vpop.f32.mrb[0].mxu0
      %v4955 = vadd.f32 %v1942, %v4954
      %v4956 = vpop.f32.mrb[0].mxu0
      %v4957 = vadd.f32 %v1946, %v4956
      %v4958 = vpop.f32.mrb[0].mxu0
      %v4959 = vpop.f32.mrb[0].mxu0
      %4960 = vdwg.mxu0
      %4961 = vmatprep.subr.bf16.mxu0 %v2202
      %4962 = vmatpush1.bf16.msra.mxu0 %v2201
      %4963 = vmatprep.subr.bf16.mxu0 %v2218
      %4964 = vmatpush1.bf16.msra.mxu0 %v2217
      %4965 = vmatprep.subr.bf16.mxu0 %v2234
      %4966 = vmatpush1.bf16.msra.mxu0 %v2233
      %4967 = vmatprep.subr.bf16.mxu0 %v2250
      %4968 = vmatpush1.bf16.msra.mxu0 %v2249
      %4969 = vmatprep.subr.bf16.mxu0 0
      %4970 = vmatpush1.bf16.msra.mxu0 0
      %4971 = vmatprep.subr.bf16.mxu0 0
      %4972 = vmatpush1.bf16.msra.mxu0 0
      %4973 = vmatprep.subr.bf16.mxu0 0
      %4974 = vmatpush1.bf16.msra.mxu0 0
      %4975 = vmatprep.subr.bf16.mxu0 0
      %4976 = vmatpush1.bf16.msra.mxu0 0
      %4977 = vmatprep.subr.bf16.mxu0 0
      %4978 = vmatpush1.bf16.msra.mxu0 0
      %4979 = vmatprep.subr.bf16.mxu0 0
      %4980 = vmatpush1.bf16.msra.mxu0 0
      %4981 = vmatprep.subr.bf16.mxu0 0
      %4982 = vmatpush1.bf16.msra.mxu0 0
      %4983 = vmatprep.subr.bf16.mxu0 0
      %4984 = vmatpush1.bf16.msra.mxu0 0
      %4985 = vmatprep.subr.bf16.mxu0 0
      %4986 = vmatpush1.bf16.msra.mxu0 0
      %4987 = vmatprep.subr.bf16.mxu0 0
      %4988 = vmatpush1.bf16.msra.mxu0 0
      %4989 = vmatprep.subr.bf16.mxu0 0
      %4990 = vmatpush1.bf16.msra.mxu0 0
      %4991 = vmatprep.subr.bf16.mxu0 0
      %4992 = vmatpush1.bf16.msra.mxu0 0
      %4993 = vmatprep.mubr.bf16.mxu0 0
      %4994 = vmatmul.mubr.bf16.gmra.mrb[0].mxu0 %v4836
      %v4995 = vpop.f32.mrb[0].mxu0
      %v4996 = vadd.f32 %v1950, %v4995
      %v4997 = vpop.f32.mrb[0].mxu0
      %v4998 = vadd.f32 %v1954, %v4997
      %v4999 = vpop.f32.mrb[0].mxu0
      %v5000 = vpop.f32.mrb[0].mxu0
      %5001 = vdwg.mxu0
      %5002 = vmatprep.subr.bf16.mxu0 %v2204
      %5003 = vmatpush1.bf16.msra.mxu0 %v2203
      %5004 = vmatprep.subr.bf16.mxu0 %v2220
      %5005 = vmatpush1.bf16.msra.mxu0 %v2219
      %5006 = vmatprep.subr.bf16.mxu0 %v2236
      %5007 = vmatpush1.bf16.msra.mxu0 %v2235
      %5008 = vmatprep.subr.bf16.mxu0 %v2252
      %5009 = vmatpush1.bf16.msra.mxu0 %v2251
      %5010 = vmatprep.subr.bf16.mxu0 0
      %5011 = vmatpush1.bf16.msra.mxu0 0
      %5012 = vmatprep.subr.bf16.mxu0 0
      %5013 = vmatpush1.bf16.msra.mxu0 0
      %5014 = vmatprep.subr.bf16.mxu0 0
      %5015 = vmatpush1.bf16.msra.mxu0 0
      %5016 = vmatprep.subr.bf16.mxu0 0
      %5017 = vmatpush1.bf16.msra.mxu0 0
      %5018 = vmatprep.subr.bf16.mxu0 0
      %5019 = vmatpush1.bf16.msra.mxu0 0
      %5020 = vmatprep.subr.bf16.mxu0 0
      %5021 = vmatpush1.bf16.msra.mxu0 0
      %5022 = vmatprep.subr.bf16.mxu0 0
      %5023 = vmatpush1.bf16.msra.mxu0 0
      %5024 = vmatprep.subr.bf16.mxu0 0
      %5025 = vmatpush1.bf16.msra.mxu0 0
      %5026 = vmatprep.subr.bf16.mxu0 0
      %5027 = vmatpush1.bf16.msra.mxu0 0
      %5028 = vmatprep.subr.bf16.mxu0 0
      %5029 = vmatpush1.bf16.msra.mxu0 0
      %5030 = vmatprep.subr.bf16.mxu0 0
      %5031 = vmatpush1.bf16.msra.mxu0 0
      %5032 = vmatprep.subr.bf16.mxu0 0
      %5033 = vmatpush1.bf16.msra.mxu0 0
      %5034 = vmatprep.mubr.bf16.mxu0 0
      %5035 = vmatmul.mubr.bf16.gmra.mrb[0].mxu0 %v4836
      %v5036 = vpop.f32.mrb[0].mxu0
      %v5037 = vadd.f32 %v1958, %v5036
      %v5038 = vpop.f32.mrb[0].mxu0
      %v5039 = vadd.f32 %v1962, %v5038
      %v5040 = vpop.f32.mrb[0].mxu0
      %v5041 = vpop.f32.mrb[0].mxu0
      %5042 = vdwg.mxu0
      %5043 = vmatprep.subr.bf16.mxu0 %v2206
      %5044 = vmatpush1.bf16.msra.mxu0 %v2205
      %5045 = vmatprep.subr.bf16.mxu0 %v2222
      %5046 = vmatpush1.bf16.msra.mxu0 %v2221
      %5047 = vmatprep.subr.bf16.mxu0 %v2238
      %5048 = vmatpush1.bf16.msra.mxu0 %v2237
      %5049 = vmatprep.subr.bf16.mxu0 %v2254
      %5050 = vmatpush1.bf16.msra.mxu0 %v2253
      %5051 = vmatprep.subr.bf16.mxu0 0
      %5052 = vmatpush1.bf16.msra.mxu0 0
      %5053 = vmatprep.subr.bf16.mxu0 0
      %5054 = vmatpush1.bf16.msra.mxu0 0
      %5055 = vmatprep.subr.bf16.mxu0 0
      %5056 = vmatpush1.bf16.msra.mxu0 0
      %5057 = vmatprep.subr.bf16.mxu0 0
      %5058 = vmatpush1.bf16.msra.mxu0 0
      %5059 = vmatprep.subr.bf16.mxu0 0
      %5060 = vmatpush1.bf16.msra.mxu0 0
      %5061 = vmatprep.subr.bf16.mxu0 0
      %5062 = vmatpush1.bf16.msra.mxu0 0
      %5063 = vmatprep.subr.bf16.mxu0 0
      %5064 = vmatpush1.bf16.msra.mxu0 0
      %5065 = vmatprep.subr.bf16.mxu0 0
      %5066 = vmatpush1.bf16.msra.mxu0 0
      %5067 = vmatprep.subr.bf16.mxu0 0
      %5068 = vmatpush1.bf16.msra.mxu0 0
      %5069 = vmatprep.subr.bf16.mxu0 0
      %5070 = vmatpush1.bf16.msra.mxu0 0
      %5071 = vmatprep.subr.bf16.mxu0 0
      %5072 = vmatpush1.bf16.msra.mxu0 0
      %5073 = vmatprep.subr.bf16.mxu0 0
      %5074 = vmatpush1.bf16.msra.mxu0 0
      %5075 = vmatprep.mubr.bf16.mxu0 0
      %5076 = vmatmul.mubr.bf16.gmra.mrb[0].mxu0 %v4836
      %v5077 = vpop.f32.mrb[0].mxu0
      %v5078 = vadd.f32 %v1966, %v5077
      %v5079 = vpop.f32.mrb[0].mxu0
      %v5080 = vadd.f32 %v1970, %v5079
      %v5081 = vpop.f32.mrb[0].mxu0
      %v5082 = vpop.f32.mrb[0].mxu0
      %5083 = vdwg.mxu0
      %5084 = vmatprep.subr.bf16.mxu0 %v2208
      %5085 = vmatpush1.bf16.msra.mxu0 %v2207
      %5086 = vmatprep.subr.bf16.mxu0 %v2224
      %5087 = vmatpush1.bf16.msra.mxu0 %v2223
      %5088 = vmatprep.subr.bf16.mxu0 %v2240
      %5089 = vmatpush1.bf16.msra.mxu0 %v2239
      %5090 = vmatprep.subr.bf16.mxu0 %v2256
      %5091 = vmatpush1.bf16.msra.mxu0 %v2255
      %5092 = vmatprep.subr.bf16.mxu0 0
      %5093 = vmatpush1.bf16.msra.mxu0 0
      %5094 = vmatprep.subr.bf16.mxu0 0
      %5095 = vmatpush1.bf16.msra.mxu0 0
      %5096 = vmatprep.subr.bf16.mxu0 0
      %5097 = vmatpush1.bf16.msra.mxu0 0
      %5098 = vmatprep.subr.bf16.mxu0 0
      %5099 = vmatpush1.bf16.msra.mxu0 0
      %5100 = vmatprep.subr.bf16.mxu0 0
      %5101 = vmatpush1.bf16.msra.mxu0 0
      %5102 = vmatprep.subr.bf16.mxu0 0
      %5103 = vmatpush1.bf16.msra.mxu0 0
      %5104 = vmatprep.subr.bf16.mxu0 0
      %5105 = vmatpush1.bf16.msra.mxu0 0
      %5106 = vmatprep.subr.bf16.mxu0 0
      %5107 = vmatpush1.bf16.msra.mxu0 0
      %5108 = vmatprep.subr.bf16.mxu0 0
      %5109 = vmatpush1.bf16.msra.mxu0 0
      %5110 = vmatprep.subr.bf16.mxu0 0
      %5111 = vmatpush1.bf16.msra.mxu0 0
      %5112 = vmatprep.subr.bf16.mxu0 0
      %5113 = vmatpush1.bf16.msra.mxu0 0
      %5114 = vmatprep.subr.bf16.mxu0 0
      %5115 = vmatpush1.bf16.msra.mxu0 0
      %5116 = vmatprep.mubr.bf16.mxu0 0
      %5117 = vmatmul.mubr.bf16.gmra.mrb[0].mxu0 %v4836
      %v5118 = vpop.f32.mrb[0].mxu0
      %v5119 = vadd.f32 %v1974, %v5118
      %v5120 = vpop.f32.mrb[0].mxu0
      %v5121 = vadd.f32 %v1978, %v5120
      %v5122 = vpop.f32.mrb[0].mxu0
      %v5123 = vpop.f32.mrb[0].mxu0
      %5124 = vdwg.mxu0
      %5125 = vmatprep.subr.bf16.mxu0 %v2210
      %5126 = vmatpush1.bf16.msra.mxu0 %v2209
      %5127 = vmatprep.subr.bf16.mxu0 %v2226
      %5128 = vmatpush1.bf16.msra.mxu0 %v2225
      %5129 = vmatprep.subr.bf16.mxu0 %v2242
      %5130 = vmatpush1.bf16.msra.mxu0 %v2241
      %5131 = vmatprep.subr.bf16.mxu0 %v2258
      %5132 = vmatpush1.bf16.msra.mxu0 %v2257
      %5133 = vmatprep.subr.bf16.mxu0 0
      %5134 = vmatpush1.bf16.msra.mxu0 0
      %5135 = vmatprep.subr.bf16.mxu0 0
      %5136 = vmatpush1.bf16.msra.mxu0 0
      %5137 = vmatprep.subr.bf16.mxu0 0
      %5138 = vmatpush1.bf16.msra.mxu0 0
      %5139 = vmatprep.subr.bf16.mxu0 0
      %5140 = vmatpush1.bf16.msra.mxu0 0
      %5141 = vmatprep.subr.bf16.mxu0 0
      %5142 = vmatpush1.bf16.msra.mxu0 0
      %5143 = vmatprep.subr.bf16.mxu0 0
      %5144 = vmatpush1.bf16.msra.mxu0 0
      %5145 = vmatprep.subr.bf16.mxu0 0
      %5146 = vmatpush1.bf16.msra.mxu0 0
      %5147 = vmatprep.subr.bf16.mxu0 0
      %5148 = vmatpush1.bf16.msra.mxu0 0
      %5149 = vmatprep.subr.bf16.mxu0 0
      %5150 = vmatpush1.bf16.msra.mxu0 0
      %5151 = vmatprep.subr.bf16.mxu0 0
      %5152 = vmatpush1.bf16.msra.mxu0 0
      %5153 = vmatprep.subr.bf16.mxu0 0
      %5154 = vmatpush1.bf16.msra.mxu0 0
      %5155 = vmatprep.subr.bf16.mxu0 0
      %5156 = vmatpush1.bf16.msra.mxu0 0
      %5157 = vmatprep.mubr.bf16.mxu0 0
      %5158 = vmatmul.mubr.bf16.gmra.mrb[0].mxu0 %v4836
      %v5159 = vpop.f32.mrb[0].mxu0
      %v5160 = vadd.f32 %v1982, %v5159
      %v5161 = vpop.f32.mrb[0].mxu0
      %v5162 = vadd.f32 %v1986, %v5161
      %v5163 = vpop.f32.mrb[0].mxu0
      %v5164 = vpop.f32.mrb[0].mxu0
      %5165 = vdwg.mxu0
      %v5166 = vmax.f32 %v4873, 0.0
      %v5167 = vmax.f32 %v4875, 0.0
      %v5168 = vmax.f32 %v4914, 0.0
      %v5169 = vmax.f32 %v4916, 0.0
      %v5170 = vmax.f32 %v4955, 0.0
      %v5171 = vmax.f32 %v4957, 0.0
      %v5172 = vmax.f32 %v4996, 0.0
      %v5173 = vmax.f32 %v4998, 0.0
      %v5174 = vmax.f32 %v5037, 0.0
      %v5175 = vmax.f32 %v5039, 0.0
      %v5176 = vmax.f32 %v5078, 0.0
      %v5177 = vmax.f32 %v5080, 0.0
      %v5178 = vmax.f32 %v5119, 0.0
      %v5179 = vmax.f32 %v5121, 0.0
      %v5180 = vmax.f32 %v5160, 0.0
      %v5181 = vmax.f32 %v5162, 0.0
      %v5182 = vpack.c.bf16 %v5166, %v5166
      %v5183 = vpack.c.bf16 %v5167, %v5167
      %v5184 = vpack.c.bf16 %v5168, %v5168
      %v5185 = vpack.c.bf16 %v5169, %v5169
      %v5186 = vpack.c.bf16 %v5170, %v5170
      %v5187 = vpack.c.bf16 %v5171, %v5171
      %v5188 = vpack.c.bf16 %v5172, %v5172
      %v5189 = vpack.c.bf16 %v5173, %v5173
      %v5190 = vpack.c.bf16 %v5174, %v5174
      %v5191 = vpack.c.bf16 %v5175, %v5175
      %v5192 = vpack.c.bf16 %v5176, %v5176
      %v5193 = vpack.c.bf16 %v5177, %v5177
      %v5194 = vpack.c.bf16 %v5178, %v5178
      %v5195 = vpack.c.bf16 %v5179, %v5179
      %v5196 = vpack.c.bf16 %v5180, %v5180
      %v5197 = vpack.c.bf16 %v5181, %v5181
      %5198 = vmatprep.subr.bf16.mxu0 0
      %5199 = vmatpush1.bf16.msra.mxu0 %v3204
      %5200 = vmatprep.subr.bf16.mxu0 0
      %5201 = vmatpush1.bf16.msra.mxu0 %v3205
      %5202 = vmatprep.subr.bf16.mxu0 0
      %5203 = vmatpush1.bf16.msra.mxu0 %v3206
      %5204 = vmatprep.subr.bf16.mxu0 0
      %5205 = vmatpush1.bf16.msra.mxu0 %v3207
      %5206 = vmatprep.subr.bf16.mxu0 0
      %5207 = vmatpush1.bf16.msra.mxu0 %v3208
      %5208 = vmatprep.subr.bf16.mxu0 0
      %5209 = vmatpush1.bf16.msra.mxu0 %v3209
      %5210 = vmatprep.subr.bf16.mxu0 0
      %5211 = vmatpush1.bf16.msra.mxu0 %v3210
      %5212 = vmatprep.subr.bf16.mxu0 0
      %5213 = vmatpush1.bf16.msra.mxu0 %v3211
      %5214 = vmatprep.subr.bf16.mxu0 0
      %5215 = vmatpush1.bf16.msra.mxu0 %v3212
      %5216 = vmatprep.subr.bf16.mxu0 0
      %5217 = vmatpush1.bf16.msra.mxu0 %v3213
      %5218 = vmatprep.subr.bf16.mxu0 0
      %5219 = vmatpush1.bf16.msra.mxu0 %v3214
      %5220 = vmatprep.subr.bf16.mxu0 0
      %5221 = vmatpush1.bf16.msra.mxu0 %v3215
      %5222 = vmatprep.subr.bf16.mxu0 0
      %5223 = vmatpush1.bf16.msra.mxu0 %v3216
      %5224 = vmatprep.subr.bf16.mxu0 0
      %5225 = vmatpush1.bf16.msra.mxu0 %v3217
      %5226 = vmatprep.subr.bf16.mxu0 0
      %5227 = vmatpush1.bf16.msra.mxu0 %v3218
      %5228 = vmatprep.subr.bf16.mxu0 0
      %5229 = vmatpush1.bf16.msra.mxu0 %v3219
      %5230 = vmatprep.mubr.bf16.mxu0 %v5183
      %5231 = vmatmul.mubr.bf16.gmra.mrb[0].mxu0 %v5182
      %v5232 = vpop.f32.mrb[0].mxu0
      %v5233 = vadd.f32 %v2690, %v5232
      %v5234 = vpop.f32.mrb[0].mxu0
      %v5235 = vpop.f32.mrb[0].mxu0
      %v5236 = vpop.f32.mrb[0].mxu0
      %5237 = vdwg.mxu0
      %5238 = vmatprep.subr.bf16.mxu0 0
      %5239 = vmatpush1.bf16.msra.mxu0 %v3220
      %5240 = vmatprep.subr.bf16.mxu0 0
      %5241 = vmatpush1.bf16.msra.mxu0 %v3221
      %5242 = vmatprep.subr.bf16.mxu0 0
      %5243 = vmatpush1.bf16.msra.mxu0 %v3222
      %5244 = vmatprep.subr.bf16.mxu0 0
      %5245 = vmatpush1.bf16.msra.mxu0 %v3223
      %5246 = vmatprep.subr.bf16.mxu0 0
      %5247 = vmatpush1.bf16.msra.mxu0 %v3224
      %5248 = vmatprep.subr.bf16.mxu0 0
      %5249 = vmatpush1.bf16.msra.mxu0 %v3225
      %5250 = vmatprep.subr.bf16.mxu0 0
      %5251 = vmatpush1.bf16.msra.mxu0 %v3226
      %5252 = vmatprep.subr.bf16.mxu0 0
      %5253 = vmatpush1.bf16.msra.mxu0 %v3227
      %5254 = vmatprep.subr.bf16.mxu0 0
      %5255 = vmatpush1.bf16.msra.mxu0 %v3228
      %5256 = vmatprep.subr.bf16.mxu0 0
      %5257 = vmatpush1.bf16.msra.mxu0 %v3229
      %5258 = vmatprep.subr.bf16.mxu0 0
      %5259 = vmatpush1.bf16.msra.mxu0 %v3230
      %5260 = vmatprep.subr.bf16.mxu0 0
      %5261 = vmatpush1.bf16.msra.mxu0 %v3231
      %5262 = vmatprep.subr.bf16.mxu0 0
      %5263 = vmatpush1.bf16.msra.mxu0 %v3232
      %5264 = vmatprep.subr.bf16.mxu0 0
      %5265 = vmatpush1.bf16.msra.mxu0 %v3233
      %5266 = vmatprep.subr.bf16.mxu0 0
      %5267 = vmatpush1.bf16.msra.mxu0 %v3234
      %5268 = vmatprep.subr.bf16.mxu0 0
      %5269 = vmatpush1.bf16.msra.mxu0 %v3235
      %5270 = vmatprep.mubr.bf16.mxu0 %v5185
      %5271 = vmatmul.mubr.bf16.gmra.mrb[0].mxu0 %v5184
      %v5272 = vpop.f32.mrb[0].mxu0
      %v5273 = vadd.f32 %v5233, %v5272
      %v5274 = vpop.f32.mrb[0].mxu0
      %v5275 = vpop.f32.mrb[0].mxu0
      %v5276 = vpop.f32.mrb[0].mxu0
      %5277 = vdwg.mxu0
      %5278 = vmatprep.subr.bf16.mxu0 0
      %5279 = vmatpush1.bf16.msra.mxu0 %v3236
      %5280 = vmatprep.subr.bf16.mxu0 0
      %5281 = vmatpush1.bf16.msra.mxu0 %v3237
      %5282 = vmatprep.subr.bf16.mxu0 0
      %5283 = vmatpush1.bf16.msra.mxu0 %v3238
      %5284 = vmatprep.subr.bf16.mxu0 0
      %5285 = vmatpush1.bf16.msra.mxu0 %v3239
      %5286 = vmatprep.subr.bf16.mxu0 0
      %5287 = vmatpush1.bf16.msra.mxu0 %v3240
      %5288 = vmatprep.subr.bf16.mxu0 0
      %5289 = vmatpush1.bf16.msra.mxu0 %v3241
      %5290 = vmatprep.subr.bf16.mxu0 0
      %5291 = vmatpush1.bf16.msra.mxu0 %v3242
      %5292 = vmatprep.subr.bf16.mxu0 0
      %5293 = vmatpush1.bf16.msra.mxu0 %v3243
      %5294 = vmatprep.subr.bf16.mxu0 0
      %5295 = vmatpush1.bf16.msra.mxu0 %v3244
      %5296 = vmatprep.subr.bf16.mxu0 0
      %5297 = vmatpush1.bf16.msra.mxu0 %v3245
      %5298 = vmatprep.subr.bf16.mxu0 0
      %5299 = vmatpush1.bf16.msra.mxu0 %v3246
      %5300 = vmatprep.subr.bf16.mxu0 0
      %5301 = vmatpush1.bf16.msra.mxu0 %v3247
      %5302 = vmatprep.subr.bf16.mxu0 0
      %5303 = vmatpush1.bf16.msra.mxu0 %v3248
      %5304 = vmatprep.subr.bf16.mxu0 0
      %5305 = vmatpush1.bf16.msra.mxu0 %v3249
      %5306 = vmatprep.subr.bf16.mxu0 0
      %5307 = vmatpush1.bf16.msra.mxu0 %v3250
      %5308 = vmatprep.subr.bf16.mxu0 0
      %5309 = vmatpush1.bf16.msra.mxu0 %v3251
      %5310 = vmatprep.mubr.bf16.mxu0 %v5187
      %5311 = vmatmul.mubr.bf16.gmra.mrb[0].mxu0 %v5186
      %v5312 = vpop.f32.mrb[0].mxu0
      %v5313 = vadd.f32 %v5273, %v5312
      %v5314 = vpop.f32.mrb[0].mxu0
      %v5315 = vpop.f32.mrb[0].mxu0
      %v5316 = vpop.f32.mrb[0].mxu0
      %5317 = vdwg.mxu0
      %5318 = vmatprep.subr.bf16.mxu0 0
      %5319 = vmatpush1.bf16.msra.mxu0 %v3252
      %5320 = vmatprep.subr.bf16.mxu0 0
      %5321 = vmatpush1.bf16.msra.mxu0 %v3253
      %5322 = vmatprep.subr.bf16.mxu0 0
      %5323 = vmatpush1.bf16.msra.mxu0 %v3254
      %5324 = vmatprep.subr.bf16.mxu0 0
      %5325 = vmatpush1.bf16.msra.mxu0 %v3255
      %5326 = vmatprep.subr.bf16.mxu0 0
      %5327 = vmatpush1.bf16.msra.mxu0 %v3256
      %5328 = vmatprep.subr.bf16.mxu0 0
      %5329 = vmatpush1.bf16.msra.mxu0 %v3257
      %5330 = vmatprep.subr.bf16.mxu0 0
      %5331 = vmatpush1.bf16.msra.mxu0 %v3258
      %5332 = vmatprep.subr.bf16.mxu0 0
      %5333 = vmatpush1.bf16.msra.mxu0 %v3259
      %5334 = vmatprep.subr.bf16.mxu0 0
      %5335 = vmatpush1.bf16.msra.mxu0 %v3260
      %5336 = vmatprep.subr.bf16.mxu0 0
      %5337 = vmatpush1.bf16.msra.mxu0 %v3261
      %5338 = vmatprep.subr.bf16.mxu0 0
      %5339 = vmatpush1.bf16.msra.mxu0 %v3262
      %5340 = vmatprep.subr.bf16.mxu0 0
      %5341 = vmatpush1.bf16.msra.mxu0 %v3263
      %5342 = vmatprep.subr.bf16.mxu0 0
      %5343 = vmatpush1.bf16.msra.mxu0 %v3264
      %5344 = vmatprep.subr.bf16.mxu0 0
      %5345 = vmatpush1.bf16.msra.mxu0 %v3265
      %5346 = vmatprep.subr.bf16.mxu0 0
      %5347 = vmatpush1.bf16.msra.mxu0 %v3266
      %5348 = vmatprep.subr.bf16.mxu0 0
      %5349 = vmatpush1.bf16.msra.mxu0 %v3267
      %5350 = vmatprep.mubr.bf16.mxu0 %v5189
      %5351 = vmatmul.mubr.bf16.gmra.mrb[0].mxu0 %v5188
      %v5352 = vpop.f32.mrb[0].mxu0
      %v5353 = vadd.f32 %v5313, %v5352
      %v5354 = vpop.f32.mrb[0].mxu0
      %v5355 = vpop.f32.mrb[0].mxu0
      %v5356 = vpop.f32.mrb[0].mxu0
      %5357 = vdwg.mxu0
      %5358 = vmatprep.subr.bf16.mxu0 0
      %5359 = vmatpush1.bf16.msra.mxu0 %v3268
      %5360 = vmatprep.subr.bf16.mxu0 0
      %5361 = vmatpush1.bf16.msra.mxu0 %v3269
      %5362 = vmatprep.subr.bf16.mxu0 0
      %5363 = vmatpush1.bf16.msra.mxu0 %v3270
      %5364 = vmatprep.subr.bf16.mxu0 0
      %5365 = vmatpush1.bf16.msra.mxu0 %v3271
      %5366 = vmatprep.subr.bf16.mxu0 0
      %5367 = vmatpush1.bf16.msra.mxu0 %v3272
      %5368 = vmatprep.subr.bf16.mxu0 0
      %5369 = vmatpush1.bf16.msra.mxu0 %v3273
      %5370 = vmatprep.subr.bf16.mxu0 0
      %5371 = vmatpush1.bf16.msra.mxu0 %v3274
      %5372 = vmatprep.subr.bf16.mxu0 0
      %5373 = vmatpush1.bf16.msra.mxu0 %v3275
      %5374 = vmatprep.subr.bf16.mxu0 0
      %5375 = vmatpush1.bf16.msra.mxu0 %v3276
      %5376 = vmatprep.subr.bf16.mxu0 0
      %5377 = vmatpush1.bf16.msra.mxu0 %v3277
      %5378 = vmatprep.subr.bf16.mxu0 0
      %5379 = vmatpush1.bf16.msra.mxu0 %v3278
      %5380 = vmatprep.subr.bf16.mxu0 0
      %5381 = vmatpush1.bf16.msra.mxu0 %v3279
      %5382 = vmatprep.subr.bf16.mxu0 0
      %5383 = vmatpush1.bf16.msra.mxu0 %v3280
      %5384 = vmatprep.subr.bf16.mxu0 0
      %5385 = vmatpush1.bf16.msra.mxu0 %v3281
      %5386 = vmatprep.subr.bf16.mxu0 0
      %5387 = vmatpush1.bf16.msra.mxu0 %v3282
      %5388 = vmatprep.subr.bf16.mxu0 0
      %5389 = vmatpush1.bf16.msra.mxu0 %v3283
      %5390 = vmatprep.mubr.bf16.mxu0 %v5191
      %5391 = vmatmul.mubr.bf16.gmra.mrb[0].mxu0 %v5190
      %v5392 = vpop.f32.mrb[0].mxu0
      %v5393 = vadd.f32 %v5353, %v5392
      %v5394 = vpop.f32.mrb[0].mxu0
      %v5395 = vpop.f32.mrb[0].mxu0
      %v5396 = vpop.f32.mrb[0].mxu0
      %5397 = vdwg.mxu0
      %5398 = vmatprep.subr.bf16.mxu0 0
      %5399 = vmatpush1.bf16.msra.mxu0 %v3284
      %5400 = vmatprep.subr.bf16.mxu0 0
      %5401 = vmatpush1.bf16.msra.mxu0 %v3285
      %5402 = vmatprep.subr.bf16.mxu0 0
      %5403 = vmatpush1.bf16.msra.mxu0 %v3286
      %5404 = vmatprep.subr.bf16.mxu0 0
      %5405 = vmatpush1.bf16.msra.mxu0 %v3287
      %5406 = vmatprep.subr.bf16.mxu0 0
      %5407 = vmatpush1.bf16.msra.mxu0 %v3288
      %5408 = vmatprep.subr.bf16.mxu0 0
      %5409 = vmatpush1.bf16.msra.mxu0 %v3289
      %5410 = vmatprep.subr.bf16.mxu0 0
      %5411 = vmatpush1.bf16.msra.mxu0 %v3290
      %5412 = vmatprep.subr.bf16.mxu0 0
      %5413 = vmatpush1.bf16.msra.mxu0 %v3291
      %5414 = vmatprep.subr.bf16.mxu0 0
      %5415 = vmatpush1.bf16.msra.mxu0 %v3292
      %5416 = vmatprep.subr.bf16.mxu0 0
      %5417 = vmatpush1.bf16.msra.mxu0 %v3293
      %5418 = vmatprep.subr.bf16.mxu0 0
      %5419 = vmatpush1.bf16.msra.mxu0 %v3294
      %5420 = vmatprep.subr.bf16.mxu0 0
      %5421 = vmatpush1.bf16.msra.mxu0 %v3295
      %5422 = vmatprep.subr.bf16.mxu0 0
      %5423 = vmatpush1.bf16.msra.mxu0 %v3296
      %5424 = vmatprep.subr.bf16.mxu0 0
      %5425 = vmatpush1.bf16.msra.mxu0 %v3297
      %5426 = vmatprep.subr.bf16.mxu0 0
      %5427 = vmatpush1.bf16.msra.mxu0 %v3298
      %5428 = vmatprep.subr.bf16.mxu0 0
      %5429 = vmatpush1.bf16.msra.mxu0 %v3299
      %5430 = vmatprep.mubr.bf16.mxu0 %v5193
      %5431 = vmatmul.mubr.bf16.gmra.mrb[0].mxu0 %v5192
      %v5432 = vpop.f32.mrb[0].mxu0
      %v5433 = vadd.f32 %v5393, %v5432
      %v5434 = vpop.f32.mrb[0].mxu0
      %v5435 = vpop.f32.mrb[0].mxu0
      %v5436 = vpop.f32.mrb[0].mxu0
      %5437 = vdwg.mxu0
      %5438 = vmatprep.subr.bf16.mxu0 0
      %5439 = vmatpush1.bf16.msra.mxu0 %v3300
      %5440 = vmatprep.subr.bf16.mxu0 0
      %5441 = vmatpush1.bf16.msra.mxu0 %v3301
      %5442 = vmatprep.subr.bf16.mxu0 0
      %5443 = vmatpush1.bf16.msra.mxu0 %v3302
      %5444 = vmatprep.subr.bf16.mxu0 0
      %5445 = vmatpush1.bf16.msra.mxu0 %v3303
      %5446 = vmatprep.subr.bf16.mxu0 0
      %5447 = vmatpush1.bf16.msra.mxu0 %v3304
      %5448 = vmatprep.subr.bf16.mxu0 0
      %5449 = vmatpush1.bf16.msra.mxu0 %v3305
      %5450 = vmatprep.subr.bf16.mxu0 0
      %5451 = vmatpush1.bf16.msra.mxu0 %v3306
      %5452 = vmatprep.subr.bf16.mxu0 0
      %5453 = vmatpush1.bf16.msra.mxu0 %v3307
      %5454 = vmatprep.subr.bf16.mxu0 0
      %5455 = vmatpush1.bf16.msra.mxu0 %v3308
      %5456 = vmatprep.subr.bf16.mxu0 0
      %5457 = vmatpush1.bf16.msra.mxu0 %v3309
      %5458 = vmatprep.subr.bf16.mxu0 0
      %5459 = vmatpush1.bf16.msra.mxu0 %v3310
      %5460 = vmatprep.subr.bf16.mxu0 0
      %5461 = vmatpush1.bf16.msra.mxu0 %v3311
      %5462 = vmatprep.subr.bf16.mxu0 0
      %5463 = vmatpush1.bf16.msra.mxu0 %v3312
      %5464 = vmatprep.subr.bf16.mxu0 0
      %5465 = vmatpush1.bf16.msra.mxu0 %v3313
      %5466 = vmatprep.subr.bf16.mxu0 0
      %5467 = vmatpush1.bf16.msra.mxu0 %v3314
      %5468 = vmatprep.subr.bf16.mxu0 0
      %5469 = vmatpush1.bf16.msra.mxu0 %v3315
      %5470 = vmatprep.mubr.bf16.mxu0 %v5195
      %5471 = vmatmul.mubr.bf16.gmra.mrb[0].mxu0 %v5194
      %v5472 = vpop.f32.mrb[0].mxu0
      %v5473 = vadd.f32 %v5433, %v5472
      %v5474 = vpop.f32.mrb[0].mxu0
      %v5475 = vpop.f32.mrb[0].mxu0
      %v5476 = vpop.f32.mrb[0].mxu0
      %5477 = vdwg.mxu0
      %5478 = vmatprep.subr.bf16.mxu0 0
      %5479 = vmatpush1.bf16.msra.mxu0 %v3316
      %5480 = vmatprep.subr.bf16.mxu0 0
      %5481 = vmatpush1.bf16.msra.mxu0 %v3317
      %5482 = vmatprep.subr.bf16.mxu0 0
      %5483 = vmatpush1.bf16.msra.mxu0 %v3318
      %5484 = vmatprep.subr.bf16.mxu0 0
      %5485 = vmatpush1.bf16.msra.mxu0 %v3319
      %5486 = vmatprep.subr.bf16.mxu0 0
      %5487 = vmatpush1.bf16.msra.mxu0 %v3320
      %5488 = vmatprep.subr.bf16.mxu0 0
      %5489 = vmatpush1.bf16.msra.mxu0 %v3321
      %5490 = vmatprep.subr.bf16.mxu0 0
      %5491 = vmatpush1.bf16.msra.mxu0 %v3322
      %5492 = vmatprep.subr.bf16.mxu0 0
      %5493 = vmatpush1.bf16.msra.mxu0 %v3323
      %5494 = vmatprep.subr.bf16.mxu0 0
      %5495 = vmatpush1.bf16.msra.mxu0 %v3324
      %5496 = vmatprep.subr.bf16.mxu0 0
      %5497 = vmatpush1.bf16.msra.mxu0 %v3325
      %5498 = vmatprep.subr.bf16.mxu0 0
      %5499 = vmatpush1.bf16.msra.mxu0 %v3326
      %5500 = vmatprep.subr.bf16.mxu0 0
      %5501 = vmatpush1.bf16.msra.mxu0 %v3327
      %5502 = vmatprep.subr.bf16.mxu0 0
      %5503 = vmatpush1.bf16.msra.mxu0 %v3328
      %5504 = vmatprep.subr.bf16.mxu0 0
      %5505 = vmatpush1.bf16.msra.mxu0 %v3329
      %5506 = vmatprep.subr.bf16.mxu0 0
      %5507 = vmatpush1.bf16.msra.mxu0 %v3330
      %5508 = vmatprep.subr.bf16.mxu0 0
      %5509 = vmatpush1.bf16.msra.mxu0 %v3331
      %5510 = vmatprep.mubr.bf16.mxu0 %v5197
      %5511 = vmatmul.mubr.bf16.gmra.mrb[0].mxu0 %v5196
      %v5512 = vpop.f32.mrb[0].mxu0
      %v5513 = vadd.f32 %v5473, %v5512
      %v5514 = vpop.f32.mrb[0].mxu0
      %v5515 = vpop.f32.mrb[0].mxu0
      %v5516 = vpop.f32.mrb[0].mxu0
      %5517 = vdwg.mxu0
      %v5518 = vadd.f32 %v4833, %v5513
      %v5519 = vsel %vm1891, %v5518, 0.0
      %5520 = vadd.xlane.f32.xlu0 %v5519
      %v5521 = vpop.xlane.xlu0 %5520
      %v5522 = vmul.f32 %v5521, %v1895
      %v5523 = vsub.f32 %v5518, %v5522
      %v5524 = vmul.f32 %v5523, %v5523
      %v5525 = vsel %vm1891, %v5524, 0.0
      %5526 = vadd.xlane.f32.xlu0 %v5525
      %v5527 = vpop.xlane.xlu0 %5526
      %v5528 = vmul.f32 %v5527, %v1895
      %v5529 = vadd.f32 %v5528, 1e-05
      %v5530 = vrsqrt.pop %v5529
      %v5531 = vmul.f32 %v5523, %v5530
      %v5532 = vmul.f32 %v5531, %v3798
      %v5533 = vadd.f32 %v5532, %v3805
      %s5534 = scalar_lea.vmem %s442, 4
      %5535 = vst.msk [vmem:[%s5534] sm:$0xf] %vm1891, %v5533
      %s5536 = smul.u32 2, %s24
      %p5537 = scmp.lt.s32.totalorder %s5536, 7
      %s5538 = scalar_select %p5537, %s5536, 7
      %s5539 = smul.addr %s5538, 4
      %s5540 = scalar_lea.vmem %s13, %s5539
      // Predicated region
      $region73: #{_forward_core.3} parent=71 // pred_check
        %p5541 = pneg %p320
      $region74: #{_forward_core.3} parent=71 // pred_check_branch
        %5543 = sbr.rel (%p5541) target = $region76
      $region75: #{_forward_core.3} parent=71 // pred_region
        %s5544 = smul.u32 2, %s24
      $region76: #{_forward_core.3} parent=71 // pred_fallthru
        _
    $region72: #{_forward_core.3} parent=5 // pred_fallthru
      _
    %p5545 = scmp.le.s32.totalorder 2, %s19
    // Predicated region
    $region77: #{_forward_core.3} parent=5 // pred_check
      %p5546 = pneg %p5545
    $region78: #{_forward_core.3} parent=5 // pred_check_branch
      %5548 = sbr.rel (%p5546) target = $region80
    $region79: #{_forward_core.3} parent=5 // pred_region
      %s5549 = ssub.s32 %s19, 2
      // Predicated region
      $region81: #{_forward_core.3} parent=79 // pred_check
        %p5550 = pneg %p326
      $region82: #{_forward_core.3} parent=79 // pred_check_branch
        %5552 = sbr.rel (%p5550) target = $region84
      $region83: #{_forward_core.3} parent=79 // pred_region
        %s5553 = smul.u32 2, %s25
        %p5554 = scmp.lt.s32.totalorder %s5553, 7
        %s5555 = scalar_select %p5554, %s5553, 7
        %s5556 = smul.addr %s5555, 4
        %s5557 = scalar_lea.vmem %s13, %s5556
      $region84: #{_forward_core.3} parent=79 // pred_fallthru
        _
    $region80: #{_forward_core.3} parent=5 // pred_fallthru
      _
  $region6: #{_forward_core.3} parent=0 // loop_footer
    %s23 = sadd.s32 1, %s19
  $region7: #{_forward_core.3} parent=0 // loop_footer_branch
    %18 = sbr.rel target = $region3
  $region8: #{_forward_core.3} parent=0 // loop_exit
    _

</llo_original>
